<compile_context>
chip_gen: v5e
topology: v5e:2x2
jax: 0.10.0
libtpu: 0.0.40
codegen_flags: <defaults>
</compile_context>

<pallas_src>
import jax
import jax.numpy as jnp
from jax.experimental import pallas as pl
from jax.experimental.pallas import tpu as pltpu

LANE = 128      # channel (lane) dim is padded to a multiple of this
_W_HALO = 8     # left/right halo width in the padded scratch; 8 keeps the
                # interior stores sublane-aligned (only column _W_HALO-1 and
                # column _W_HALO+W are actually read as the conv halo)


def _round_up(x, m):
    return (x + m - 1) // m * m


# ---------------------------------------------------------------------------
# Fused Pallas kernel: conv1+bn1+relu -> conv2+bn2 -> +residual -> relu
# ---------------------------------------------------------------------------
def _basic_block_kernel(x_ref, w1_ref, w2_ref, s1_ref, b1_ref, s2_ref, b2_ref,
                        o_ref, xp_ref):
    """Full BasicBlock forward for a (Nb, H, W, Cp) activation block.

    x_ref : (Nb, H, W, Cp) f32    input tile (also the residual)
    w*_ref: (9*Cp, Cp)      bf16  conv weights, im2col-flattened [(kh,kw,ci), co]
    s*/b* : (1, Cp)         f32   folded BN scale / bias (zero on padded lanes)
    o_ref : (Nb, H, W, Cp)  f32
    xp_ref: (H+2, W+16, Cp) bf16  VMEM scratch: zero-haloed conv input, reused
                                  for both convs and all batch rows; the
                                  intermediate activation never touches HBM.
    """
    Nb, H, W, Cp = x_ref.shape
    HW = H * W

    # Zero ONLY the halo border strips (the interior is fully overwritten by
    # the very next store). Side strips are 8 sublanes wide and 8-aligned, so
    # these are unmasked full-tile stores. Re-done every grid step so the
    # kernel stays correct under megacore grid partitioning (per-core scratch).
    zside = jnp.zeros((H + 2, _W_HALO, Cp), xp_ref.dtype)
    xp_ref[:, 0:_W_HALO, :] = zside
    xp_ref[:, _W_HALO + W:2 * _W_HALO + W, :] = zside
    zrow = jnp.zeros((1, W, Cp), xp_ref.dtype)
    xp_ref[0:1, _W_HALO:_W_HALO + W, :] = zrow
    xp_ref[H + 1:H + 2, _W_HALO:_W_HALO + W, :] = zrow

    w1 = w1_ref[...]                       # (9*Cp, Cp) bf16, resident across Nb
    w2 = w2_ref[...]
    s1, b1 = s1_ref[...], b1_ref[...]      # (1, Cp) f32
    s2, b2 = s2_ref[...], b2_ref[...]

    def conv3x3(w2d):
        # im2col: one (HW, 9*Cp) x (9*Cp, Cp) bf16 contraction per conv
        # (f32 accumulate) instead of 9 tiny K=C matmuls + 8 VALU adds.
        cols = []
        for kh in range(3):
            for kw in range(3):
                cols.append(
                    xp_ref[kh:kh + H,
                           _W_HALO - 1 + kw:_W_HALO - 1 + kw + W, :]
                    .reshape(HW, Cp))
        patch = jnp.concatenate(cols, axis=1)          # (HW, 9*Cp) bf16
        return jnp.dot(patch, w2d, preferred_element_type=jnp.float32)

    # Static unroll over the batch rows of this block (Nb kept small by the
    # wrapper); weights / BN params stay resident across all of them.
    for n in range(Nb):
        x = x_ref[n]                                   # (H, W, Cp) f32

        # conv1 -> bn1 -> relu       (intermediate stays in VMEM, bf16)
        xp_ref[1:H + 1, _W_HALO:_W_HALO + W, :] = x.astype(xp_ref.dtype)
        y = conv3x3(w1)
        y = jnp.maximum(y * s1 + b1, 0.0)

        # conv2 -> bn2 -> +residual -> relu   (residual add kept in f32)
        xp_ref[1:H + 1, _W_HALO:_W_HALO + W, :] = (
            y.reshape(H, W, Cp).astype(xp_ref.dtype))
        y = conv3x3(w2)
        y = y * s2 + b2
        y = jnp.maximum(y + x.reshape(HW, Cp), 0.0)

        o_ref[n] = y.reshape(H, W, Cp).astype(o_ref.dtype)


# ---------------------------------------------------------------------------
# Wrappers
# ---------------------------------------------------------------------------
def _fold_bn(gamma, beta, mean, var, eps=1e-5):
    scale = gamma / jnp.sqrt(var + eps)
    bias = beta - mean * scale
    return scale.reshape(1, -1), bias.reshape(1, -1)


def _prep_weight(w_hwio, C, Cp):
    """(3,3,C,C) HWIO f32 -> (9*Cp, Cp) bf16, zero-padded channels, row order
    (kh, kw, ci) matching the in-kernel im2col patch."""
    w = jnp.pad(w_hwio, ((0, 0), (0, 0), (0, Cp - C), (0, Cp - C)))
    return w.reshape(9 * Cp, Cp).astype(jnp.bfloat16)


def _pad_lanes(v, Cp):
    return jnp.pad(v, ((0, 0), (0, Cp - v.shape[-1])))


def basic_block_forward_nhwc(x_nhwc, params):
    """(N, H, W, C) -> (N, H, W, C); single fused pallas_call for the block."""
    N, H, W, C = x_nhwc.shape
    Cp = _round_up(C, LANE)

    # Largest batch sub-block <= 8 that divides N (amortizes per-step overhead,
    # keeps weights resident across more compute).
    Nb = 1
    for cand in range(min(N, 8), 0, -1):
        if N % cand == 0:
            Nb = cand
            break

    s1, b1 = _fold_bn(params["bn1_gamma"], params["bn1_beta"],
                      params["bn1_mean"], params["bn1_var"])
    s2, b2 = _fold_bn(params["bn2_gamma"], params["bn2_beta"],
                      params["bn2_mean"], params["bn2_var"])
    s1, b1, s2, b2 = (_pad_lanes(v, Cp) for v in (s1, b1, s2, b2))

    w1 = _prep_weight(params["w1_hwio"], C, Cp)
    w2 = _prep_weight(params["w2_hwio"], C, Cp)

    # Lane-dense activations: zero-pad channels to Cp (a real block stack would
    # keep this padded layout end-to-end).
    x_p = jnp.pad(x_nhwc, ((0, 0), (0, 0), (0, 0), (0, Cp - C)))

    flops = 2 * (2 * N * H * W * (9 * Cp) * Cp)           # two convs
    bytes_accessed = ((x_p.size + N * H * W * Cp) * 4     # x in, out
                      + 2 * 9 * Cp * Cp * 2               # bf16 weights
                      + 4 * Cp * 4)                       # BN scale/bias

    out_p = pl.pallas_call(
        _basic_block_kernel,
        out_shape=jax.ShapeDtypeStruct((N, H, W, Cp), x_nhwc.dtype),
        grid=(N // Nb,),
        in_specs=[
            pl.BlockSpec((Nb, H, W, Cp), lambda i: (i, 0, 0, 0)),  # x / residual
            pl.BlockSpec((9 * Cp, Cp), lambda i: (0, 0)),          # w1 (im2col)
            pl.BlockSpec((9 * Cp, Cp), lambda i: (0, 0)),          # w2 (im2col)
            pl.BlockSpec((1, Cp), lambda i: (0, 0)),               # bn1 scale
            pl.BlockSpec((1, Cp), lambda i: (0, 0)),               # bn1 bias
            pl.BlockSpec((1, Cp), lambda i: (0, 0)),               # bn2 scale
            pl.BlockSpec((1, Cp), lambda i: (0, 0)),               # bn2 bias
        ],
        out_specs=pl.BlockSpec((Nb, H, W, Cp), lambda i: (i, 0, 0, 0)),
        scratch_shapes=[pltpu.VMEM((H + 2, W + 2 * _W_HALO, Cp), jnp.bfloat16)],
        compiler_params=pltpu.CompilerParams(
            dimension_semantics=("parallel",),
            vmem_limit_bytes=48 * 1024 * 1024),
        cost_estimate=pl.CostEstimate(
            flops=flops, transcendentals=0, bytes_accessed=bytes_accessed),
    )(x_p, w1, w2, s1, b1, s2, b2)

    return out_p[..., :C]


def basic_block_forward(x_nchw, params):
    """NCHW interface matching the PyTorch module (transpose only at boundary)."""
    x = jnp.transpose(x_nchw, (0, 2, 3, 1))          # NCHW -> NHWC
    out = basic_block_forward_nhwc(x, params)
    return jnp.transpose(out, (0, 3, 1, 2))          # NHWC -> NCHW


# ---------------------------------------------------------------------------
# Matching-precision pure-JAX reference (bf16 conv operands, f32 accumulation
# and f32 BN / ReLU / residual epilogues — same numerics as the kernel).
# ---------------------------------------------------------------------------
def _reference_forward(x_nchw, params):
    x = jnp.transpose(x_nchw, (0, 2, 3, 1))

    def conv(a, w):
        return jax.lax.conv_general_dilated(
            a.astype(jnp.bfloat16), w.astype(jnp.bfloat16),
            window_strides=(1, 1), padding="SAME",
            dimension_numbers=("NHWC", "HWIO", "NHWC"),
            preferred_element_type=jnp.float32)

    s1, b1 = _fold_bn(params["bn1_gamma"], params["bn1_beta"],
                      params["bn1_mean"], params["bn1_var"])
    s2, b2 = _fold_bn(params["bn2_gamma"], params["bn2_beta"],
                      params["bn2_mean"], params["bn2_var"])

    out = jnp.maximum(conv(x, params["w1_hwio"]) * s1 + b1, 0.0)
    out = conv(out, params["w2_hwio"]) * s2 + b2
    out = jnp.maximum(out + x, 0.0)
    return jnp.transpose(out, (0, 3, 1, 2))


# ---------------------------------------------------------------------------
# Main
# ---------------------------------------------------------------------------
if __name__ == "__main__":
    N, C, H, W = 2, 4, 16, 16          # inplanes = planes = 4, stride = 1
    key = jax.random.PRNGKey(0)
    ks = jax.random.split(key, 11)

    x = jax.random.normal(ks[0], (N, C, H, W), jnp.float32)

    # PyTorch conv weights are OIHW (planes, inplanes, 3, 3); convert to HWIO.
    w1_oihw = 0.2 * jax.random.normal(ks[1], (C, C, 3, 3), jnp.float32)
    w2_oihw = 0.2 * jax.random.normal(ks[2], (C, C, 3, 3), jnp.float32)

    params = {
        "w1_hwio": jnp.transpose(w1_oihw, (2, 3, 1, 0)),
        "w2_hwio": jnp.transpose(w2_oihw, (2, 3, 1, 0)),
        "bn1_gamma": 1.0 + 0.1 * jax.random.normal(ks[3], (C,), jnp.float32),
        "bn1_beta": 0.1 * jax.random.normal(ks[4], (C,), jnp.float32),
        "bn1_mean": 0.1 * jax.random.normal(ks[5], (C,), jnp.float32),
        "bn1_var": 0.5 + jnp.abs(jax.random.normal(ks[6], (C,), jnp.float32)),
        "bn2_gamma": 1.0 + 0.1 * jax.random.normal(ks[7], (C,), jnp.float32),
        "bn2_beta": 0.1 * jax.random.normal(ks[8], (C,), jnp.float32),
        "bn2_mean": 0.1 * jax.random.normal(ks[9], (C,), jnp.float32),
        "bn2_var": 0.5 + jnp.abs(jax.random.normal(ks[10], (C,), jnp.float32)),
    }

    out = jax.jit(basic_block_forward)(x, params)
    out = jax.block_until_ready(out)

    ref = jax.block_until_ready(_reference_forward(x, params))
    assert out.shape == (N, C, H, W)
    # bf16 MXU operands -> compare against the matching-precision reference.
    assert jnp.allclose(out, ref, atol=2e-2, rtol=2e-2), (
        float(jnp.max(jnp.abs(out - ref))))

    print("KERNEL_OK")
</pallas_src>

<mosaic_0001>
module attributes {stable_mosaic.version = 11 : i64} {
  func.func @_basic_block_kernel(%arg0: i32, %arg1: memref<2x16x16x128xf32, #tpu.memory_space<vmem>>, %arg2: memref<1152x128xbf16, #tpu.memory_space<vmem>>, %arg3: memref<1152x128xbf16, #tpu.memory_space<vmem>>, %arg4: memref<1x128xf32, #tpu.memory_space<vmem>>, %arg5: memref<1x128xf32, #tpu.memory_space<vmem>>, %arg6: memref<1x128xf32, #tpu.memory_space<vmem>>, %arg7: memref<1x128xf32, #tpu.memory_space<vmem>>, %arg8: memref<2x16x16x128xf32, #tpu.memory_space<vmem>>, %arg9: memref<18x32x128xbf16, #tpu.memory_space<vmem>>) attributes {dimension_semantics = [#tpu.dimension_semantics<parallel>], iteration_bounds = array<i64: 1>, scalar_prefetch = 0 : i64, scratch_operands = 1 : i64, tpu.core_type = #tpu.core_type<tc>, window_params = [{transform_indices = @transform_0, window_bounds = array<i64: 2, 16, 16, 128>}, {pipeline_mode = #tpu.pipeline_mode<synchronous>, transform_indices = @transform_1, window_bounds = array<i64: 1152, 128>}, {pipeline_mode = #tpu.pipeline_mode<synchronous>, transform_indices = @transform_2, window_bounds = array<i64: 1152, 128>}, {pipeline_mode = #tpu.pipeline_mode<synchronous>, transform_indices = @transform_3, window_bounds = array<i64: 1, 128>}, {pipeline_mode = #tpu.pipeline_mode<synchronous>, transform_indices = @transform_4, window_bounds = array<i64: 1, 128>}, {pipeline_mode = #tpu.pipeline_mode<synchronous>, transform_indices = @transform_5, window_bounds = array<i64: 1, 128>}, {pipeline_mode = #tpu.pipeline_mode<synchronous>, transform_indices = @transform_6, window_bounds = array<i64: 1, 128>}, {transform_indices = @transform_7, window_bounds = array<i64: 2, 16, 16, 128>}]} {
    %cst = arith.constant 0.000000e+00 : bf16
    %0 = vector.broadcast %cst : bf16 to vector<18x8x128xbf16>
    %c0 = arith.constant 0 : index
    %c0_0 = arith.constant 0 : index
    %c0_1 = arith.constant 0 : index
    %1 = vector.load %arg9[%c0, %c0_0, %c0_1] : memref<18x32x128xbf16, #tpu.memory_space<vmem>>, vector<18x8x128xbf16>
    tpu.vector_store %arg9[%c0, %c0_0, %c0_1], %0 {strides = array<i32>} : memref<18x32x128xbf16, #tpu.memory_space<vmem>>, vector<18x8x128xbf16>,
    %c0_2 = arith.constant 0 : index
    %c24 = arith.constant 24 : index
    %c0_3 = arith.constant 0 : index
    %2 = vector.load %arg9[%c0_2, %c24, %c0_3] : memref<18x32x128xbf16, #tpu.memory_space<vmem>>, vector<18x8x128xbf16>
    tpu.vector_store %arg9[%c0_2, %c24, %c0_3], %0 {strides = array<i32>} : memref<18x32x128xbf16, #tpu.memory_space<vmem>>, vector<18x8x128xbf16>,
    %cst_4 = arith.constant 0.000000e+00 : bf16
    %3 = vector.broadcast %cst_4 : bf16 to vector<1x16x128xbf16>
    %c0_5 = arith.constant 0 : index
    %c8 = arith.constant 8 : index
    %c0_6 = arith.constant 0 : index
    %4 = vector.load %arg9[%c0_5, %c8, %c0_6] : memref<18x32x128xbf16, #tpu.memory_space<vmem>>, vector<1x16x128xbf16>
    tpu.vector_store %arg9[%c0_5, %c8, %c0_6], %3 {strides = array<i32>} : memref<18x32x128xbf16, #tpu.memory_space<vmem>>, vector<1x16x128xbf16>,
    %c17 = arith.constant 17 : index
    %c8_7 = arith.constant 8 : index
    %c0_8 = arith.constant 0 : index
    %5 = vector.load %arg9[%c17, %c8_7, %c0_8] : memref<18x32x128xbf16, #tpu.memory_space<vmem>>, vector<1x16x128xbf16>
    tpu.vector_store %arg9[%c17, %c8_7, %c0_8], %3 {strides = array<i32>} : memref<18x32x128xbf16, #tpu.memory_space<vmem>>, vector<1x16x128xbf16>,
    %c0_9 = arith.constant 0 : index
    %c0_10 = arith.constant 0 : index
    %6 = vector.load %arg2[%c0_9, %c0_10] : memref<1152x128xbf16, #tpu.memory_space<vmem>>, vector<1152x128xbf16>
    %c0_11 = arith.constant 0 : index
    %c0_12 = arith.constant 0 : index
    %7 = vector.load %arg3[%c0_11, %c0_12] : memref<1152x128xbf16, #tpu.memory_space<vmem>>, vector<1152x128xbf16>
    %c0_13 = arith.constant 0 : index
    %c0_14 = arith.constant 0 : index
    %8 = vector.load %arg4[%c0_13, %c0_14] : memref<1x128xf32, #tpu.memory_space<vmem>>, vector<1x128xf32>
    %c0_15 = arith.constant 0 : index
    %c0_16 = arith.constant 0 : index
    %9 = vector.load %arg5[%c0_15, %c0_16] : memref<1x128xf32, #tpu.memory_space<vmem>>, vector<1x128xf32>
    %c0_17 = arith.constant 0 : index
    %c0_18 = arith.constant 0 : index
    %10 = vector.load %arg6[%c0_17, %c0_18] : memref<1x128xf32, #tpu.memory_space<vmem>>, vector<1x128xf32>
    %c0_19 = arith.constant 0 : index
    %c0_20 = arith.constant 0 : index
    %11 = vector.load %arg7[%c0_19, %c0_20] : memref<1x128xf32, #tpu.memory_space<vmem>>, vector<1x128xf32>
    %c0_21 = arith.constant 0 : index
    %c0_22 = arith.constant 0 : index
    %c0_23 = arith.constant 0 : index
    %c0_24 = arith.constant 0 : index
    %12 = vector.load %arg1[%c0_21, %c0_22, %c0_23, %c0_24] : memref<2x16x16x128xf32, #tpu.memory_space<vmem>>, vector<1x16x16x128xf32>
    %13 = vector.shape_cast %12 : vector<1x16x16x128xf32> to vector<16x16x128xf32>
    %14 = arith.truncf %13 : vector<16x16x128xf32> to vector<16x16x128xbf16>
    %c1 = arith.constant 1 : index
    %c8_25 = arith.constant 8 : index
    %c0_26 = arith.constant 0 : index
    %15 = vector.load %arg9[%c1, %c8_25, %c0_26] : memref<18x32x128xbf16, #tpu.memory_space<vmem>>, vector<16x16x128xbf16>
    tpu.vector_store %arg9[%c1, %c8_25, %c0_26], %14 {strides = array<i32>} : memref<18x32x128xbf16, #tpu.memory_space<vmem>>, vector<16x16x128xbf16>,
    %c0_27 = arith.constant 0 : index
    %c7 = arith.constant 7 : index
    %c0_28 = arith.constant 0 : index
    %16 = vector.load %arg9[%c0_27, %c7, %c0_28] : memref<18x32x128xbf16, #tpu.memory_space<vmem>>, vector<16x16x128xbf16>
    %17 = vector.shape_cast %16 : vector<16x16x128xbf16> to vector<256x128xbf16>
    %c0_29 = arith.constant 0 : index
    %c8_30 = arith.constant 8 : index
    %c0_31 = arith.constant 0 : index
    %18 = vector.load %arg9[%c0_29, %c8_30, %c0_31] : memref<18x32x128xbf16, #tpu.memory_space<vmem>>, vector<16x16x128xbf16>
    %19 = vector.shape_cast %18 : vector<16x16x128xbf16> to vector<256x128xbf16>
    %c0_32 = arith.constant 0 : index
    %c9 = arith.constant 9 : index
    %c0_33 = arith.constant 0 : index
    %20 = vector.load %arg9[%c0_32, %c9, %c0_33] : memref<18x32x128xbf16, #tpu.memory_space<vmem>>, vector<16x16x128xbf16>
    %21 = vector.shape_cast %20 : vector<16x16x128xbf16> to vector<256x128xbf16>
    %c1_34 = arith.constant 1 : index
    %c7_35 = arith.constant 7 : index
    %c0_36 = arith.constant 0 : index
    %22 = vector.load %arg9[%c1_34, %c7_35, %c0_36] : memref<18x32x128xbf16, #tpu.memory_space<vmem>>, vector<16x16x128xbf16>
    %23 = vector.shape_cast %22 : vector<16x16x128xbf16> to vector<256x128xbf16>
    %c1_37 = arith.constant 1 : index
    %c8_38 = arith.constant 8 : index
    %c0_39 = arith.constant 0 : index
    %24 = vector.load %arg9[%c1_37, %c8_38, %c0_39] : memref<18x32x128xbf16, #tpu.memory_space<vmem>>, vector<16x16x128xbf16>
    %25 = vector.shape_cast %24 : vector<16x16x128xbf16> to vector<256x128xbf16>
    %c1_40 = arith.constant 1 : index
    %c9_41 = arith.constant 9 : index
    %c0_42 = arith.constant 0 : index
    %26 = vector.load %arg9[%c1_40, %c9_41, %c0_42] : memref<18x32x128xbf16, #tpu.memory_space<vmem>>, vector<16x16x128xbf16>
    %27 = vector.shape_cast %26 : vector<16x16x128xbf16> to vector<256x128xbf16>
    %c2 = arith.constant 2 : index
    %c7_43 = arith.constant 7 : index
    %c0_44 = arith.constant 0 : index
    %28 = vector.load %arg9[%c2, %c7_43, %c0_44] : memref<18x32x128xbf16, #tpu.memory_space<vmem>>, vector<16x16x128xbf16>
    %29 = vector.shape_cast %28 : vector<16x16x128xbf16> to vector<256x128xbf16>
    %c2_45 = arith.constant 2 : index
    %c8_46 = arith.constant 8 : index
    %c0_47 = arith.constant 0 : index
    %30 = vector.load %arg9[%c2_45, %c8_46, %c0_47] : memref<18x32x128xbf16, #tpu.memory_space<vmem>>, vector<16x16x128xbf16>
    %31 = vector.shape_cast %30 : vector<16x16x128xbf16> to vector<256x128xbf16>
    %c2_48 = arith.constant 2 : index
    %c9_49 = arith.constant 9 : index
    %c0_50 = arith.constant 0 : index
    %32 = vector.load %arg9[%c2_48, %c9_49, %c0_50] : memref<18x32x128xbf16, #tpu.memory_space<vmem>>, vector<16x16x128xbf16>
    %33 = vector.shape_cast %32 : vector<16x16x128xbf16> to vector<256x128xbf16>
    %34 = tpu.concatenate %17, %19, %21, %23, %25, %27, %29, %31, %33 in 1 : vector<256x128xbf16>, vector<256x128xbf16>, vector<256x128xbf16>, vector<256x128xbf16>, vector<256x128xbf16>, vector<256x128xbf16>, vector<256x128xbf16>, vector<256x128xbf16>, vector<256x128xbf16> -> vector<256x1152xbf16>
    %cst_51 = arith.constant dense<0.000000e+00> : vector<256x128xf32>
    %35 = tpu.matmul %34, %6, %cst_51 {dimension_numbers = #tpu.dot_dimension_numbers<[1], [0], [0], [1], [0, 0, 1, 1], [], []>} : vector<256x1152xbf16>, vector<1152x128xbf16>, vector<256x128xf32> -> vector<256x128xf32>
    %36 = vector.broadcast %8 : vector<1x128xf32> to vector<256x128xf32>
    %37 = arith.mulf %35, %36 : vector<256x128xf32>
    %38 = vector.broadcast %9 : vector<1x128xf32> to vector<256x128xf32>
    %39 = arith.addf %37, %38 : vector<256x128xf32>
    %cst_52 = arith.constant 0.000000e+00 : f32
    %40 = vector.broadcast %cst_52 : f32 to vector<256x128xf32>
    %41 = arith.maximumf %39, %40 : vector<256x128xf32>
    %42 = vector.shape_cast %41 : vector<256x128xf32> to vector<16x16x128xf32>
    %43 = arith.truncf %42 : vector<16x16x128xf32> to vector<16x16x128xbf16>
    %c1_53 = arith.constant 1 : index
    %c8_54 = arith.constant 8 : index
    %c0_55 = arith.constant 0 : index
    %44 = vector.load %arg9[%c1_53, %c8_54, %c0_55] : memref<18x32x128xbf16, #tpu.memory_space<vmem>>, vector<16x16x128xbf16>
    tpu.vector_store %arg9[%c1_53, %c8_54, %c0_55], %43 {strides = array<i32>} : memref<18x32x128xbf16, #tpu.memory_space<vmem>>, vector<16x16x128xbf16>,
    %c0_56 = arith.constant 0 : index
    %c7_57 = arith.constant 7 : index
    %c0_58 = arith.constant 0 : index
    %45 = vector.load %arg9[%c0_56, %c7_57, %c0_58] : memref<18x32x128xbf16, #tpu.memory_space<vmem>>, vector<16x16x128xbf16>
    %46 = vector.shape_cast %45 : vector<16x16x128xbf16> to vector<256x128xbf16>
    %c0_59 = arith.constant 0 : index
    %c8_60 = arith.constant 8 : index
    %c0_61 = arith.constant 0 : index
    %47 = vector.load %arg9[%c0_59, %c8_60, %c0_61] : memref<18x32x128xbf16, #tpu.memory_space<vmem>>, vector<16x16x128xbf16>
    %48 = vector.shape_cast %47 : vector<16x16x128xbf16> to vector<256x128xbf16>
    %c0_62 = arith.constant 0 : index
    %c9_63 = arith.constant 9 : index
    %c0_64 = arith.constant 0 : index
    %49 = vector.load %arg9[%c0_62, %c9_63, %c0_64] : memref<18x32x128xbf16, #tpu.memory_space<vmem>>, vector<16x16x128xbf16>
    %50 = vector.shape_cast %49 : vector<16x16x128xbf16> to vector<256x128xbf16>
    %c1_65 = arith.constant 1 : index
    %c7_66 = arith.constant 7 : index
    %c0_67 = arith.constant 0 : index
    %51 = vector.load %arg9[%c1_65, %c7_66, %c0_67] : memref<18x32x128xbf16, #tpu.memory_space<vmem>>, vector<16x16x128xbf16>
    %52 = vector.shape_cast %51 : vector<16x16x128xbf16> to vector<256x128xbf16>
    %c1_68 = arith.constant 1 : index
    %c8_69 = arith.constant 8 : index
    %c0_70 = arith.constant 0 : index
    %53 = vector.load %arg9[%c1_68, %c8_69, %c0_70] : memref<18x32x128xbf16, #tpu.memory_space<vmem>>, vector<16x16x128xbf16>
    %54 = vector.shape_cast %53 : vector<16x16x128xbf16> to vector<256x128xbf16>
    %c1_71 = arith.constant 1 : index
    %c9_72 = arith.constant 9 : index
    %c0_73 = arith.constant 0 : index
    %55 = vector.load %arg9[%c1_71, %c9_72, %c0_73] : memref<18x32x128xbf16, #tpu.memory_space<vmem>>, vector<16x16x128xbf16>
    %56 = vector.shape_cast %55 : vector<16x16x128xbf16> to vector<256x128xbf16>
    %c2_74 = arith.constant 2 : index
    %c7_75 = arith.constant 7 : index
    %c0_76 = arith.constant 0 : index
    %57 = vector.load %arg9[%c2_74, %c7_75, %c0_76] : memref<18x32x128xbf16, #tpu.memory_space<vmem>>, vector<16x16x128xbf16>
    %58 = vector.shape_cast %57 : vector<16x16x128xbf16> to vector<256x128xbf16>
    %c2_77 = arith.constant 2 : index
    %c8_78 = arith.constant 8 : index
    %c0_79 = arith.constant 0 : index
    %59 = vector.load %arg9[%c2_77, %c8_78, %c0_79] : memref<18x32x128xbf16, #tpu.memory_space<vmem>>, vector<16x16x128xbf16>
    %60 = vector.shape_cast %59 : vector<16x16x128xbf16> to vector<256x128xbf16>
    %c2_80 = arith.constant 2 : index
    %c9_81 = arith.constant 9 : index
    %c0_82 = arith.constant 0 : index
    %61 = vector.load %arg9[%c2_80, %c9_81, %c0_82] : memref<18x32x128xbf16, #tpu.memory_space<vmem>>, vector<16x16x128xbf16>
    %62 = vector.shape_cast %61 : vector<16x16x128xbf16> to vector<256x128xbf16>
    %63 = tpu.concatenate %46, %48, %50, %52, %54, %56, %58, %60, %62 in 1 : vector<256x128xbf16>, vector<256x128xbf16>, vector<256x128xbf16>, vector<256x128xbf16>, vector<256x128xbf16>, vector<256x128xbf16>, vector<256x128xbf16>, vector<256x128xbf16>, vector<256x128xbf16> -> vector<256x1152xbf16>
    %cst_83 = arith.constant dense<0.000000e+00> : vector<256x128xf32>
    %64 = tpu.matmul %63, %7, %cst_83 {dimension_numbers = #tpu.dot_dimension_numbers<[1], [0], [0], [1], [0, 0, 1, 1], [], []>} : vector<256x1152xbf16>, vector<1152x128xbf16>, vector<256x128xf32> -> vector<256x128xf32>
    %65 = vector.broadcast %10 : vector<1x128xf32> to vector<256x128xf32>
    %66 = arith.mulf %64, %65 : vector<256x128xf32>
    %67 = vector.broadcast %11 : vector<1x128xf32> to vector<256x128xf32>
    %68 = arith.addf %66, %67 : vector<256x128xf32>
    %69 = vector.shape_cast %13 : vector<16x16x128xf32> to vector<256x128xf32>
    %70 = arith.addf %68, %69 : vector<256x128xf32>
    %cst_84 = arith.constant 0.000000e+00 : f32
    %71 = vector.broadcast %cst_84 : f32 to vector<256x128xf32>
    %72 = arith.maximumf %70, %71 : vector<256x128xf32>
    %73 = vector.shape_cast %72 : vector<256x128xf32> to vector<16x16x128xf32>
    %c0_85 = arith.constant 0 : index
    %c0_86 = arith.constant 0 : index
    %c0_87 = arith.constant 0 : index
    %c0_88 = arith.constant 0 : index
    %74 = vector.load %arg8[%c0_85, %c0_86, %c0_87, %c0_88] : memref<2x16x16x128xf32, #tpu.memory_space<vmem>>, vector<1x16x16x128xf32>
    %75 = vector.shape_cast %74 : vector<1x16x16x128xf32> to vector<16x16x128xf32>
    %76 = vector.shape_cast %73 : vector<16x16x128xf32> to vector<1x16x16x128xf32>
    tpu.vector_store %arg8[%c0_85, %c0_86, %c0_87, %c0_88], %76 {strides = array<i32>} : memref<2x16x16x128xf32, #tpu.memory_space<vmem>>, vector<1x16x16x128xf32>,
    %c1_89 = arith.constant 1 : index
    %c0_90 = arith.constant 0 : index
    %c0_91 = arith.constant 0 : index
    %c0_92 = arith.constant 0 : index
    %77 = vector.load %arg1[%c1_89, %c0_90, %c0_91, %c0_92] : memref<2x16x16x128xf32, #tpu.memory_space<vmem>>, vector<1x16x16x128xf32>
    %78 = vector.shape_cast %77 : vector<1x16x16x128xf32> to vector<16x16x128xf32>
    %79 = arith.truncf %78 : vector<16x16x128xf32> to vector<16x16x128xbf16>
    %c1_93 = arith.constant 1 : index
    %c8_94 = arith.constant 8 : index
    %c0_95 = arith.constant 0 : index
    %80 = vector.load %arg9[%c1_93, %c8_94, %c0_95] : memref<18x32x128xbf16, #tpu.memory_space<vmem>>, vector<16x16x128xbf16>
    tpu.vector_store %arg9[%c1_93, %c8_94, %c0_95], %79 {strides = array<i32>} : memref<18x32x128xbf16, #tpu.memory_space<vmem>>, vector<16x16x128xbf16>,
    %c0_96 = arith.constant 0 : index
    %c7_97 = arith.constant 7 : index
    %c0_98 = arith.constant 0 : index
    %81 = vector.load %arg9[%c0_96, %c7_97, %c0_98] : memref<18x32x128xbf16, #tpu.memory_space<vmem>>, vector<16x16x128xbf16>
    %82 = vector.shape_cast %81 : vector<16x16x128xbf16> to vector<256x128xbf16>
    %c0_99 = arith.constant 0 : index
    %c8_100 = arith.constant 8 : index
    %c0_101 = arith.constant 0 : index
    %83 = vector.load %arg9[%c0_99, %c8_100, %c0_101] : memref<18x32x128xbf16, #tpu.memory_space<vmem>>, vector<16x16x128xbf16>
    %84 = vector.shape_cast %83 : vector<16x16x128xbf16> to vector<256x128xbf16>
    %c0_102 = arith.constant 0 : index
    %c9_103 = arith.constant 9 : index
    %c0_104 = arith.constant 0 : index
    %85 = vector.load %arg9[%c0_102, %c9_103, %c0_104] : memref<18x32x128xbf16, #tpu.memory_space<vmem>>, vector<16x16x128xbf16>
    %86 = vector.shape_cast %85 : vector<16x16x128xbf16> to vector<256x128xbf16>
    %c1_105 = arith.constant 1 : index
    %c7_106 = arith.constant 7 : index
    %c0_107 = arith.constant 0 : index
    %87 = vector.load %arg9[%c1_105, %c7_106, %c0_107] : memref<18x32x128xbf16, #tpu.memory_space<vmem>>, vector<16x16x128xbf16>
    %88 = vector.shape_cast %87 : vector<16x16x128xbf16> to vector<256x128xbf16>
    %c1_108 = arith.constant 1 : index
    %c8_109 = arith.constant 8 : index
    %c0_110 = arith.constant 0 : index
    %89 = vector.load %arg9[%c1_108, %c8_109, %c0_110] : memref<18x32x128xbf16, #tpu.memory_space<vmem>>, vector<16x16x128xbf16>
    %90 = vector.shape_cast %89 : vector<16x16x128xbf16> to vector<256x128xbf16>
    %c1_111 = arith.constant 1 : index
    %c9_112 = arith.constant 9 : index
    %c0_113 = arith.constant 0 : index
    %91 = vector.load %arg9[%c1_111, %c9_112, %c0_113] : memref<18x32x128xbf16, #tpu.memory_space<vmem>>, vector<16x16x128xbf16>
    %92 = vector.shape_cast %91 : vector<16x16x128xbf16> to vector<256x128xbf16>
    %c2_114 = arith.constant 2 : index
    %c7_115 = arith.constant 7 : index
    %c0_116 = arith.constant 0 : index
    %93 = vector.load %arg9[%c2_114, %c7_115, %c0_116] : memref<18x32x128xbf16, #tpu.memory_space<vmem>>, vector<16x16x128xbf16>
    %94 = vector.shape_cast %93 : vector<16x16x128xbf16> to vector<256x128xbf16>
    %c2_117 = arith.constant 2 : index
    %c8_118 = arith.constant 8 : index
    %c0_119 = arith.constant 0 : index
    %95 = vector.load %arg9[%c2_117, %c8_118, %c0_119] : memref<18x32x128xbf16, #tpu.memory_space<vmem>>, vector<16x16x128xbf16>
    %96 = vector.shape_cast %95 : vector<16x16x128xbf16> to vector<256x128xbf16>
    %c2_120 = arith.constant 2 : index
    %c9_121 = arith.constant 9 : index
    %c0_122 = arith.constant 0 : index
    %97 = vector.load %arg9[%c2_120, %c9_121, %c0_122] : memref<18x32x128xbf16, #tpu.memory_space<vmem>>, vector<16x16x128xbf16>
    %98 = vector.shape_cast %97 : vector<16x16x128xbf16> to vector<256x128xbf16>
    %99 = tpu.concatenate %82, %84, %86, %88, %90, %92, %94, %96, %98 in 1 : vector<256x128xbf16>, vector<256x128xbf16>, vector<256x128xbf16>, vector<256x128xbf16>, vector<256x128xbf16>, vector<256x128xbf16>, vector<256x128xbf16>, vector<256x128xbf16>, vector<256x128xbf16> -> vector<256x1152xbf16>
    %cst_123 = arith.constant dense<0.000000e+00> : vector<256x128xf32>
    %100 = tpu.matmul %99, %6, %cst_123 {dimension_numbers = #tpu.dot_dimension_numbers<[1], [0], [0], [1], [0, 0, 1, 1], [], []>} : vector<256x1152xbf16>, vector<1152x128xbf16>, vector<256x128xf32> -> vector<256x128xf32>
    %101 = vector.broadcast %8 : vector<1x128xf32> to vector<256x128xf32>
    %102 = arith.mulf %100, %101 : vector<256x128xf32>
    %103 = vector.broadcast %9 : vector<1x128xf32> to vector<256x128xf32>
    %104 = arith.addf %102, %103 : vector<256x128xf32>
    %cst_124 = arith.constant 0.000000e+00 : f32
    %105 = vector.broadcast %cst_124 : f32 to vector<256x128xf32>
    %106 = arith.maximumf %104, %105 : vector<256x128xf32>
    %107 = vector.shape_cast %106 : vector<256x128xf32> to vector<16x16x128xf32>
    %108 = arith.truncf %107 : vector<16x16x128xf32> to vector<16x16x128xbf16>
    %c1_125 = arith.constant 1 : index
    %c8_126 = arith.constant 8 : index
    %c0_127 = arith.constant 0 : index
    %109 = vector.load %arg9[%c1_125, %c8_126, %c0_127] : memref<18x32x128xbf16, #tpu.memory_space<vmem>>, vector<16x16x128xbf16>
    tpu.vector_store %arg9[%c1_125, %c8_126, %c0_127], %108 {strides = array<i32>} : memref<18x32x128xbf16, #tpu.memory_space<vmem>>, vector<16x16x128xbf16>,
    %c0_128 = arith.constant 0 : index
    %c7_129 = arith.constant 7 : index
    %c0_130 = arith.constant 0 : index
    %110 = vector.load %arg9[%c0_128, %c7_129, %c0_130] : memref<18x32x128xbf16, #tpu.memory_space<vmem>>, vector<16x16x128xbf16>
    %111 = vector.shape_cast %110 : vector<16x16x128xbf16> to vector<256x128xbf16>
    %c0_131 = arith.constant 0 : index
    %c8_132 = arith.constant 8 : index
    %c0_133 = arith.constant 0 : index
    %112 = vector.load %arg9[%c0_131, %c8_132, %c0_133] : memref<18x32x128xbf16, #tpu.memory_space<vmem>>, vector<16x16x128xbf16>
    %113 = vector.shape_cast %112 : vector<16x16x128xbf16> to vector<256x128xbf16>
    %c0_134 = arith.constant 0 : index
    %c9_135 = arith.constant 9 : index
    %c0_136 = arith.constant 0 : index
    %114 = vector.load %arg9[%c0_134, %c9_135, %c0_136] : memref<18x32x128xbf16, #tpu.memory_space<vmem>>, vector<16x16x128xbf16>
    %115 = vector.shape_cast %114 : vector<16x16x128xbf16> to vector<256x128xbf16>
    %c1_137 = arith.constant 1 : index
    %c7_138 = arith.constant 7 : index
    %c0_139 = arith.constant 0 : index
    %116 = vector.load %arg9[%c1_137, %c7_138, %c0_139] : memref<18x32x128xbf16, #tpu.memory_space<vmem>>, vector<16x16x128xbf16>
    %117 = vector.shape_cast %116 : vector<16x16x128xbf16> to vector<256x128xbf16>
    %c1_140 = arith.constant 1 : index
    %c8_141 = arith.constant 8 : index
    %c0_142 = arith.constant 0 : index
    %118 = vector.load %arg9[%c1_140, %c8_141, %c0_142] : memref<18x32x128xbf16, #tpu.memory_space<vmem>>, vector<16x16x128xbf16>
    %119 = vector.shape_cast %118 : vector<16x16x128xbf16> to vector<256x128xbf16>
    %c1_143 = arith.constant 1 : index
    %c9_144 = arith.constant 9 : index
    %c0_145 = arith.constant 0 : index
    %120 = vector.load %arg9[%c1_143, %c9_144, %c0_145] : memref<18x32x128xbf16, #tpu.memory_space<vmem>>, vector<16x16x128xbf16>
    %121 = vector.shape_cast %120 : vector<16x16x128xbf16> to vector<256x128xbf16>
    %c2_146 = arith.constant 2 : index
    %c7_147 = arith.constant 7 : index
    %c0_148 = arith.constant 0 : index
    %122 = vector.load %arg9[%c2_146, %c7_147, %c0_148] : memref<18x32x128xbf16, #tpu.memory_space<vmem>>, vector<16x16x128xbf16>
    %123 = vector.shape_cast %122 : vector<16x16x128xbf16> to vector<256x128xbf16>
    %c2_149 = arith.constant 2 : index
    %c8_150 = arith.constant 8 : index
    %c0_151 = arith.constant 0 : index
    %124 = vector.load %arg9[%c2_149, %c8_150, %c0_151] : memref<18x32x128xbf16, #tpu.memory_space<vmem>>, vector<16x16x128xbf16>
    %125 = vector.shape_cast %124 : vector<16x16x128xbf16> to vector<256x128xbf16>
    %c2_152 = arith.constant 2 : index
    %c9_153 = arith.constant 9 : index
    %c0_154 = arith.constant 0 : index
    %126 = vector.load %arg9[%c2_152, %c9_153, %c0_154] : memref<18x32x128xbf16, #tpu.memory_space<vmem>>, vector<16x16x128xbf16>
    %127 = vector.shape_cast %126 : vector<16x16x128xbf16> to vector<256x128xbf16>
    %128 = tpu.concatenate %111, %113, %115, %117, %119, %121, %123, %125, %127 in 1 : vector<256x128xbf16>, vector<256x128xbf16>, vector<256x128xbf16>, vector<256x128xbf16>, vector<256x128xbf16>, vector<256x128xbf16>, vector<256x128xbf16>, vector<256x128xbf16>, vector<256x128xbf16> -> vector<256x1152xbf16>
    %cst_155 = arith.constant dense<0.000000e+00> : vector<256x128xf32>
    %129 = tpu.matmul %128, %7, %cst_155 {dimension_numbers = #tpu.dot_dimension_numbers<[1], [0], [0], [1], [0, 0, 1, 1], [], []>} : vector<256x1152xbf16>, vector<1152x128xbf16>, vector<256x128xf32> -> vector<256x128xf32>
    %130 = vector.broadcast %10 : vector<1x128xf32> to vector<256x128xf32>
    %131 = arith.mulf %129, %130 : vector<256x128xf32>
    %132 = vector.broadcast %11 : vector<1x128xf32> to vector<256x128xf32>
    %133 = arith.addf %131, %132 : vector<256x128xf32>
    %134 = vector.shape_cast %78 : vector<16x16x128xf32> to vector<256x128xf32>
    %135 = arith.addf %133, %134 : vector<256x128xf32>
    %cst_156 = arith.constant 0.000000e+00 : f32
    %136 = vector.broadcast %cst_156 : f32 to vector<256x128xf32>
    %137 = arith.maximumf %135, %136 : vector<256x128xf32>
    %138 = vector.shape_cast %137 : vector<256x128xf32> to vector<16x16x128xf32>
    %c1_157 = arith.constant 1 : index
    %c0_158 = arith.constant 0 : index
    %c0_159 = arith.constant 0 : index
    %c0_160 = arith.constant 0 : index
    %139 = vector.load %arg8[%c1_157, %c0_158, %c0_159, %c0_160] : memref<2x16x16x128xf32, #tpu.memory_space<vmem>>, vector<1x16x16x128xf32>
    %140 = vector.shape_cast %139 : vector<1x16x16x128xf32> to vector<16x16x128xf32>
    %141 = vector.shape_cast %138 : vector<16x16x128xf32> to vector<1x16x16x128xf32>
    tpu.vector_store %arg8[%c1_157, %c0_158, %c0_159, %c0_160], %141 {strides = array<i32>} : memref<2x16x16x128xf32, #tpu.memory_space<vmem>>, vector<1x16x16x128xf32>,
    return
  }
  func.func @transform_0(%arg0: i32) -> (i32, i32, i32, i32) {
    %c0_i32 = arith.constant 0 : i32
    %c0_i32_0 = arith.constant 0 : i32
    %c0_i32_1 = arith.constant 0 : i32
    %c0_i32_2 = arith.constant 0 : i32
    return %arg0, %c0_i32, %c0_i32_0, %c0_i32_1 : i32, i32, i32, i32
  }
  func.func @transform_1(%arg0: i32) -> (i32, i32) {
    %c0_i32 = arith.constant 0 : i32
    %c0_i32_0 = arith.constant 0 : i32
    %c0_i32_1 = arith.constant 0 : i32
    return %c0_i32, %c0_i32_0 : i32, i32
  }
  func.func @transform_2(%arg0: i32) -> (i32, i32) {
    %c0_i32 = arith.constant 0 : i32
    %c0_i32_0 = arith.constant 0 : i32
    %c0_i32_1 = arith.constant 0 : i32
    return %c0_i32, %c0_i32_0 : i32, i32
  }
  func.func @transform_3(%arg0: i32) -> (i32, i32) {
    %c0_i32 = arith.constant 0 : i32
    %c0_i32_0 = arith.constant 0 : i32
    %c0_i32_1 = arith.constant 0 : i32
    return %c0_i32, %c0_i32_0 : i32, i32
  }
  func.func @transform_4(%arg0: i32) -> (i32, i32) {
    %c0_i32 = arith.constant 0 : i32
    %c0_i32_0 = arith.constant 0 : i32
    %c0_i32_1 = arith.constant 0 : i32
    return %c0_i32, %c0_i32_0 : i32, i32
  }
  func.func @transform_5(%arg0: i32) -> (i32, i32) {
    %c0_i32 = arith.constant 0 : i32
    %c0_i32_0 = arith.constant 0 : i32
    %c0_i32_1 = arith.constant 0 : i32
    return %c0_i32, %c0_i32_0 : i32, i32
  }
  func.func @transform_6(%arg0: i32) -> (i32, i32) {
    %c0_i32 = arith.constant 0 : i32
    %c0_i32_0 = arith.constant 0 : i32
    %c0_i32_1 = arith.constant 0 : i32
    return %c0_i32, %c0_i32_0 : i32, i32
  }
  func.func @transform_7(%arg0: i32) -> (i32, i32, i32, i32) {
    %c0_i32 = arith.constant 0 : i32
    %c0_i32_0 = arith.constant 0 : i32
    %c0_i32_1 = arith.constant 0 : i32
    %c0_i32_2 = arith.constant 0 : i32
    return %arg0, %c0_i32, %c0_i32_0, %c0_i32_1 : i32, i32, i32, i32
  }
}

</mosaic_0001>

<llo_original>
// kernel: basic_block_forward.1
$region0: #{basic_block_forward.1}
  #allocation0 [shape = 'u32[]', space=smem, size = 0x4, offset = 0x4, fixed_abs, tag = 'smem constant byte address 0x4 - core index']
  #allocation1 [shape = 'u32[72,128]{1,0:T(1,128)}', space=vmem, size = 0x9000, scoped, tag = 'internal scratch']
  #allocation2 [shape = 'bf16[18,32,128]{2,1,0:T(8,128)(2,1)}', space=vmem, size = 0x24000, scoped, tag = 'scratch operand']
  %s0 = inlined_call_operand.vmem [shape: f32[2,16,16,128], index: 0, kind: input, shape index: {}]
  %s1 = inlined_call_operand.vmem [shape: bf16[1152,128], index: 1, kind: input, shape index: {}]
  %s2 = inlined_call_operand.vmem [shape: bf16[1152,128], index: 2, kind: input, shape index: {}]
  %s3 = inlined_call_operand.vmem [shape: f32[1,128], index: 3, kind: input, shape index: {}]
  %s4 = inlined_call_operand.vmem [shape: f32[1,128], index: 4, kind: input, shape index: {}]
  %s5 = inlined_call_operand.vmem [shape: f32[1,128], index: 5, kind: input, shape index: {}]
  %s6 = inlined_call_operand.vmem [shape: f32[1,128], index: 6, kind: input, shape index: {}]
  %s7 = inlined_call_operand.vmem [shape: f32[2,16,16,128], index: 7, kind: output, shape index: {}]
  %s8 = sld [smem:[#allocation0]]
  $region38: #{basic_block_forward.1} parent=0
    _
  %s10 = ssub.s32 1, %s8
  %s11 = scalar_select 0, %s10, %s8
  // Predicated region
  $region2: #{basic_block_forward.1} parent=0 // pred_check
    _
  $region3: #{basic_block_forward.1} parent=0 // pred_check_branch
    %13 = sbr.rel (0) target = $region5
  $region4: #{basic_block_forward.1} parent=0 // pred_region
    _
  $region5: #{basic_block_forward.1} parent=0 // pred_fallthru
    _
  // Predicated region
  $region6: #{basic_block_forward.1} parent=0 // pred_check
    _
  $region7: #{basic_block_forward.1} parent=0 // pred_check_branch
    %15 = sbr.rel (0) target = $region9
  $region8: #{basic_block_forward.1} parent=0 // pred_region
    _
  $region9: #{basic_block_forward.1} parent=0 // pred_fallthru
    _
  // Predicated region
  $region10: #{basic_block_forward.1} parent=0 // pred_check
    _
  $region11: #{basic_block_forward.1} parent=0 // pred_check_branch
    %17 = sbr.rel (0) target = $region13
  $region12: #{basic_block_forward.1} parent=0 // pred_region
    _
  $region13: #{basic_block_forward.1} parent=0 // pred_fallthru
    _
  // Predicated region
  $region14: #{basic_block_forward.1} parent=0 // pred_check
    _
  $region15: #{basic_block_forward.1} parent=0 // pred_check_branch
    %19 = sbr.rel (0) target = $region17
  $region16: #{basic_block_forward.1} parent=0 // pred_region
    _
  $region17: #{basic_block_forward.1} parent=0 // pred_fallthru
    _
  // Predicated region
  $region18: #{basic_block_forward.1} parent=0 // pred_check
    _
  $region19: #{basic_block_forward.1} parent=0 // pred_check_branch
    %21 = sbr.rel (0) target = $region21
  $region20: #{basic_block_forward.1} parent=0 // pred_region
    _
  $region21: #{basic_block_forward.1} parent=0 // pred_fallthru
    _
  // Predicated region
  $region22: #{basic_block_forward.1} parent=0 // pred_check
    _
  $region23: #{basic_block_forward.1} parent=0 // pred_check_branch
    %23 = sbr.rel (0) target = $region25
  $region24: #{basic_block_forward.1} parent=0 // pred_region
    _
  $region25: #{basic_block_forward.1} parent=0 // pred_fallthru
    _
  // Predicated region
  $region26: #{basic_block_forward.1} parent=0 // pred_check
    _
  $region27: #{basic_block_forward.1} parent=0 // pred_check_branch
    %25 = sbr.rel (0) target = $region29
  $region28: #{basic_block_forward.1} parent=0 // pred_region
    _
  $region29: #{basic_block_forward.1} parent=0 // pred_fallthru
    _
  %27 = vst [vmem:[#allocation2] sm:$0xf] 0
  %28 = vst [vmem:[#allocation2 + $0x10] sm:$0xf] 0
  %29 = vst [vmem:[#allocation2 + $0x20] sm:$0xf] 0
  %30 = vst [vmem:[#allocation2 + $0x30] sm:$0xf] 0
  %31 = vst [vmem:[#allocation2 + $0x40] sm:$0xf] 0
  %32 = vst [vmem:[#allocation2 + $0x50] sm:$0xf] 0
  %33 = vst [vmem:[#allocation2 + $0x60] sm:$0xf] 0
  %34 = vst [vmem:[#allocation2 + $0x70] sm:$0xf] 0
  %35 = vst [vmem:[#allocation2 + $0x80] sm:$0xf] 0
  %36 = vst [vmem:[#allocation2 + $0x90] sm:$0xf] 0
  %37 = vst [vmem:[#allocation2 + $0xa0] sm:$0xf] 0
  %38 = vst [vmem:[#allocation2 + $0xb0] sm:$0xf] 0
  %39 = vst [vmem:[#allocation2 + $0xc0] sm:$0xf] 0
  %40 = vst [vmem:[#allocation2 + $0xd0] sm:$0xf] 0
  %41 = vst [vmem:[#allocation2 + $0xe0] sm:$0xf] 0
  %42 = vst [vmem:[#allocation2 + $0xf0] sm:$0xf] 0
  %43 = vst [vmem:[#allocation2 + $0x100] sm:$0xf] 0
  %44 = vst [vmem:[#allocation2 + $0x110] sm:$0xf] 0
  %45 = vst [vmem:[#allocation2 + $0xc] sm:$0xf] 0
  %46 = vst [vmem:[#allocation2 + $0x1c] sm:$0xf] 0
  %47 = vst [vmem:[#allocation2 + $0x2c] sm:$0xf] 0
  %48 = vst [vmem:[#allocation2 + $0x3c] sm:$0xf] 0
  %49 = vst [vmem:[#allocation2 + $0x4c] sm:$0xf] 0
  %50 = vst [vmem:[#allocation2 + $0x5c] sm:$0xf] 0
  %51 = vst [vmem:[#allocation2 + $0x6c] sm:$0xf] 0
  %52 = vst [vmem:[#allocation2 + $0x7c] sm:$0xf] 0
  %53 = vst [vmem:[#allocation2 + $0x8c] sm:$0xf] 0
  %54 = vst [vmem:[#allocation2 + $0x9c] sm:$0xf] 0
  %55 = vst [vmem:[#allocation2 + $0xac] sm:$0xf] 0
  %56 = vst [vmem:[#allocation2 + $0xbc] sm:$0xf] 0
  %57 = vst [vmem:[#allocation2 + $0xcc] sm:$0xf] 0
  %58 = vst [vmem:[#allocation2 + $0xdc] sm:$0xf] 0
  %59 = vst [vmem:[#allocation2 + $0xec] sm:$0xf] 0
  %60 = vst [vmem:[#allocation2 + $0xfc] sm:$0xf] 0
  %61 = vst [vmem:[#allocation2 + $0x10c] sm:$0xf] 0
  %62 = vst [vmem:[#allocation2 + $0x11c] sm:$0xf] 0
  %63 = vst [vmem:[#allocation2 + $0x4] sm:$0xf] 0
  %64 = vst [vmem:[#allocation2 + $0x8] sm:$0xf] 0
  %s65 = scalar_lea.vmem [#allocation2], 272
  %66 = vst [vmem:[%s65 + $0x4] sm:$0xf] 0
  %67 = vst [vmem:[%s65 + $0x8] sm:$0xf] 0
  %v68 = vld [vmem:[%s1] sm:$0xf]
  %v69 = vld [vmem:[%s1 + $0x4] sm:$0xf]
  %v70 = vld [vmem:[%s1 + $0x8] sm:$0xf]
  %v71 = vld [vmem:[%s1 + $0xc] sm:$0xf]
  %v72 = vld [vmem:[%s1 + $0x10] sm:$0xf]
  %v73 = vld [vmem:[%s1 + $0x14] sm:$0xf]
  %v74 = vld [vmem:[%s1 + $0x18] sm:$0xf]
  %v75 = vld [vmem:[%s1 + $0x1c] sm:$0xf]
  %v76 = vld [vmem:[%s1 + $0x20] sm:$0xf]
  %v77 = vld [vmem:[%s1 + $0x24] sm:$0xf]
  %v78 = vld [vmem:[%s1 + $0x28] sm:$0xf]
  %v79 = vld [vmem:[%s1 + $0x2c] sm:$0xf]
  %v80 = vld [vmem:[%s1 + $0x30] sm:$0xf]
  %v81 = vld [vmem:[%s1 + $0x34] sm:$0xf]
  %v82 = vld [vmem:[%s1 + $0x38] sm:$0xf]
  %v83 = vld [vmem:[%s1 + $0x3c] sm:$0xf]
  %v84 = vld [vmem:[%s1 + $0x40] sm:$0xf]
  %v85 = vld [vmem:[%s1 + $0x44] sm:$0xf]
  %v86 = vld [vmem:[%s1 + $0x48] sm:$0xf]
  %v87 = vld [vmem:[%s1 + $0x4c] sm:$0xf]
  %v88 = vld [vmem:[%s1 + $0x50] sm:$0xf]
  %v89 = vld [vmem:[%s1 + $0x54] sm:$0xf]
  %v90 = vld [vmem:[%s1 + $0x58] sm:$0xf]
  %v91 = vld [vmem:[%s1 + $0x5c] sm:$0xf]
  %v92 = vld [vmem:[%s1 + $0x60] sm:$0xf]
  %v93 = vld [vmem:[%s1 + $0x64] sm:$0xf]
  %v94 = vld [vmem:[%s1 + $0x68] sm:$0xf]
  %v95 = vld [vmem:[%s1 + $0x6c] sm:$0xf]
  %v96 = vld [vmem:[%s1 + $0x70] sm:$0xf]
  %v97 = vld [vmem:[%s1 + $0x74] sm:$0xf]
  %v98 = vld [vmem:[%s1 + $0x78] sm:$0xf]
  %v99 = vld [vmem:[%s1 + $0x7c] sm:$0xf]
  %v100 = vld [vmem:[%s1 + $0x80] sm:$0xf]
  %v101 = vld [vmem:[%s1 + $0x84] sm:$0xf]
  %v102 = vld [vmem:[%s1 + $0x88] sm:$0xf]
  %v103 = vld [vmem:[%s1 + $0x8c] sm:$0xf]
  %v104 = vld [vmem:[%s1 + $0x90] sm:$0xf]
  %v105 = vld [vmem:[%s1 + $0x94] sm:$0xf]
  %v106 = vld [vmem:[%s1 + $0x98] sm:$0xf]
  %v107 = vld [vmem:[%s1 + $0x9c] sm:$0xf]
  %v108 = vld [vmem:[%s1 + $0xa0] sm:$0xf]
  %v109 = vld [vmem:[%s1 + $0xa4] sm:$0xf]
  %v110 = vld [vmem:[%s1 + $0xa8] sm:$0xf]
  %v111 = vld [vmem:[%s1 + $0xac] sm:$0xf]
  %v112 = vld [vmem:[%s1 + $0xb0] sm:$0xf]
  %v113 = vld [vmem:[%s1 + $0xb4] sm:$0xf]
  %v114 = vld [vmem:[%s1 + $0xb8] sm:$0xf]
  %v115 = vld [vmem:[%s1 + $0xbc] sm:$0xf]
  %v116 = vld [vmem:[%s1 + $0xc0] sm:$0xf]
  %v117 = vld [vmem:[%s1 + $0xc4] sm:$0xf]
  %v118 = vld [vmem:[%s1 + $0xc8] sm:$0xf]
  %v119 = vld [vmem:[%s1 + $0xcc] sm:$0xf]
  %v120 = vld [vmem:[%s1 + $0xd0] sm:$0xf]
  %v121 = vld [vmem:[%s1 + $0xd4] sm:$0xf]
  %v122 = vld [vmem:[%s1 + $0xd8] sm:$0xf]
  %v123 = vld [vmem:[%s1 + $0xdc] sm:$0xf]
  %v124 = vld [vmem:[%s1 + $0xe0] sm:$0xf]
  %v125 = vld [vmem:[%s1 + $0xe4] sm:$0xf]
  %v126 = vld [vmem:[%s1 + $0xe8] sm:$0xf]
  %v127 = vld [vmem:[%s1 + $0xec] sm:$0xf]
  %v128 = vld [vmem:[%s1 + $0xf0] sm:$0xf]
  %v129 = vld [vmem:[%s1 + $0xf4] sm:$0xf]
  %v130 = vld [vmem:[%s1 + $0xf8] sm:$0xf]
  %v131 = vld [vmem:[%s1 + $0xfc] sm:$0xf]
  %v132 = vld [vmem:[%s1 + $0x100] sm:$0xf]
  %v133 = vld [vmem:[%s1 + $0x104] sm:$0xf]
  %v134 = vld [vmem:[%s1 + $0x108] sm:$0xf]
  %v135 = vld [vmem:[%s1 + $0x10c] sm:$0xf]
  %v136 = vld [vmem:[%s1 + $0x110] sm:$0xf]
  %v137 = vld [vmem:[%s1 + $0x114] sm:$0xf]
  %v138 = vld [vmem:[%s1 + $0x118] sm:$0xf]
  %v139 = vld [vmem:[%s1 + $0x11c] sm:$0xf]
  %v140 = vld [vmem:[%s1 + $0x120] sm:$0xf]
  %v141 = vld [vmem:[%s1 + $0x124] sm:$0xf]
  %v142 = vld [vmem:[%s1 + $0x128] sm:$0xf]
  %v143 = vld [vmem:[%s1 + $0x12c] sm:$0xf]
  %v144 = vld [vmem:[%s1 + $0x130] sm:$0xf]
  %v145 = vld [vmem:[%s1 + $0x134] sm:$0xf]
  %v146 = vld [vmem:[%s1 + $0x138] sm:$0xf]
  %v147 = vld [vmem:[%s1 + $0x13c] sm:$0xf]
  %v148 = vld [vmem:[%s1 + $0x140] sm:$0xf]
  %v149 = vld [vmem:[%s1 + $0x144] sm:$0xf]
  %v150 = vld [vmem:[%s1 + $0x148] sm:$0xf]
  %v151 = vld [vmem:[%s1 + $0x14c] sm:$0xf]
  %v152 = vld [vmem:[%s1 + $0x150] sm:$0xf]
  %v153 = vld [vmem:[%s1 + $0x154] sm:$0xf]
  %v154 = vld [vmem:[%s1 + $0x158] sm:$0xf]
  %v155 = vld [vmem:[%s1 + $0x15c] sm:$0xf]
  %v156 = vld [vmem:[%s1 + $0x160] sm:$0xf]
  %v157 = vld [vmem:[%s1 + $0x164] sm:$0xf]
  %v158 = vld [vmem:[%s1 + $0x168] sm:$0xf]
  %v159 = vld [vmem:[%s1 + $0x16c] sm:$0xf]
  %v160 = vld [vmem:[%s1 + $0x170] sm:$0xf]
  %v161 = vld [vmem:[%s1 + $0x174] sm:$0xf]
  %v162 = vld [vmem:[%s1 + $0x178] sm:$0xf]
  %v163 = vld [vmem:[%s1 + $0x17c] sm:$0xf]
  %v164 = vld [vmem:[%s1 + $0x180] sm:$0xf]
  %v165 = vld [vmem:[%s1 + $0x184] sm:$0xf]
  %v166 = vld [vmem:[%s1 + $0x188] sm:$0xf]
  %v167 = vld [vmem:[%s1 + $0x18c] sm:$0xf]
  %v168 = vld [vmem:[%s1 + $0x190] sm:$0xf]
  %v169 = vld [vmem:[%s1 + $0x194] sm:$0xf]
  %v170 = vld [vmem:[%s1 + $0x198] sm:$0xf]
  %v171 = vld [vmem:[%s1 + $0x19c] sm:$0xf]
  %v172 = vld [vmem:[%s1 + $0x1a0] sm:$0xf]
  %v173 = vld [vmem:[%s1 + $0x1a4] sm:$0xf]
  %v174 = vld [vmem:[%s1 + $0x1a8] sm:$0xf]
  %v175 = vld [vmem:[%s1 + $0x1ac] sm:$0xf]
  %v176 = vld [vmem:[%s1 + $0x1b0] sm:$0xf]
  %v177 = vld [vmem:[%s1 + $0x1b4] sm:$0xf]
  %v178 = vld [vmem:[%s1 + $0x1b8] sm:$0xf]
  %v179 = vld [vmem:[%s1 + $0x1bc] sm:$0xf]
  %v180 = vld [vmem:[%s1 + $0x1c0] sm:$0xf]
  %v181 = vld [vmem:[%s1 + $0x1c4] sm:$0xf]
  %v182 = vld [vmem:[%s1 + $0x1c8] sm:$0xf]
  %v183 = vld [vmem:[%s1 + $0x1cc] sm:$0xf]
  %v184 = vld [vmem:[%s1 + $0x1d0] sm:$0xf]
  %v185 = vld [vmem:[%s1 + $0x1d4] sm:$0xf]
  %v186 = vld [vmem:[%s1 + $0x1d8] sm:$0xf]
  %v187 = vld [vmem:[%s1 + $0x1dc] sm:$0xf]
  %v188 = vld [vmem:[%s1 + $0x1e0] sm:$0xf]
  %v189 = vld [vmem:[%s1 + $0x1e4] sm:$0xf]
  %v190 = vld [vmem:[%s1 + $0x1e8] sm:$0xf]
  %v191 = vld [vmem:[%s1 + $0x1ec] sm:$0xf]
  %v192 = vld [vmem:[%s1 + $0x1f0] sm:$0xf]
  %v193 = vld [vmem:[%s1 + $0x1f4] sm:$0xf]
  %v194 = vld [vmem:[%s1 + $0x1f8] sm:$0xf]
  %v195 = vld [vmem:[%s1 + $0x1fc] sm:$0xf]
  %v196 = vld [vmem:[%s1 + $0x200] sm:$0xf]
  %v197 = vld [vmem:[%s1 + $0x204] sm:$0xf]
  %v198 = vld [vmem:[%s1 + $0x208] sm:$0xf]
  %v199 = vld [vmem:[%s1 + $0x20c] sm:$0xf]
  %v200 = vld [vmem:[%s1 + $0x210] sm:$0xf]
  %v201 = vld [vmem:[%s1 + $0x214] sm:$0xf]
  %v202 = vld [vmem:[%s1 + $0x218] sm:$0xf]
  %v203 = vld [vmem:[%s1 + $0x21c] sm:$0xf]
  %v204 = vld [vmem:[%s1 + $0x220] sm:$0xf]
  %v205 = vld [vmem:[%s1 + $0x224] sm:$0xf]
  %v206 = vld [vmem:[%s1 + $0x228] sm:$0xf]
  %v207 = vld [vmem:[%s1 + $0x22c] sm:$0xf]
  %v208 = vld [vmem:[%s1 + $0x230] sm:$0xf]
  %v209 = vld [vmem:[%s1 + $0x234] sm:$0xf]
  %v210 = vld [vmem:[%s1 + $0x238] sm:$0xf]
  %v211 = vld [vmem:[%s1 + $0x23c] sm:$0xf]
  %v212 = vld [vmem:[%s2] sm:$0xf]
  %v213 = vld [vmem:[%s2 + $0x4] sm:$0xf]
  %v214 = vld [vmem:[%s2 + $0x8] sm:$0xf]
  %v215 = vld [vmem:[%s2 + $0xc] sm:$0xf]
  %v216 = vld [vmem:[%s2 + $0x10] sm:$0xf]
  %v217 = vld [vmem:[%s2 + $0x14] sm:$0xf]
  %v218 = vld [vmem:[%s2 + $0x18] sm:$0xf]
  %v219 = vld [vmem:[%s2 + $0x1c] sm:$0xf]
  %v220 = vld [vmem:[%s2 + $0x20] sm:$0xf]
  %v221 = vld [vmem:[%s2 + $0x24] sm:$0xf]
  %v222 = vld [vmem:[%s2 + $0x28] sm:$0xf]
  %v223 = vld [vmem:[%s2 + $0x2c] sm:$0xf]
  %v224 = vld [vmem:[%s2 + $0x30] sm:$0xf]
  %v225 = vld [vmem:[%s2 + $0x34] sm:$0xf]
  %v226 = vld [vmem:[%s2 + $0x38] sm:$0xf]
  %v227 = vld [vmem:[%s2 + $0x3c] sm:$0xf]
  %v228 = vld [vmem:[%s2 + $0x40] sm:$0xf]
  %v229 = vld [vmem:[%s2 + $0x44] sm:$0xf]
  %v230 = vld [vmem:[%s2 + $0x48] sm:$0xf]
  %v231 = vld [vmem:[%s2 + $0x4c] sm:$0xf]
  %v232 = vld [vmem:[%s2 + $0x50] sm:$0xf]
  %v233 = vld [vmem:[%s2 + $0x54] sm:$0xf]
  %v234 = vld [vmem:[%s2 + $0x58] sm:$0xf]
  %v235 = vld [vmem:[%s2 + $0x5c] sm:$0xf]
  %v236 = vld [vmem:[%s2 + $0x60] sm:$0xf]
  %v237 = vld [vmem:[%s2 + $0x64] sm:$0xf]
  %v238 = vld [vmem:[%s2 + $0x68] sm:$0xf]
  %v239 = vld [vmem:[%s2 + $0x6c] sm:$0xf]
  %v240 = vld [vmem:[%s2 + $0x70] sm:$0xf]
  %v241 = vld [vmem:[%s2 + $0x74] sm:$0xf]
  %v242 = vld [vmem:[%s2 + $0x78] sm:$0xf]
  %v243 = vld [vmem:[%s2 + $0x7c] sm:$0xf]
  %v244 = vld [vmem:[%s2 + $0x80] sm:$0xf]
  %v245 = vld [vmem:[%s2 + $0x84] sm:$0xf]
  %v246 = vld [vmem:[%s2 + $0x88] sm:$0xf]
  %v247 = vld [vmem:[%s2 + $0x8c] sm:$0xf]
  %v248 = vld [vmem:[%s2 + $0x90] sm:$0xf]
  %v249 = vld [vmem:[%s2 + $0x94] sm:$0xf]
  %v250 = vld [vmem:[%s2 + $0x98] sm:$0xf]
  %v251 = vld [vmem:[%s2 + $0x9c] sm:$0xf]
  %v252 = vld [vmem:[%s2 + $0xa0] sm:$0xf]
  %v253 = vld [vmem:[%s2 + $0xa4] sm:$0xf]
  %v254 = vld [vmem:[%s2 + $0xa8] sm:$0xf]
  %v255 = vld [vmem:[%s2 + $0xac] sm:$0xf]
  %v256 = vld [vmem:[%s2 + $0xb0] sm:$0xf]
  %v257 = vld [vmem:[%s2 + $0xb4] sm:$0xf]
  %v258 = vld [vmem:[%s2 + $0xb8] sm:$0xf]
  %v259 = vld [vmem:[%s2 + $0xbc] sm:$0xf]
  %v260 = vld [vmem:[%s2 + $0xc0] sm:$0xf]
  %v261 = vld [vmem:[%s2 + $0xc4] sm:$0xf]
  %v262 = vld [vmem:[%s2 + $0xc8] sm:$0xf]
  %v263 = vld [vmem:[%s2 + $0xcc] sm:$0xf]
  %v264 = vld [vmem:[%s2 + $0xd0] sm:$0xf]
  %v265 = vld [vmem:[%s2 + $0xd4] sm:$0xf]
  %v266 = vld [vmem:[%s2 + $0xd8] sm:$0xf]
  %v267 = vld [vmem:[%s2 + $0xdc] sm:$0xf]
  %v268 = vld [vmem:[%s2 + $0xe0] sm:$0xf]
  %v269 = vld [vmem:[%s2 + $0xe4] sm:$0xf]
  %v270 = vld [vmem:[%s2 + $0xe8] sm:$0xf]
  %v271 = vld [vmem:[%s2 + $0xec] sm:$0xf]
  %v272 = vld [vmem:[%s2 + $0xf0] sm:$0xf]
  %v273 = vld [vmem:[%s2 + $0xf4] sm:$0xf]
  %v274 = vld [vmem:[%s2 + $0xf8] sm:$0xf]
  %v275 = vld [vmem:[%s2 + $0xfc] sm:$0xf]
  %v276 = vld [vmem:[%s2 + $0x100] sm:$0xf]
  %v277 = vld [vmem:[%s2 + $0x104] sm:$0xf]
  %v278 = vld [vmem:[%s2 + $0x108] sm:$0xf]
  %v279 = vld [vmem:[%s2 + $0x10c] sm:$0xf]
  %v280 = vld [vmem:[%s2 + $0x110] sm:$0xf]
  %v281 = vld [vmem:[%s2 + $0x114] sm:$0xf]
  %v282 = vld [vmem:[%s2 + $0x118] sm:$0xf]
  %v283 = vld [vmem:[%s2 + $0x11c] sm:$0xf]
  %v284 = vld [vmem:[%s2 + $0x120] sm:$0xf]
  %v285 = vld [vmem:[%s2 + $0x124] sm:$0xf]
  %v286 = vld [vmem:[%s2 + $0x128] sm:$0xf]
  %v287 = vld [vmem:[%s2 + $0x12c] sm:$0xf]
  %v288 = vld [vmem:[%s2 + $0x130] sm:$0xf]
  %v289 = vld [vmem:[%s2 + $0x134] sm:$0xf]
  %v290 = vld [vmem:[%s2 + $0x138] sm:$0xf]
  %v291 = vld [vmem:[%s2 + $0x13c] sm:$0xf]
  %v292 = vld [vmem:[%s2 + $0x140] sm:$0xf]
  %v293 = vld [vmem:[%s2 + $0x144] sm:$0xf]
  %v294 = vld [vmem:[%s2 + $0x148] sm:$0xf]
  %v295 = vld [vmem:[%s2 + $0x14c] sm:$0xf]
  %v296 = vld [vmem:[%s2 + $0x150] sm:$0xf]
  %v297 = vld [vmem:[%s2 + $0x154] sm:$0xf]
  %v298 = vld [vmem:[%s2 + $0x158] sm:$0xf]
  %v299 = vld [vmem:[%s2 + $0x15c] sm:$0xf]
  %v300 = vld [vmem:[%s2 + $0x160] sm:$0xf]
  %v301 = vld [vmem:[%s2 + $0x164] sm:$0xf]
  %v302 = vld [vmem:[%s2 + $0x168] sm:$0xf]
  %v303 = vld [vmem:[%s2 + $0x16c] sm:$0xf]
  %v304 = vld [vmem:[%s2 + $0x170] sm:$0xf]
  %v305 = vld [vmem:[%s2 + $0x174] sm:$0xf]
  %v306 = vld [vmem:[%s2 + $0x178] sm:$0xf]
  %v307 = vld [vmem:[%s2 + $0x17c] sm:$0xf]
  %v308 = vld [vmem:[%s2 + $0x180] sm:$0xf]
  %v309 = vld [vmem:[%s2 + $0x184] sm:$0xf]
  %v310 = vld [vmem:[%s2 + $0x188] sm:$0xf]
  %v311 = vld [vmem:[%s2 + $0x18c] sm:$0xf]
  %v312 = vld [vmem:[%s2 + $0x190] sm:$0xf]
  %v313 = vld [vmem:[%s2 + $0x194] sm:$0xf]
  %v314 = vld [vmem:[%s2 + $0x198] sm:$0xf]
  %v315 = vld [vmem:[%s2 + $0x19c] sm:$0xf]
  %v316 = vld [vmem:[%s2 + $0x1a0] sm:$0xf]
  %v317 = vld [vmem:[%s2 + $0x1a4] sm:$0xf]
  %v318 = vld [vmem:[%s2 + $0x1a8] sm:$0xf]
  %v319 = vld [vmem:[%s2 + $0x1ac] sm:$0xf]
  %v320 = vld [vmem:[%s2 + $0x1b0] sm:$0xf]
  %v321 = vld [vmem:[%s2 + $0x1b4] sm:$0xf]
  %v322 = vld [vmem:[%s2 + $0x1b8] sm:$0xf]
  %v323 = vld [vmem:[%s2 + $0x1bc] sm:$0xf]
  %v324 = vld [vmem:[%s2 + $0x1c0] sm:$0xf]
  %v325 = vld [vmem:[%s2 + $0x1c4] sm:$0xf]
  %v326 = vld [vmem:[%s2 + $0x1c8] sm:$0xf]
  %v327 = vld [vmem:[%s2 + $0x1cc] sm:$0xf]
  %v328 = vld [vmem:[%s2 + $0x1d0] sm:$0xf]
  %v329 = vld [vmem:[%s2 + $0x1d4] sm:$0xf]
  %v330 = vld [vmem:[%s2 + $0x1d8] sm:$0xf]
  %v331 = vld [vmem:[%s2 + $0x1dc] sm:$0xf]
  %v332 = vld [vmem:[%s2 + $0x1e0] sm:$0xf]
  %v333 = vld [vmem:[%s2 + $0x1e4] sm:$0xf]
  %v334 = vld [vmem:[%s2 + $0x1e8] sm:$0xf]
  %v335 = vld [vmem:[%s2 + $0x1ec] sm:$0xf]
  %v336 = vld [vmem:[%s2 + $0x1f0] sm:$0xf]
  %v337 = vld [vmem:[%s2 + $0x1f4] sm:$0xf]
  %v338 = vld [vmem:[%s2 + $0x1f8] sm:$0xf]
  %v339 = vld [vmem:[%s2 + $0x1fc] sm:$0xf]
  %v340 = vld [vmem:[%s2 + $0x200] sm:$0xf]
  %v341 = vld [vmem:[%s2 + $0x204] sm:$0xf]
  %v342 = vld [vmem:[%s2 + $0x208] sm:$0xf]
  %v343 = vld [vmem:[%s2 + $0x20c] sm:$0xf]
  %v344 = vld [vmem:[%s2 + $0x210] sm:$0xf]
  %v345 = vld [vmem:[%s2 + $0x214] sm:$0xf]
  %v346 = vld [vmem:[%s2 + $0x218] sm:$0xf]
  %v347 = vld [vmem:[%s2 + $0x21c] sm:$0xf]
  %v348 = vld [vmem:[%s2 + $0x220] sm:$0xf]
  %v349 = vld [vmem:[%s2 + $0x224] sm:$0xf]
  %v350 = vld [vmem:[%s2 + $0x228] sm:$0xf]
  %v351 = vld [vmem:[%s2 + $0x22c] sm:$0xf]
  %v352 = vld [vmem:[%s2 + $0x230] sm:$0xf]
  %v353 = vld [vmem:[%s2 + $0x234] sm:$0xf]
  %v354 = vld [vmem:[%s2 + $0x238] sm:$0xf]
  %v355 = vld [vmem:[%s2 + $0x23c] sm:$0xf]
  %v356 = vld [vmem:[%s3] sm:$0x1]
  %v357 = vld [vmem:[%s4] sm:$0x1]
  %v358 = vld [vmem:[%s5] sm:$0x1]
  %v359 = vld [vmem:[%s6] sm:$0x1]
  %v360 = vld [vmem:[%s0] sm:$0xff]
  %v361 = vld [vmem:[%s0 + $0x8] sm:$0xff]
  %v362 = vld [vmem:[%s0 + $0x10] sm:$0xff]
  %v363 = vld [vmem:[%s0 + $0x18] sm:$0xff]
  %v364 = vld [vmem:[%s0 + $0x20] sm:$0xff]
  %v365 = vld [vmem:[%s0 + $0x28] sm:$0xff]
  %v366 = vld [vmem:[%s0 + $0x30] sm:$0xff]
  %v367 = vld [vmem:[%s0 + $0x38] sm:$0xff]
  %v368 = vld [vmem:[%s0 + $0x40] sm:$0xff]
  %v369 = vld [vmem:[%s0 + $0x48] sm:$0xff]
  %v370 = vld [vmem:[%s0 + $0x50] sm:$0xff]
  %v371 = vld [vmem:[%s0 + $0x58] sm:$0xff]
  %v372 = vld [vmem:[%s0 + $0x60] sm:$0xff]
  %v373 = vld [vmem:[%s0 + $0x68] sm:$0xff]
  %v374 = vld [vmem:[%s0 + $0x70] sm:$0xff]
  %v375 = vld [vmem:[%s0 + $0x78] sm:$0xff]
  %v376 = vld [vmem:[%s0 + $0x80] sm:$0xff]
  %v377 = vld [vmem:[%s0 + $0x88] sm:$0xff]
  %v378 = vld [vmem:[%s0 + $0x90] sm:$0xff]
  %v379 = vld [vmem:[%s0 + $0x98] sm:$0xff]
  %v380 = vld [vmem:[%s0 + $0xa0] sm:$0xff]
  %v381 = vld [vmem:[%s0 + $0xa8] sm:$0xff]
  %v382 = vld [vmem:[%s0 + $0xb0] sm:$0xff]
  %v383 = vld [vmem:[%s0 + $0xb8] sm:$0xff]
  %v384 = vld [vmem:[%s0 + $0xc0] sm:$0xff]
  %v385 = vld [vmem:[%s0 + $0xc8] sm:$0xff]
  %v386 = vld [vmem:[%s0 + $0xd0] sm:$0xff]
  %v387 = vld [vmem:[%s0 + $0xd8] sm:$0xff]
  %v388 = vld [vmem:[%s0 + $0xe0] sm:$0xff]
  %v389 = vld [vmem:[%s0 + $0xe8] sm:$0xff]
  %v390 = vld [vmem:[%s0 + $0xf0] sm:$0xff]
  %v391 = vld [vmem:[%s0 + $0xf8] sm:$0xff]
  %v392 = vpack.c.bf16 %v360, %v360
  %v393 = vpack.c.bf16 %v361, %v361
  %v394 = vpack.c.bf16 %v362, %v362
  %v395 = vpack.c.bf16 %v363, %v363
  %v396 = vpack.c.bf16 %v364, %v364
  %v397 = vpack.c.bf16 %v365, %v365
  %v398 = vpack.c.bf16 %v366, %v366
  %v399 = vpack.c.bf16 %v367, %v367
  %v400 = vpack.c.bf16 %v368, %v368
  %v401 = vpack.c.bf16 %v369, %v369
  %v402 = vpack.c.bf16 %v370, %v370
  %v403 = vpack.c.bf16 %v371, %v371
  %v404 = vpack.c.bf16 %v372, %v372
  %v405 = vpack.c.bf16 %v373, %v373
  %v406 = vpack.c.bf16 %v374, %v374
  %v407 = vpack.c.bf16 %v375, %v375
  %v408 = vpack.c.bf16 %v376, %v376
  %v409 = vpack.c.bf16 %v377, %v377
  %v410 = vpack.c.bf16 %v378, %v378
  %v411 = vpack.c.bf16 %v379, %v379
  %v412 = vpack.c.bf16 %v380, %v380
  %v413 = vpack.c.bf16 %v381, %v381
  %v414 = vpack.c.bf16 %v382, %v382
  %v415 = vpack.c.bf16 %v383, %v383
  %v416 = vpack.c.bf16 %v384, %v384
  %v417 = vpack.c.bf16 %v385, %v385
  %v418 = vpack.c.bf16 %v386, %v386
  %v419 = vpack.c.bf16 %v387, %v387
  %v420 = vpack.c.bf16 %v388, %v388
  %v421 = vpack.c.bf16 %v389, %v389
  %v422 = vpack.c.bf16 %v390, %v390
  %v423 = vpack.c.bf16 %v391, %v391
  %s424 = scalar_lea.vmem [#allocation2], 16
  %425 = vst [vmem:[%s424 + $0x4] sm:$0xf] %v392
  %426 = vst [vmem:[%s424 + $0x8] sm:$0xf] %v393
  %427 = vst [vmem:[%s424 + $0x14] sm:$0xf] %v394
  %428 = vst [vmem:[%s424 + $0x18] sm:$0xf] %v395
  %429 = vst [vmem:[%s424 + $0x24] sm:$0xf] %v396
  %430 = vst [vmem:[%s424 + $0x28] sm:$0xf] %v397
  %431 = vst [vmem:[%s424 + $0x34] sm:$0xf] %v398
  %432 = vst [vmem:[%s424 + $0x38] sm:$0xf] %v399
  %433 = vst [vmem:[%s424 + $0x44] sm:$0xf] %v400
  %434 = vst [vmem:[%s424 + $0x48] sm:$0xf] %v401
  %435 = vst [vmem:[%s424 + $0x54] sm:$0xf] %v402
  %436 = vst [vmem:[%s424 + $0x58] sm:$0xf] %v403
  %437 = vst [vmem:[%s424 + $0x64] sm:$0xf] %v404
  %438 = vst [vmem:[%s424 + $0x68] sm:$0xf] %v405
  %439 = vst [vmem:[%s424 + $0x74] sm:$0xf] %v406
  %440 = vst [vmem:[%s424 + $0x78] sm:$0xf] %v407
  %441 = vst [vmem:[%s424 + $0x84] sm:$0xf] %v408
  %442 = vst [vmem:[%s424 + $0x88] sm:$0xf] %v409
  %443 = vst [vmem:[%s424 + $0x94] sm:$0xf] %v410
  %444 = vst [vmem:[%s424 + $0x98] sm:$0xf] %v411
  %445 = vst [vmem:[%s424 + $0xa4] sm:$0xf] %v412
  %446 = vst [vmem:[%s424 + $0xa8] sm:$0xf] %v413
  %447 = vst [vmem:[%s424 + $0xb4] sm:$0xf] %v414
  %448 = vst [vmem:[%s424 + $0xb8] sm:$0xf] %v415
  %449 = vst [vmem:[%s424 + $0xc4] sm:$0xf] %v416
  %450 = vst [vmem:[%s424 + $0xc8] sm:$0xf] %v417
  %451 = vst [vmem:[%s424 + $0xd4] sm:$0xf] %v418
  %452 = vst [vmem:[%s424 + $0xd8] sm:$0xf] %v419
  %453 = vst [vmem:[%s424 + $0xe4] sm:$0xf] %v420
  %454 = vst [vmem:[%s424 + $0xe8] sm:$0xf] %v421
  %455 = vst [vmem:[%s424 + $0xf4] sm:$0xf] %v422
  %456 = vst [vmem:[%s424 + $0xf8] sm:$0xf] %v423
  %v457 = vld [vmem:[#allocation2] sm:$0x8]
  %v458 = vld [vmem:[#allocation2 + $0x4] sm:$0xf]
  %v459 = vld [vmem:[#allocation2 + $0x8] sm:$0xf]
  %v460 = vld [vmem:[#allocation2 + $0x10] sm:$0x8]
  %v461 = vld [vmem:[#allocation2 + $0x14] sm:$0xf]
  %v462 = vld [vmem:[#allocation2 + $0x18] sm:$0xf]
  %v463 = vld [vmem:[#allocation2 + $0x20] sm:$0x8]
  %v464 = vld [vmem:[#allocation2 + $0x24] sm:$0xf]
  %v465 = vld [vmem:[#allocation2 + $0x28] sm:$0xf]
  %v466 = vld [vmem:[#allocation2 + $0x30] sm:$0x8]
  %v467 = vld [vmem:[#allocation2 + $0x34] sm:$0xf]
  %v468 = vld [vmem:[#allocation2 + $0x38] sm:$0xf]
  %v469 = vld [vmem:[#allocation2 + $0x40] sm:$0x8]
  %v470 = vld [vmem:[#allocation2 + $0x44] sm:$0xf]
  %v471 = vld [vmem:[#allocation2 + $0x48] sm:$0xf]
  %v472 = vld [vmem:[#allocation2 + $0x50] sm:$0x8]
  %v473 = vld [vmem:[#allocation2 + $0x54] sm:$0xf]
  %v474 = vld [vmem:[#allocation2 + $0x58] sm:$0xf]
  %v475 = vld [vmem:[#allocation2 + $0x60] sm:$0x8]
  %v476 = vld [vmem:[#allocation2 + $0x64] sm:$0xf]
  %v477 = vld [vmem:[#allocation2 + $0x68] sm:$0xf]
  %v478 = vld [vmem:[#allocation2 + $0x70] sm:$0x8]
  %v479 = vld [vmem:[#allocation2 + $0x74] sm:$0xf]
  %v480 = vld [vmem:[#allocation2 + $0x78] sm:$0xf]
  %v481 = vld [vmem:[#allocation2 + $0x80] sm:$0x8]
  %v482 = vld [vmem:[#allocation2 + $0x84] sm:$0xf]
  %v483 = vld [vmem:[#allocation2 + $0x88] sm:$0xf]
  %v484 = vld [vmem:[#allocation2 + $0x90] sm:$0x8]
  %v485 = vld [vmem:[#allocation2 + $0x94] sm:$0xf]
  %v486 = vld [vmem:[#allocation2 + $0x98] sm:$0xf]
  %v487 = vld [vmem:[#allocation2 + $0xa0] sm:$0x8]
  %v488 = vld [vmem:[#allocation2 + $0xa4] sm:$0xf]
  %v489 = vld [vmem:[#allocation2 + $0xa8] sm:$0xf]
  %v490 = vld [vmem:[#allocation2 + $0xb0] sm:$0x8]
  %v491 = vld [vmem:[#allocation2 + $0xb4] sm:$0xf]
  %v492 = vld [vmem:[#allocation2 + $0xb8] sm:$0xf]
  %v493 = vld [vmem:[#allocation2 + $0xc0] sm:$0x8]
  %v494 = vld [vmem:[#allocation2 + $0xc4] sm:$0xf]
  %v495 = vld [vmem:[#allocation2 + $0xc8] sm:$0xf]
  %v496 = vld [vmem:[#allocation2 + $0xd0] sm:$0x8]
  %v497 = vld [vmem:[#allocation2 + $0xd4] sm:$0xf]
  %v498 = vld [vmem:[#allocation2 + $0xd8] sm:$0xf]
  %v499 = vld [vmem:[#allocation2 + $0xe0] sm:$0x8]
  %v500 = vld [vmem:[#allocation2 + $0xe4] sm:$0xf]
  %v501 = vld [vmem:[#allocation2 + $0xe8] sm:$0xf]
  %v502 = vld [vmem:[#allocation2 + $0xf0] sm:$0x8]
  %v503 = vld [vmem:[#allocation2 + $0xf4] sm:$0xf]
  %v504 = vld [vmem:[#allocation2 + $0xf8] sm:$0xf]
  %vm505 = vsmask.f32 256
  %vm506 = vsmask.f32 4368
  %vm507 = vmor %vm505, %vm506
  %v509 = vshrl.u32 %v457, 16
  %v511 = vrot.slane %v509, 7
  %v512 = vrot.slane %v511, 4
  %v514 = vshrl.u32 %v458, 16
  %v516 = vrot.slane %v514, 7
  %v517 = vshll.u32 %v458, 16
  %v519 = vor.u32 %v516, %v517
  %v520 = vsel %vm507, %v512, %v519
  %v521 = vrot.slane %v516, 4
  %v523 = vshrl.u32 %v459, 16
  %v525 = vrot.slane %v523, 7
  %v526 = vshll.u32 %v459, 16
  %v528 = vor.u32 %v525, %v526
  %v529 = vsel %vm507, %v521, %v528
  %v531 = vshrl.u32 %v460, 16
  %v533 = vrot.slane %v531, 7
  %v534 = vrot.slane %v533, 4
  %v536 = vshrl.u32 %v461, 16
  %v538 = vrot.slane %v536, 7
  %v539 = vshll.u32 %v461, 16
  %v541 = vor.u32 %v538, %v539
  %v542 = vsel %vm507, %v534, %v541
  %v543 = vrot.slane %v538, 4
  %v545 = vshrl.u32 %v462, 16
  %v547 = vrot.slane %v545, 7
  %v548 = vshll.u32 %v462, 16
  %v550 = vor.u32 %v547, %v548
  %v551 = vsel %vm507, %v543, %v550
  %v553 = vshrl.u32 %v463, 16
  %v555 = vrot.slane %v553, 7
  %v556 = vrot.slane %v555, 4
  %v558 = vshrl.u32 %v464, 16
  %v560 = vrot.slane %v558, 7
  %v561 = vshll.u32 %v464, 16
  %v563 = vor.u32 %v560, %v561
  %v564 = vsel %vm507, %v556, %v563
  %v565 = vrot.slane %v560, 4
  %v567 = vshrl.u32 %v465, 16
  %v569 = vrot.slane %v567, 7
  %v570 = vshll.u32 %v465, 16
  %v572 = vor.u32 %v569, %v570
  %v573 = vsel %vm507, %v565, %v572
  %v575 = vshrl.u32 %v466, 16
  %v577 = vrot.slane %v575, 7
  %v578 = vrot.slane %v577, 4
  %v580 = vshrl.u32 %v467, 16
  %v582 = vrot.slane %v580, 7
  %v583 = vshll.u32 %v467, 16
  %v585 = vor.u32 %v582, %v583
  %v586 = vsel %vm507, %v578, %v585
  %v587 = vrot.slane %v582, 4
  %v589 = vshrl.u32 %v468, 16
  %v591 = vrot.slane %v589, 7
  %v592 = vshll.u32 %v468, 16
  %v594 = vor.u32 %v591, %v592
  %v595 = vsel %vm507, %v587, %v594
  %v597 = vshrl.u32 %v469, 16
  %v599 = vrot.slane %v597, 7
  %v600 = vrot.slane %v599, 4
  %v602 = vshrl.u32 %v470, 16
  %v604 = vrot.slane %v602, 7
  %v605 = vshll.u32 %v470, 16
  %v607 = vor.u32 %v604, %v605
  %v608 = vsel %vm507, %v600, %v607
  %v609 = vrot.slane %v604, 4
  %v611 = vshrl.u32 %v471, 16
  %v613 = vrot.slane %v611, 7
  %v614 = vshll.u32 %v471, 16
  %v616 = vor.u32 %v613, %v614
  %v617 = vsel %vm507, %v609, %v616
  %v619 = vshrl.u32 %v472, 16
  %v621 = vrot.slane %v619, 7
  %v622 = vrot.slane %v621, 4
  %v624 = vshrl.u32 %v473, 16
  %v626 = vrot.slane %v624, 7
  %v627 = vshll.u32 %v473, 16
  %v629 = vor.u32 %v626, %v627
  %v630 = vsel %vm507, %v622, %v629
  %v631 = vrot.slane %v626, 4
  %v633 = vshrl.u32 %v474, 16
  %v635 = vrot.slane %v633, 7
  %v636 = vshll.u32 %v474, 16
  %v638 = vor.u32 %v635, %v636
  %v639 = vsel %vm507, %v631, %v638
  %v641 = vshrl.u32 %v475, 16
  %v643 = vrot.slane %v641, 7
  %v644 = vrot.slane %v643, 4
  %v646 = vshrl.u32 %v476, 16
  %v648 = vrot.slane %v646, 7
  %v649 = vshll.u32 %v476, 16
  %v651 = vor.u32 %v648, %v649
  %v652 = vsel %vm507, %v644, %v651
  %v653 = vrot.slane %v648, 4
  %v655 = vshrl.u32 %v477, 16
  %v657 = vrot.slane %v655, 7
  %v658 = vshll.u32 %v477, 16
  %v660 = vor.u32 %v657, %v658
  %v661 = vsel %vm507, %v653, %v660
  %v663 = vshrl.u32 %v478, 16
  %v665 = vrot.slane %v663, 7
  %v666 = vrot.slane %v665, 4
  %v668 = vshrl.u32 %v479, 16
  %v670 = vrot.slane %v668, 7
  %v671 = vshll.u32 %v479, 16
  %v673 = vor.u32 %v670, %v671
  %v674 = vsel %vm507, %v666, %v673
  %v675 = vrot.slane %v670, 4
  %v677 = vshrl.u32 %v480, 16
  %v679 = vrot.slane %v677, 7
  %v680 = vshll.u32 %v480, 16
  %v682 = vor.u32 %v679, %v680
  %v683 = vsel %vm507, %v675, %v682
  %v685 = vshrl.u32 %v481, 16
  %v687 = vrot.slane %v685, 7
  %v688 = vrot.slane %v687, 4
  %v690 = vshrl.u32 %v482, 16
  %v692 = vrot.slane %v690, 7
  %v693 = vshll.u32 %v482, 16
  %v695 = vor.u32 %v692, %v693
  %v696 = vsel %vm507, %v688, %v695
  %v697 = vrot.slane %v692, 4
  %v699 = vshrl.u32 %v483, 16
  %v701 = vrot.slane %v699, 7
  %v702 = vshll.u32 %v483, 16
  %v704 = vor.u32 %v701, %v702
  %v705 = vsel %vm507, %v697, %v704
  %v707 = vshrl.u32 %v484, 16
  %v709 = vrot.slane %v707, 7
  %v710 = vrot.slane %v709, 4
  %v712 = vshrl.u32 %v485, 16
  %v714 = vrot.slane %v712, 7
  %v715 = vshll.u32 %v485, 16
  %v717 = vor.u32 %v714, %v715
  %v718 = vsel %vm507, %v710, %v717
  %v719 = vrot.slane %v714, 4
  %v721 = vshrl.u32 %v486, 16
  %v723 = vrot.slane %v721, 7
  %v724 = vshll.u32 %v486, 16
  %v726 = vor.u32 %v723, %v724
  %v727 = vsel %vm507, %v719, %v726
  %v729 = vshrl.u32 %v487, 16
  %v731 = vrot.slane %v729, 7
  %v732 = vrot.slane %v731, 4
  %v734 = vshrl.u32 %v488, 16
  %v736 = vrot.slane %v734, 7
  %v737 = vshll.u32 %v488, 16
  %v739 = vor.u32 %v736, %v737
  %v740 = vsel %vm507, %v732, %v739
  %v741 = vrot.slane %v736, 4
  %v743 = vshrl.u32 %v489, 16
  %v745 = vrot.slane %v743, 7
  %v746 = vshll.u32 %v489, 16
  %v748 = vor.u32 %v745, %v746
  %v749 = vsel %vm507, %v741, %v748
  %v751 = vshrl.u32 %v490, 16
  %v753 = vrot.slane %v751, 7
  %v754 = vrot.slane %v753, 4
  %v756 = vshrl.u32 %v491, 16
  %v758 = vrot.slane %v756, 7
  %v759 = vshll.u32 %v491, 16
  %v761 = vor.u32 %v758, %v759
  %v762 = vsel %vm507, %v754, %v761
  %v763 = vrot.slane %v758, 4
  %v765 = vshrl.u32 %v492, 16
  %v767 = vrot.slane %v765, 7
  %v768 = vshll.u32 %v492, 16
  %v770 = vor.u32 %v767, %v768
  %v771 = vsel %vm507, %v763, %v770
  %v773 = vshrl.u32 %v493, 16
  %v775 = vrot.slane %v773, 7
  %v776 = vrot.slane %v775, 4
  %v778 = vshrl.u32 %v494, 16
  %v780 = vrot.slane %v778, 7
  %v781 = vshll.u32 %v494, 16
  %v783 = vor.u32 %v780, %v781
  %v784 = vsel %vm507, %v776, %v783
  %v785 = vrot.slane %v780, 4
  %v787 = vshrl.u32 %v495, 16
  %v789 = vrot.slane %v787, 7
  %v790 = vshll.u32 %v495, 16
  %v792 = vor.u32 %v789, %v790
  %v793 = vsel %vm507, %v785, %v792
  %v795 = vshrl.u32 %v496, 16
  %v797 = vrot.slane %v795, 7
  %v798 = vrot.slane %v797, 4
  %v800 = vshrl.u32 %v497, 16
  %v802 = vrot.slane %v800, 7
  %v803 = vshll.u32 %v497, 16
  %v805 = vor.u32 %v802, %v803
  %v806 = vsel %vm507, %v798, %v805
  %v807 = vrot.slane %v802, 4
  %v809 = vshrl.u32 %v498, 16
  %v811 = vrot.slane %v809, 7
  %v812 = vshll.u32 %v498, 16
  %v814 = vor.u32 %v811, %v812
  %v815 = vsel %vm507, %v807, %v814
  %v817 = vshrl.u32 %v499, 16
  %v819 = vrot.slane %v817, 7
  %v820 = vrot.slane %v819, 4
  %v822 = vshrl.u32 %v500, 16
  %v824 = vrot.slane %v822, 7
  %v825 = vshll.u32 %v500, 16
  %v827 = vor.u32 %v824, %v825
  %v828 = vsel %vm507, %v820, %v827
  %v829 = vrot.slane %v824, 4
  %v831 = vshrl.u32 %v501, 16
  %v833 = vrot.slane %v831, 7
  %v834 = vshll.u32 %v501, 16
  %v836 = vor.u32 %v833, %v834
  %v837 = vsel %vm507, %v829, %v836
  %v839 = vshrl.u32 %v502, 16
  %v841 = vrot.slane %v839, 7
  %v842 = vrot.slane %v841, 4
  %v844 = vshrl.u32 %v503, 16
  %v846 = vrot.slane %v844, 7
  %v847 = vshll.u32 %v503, 16
  %v849 = vor.u32 %v846, %v847
  %v850 = vsel %vm507, %v842, %v849
  %v851 = vrot.slane %v846, 4
  %v853 = vshrl.u32 %v504, 16
  %v855 = vrot.slane %v853, 7
  %v856 = vshll.u32 %v504, 16
  %v858 = vor.u32 %v855, %v856
  %v859 = vsel %vm507, %v851, %v858
  %v860 = vld [vmem:[#allocation2 + $0xc] sm:$0x1]
  %v861 = vld [vmem:[#allocation2 + $0x1c] sm:$0x1]
  %v862 = vld [vmem:[#allocation2 + $0x2c] sm:$0x1]
  %v863 = vld [vmem:[#allocation2 + $0x3c] sm:$0x1]
  %v864 = vld [vmem:[#allocation2 + $0x4c] sm:$0x1]
  %v865 = vld [vmem:[#allocation2 + $0x5c] sm:$0x1]
  %v866 = vld [vmem:[#allocation2 + $0x6c] sm:$0x1]
  %v867 = vld [vmem:[#allocation2 + $0x7c] sm:$0x1]
  %v868 = vld [vmem:[#allocation2 + $0x8c] sm:$0x1]
  %v869 = vld [vmem:[#allocation2 + $0x9c] sm:$0x1]
  %v870 = vld [vmem:[#allocation2 + $0xac] sm:$0x1]
  %v871 = vld [vmem:[#allocation2 + $0xbc] sm:$0x1]
  %v872 = vld [vmem:[#allocation2 + $0xcc] sm:$0x1]
  %v873 = vld [vmem:[#allocation2 + $0xdc] sm:$0x1]
  %v874 = vld [vmem:[#allocation2 + $0xec] sm:$0x1]
  %v875 = vld [vmem:[#allocation2 + $0xfc] sm:$0x1]
  %vm876 = vsmask.f32 3328
  %vm877 = vsmask.f32 7440
  %vm878 = vmor %vm876, %vm877
  %v879 = vrot.slane %v514, 4
  %v880 = vrot.slane %v517, 5
  %v881 = vor.u32 %v879, %v880
  %v882 = vrot.slane %v881, 4
  %v883 = vrot.slane %v526, 5
  %v884 = vsel %vm878, %v882, %v883
  %v885 = vrot.slane %v523, 4
  %v886 = vor.u32 %v885, %v883
  %v887 = vrot.slane %v886, 4
  %v889 = vshll.u32 %v860, 16
  %v891 = vrot.slane %v889, 5
  %v892 = vsel %vm878, %v887, %v891
  %v893 = vrot.slane %v536, 4
  %v894 = vrot.slane %v539, 5
  %v895 = vor.u32 %v893, %v894
  %v896 = vrot.slane %v895, 4
  %v897 = vrot.slane %v548, 5
  %v898 = vsel %vm878, %v896, %v897
  %v899 = vrot.slane %v545, 4
  %v900 = vor.u32 %v899, %v897
  %v901 = vrot.slane %v900, 4
  %v903 = vshll.u32 %v861, 16
  %v905 = vrot.slane %v903, 5
  %v906 = vsel %vm878, %v901, %v905
  %v907 = vrot.slane %v558, 4
  %v908 = vrot.slane %v561, 5
  %v909 = vor.u32 %v907, %v908
  %v910 = vrot.slane %v909, 4
  %v911 = vrot.slane %v570, 5
  %v912 = vsel %vm878, %v910, %v911
  %v913 = vrot.slane %v567, 4
  %v914 = vor.u32 %v913, %v911
  %v915 = vrot.slane %v914, 4
  %v917 = vshll.u32 %v862, 16
  %v919 = vrot.slane %v917, 5
  %v920 = vsel %vm878, %v915, %v919
  %v921 = vrot.slane %v580, 4
  %v922 = vrot.slane %v583, 5
  %v923 = vor.u32 %v921, %v922
  %v924 = vrot.slane %v923, 4
  %v925 = vrot.slane %v592, 5
  %v926 = vsel %vm878, %v924, %v925
  %v927 = vrot.slane %v589, 4
  %v928 = vor.u32 %v927, %v925
  %v929 = vrot.slane %v928, 4
  %v931 = vshll.u32 %v863, 16
  %v933 = vrot.slane %v931, 5
  %v934 = vsel %vm878, %v929, %v933
  %v935 = vrot.slane %v602, 4
  %v936 = vrot.slane %v605, 5
  %v937 = vor.u32 %v935, %v936
  %v938 = vrot.slane %v937, 4
  %v939 = vrot.slane %v614, 5
  %v940 = vsel %vm878, %v938, %v939
  %v941 = vrot.slane %v611, 4
  %v942 = vor.u32 %v941, %v939
  %v943 = vrot.slane %v942, 4
  %v945 = vshll.u32 %v864, 16
  %v947 = vrot.slane %v945, 5
  %v948 = vsel %vm878, %v943, %v947
  %v949 = vrot.slane %v624, 4
  %v950 = vrot.slane %v627, 5
  %v951 = vor.u32 %v949, %v950
  %v952 = vrot.slane %v951, 4
  %v953 = vrot.slane %v636, 5
  %v954 = vsel %vm878, %v952, %v953
  %v955 = vrot.slane %v633, 4
  %v956 = vor.u32 %v955, %v953
  %v957 = vrot.slane %v956, 4
  %v959 = vshll.u32 %v865, 16
  %v961 = vrot.slane %v959, 5
  %v962 = vsel %vm878, %v957, %v961
  %v963 = vrot.slane %v646, 4
  %v964 = vrot.slane %v649, 5
  %v965 = vor.u32 %v963, %v964
  %v966 = vrot.slane %v965, 4
  %v967 = vrot.slane %v658, 5
  %v968 = vsel %vm878, %v966, %v967
  %v969 = vrot.slane %v655, 4
  %v970 = vor.u32 %v969, %v967
  %v971 = vrot.slane %v970, 4
  %v973 = vshll.u32 %v866, 16
  %v975 = vrot.slane %v973, 5
  %v976 = vsel %vm878, %v971, %v975
  %v977 = vrot.slane %v668, 4
  %v978 = vrot.slane %v671, 5
  %v979 = vor.u32 %v977, %v978
  %v980 = vrot.slane %v979, 4
  %v981 = vrot.slane %v680, 5
  %v982 = vsel %vm878, %v980, %v981
  %v983 = vrot.slane %v677, 4
  %v984 = vor.u32 %v983, %v981
  %v985 = vrot.slane %v984, 4
  %v987 = vshll.u32 %v867, 16
  %v989 = vrot.slane %v987, 5
  %v990 = vsel %vm878, %v985, %v989
  %v991 = vrot.slane %v690, 4
  %v992 = vrot.slane %v693, 5
  %v993 = vor.u32 %v991, %v992
  %v994 = vrot.slane %v993, 4
  %v995 = vrot.slane %v702, 5
  %v996 = vsel %vm878, %v994, %v995
  %v997 = vrot.slane %v699, 4
  %v998 = vor.u32 %v997, %v995
  %v999 = vrot.slane %v998, 4
  %v1001 = vshll.u32 %v868, 16
  %v1003 = vrot.slane %v1001, 5
  %v1004 = vsel %vm878, %v999, %v1003
  %v1005 = vrot.slane %v712, 4
  %v1006 = vrot.slane %v715, 5
  %v1007 = vor.u32 %v1005, %v1006
  %v1008 = vrot.slane %v1007, 4
  %v1009 = vrot.slane %v724, 5
  %v1010 = vsel %vm878, %v1008, %v1009
  %v1011 = vrot.slane %v721, 4
  %v1012 = vor.u32 %v1011, %v1009
  %v1013 = vrot.slane %v1012, 4
  %v1015 = vshll.u32 %v869, 16
  %v1017 = vrot.slane %v1015, 5
  %v1018 = vsel %vm878, %v1013, %v1017
  %v1019 = vrot.slane %v734, 4
  %v1020 = vrot.slane %v737, 5
  %v1021 = vor.u32 %v1019, %v1020
  %v1022 = vrot.slane %v1021, 4
  %v1023 = vrot.slane %v746, 5
  %v1024 = vsel %vm878, %v1022, %v1023
  %v1025 = vrot.slane %v743, 4
  %v1026 = vor.u32 %v1025, %v1023
  %v1027 = vrot.slane %v1026, 4
  %v1029 = vshll.u32 %v870, 16
  %v1031 = vrot.slane %v1029, 5
  %v1032 = vsel %vm878, %v1027, %v1031
  %v1033 = vrot.slane %v756, 4
  %v1034 = vrot.slane %v759, 5
  %v1035 = vor.u32 %v1033, %v1034
  %v1036 = vrot.slane %v1035, 4
  %v1037 = vrot.slane %v768, 5
  %v1038 = vsel %vm878, %v1036, %v1037
  %v1039 = vrot.slane %v765, 4
  %v1040 = vor.u32 %v1039, %v1037
  %v1041 = vrot.slane %v1040, 4
  %v1043 = vshll.u32 %v871, 16
  %v1045 = vrot.slane %v1043, 5
  %v1046 = vsel %vm878, %v1041, %v1045
  %v1047 = vrot.slane %v778, 4
  %v1048 = vrot.slane %v781, 5
  %v1049 = vor.u32 %v1047, %v1048
  %v1050 = vrot.slane %v1049, 4
  %v1051 = vrot.slane %v790, 5
  %v1052 = vsel %vm878, %v1050, %v1051
  %v1053 = vrot.slane %v787, 4
  %v1054 = vor.u32 %v1053, %v1051
  %v1055 = vrot.slane %v1054, 4
  %v1057 = vshll.u32 %v872, 16
  %v1059 = vrot.slane %v1057, 5
  %v1060 = vsel %vm878, %v1055, %v1059
  %v1061 = vrot.slane %v800, 4
  %v1062 = vrot.slane %v803, 5
  %v1063 = vor.u32 %v1061, %v1062
  %v1064 = vrot.slane %v1063, 4
  %v1065 = vrot.slane %v812, 5
  %v1066 = vsel %vm878, %v1064, %v1065
  %v1067 = vrot.slane %v809, 4
  %v1068 = vor.u32 %v1067, %v1065
  %v1069 = vrot.slane %v1068, 4
  %v1071 = vshll.u32 %v873, 16
  %v1073 = vrot.slane %v1071, 5
  %v1074 = vsel %vm878, %v1069, %v1073
  %v1075 = vrot.slane %v822, 4
  %v1076 = vrot.slane %v825, 5
  %v1077 = vor.u32 %v1075, %v1076
  %v1078 = vrot.slane %v1077, 4
  %v1079 = vrot.slane %v834, 5
  %v1080 = vsel %vm878, %v1078, %v1079
  %v1081 = vrot.slane %v831, 4
  %v1082 = vor.u32 %v1081, %v1079
  %v1083 = vrot.slane %v1082, 4
  %v1085 = vshll.u32 %v874, 16
  %v1087 = vrot.slane %v1085, 5
  %v1088 = vsel %vm878, %v1083, %v1087
  %v1089 = vrot.slane %v844, 4
  %v1090 = vrot.slane %v847, 5
  %v1091 = vor.u32 %v1089, %v1090
  %v1092 = vrot.slane %v1091, 4
  %v1093 = vrot.slane %v856, 5
  %v1094 = vsel %vm878, %v1092, %v1093
  %v1095 = vrot.slane %v853, 4
  %v1096 = vor.u32 %v1095, %v1093
  %v1097 = vrot.slane %v1096, 4
  %v1099 = vshll.u32 %v875, 16
  %v1101 = vrot.slane %v1099, 5
  %v1102 = vsel %vm878, %v1097, %v1101
  %v1103 = vld [vmem:[%s424] sm:$0x8]
  %v1104 = vld [vmem:[%s424 + $0x4] sm:$0xf]
  %v1105 = vld [vmem:[%s424 + $0x8] sm:$0xf]
  %v1106 = vld [vmem:[%s424 + $0x10] sm:$0x8]
  %v1107 = vld [vmem:[%s424 + $0x14] sm:$0xf]
  %v1108 = vld [vmem:[%s424 + $0x18] sm:$0xf]
  %v1109 = vld [vmem:[%s424 + $0x20] sm:$0x8]
  %v1110 = vld [vmem:[%s424 + $0x24] sm:$0xf]
  %v1111 = vld [vmem:[%s424 + $0x28] sm:$0xf]
  %v1112 = vld [vmem:[%s424 + $0x30] sm:$0x8]
  %v1113 = vld [vmem:[%s424 + $0x34] sm:$0xf]
  %v1114 = vld [vmem:[%s424 + $0x38] sm:$0xf]
  %v1115 = vld [vmem:[%s424 + $0x40] sm:$0x8]
  %v1116 = vld [vmem:[%s424 + $0x44] sm:$0xf]
  %v1117 = vld [vmem:[%s424 + $0x48] sm:$0xf]
  %v1118 = vld [vmem:[%s424 + $0x50] sm:$0x8]
  %v1119 = vld [vmem:[%s424 + $0x54] sm:$0xf]
  %v1120 = vld [vmem:[%s424 + $0x58] sm:$0xf]
  %v1121 = vld [vmem:[%s424 + $0x60] sm:$0x8]
  %v1122 = vld [vmem:[%s424 + $0x64] sm:$0xf]
  %v1123 = vld [vmem:[%s424 + $0x68] sm:$0xf]
  %v1124 = vld [vmem:[%s424 + $0x70] sm:$0x8]
  %v1125 = vld [vmem:[%s424 + $0x74] sm:$0xf]
  %v1126 = vld [vmem:[%s424 + $0x78] sm:$0xf]
  %v1127 = vld [vmem:[%s424 + $0x80] sm:$0x8]
  %v1128 = vld [vmem:[%s424 + $0x84] sm:$0xf]
  %v1129 = vld [vmem:[%s424 + $0x88] sm:$0xf]
  %v1130 = vld [vmem:[%s424 + $0x90] sm:$0x8]
  %v1131 = vld [vmem:[%s424 + $0x94] sm:$0xf]
  %v1132 = vld [vmem:[%s424 + $0x98] sm:$0xf]
  %v1133 = vld [vmem:[%s424 + $0xa0] sm:$0x8]
  %v1134 = vld [vmem:[%s424 + $0xa4] sm:$0xf]
  %v1135 = vld [vmem:[%s424 + $0xa8] sm:$0xf]
  %v1136 = vld [vmem:[%s424 + $0xb0] sm:$0x8]
  %v1137 = vld [vmem:[%s424 + $0xb4] sm:$0xf]
  %v1138 = vld [vmem:[%s424 + $0xb8] sm:$0xf]
  %v1139 = vld [vmem:[%s424 + $0xc0] sm:$0x8]
  %v1140 = vld [vmem:[%s424 + $0xc4] sm:$0xf]
  %v1141 = vld [vmem:[%s424 + $0xc8] sm:$0xf]
  %v1142 = vld [vmem:[%s424 + $0xd0] sm:$0x8]
  %v1143 = vld [vmem:[%s424 + $0xd4] sm:$0xf]
  %v1144 = vld [vmem:[%s424 + $0xd8] sm:$0xf]
  %v1145 = vld [vmem:[%s424 + $0xe0] sm:$0x8]
  %v1146 = vld [vmem:[%s424 + $0xe4] sm:$0xf]
  %v1147 = vld [vmem:[%s424 + $0xe8] sm:$0xf]
  %v1148 = vld [vmem:[%s424 + $0xf0] sm:$0x8]
  %v1149 = vld [vmem:[%s424 + $0xf4] sm:$0xf]
  %v1150 = vld [vmem:[%s424 + $0xf8] sm:$0xf]
  %v1152 = vshrl.u32 %v1103, 16
  %v1154 = vrot.slane %v1152, 7
  %v1155 = vrot.slane %v1154, 4
  %v1157 = vshrl.u32 %v1104, 16
  %v1159 = vrot.slane %v1157, 7
  %v1160 = vshll.u32 %v1104, 16
  %v1162 = vor.u32 %v1159, %v1160
  %v1163 = vsel %vm507, %v1155, %v1162
  %v1164 = vrot.slane %v1159, 4
  %v1166 = vshrl.u32 %v1105, 16
  %v1168 = vrot.slane %v1166, 7
  %v1169 = vshll.u32 %v1105, 16
  %v1171 = vor.u32 %v1168, %v1169
  %v1172 = vsel %vm507, %v1164, %v1171
  %v1174 = vshrl.u32 %v1106, 16
  %v1176 = vrot.slane %v1174, 7
  %v1177 = vrot.slane %v1176, 4
  %v1179 = vshrl.u32 %v1107, 16
  %v1181 = vrot.slane %v1179, 7
  %v1182 = vshll.u32 %v1107, 16
  %v1184 = vor.u32 %v1181, %v1182
  %v1185 = vsel %vm507, %v1177, %v1184
  %v1186 = vrot.slane %v1181, 4
  %v1188 = vshrl.u32 %v1108, 16
  %v1190 = vrot.slane %v1188, 7
  %v1191 = vshll.u32 %v1108, 16
  %v1193 = vor.u32 %v1190, %v1191
  %v1194 = vsel %vm507, %v1186, %v1193
  %v1196 = vshrl.u32 %v1109, 16
  %v1198 = vrot.slane %v1196, 7
  %v1199 = vrot.slane %v1198, 4
  %v1201 = vshrl.u32 %v1110, 16
  %v1203 = vrot.slane %v1201, 7
  %v1204 = vshll.u32 %v1110, 16
  %v1206 = vor.u32 %v1203, %v1204
  %v1207 = vsel %vm507, %v1199, %v1206
  %v1208 = vrot.slane %v1203, 4
  %v1210 = vshrl.u32 %v1111, 16
  %v1212 = vrot.slane %v1210, 7
  %v1213 = vshll.u32 %v1111, 16
  %v1215 = vor.u32 %v1212, %v1213
  %v1216 = vsel %vm507, %v1208, %v1215
  %v1218 = vshrl.u32 %v1112, 16
  %v1220 = vrot.slane %v1218, 7
  %v1221 = vrot.slane %v1220, 4
  %v1223 = vshrl.u32 %v1113, 16
  %v1225 = vrot.slane %v1223, 7
  %v1226 = vshll.u32 %v1113, 16
  %v1228 = vor.u32 %v1225, %v1226
  %v1229 = vsel %vm507, %v1221, %v1228
  %v1230 = vrot.slane %v1225, 4
  %v1232 = vshrl.u32 %v1114, 16
  %v1234 = vrot.slane %v1232, 7
  %v1235 = vshll.u32 %v1114, 16
  %v1237 = vor.u32 %v1234, %v1235
  %v1238 = vsel %vm507, %v1230, %v1237
  %v1240 = vshrl.u32 %v1115, 16
  %v1242 = vrot.slane %v1240, 7
  %v1243 = vrot.slane %v1242, 4
  %v1245 = vshrl.u32 %v1116, 16
  %v1247 = vrot.slane %v1245, 7
  %v1248 = vshll.u32 %v1116, 16
  %v1250 = vor.u32 %v1247, %v1248
  %v1251 = vsel %vm507, %v1243, %v1250
  %v1252 = vrot.slane %v1247, 4
  %v1254 = vshrl.u32 %v1117, 16
  %v1256 = vrot.slane %v1254, 7
  %v1257 = vshll.u32 %v1117, 16
  %v1259 = vor.u32 %v1256, %v1257
  %v1260 = vsel %vm507, %v1252, %v1259
  %v1262 = vshrl.u32 %v1118, 16
  %v1264 = vrot.slane %v1262, 7
  %v1265 = vrot.slane %v1264, 4
  %v1267 = vshrl.u32 %v1119, 16
  %v1269 = vrot.slane %v1267, 7
  %v1270 = vshll.u32 %v1119, 16
  %v1272 = vor.u32 %v1269, %v1270
  %v1273 = vsel %vm507, %v1265, %v1272
  %v1274 = vrot.slane %v1269, 4
  %v1276 = vshrl.u32 %v1120, 16
  %v1278 = vrot.slane %v1276, 7
  %v1279 = vshll.u32 %v1120, 16
  %v1281 = vor.u32 %v1278, %v1279
  %v1282 = vsel %vm507, %v1274, %v1281
  %v1284 = vshrl.u32 %v1121, 16
  %v1286 = vrot.slane %v1284, 7
  %v1287 = vrot.slane %v1286, 4
  %v1289 = vshrl.u32 %v1122, 16
  %v1291 = vrot.slane %v1289, 7
  %v1292 = vshll.u32 %v1122, 16
  %v1294 = vor.u32 %v1291, %v1292
  %v1295 = vsel %vm507, %v1287, %v1294
  %v1296 = vrot.slane %v1291, 4
  %v1298 = vshrl.u32 %v1123, 16
  %v1300 = vrot.slane %v1298, 7
  %v1301 = vshll.u32 %v1123, 16
  %v1303 = vor.u32 %v1300, %v1301
  %v1304 = vsel %vm507, %v1296, %v1303
  %v1306 = vshrl.u32 %v1124, 16
  %v1308 = vrot.slane %v1306, 7
  %v1309 = vrot.slane %v1308, 4
  %v1311 = vshrl.u32 %v1125, 16
  %v1313 = vrot.slane %v1311, 7
  %v1314 = vshll.u32 %v1125, 16
  %v1316 = vor.u32 %v1313, %v1314
  %v1317 = vsel %vm507, %v1309, %v1316
  %v1318 = vrot.slane %v1313, 4
  %v1320 = vshrl.u32 %v1126, 16
  %v1322 = vrot.slane %v1320, 7
  %v1323 = vshll.u32 %v1126, 16
  %v1325 = vor.u32 %v1322, %v1323
  %v1326 = vsel %vm507, %v1318, %v1325
  %v1328 = vshrl.u32 %v1127, 16
  %v1330 = vrot.slane %v1328, 7
  %v1331 = vrot.slane %v1330, 4
  %v1333 = vshrl.u32 %v1128, 16
  %v1335 = vrot.slane %v1333, 7
  %v1336 = vshll.u32 %v1128, 16
  %v1338 = vor.u32 %v1335, %v1336
  %v1339 = vsel %vm507, %v1331, %v1338
  %v1340 = vrot.slane %v1335, 4
  %v1342 = vshrl.u32 %v1129, 16
  %v1344 = vrot.slane %v1342, 7
  %v1345 = vshll.u32 %v1129, 16
  %v1347 = vor.u32 %v1344, %v1345
  %v1348 = vsel %vm507, %v1340, %v1347
  %v1350 = vshrl.u32 %v1130, 16
  %v1352 = vrot.slane %v1350, 7
  %v1353 = vrot.slane %v1352, 4
  %v1355 = vshrl.u32 %v1131, 16
  %v1357 = vrot.slane %v1355, 7
  %v1358 = vshll.u32 %v1131, 16
  %v1360 = vor.u32 %v1357, %v1358
  %v1361 = vsel %vm507, %v1353, %v1360
  %v1362 = vrot.slane %v1357, 4
  %v1364 = vshrl.u32 %v1132, 16
  %v1366 = vrot.slane %v1364, 7
  %v1367 = vshll.u32 %v1132, 16
  %v1369 = vor.u32 %v1366, %v1367
  %v1370 = vsel %vm507, %v1362, %v1369
  %v1372 = vshrl.u32 %v1133, 16
  %v1374 = vrot.slane %v1372, 7
  %v1375 = vrot.slane %v1374, 4
  %v1377 = vshrl.u32 %v1134, 16
  %v1379 = vrot.slane %v1377, 7
  %v1380 = vshll.u32 %v1134, 16
  %v1382 = vor.u32 %v1379, %v1380
  %v1383 = vsel %vm507, %v1375, %v1382
  %v1384 = vrot.slane %v1379, 4
  %v1386 = vshrl.u32 %v1135, 16
  %v1388 = vrot.slane %v1386, 7
  %v1389 = vshll.u32 %v1135, 16
  %v1391 = vor.u32 %v1388, %v1389
  %v1392 = vsel %vm507, %v1384, %v1391
  %v1394 = vshrl.u32 %v1136, 16
  %v1396 = vrot.slane %v1394, 7
  %v1397 = vrot.slane %v1396, 4
  %v1399 = vshrl.u32 %v1137, 16
  %v1401 = vrot.slane %v1399, 7
  %v1402 = vshll.u32 %v1137, 16
  %v1404 = vor.u32 %v1401, %v1402
  %v1405 = vsel %vm507, %v1397, %v1404
  %v1406 = vrot.slane %v1401, 4
  %v1408 = vshrl.u32 %v1138, 16
  %v1410 = vrot.slane %v1408, 7
  %v1411 = vshll.u32 %v1138, 16
  %v1413 = vor.u32 %v1410, %v1411
  %v1414 = vsel %vm507, %v1406, %v1413
  %v1416 = vshrl.u32 %v1139, 16
  %v1418 = vrot.slane %v1416, 7
  %v1419 = vrot.slane %v1418, 4
  %v1421 = vshrl.u32 %v1140, 16
  %v1423 = vrot.slane %v1421, 7
  %v1424 = vshll.u32 %v1140, 16
  %v1426 = vor.u32 %v1423, %v1424
  %v1427 = vsel %vm507, %v1419, %v1426
  %v1428 = vrot.slane %v1423, 4
  %v1430 = vshrl.u32 %v1141, 16
  %v1432 = vrot.slane %v1430, 7
  %v1433 = vshll.u32 %v1141, 16
  %v1435 = vor.u32 %v1432, %v1433
  %v1436 = vsel %vm507, %v1428, %v1435
  %v1438 = vshrl.u32 %v1142, 16
  %v1440 = vrot.slane %v1438, 7
  %v1441 = vrot.slane %v1440, 4
  %v1443 = vshrl.u32 %v1143, 16
  %v1445 = vrot.slane %v1443, 7
  %v1446 = vshll.u32 %v1143, 16
  %v1448 = vor.u32 %v1445, %v1446
  %v1449 = vsel %vm507, %v1441, %v1448
  %v1450 = vrot.slane %v1445, 4
  %v1452 = vshrl.u32 %v1144, 16
  %v1454 = vrot.slane %v1452, 7
  %v1455 = vshll.u32 %v1144, 16
  %v1457 = vor.u32 %v1454, %v1455
  %v1458 = vsel %vm507, %v1450, %v1457
  %v1460 = vshrl.u32 %v1145, 16
  %v1462 = vrot.slane %v1460, 7
  %v1463 = vrot.slane %v1462, 4
  %v1465 = vshrl.u32 %v1146, 16
  %v1467 = vrot.slane %v1465, 7
  %v1468 = vshll.u32 %v1146, 16
  %v1470 = vor.u32 %v1467, %v1468
  %v1471 = vsel %vm507, %v1463, %v1470
  %v1472 = vrot.slane %v1467, 4
  %v1474 = vshrl.u32 %v1147, 16
  %v1476 = vrot.slane %v1474, 7
  %v1477 = vshll.u32 %v1147, 16
  %v1479 = vor.u32 %v1476, %v1477
  %v1480 = vsel %vm507, %v1472, %v1479
  %v1482 = vshrl.u32 %v1148, 16
  %v1484 = vrot.slane %v1482, 7
  %v1485 = vrot.slane %v1484, 4
  %v1487 = vshrl.u32 %v1149, 16
  %v1489 = vrot.slane %v1487, 7
  %v1490 = vshll.u32 %v1149, 16
  %v1492 = vor.u32 %v1489, %v1490
  %v1493 = vsel %vm507, %v1485, %v1492
  %v1494 = vrot.slane %v1489, 4
  %v1496 = vshrl.u32 %v1150, 16
  %v1498 = vrot.slane %v1496, 7
  %v1499 = vshll.u32 %v1150, 16
  %v1501 = vor.u32 %v1498, %v1499
  %v1502 = vsel %vm507, %v1494, %v1501
  %v1503 = vld [vmem:[%s424 + $0xc] sm:$0x1]
  %v1504 = vld [vmem:[%s424 + $0x1c] sm:$0x1]
  %v1505 = vld [vmem:[%s424 + $0x2c] sm:$0x1]
  %v1506 = vld [vmem:[%s424 + $0x3c] sm:$0x1]
  %v1507 = vld [vmem:[%s424 + $0x4c] sm:$0x1]
  %v1508 = vld [vmem:[%s424 + $0x5c] sm:$0x1]
  %v1509 = vld [vmem:[%s424 + $0x6c] sm:$0x1]
  %v1510 = vld [vmem:[%s424 + $0x7c] sm:$0x1]
  %v1511 = vld [vmem:[%s424 + $0x8c] sm:$0x1]
  %v1512 = vld [vmem:[%s424 + $0x9c] sm:$0x1]
  %v1513 = vld [vmem:[%s424 + $0xac] sm:$0x1]
  %v1514 = vld [vmem:[%s424 + $0xbc] sm:$0x1]
  %v1515 = vld [vmem:[%s424 + $0xcc] sm:$0x1]
  %v1516 = vld [vmem:[%s424 + $0xdc] sm:$0x1]
  %v1517 = vld [vmem:[%s424 + $0xec] sm:$0x1]
  %v1518 = vld [vmem:[%s424 + $0xfc] sm:$0x1]
  %v1519 = vrot.slane %v1157, 4
  %v1520 = vrot.slane %v1160, 5
  %v1521 = vor.u32 %v1519, %v1520
  %v1522 = vrot.slane %v1521, 4
  %v1523 = vrot.slane %v1169, 5
  %v1524 = vsel %vm878, %v1522, %v1523
  %v1525 = vrot.slane %v1166, 4
  %v1526 = vor.u32 %v1525, %v1523
  %v1527 = vrot.slane %v1526, 4
  %v1529 = vshll.u32 %v1503, 16
  %v1531 = vrot.slane %v1529, 5
  %v1532 = vsel %vm878, %v1527, %v1531
  %v1533 = vrot.slane %v1179, 4
  %v1534 = vrot.slane %v1182, 5
  %v1535 = vor.u32 %v1533, %v1534
  %v1536 = vrot.slane %v1535, 4
  %v1537 = vrot.slane %v1191, 5
  %v1538 = vsel %vm878, %v1536, %v1537
  %v1539 = vrot.slane %v1188, 4
  %v1540 = vor.u32 %v1539, %v1537
  %v1541 = vrot.slane %v1540, 4
  %v1543 = vshll.u32 %v1504, 16
  %v1545 = vrot.slane %v1543, 5
  %v1546 = vsel %vm878, %v1541, %v1545
  %v1547 = vrot.slane %v1201, 4
  %v1548 = vrot.slane %v1204, 5
  %v1549 = vor.u32 %v1547, %v1548
  %v1550 = vrot.slane %v1549, 4
  %v1551 = vrot.slane %v1213, 5
  %v1552 = vsel %vm878, %v1550, %v1551
  %v1553 = vrot.slane %v1210, 4
  %v1554 = vor.u32 %v1553, %v1551
  %v1555 = vrot.slane %v1554, 4
  %v1557 = vshll.u32 %v1505, 16
  %v1559 = vrot.slane %v1557, 5
  %v1560 = vsel %vm878, %v1555, %v1559
  %v1561 = vrot.slane %v1223, 4
  %v1562 = vrot.slane %v1226, 5
  %v1563 = vor.u32 %v1561, %v1562
  %v1564 = vrot.slane %v1563, 4
  %v1565 = vrot.slane %v1235, 5
  %v1566 = vsel %vm878, %v1564, %v1565
  %v1567 = vrot.slane %v1232, 4
  %v1568 = vor.u32 %v1567, %v1565
  %v1569 = vrot.slane %v1568, 4
  %v1571 = vshll.u32 %v1506, 16
  %v1573 = vrot.slane %v1571, 5
  %v1574 = vsel %vm878, %v1569, %v1573
  %v1575 = vrot.slane %v1245, 4
  %v1576 = vrot.slane %v1248, 5
  %v1577 = vor.u32 %v1575, %v1576
  %v1578 = vrot.slane %v1577, 4
  %v1579 = vrot.slane %v1257, 5
  %v1580 = vsel %vm878, %v1578, %v1579
  %v1581 = vrot.slane %v1254, 4
  %v1582 = vor.u32 %v1581, %v1579
  %v1583 = vrot.slane %v1582, 4
  %v1585 = vshll.u32 %v1507, 16
  %v1587 = vrot.slane %v1585, 5
  %v1588 = vsel %vm878, %v1583, %v1587
  %v1589 = vrot.slane %v1267, 4
  %v1590 = vrot.slane %v1270, 5
  %v1591 = vor.u32 %v1589, %v1590
  %v1592 = vrot.slane %v1591, 4
  %v1593 = vrot.slane %v1279, 5
  %v1594 = vsel %vm878, %v1592, %v1593
  %v1595 = vrot.slane %v1276, 4
  %v1596 = vor.u32 %v1595, %v1593
  %v1597 = vrot.slane %v1596, 4
  %v1599 = vshll.u32 %v1508, 16
  %v1601 = vrot.slane %v1599, 5
  %v1602 = vsel %vm878, %v1597, %v1601
  %v1603 = vrot.slane %v1289, 4
  %v1604 = vrot.slane %v1292, 5
  %v1605 = vor.u32 %v1603, %v1604
  %v1606 = vrot.slane %v1605, 4
  %v1607 = vrot.slane %v1301, 5
  %v1608 = vsel %vm878, %v1606, %v1607
  %v1609 = vrot.slane %v1298, 4
  %v1610 = vor.u32 %v1609, %v1607
  %v1611 = vrot.slane %v1610, 4
  %v1613 = vshll.u32 %v1509, 16
  %v1615 = vrot.slane %v1613, 5
  %v1616 = vsel %vm878, %v1611, %v1615
  %v1617 = vrot.slane %v1311, 4
  %v1618 = vrot.slane %v1314, 5
  %v1619 = vor.u32 %v1617, %v1618
  %v1620 = vrot.slane %v1619, 4
  %v1621 = vrot.slane %v1323, 5
  %v1622 = vsel %vm878, %v1620, %v1621
  %v1623 = vrot.slane %v1320, 4
  %v1624 = vor.u32 %v1623, %v1621
  %v1625 = vrot.slane %v1624, 4
  %v1627 = vshll.u32 %v1510, 16
  %v1629 = vrot.slane %v1627, 5
  %v1630 = vsel %vm878, %v1625, %v1629
  %v1631 = vrot.slane %v1333, 4
  %v1632 = vrot.slane %v1336, 5
  %v1633 = vor.u32 %v1631, %v1632
  %v1634 = vrot.slane %v1633, 4
  %v1635 = vrot.slane %v1345, 5
  %v1636 = vsel %vm878, %v1634, %v1635
  %v1637 = vrot.slane %v1342, 4
  %v1638 = vor.u32 %v1637, %v1635
  %v1639 = vrot.slane %v1638, 4
  %v1641 = vshll.u32 %v1511, 16
  %v1643 = vrot.slane %v1641, 5
  %v1644 = vsel %vm878, %v1639, %v1643
  %v1645 = vrot.slane %v1355, 4
  %v1646 = vrot.slane %v1358, 5
  %v1647 = vor.u32 %v1645, %v1646
  %v1648 = vrot.slane %v1647, 4
  %v1649 = vrot.slane %v1367, 5
  %v1650 = vsel %vm878, %v1648, %v1649
  %v1651 = vrot.slane %v1364, 4
  %v1652 = vor.u32 %v1651, %v1649
  %v1653 = vrot.slane %v1652, 4
  %v1655 = vshll.u32 %v1512, 16
  %v1657 = vrot.slane %v1655, 5
  %v1658 = vsel %vm878, %v1653, %v1657
  %v1659 = vrot.slane %v1377, 4
  %v1660 = vrot.slane %v1380, 5
  %v1661 = vor.u32 %v1659, %v1660
  %v1662 = vrot.slane %v1661, 4
  %v1663 = vrot.slane %v1389, 5
  %v1664 = vsel %vm878, %v1662, %v1663
  %v1665 = vrot.slane %v1386, 4
  %v1666 = vor.u32 %v1665, %v1663
  %v1667 = vrot.slane %v1666, 4
  %v1669 = vshll.u32 %v1513, 16
  %v1671 = vrot.slane %v1669, 5
  %v1672 = vsel %vm878, %v1667, %v1671
  %v1673 = vrot.slane %v1399, 4
  %v1674 = vrot.slane %v1402, 5
  %v1675 = vor.u32 %v1673, %v1674
  %v1676 = vrot.slane %v1675, 4
  %v1677 = vrot.slane %v1411, 5
  %v1678 = vsel %vm878, %v1676, %v1677
  %v1679 = vrot.slane %v1408, 4
  %v1680 = vor.u32 %v1679, %v1677
  %v1681 = vrot.slane %v1680, 4
  %v1683 = vshll.u32 %v1514, 16
  %v1685 = vrot.slane %v1683, 5
  %v1686 = vsel %vm878, %v1681, %v1685
  %v1687 = vrot.slane %v1421, 4
  %v1688 = vrot.slane %v1424, 5
  %v1689 = vor.u32 %v1687, %v1688
  %v1690 = vrot.slane %v1689, 4
  %v1691 = vrot.slane %v1433, 5
  %v1692 = vsel %vm878, %v1690, %v1691
  %v1693 = vrot.slane %v1430, 4
  %v1694 = vor.u32 %v1693, %v1691
  %v1695 = vrot.slane %v1694, 4
  %v1697 = vshll.u32 %v1515, 16
  %v1699 = vrot.slane %v1697, 5
  %v1700 = vsel %vm878, %v1695, %v1699
  %v1701 = vrot.slane %v1443, 4
  %v1702 = vrot.slane %v1446, 5
  %v1703 = vor.u32 %v1701, %v1702
  %v1704 = vrot.slane %v1703, 4
  %v1705 = vrot.slane %v1455, 5
  %v1706 = vsel %vm878, %v1704, %v1705
  %v1707 = vrot.slane %v1452, 4
  %v1708 = vor.u32 %v1707, %v1705
  %v1709 = vrot.slane %v1708, 4
  %v1711 = vshll.u32 %v1516, 16
  %v1713 = vrot.slane %v1711, 5
  %v1714 = vsel %vm878, %v1709, %v1713
  %v1715 = vrot.slane %v1465, 4
  %v1716 = vrot.slane %v1468, 5
  %v1717 = vor.u32 %v1715, %v1716
  %v1718 = vrot.slane %v1717, 4
  %v1719 = vrot.slane %v1477, 5
  %v1720 = vsel %vm878, %v1718, %v1719
  %v1721 = vrot.slane %v1474, 4
  %v1722 = vor.u32 %v1721, %v1719
  %v1723 = vrot.slane %v1722, 4
  %v1725 = vshll.u32 %v1517, 16
  %v1727 = vrot.slane %v1725, 5
  %v1728 = vsel %vm878, %v1723, %v1727
  %v1729 = vrot.slane %v1487, 4
  %v1730 = vrot.slane %v1490, 5
  %v1731 = vor.u32 %v1729, %v1730
  %v1732 = vrot.slane %v1731, 4
  %v1733 = vrot.slane %v1499, 5
  %v1734 = vsel %vm878, %v1732, %v1733
  %v1735 = vrot.slane %v1496, 4
  %v1736 = vor.u32 %v1735, %v1733
  %v1737 = vrot.slane %v1736, 4
  %v1739 = vshll.u32 %v1518, 16
  %v1741 = vrot.slane %v1739, 5
  %v1742 = vsel %vm878, %v1737, %v1741
  %s1743 = scalar_lea.vmem [#allocation2], 32
  %v1744 = vld [vmem:[%s1743] sm:$0x8]
  %v1745 = vld [vmem:[%s1743 + $0x4] sm:$0xf]
  %v1746 = vld [vmem:[%s1743 + $0x8] sm:$0xf]
  %v1747 = vld [vmem:[%s1743 + $0x10] sm:$0x8]
  %v1748 = vld [vmem:[%s1743 + $0x14] sm:$0xf]
  %v1749 = vld [vmem:[%s1743 + $0x18] sm:$0xf]
  %v1750 = vld [vmem:[%s1743 + $0x20] sm:$0x8]
  %v1751 = vld [vmem:[%s1743 + $0x24] sm:$0xf]
  %v1752 = vld [vmem:[%s1743 + $0x28] sm:$0xf]
  %v1753 = vld [vmem:[%s1743 + $0x30] sm:$0x8]
  %v1754 = vld [vmem:[%s1743 + $0x34] sm:$0xf]
  %v1755 = vld [vmem:[%s1743 + $0x38] sm:$0xf]
  %v1756 = vld [vmem:[%s1743 + $0x40] sm:$0x8]
  %v1757 = vld [vmem:[%s1743 + $0x44] sm:$0xf]
  %v1758 = vld [vmem:[%s1743 + $0x48] sm:$0xf]
  %v1759 = vld [vmem:[%s1743 + $0x50] sm:$0x8]
  %v1760 = vld [vmem:[%s1743 + $0x54] sm:$0xf]
  %v1761 = vld [vmem:[%s1743 + $0x58] sm:$0xf]
  %v1762 = vld [vmem:[%s1743 + $0x60] sm:$0x8]
  %v1763 = vld [vmem:[%s1743 + $0x64] sm:$0xf]
  %v1764 = vld [vmem:[%s1743 + $0x68] sm:$0xf]
  %v1765 = vld [vmem:[%s1743 + $0x70] sm:$0x8]
  %v1766 = vld [vmem:[%s1743 + $0x74] sm:$0xf]
  %v1767 = vld [vmem:[%s1743 + $0x78] sm:$0xf]
  %v1768 = vld [vmem:[%s1743 + $0x80] sm:$0x8]
  %v1769 = vld [vmem:[%s1743 + $0x84] sm:$0xf]
  %v1770 = vld [vmem:[%s1743 + $0x88] sm:$0xf]
  %v1771 = vld [vmem:[%s1743 + $0x90] sm:$0x8]
  %v1772 = vld [vmem:[%s1743 + $0x94] sm:$0xf]
  %v1773 = vld [vmem:[%s1743 + $0x98] sm:$0xf]
  %v1774 = vld [vmem:[%s1743 + $0xa0] sm:$0x8]
  %v1775 = vld [vmem:[%s1743 + $0xa4] sm:$0xf]
  %v1776 = vld [vmem:[%s1743 + $0xa8] sm:$0xf]
  %v1777 = vld [vmem:[%s1743 + $0xb0] sm:$0x8]
  %v1778 = vld [vmem:[%s1743 + $0xb4] sm:$0xf]
  %v1779 = vld [vmem:[%s1743 + $0xb8] sm:$0xf]
  %v1780 = vld [vmem:[%s1743 + $0xc0] sm:$0x8]
  %v1781 = vld [vmem:[%s1743 + $0xc4] sm:$0xf]
  %v1782 = vld [vmem:[%s1743 + $0xc8] sm:$0xf]
  %v1783 = vld [vmem:[%s1743 + $0xd0] sm:$0x8]
  %v1784 = vld [vmem:[%s1743 + $0xd4] sm:$0xf]
  %v1785 = vld [vmem:[%s1743 + $0xd8] sm:$0xf]
  %v1786 = vld [vmem:[%s1743 + $0xe0] sm:$0x8]
  %v1787 = vld [vmem:[%s1743 + $0xe4] sm:$0xf]
  %v1788 = vld [vmem:[%s1743 + $0xe8] sm:$0xf]
  %v1789 = vld [vmem:[%s1743 + $0xf0] sm:$0x8]
  %v1790 = vld [vmem:[%s1743 + $0xf4] sm:$0xf]
  %v1791 = vld [vmem:[%s1743 + $0xf8] sm:$0xf]
  %v1793 = vshrl.u32 %v1744, 16
  %v1795 = vrot.slane %v1793, 7
  %v1796 = vrot.slane %v1795, 4
  %v1798 = vshrl.u32 %v1745, 16
  %v1800 = vrot.slane %v1798, 7
  %v1801 = vshll.u32 %v1745, 16
  %v1803 = vor.u32 %v1800, %v1801
  %v1804 = vsel %vm507, %v1796, %v1803
  %v1805 = vrot.slane %v1800, 4
  %v1807 = vshrl.u32 %v1746, 16
  %v1809 = vrot.slane %v1807, 7
  %v1810 = vshll.u32 %v1746, 16
  %v1812 = vor.u32 %v1809, %v1810
  %v1813 = vsel %vm507, %v1805, %v1812
  %v1815 = vshrl.u32 %v1747, 16
  %v1817 = vrot.slane %v1815, 7
  %v1818 = vrot.slane %v1817, 4
  %v1820 = vshrl.u32 %v1748, 16
  %v1822 = vrot.slane %v1820, 7
  %v1823 = vshll.u32 %v1748, 16
  %v1825 = vor.u32 %v1822, %v1823
  %v1826 = vsel %vm507, %v1818, %v1825
  %v1827 = vrot.slane %v1822, 4
  %v1829 = vshrl.u32 %v1749, 16
  %v1831 = vrot.slane %v1829, 7
  %v1832 = vshll.u32 %v1749, 16
  %v1834 = vor.u32 %v1831, %v1832
  %v1835 = vsel %vm507, %v1827, %v1834
  %v1837 = vshrl.u32 %v1750, 16
  %v1839 = vrot.slane %v1837, 7
  %v1840 = vrot.slane %v1839, 4
  %v1842 = vshrl.u32 %v1751, 16
  %v1844 = vrot.slane %v1842, 7
  %v1845 = vshll.u32 %v1751, 16
  %v1847 = vor.u32 %v1844, %v1845
  %v1848 = vsel %vm507, %v1840, %v1847
  %v1849 = vrot.slane %v1844, 4
  %v1851 = vshrl.u32 %v1752, 16
  %v1853 = vrot.slane %v1851, 7
  %v1854 = vshll.u32 %v1752, 16
  %v1856 = vor.u32 %v1853, %v1854
  %v1857 = vsel %vm507, %v1849, %v1856
  %v1859 = vshrl.u32 %v1753, 16
  %v1861 = vrot.slane %v1859, 7
  %v1862 = vrot.slane %v1861, 4
  %v1864 = vshrl.u32 %v1754, 16
  %v1866 = vrot.slane %v1864, 7
  %v1867 = vshll.u32 %v1754, 16
  %v1869 = vor.u32 %v1866, %v1867
  %v1870 = vsel %vm507, %v1862, %v1869
  %v1871 = vrot.slane %v1866, 4
  %v1873 = vshrl.u32 %v1755, 16
  %v1875 = vrot.slane %v1873, 7
  %v1876 = vshll.u32 %v1755, 16
  %v1878 = vor.u32 %v1875, %v1876
  %v1879 = vsel %vm507, %v1871, %v1878
  %v1881 = vshrl.u32 %v1756, 16
  %v1883 = vrot.slane %v1881, 7
  %v1884 = vrot.slane %v1883, 4
  %v1886 = vshrl.u32 %v1757, 16
  %v1888 = vrot.slane %v1886, 7
  %v1889 = vshll.u32 %v1757, 16
  %v1891 = vor.u32 %v1888, %v1889
  %v1892 = vsel %vm507, %v1884, %v1891
  %v1893 = vrot.slane %v1888, 4
  %v1895 = vshrl.u32 %v1758, 16
  %v1897 = vrot.slane %v1895, 7
  %v1898 = vshll.u32 %v1758, 16
  %v1900 = vor.u32 %v1897, %v1898
  %v1901 = vsel %vm507, %v1893, %v1900
  %v1903 = vshrl.u32 %v1759, 16
  %v1905 = vrot.slane %v1903, 7
  %v1906 = vrot.slane %v1905, 4
  %v1908 = vshrl.u32 %v1760, 16
  %v1910 = vrot.slane %v1908, 7
  %v1911 = vshll.u32 %v1760, 16
  %v1913 = vor.u32 %v1910, %v1911
  %v1914 = vsel %vm507, %v1906, %v1913
  %v1915 = vrot.slane %v1910, 4
  %v1917 = vshrl.u32 %v1761, 16
  %v1919 = vrot.slane %v1917, 7
  %v1920 = vshll.u32 %v1761, 16
  %v1922 = vor.u32 %v1919, %v1920
  %v1923 = vsel %vm507, %v1915, %v1922
  %v1925 = vshrl.u32 %v1762, 16
  %v1927 = vrot.slane %v1925, 7
  %v1928 = vrot.slane %v1927, 4
  %v1930 = vshrl.u32 %v1763, 16
  %v1932 = vrot.slane %v1930, 7
  %v1933 = vshll.u32 %v1763, 16
  %v1935 = vor.u32 %v1932, %v1933
  %v1936 = vsel %vm507, %v1928, %v1935
  %v1937 = vrot.slane %v1932, 4
  %v1939 = vshrl.u32 %v1764, 16
  %v1941 = vrot.slane %v1939, 7
  %v1942 = vshll.u32 %v1764, 16
  %v1944 = vor.u32 %v1941, %v1942
  %v1945 = vsel %vm507, %v1937, %v1944
  %v1947 = vshrl.u32 %v1765, 16
  %v1949 = vrot.slane %v1947, 7
  %v1950 = vrot.slane %v1949, 4
  %v1952 = vshrl.u32 %v1766, 16
  %v1954 = vrot.slane %v1952, 7
  %v1955 = vshll.u32 %v1766, 16
  %v1957 = vor.u32 %v1954, %v1955
  %v1958 = vsel %vm507, %v1950, %v1957
  %v1959 = vrot.slane %v1954, 4
  %v1961 = vshrl.u32 %v1767, 16
  %v1963 = vrot.slane %v1961, 7
  %v1964 = vshll.u32 %v1767, 16
  %v1966 = vor.u32 %v1963, %v1964
  %v1967 = vsel %vm507, %v1959, %v1966
  %v1969 = vshrl.u32 %v1768, 16
  %v1971 = vrot.slane %v1969, 7
  %v1972 = vrot.slane %v1971, 4
  %v1974 = vshrl.u32 %v1769, 16
  %v1976 = vrot.slane %v1974, 7
  %v1977 = vshll.u32 %v1769, 16
  %v1979 = vor.u32 %v1976, %v1977
  %v1980 = vsel %vm507, %v1972, %v1979
  %v1981 = vrot.slane %v1976, 4
  %v1983 = vshrl.u32 %v1770, 16
  %v1985 = vrot.slane %v1983, 7
  %v1986 = vshll.u32 %v1770, 16
  %v1988 = vor.u32 %v1985, %v1986
  %v1989 = vsel %vm507, %v1981, %v1988
  %v1991 = vshrl.u32 %v1771, 16
  %v1993 = vrot.slane %v1991, 7
  %v1994 = vrot.slane %v1993, 4
  %v1996 = vshrl.u32 %v1772, 16
  %v1998 = vrot.slane %v1996, 7
  %v1999 = vshll.u32 %v1772, 16
  %v2001 = vor.u32 %v1998, %v1999
  %v2002 = vsel %vm507, %v1994, %v2001
  %v2003 = vrot.slane %v1998, 4
  %v2005 = vshrl.u32 %v1773, 16
  %v2007 = vrot.slane %v2005, 7
  %v2008 = vshll.u32 %v1773, 16
  %v2010 = vor.u32 %v2007, %v2008
  %v2011 = vsel %vm507, %v2003, %v2010
  %v2013 = vshrl.u32 %v1774, 16
  %v2015 = vrot.slane %v2013, 7
  %v2016 = vrot.slane %v2015, 4
  %v2018 = vshrl.u32 %v1775, 16
  %v2020 = vrot.slane %v2018, 7
  %v2021 = vshll.u32 %v1775, 16
  %v2023 = vor.u32 %v2020, %v2021
  %v2024 = vsel %vm507, %v2016, %v2023
  %v2025 = vrot.slane %v2020, 4
  %v2027 = vshrl.u32 %v1776, 16
  %v2029 = vrot.slane %v2027, 7
  %v2030 = vshll.u32 %v1776, 16
  %v2032 = vor.u32 %v2029, %v2030
  %v2033 = vsel %vm507, %v2025, %v2032
  %v2035 = vshrl.u32 %v1777, 16
  %v2037 = vrot.slane %v2035, 7
  %v2038 = vrot.slane %v2037, 4
  %v2040 = vshrl.u32 %v1778, 16
  %v2042 = vrot.slane %v2040, 7
  %v2043 = vshll.u32 %v1778, 16
  %v2045 = vor.u32 %v2042, %v2043
  %v2046 = vsel %vm507, %v2038, %v2045
  %v2047 = vrot.slane %v2042, 4
  %v2049 = vshrl.u32 %v1779, 16
  %v2051 = vrot.slane %v2049, 7
  %v2052 = vshll.u32 %v1779, 16
  %v2054 = vor.u32 %v2051, %v2052
  %v2055 = vsel %vm507, %v2047, %v2054
  %v2057 = vshrl.u32 %v1780, 16
  %v2059 = vrot.slane %v2057, 7
  %v2060 = vrot.slane %v2059, 4
  %v2062 = vshrl.u32 %v1781, 16
  %v2064 = vrot.slane %v2062, 7
  %v2065 = vshll.u32 %v1781, 16
  %v2067 = vor.u32 %v2064, %v2065
  %v2068 = vsel %vm507, %v2060, %v2067
  %v2069 = vrot.slane %v2064, 4
  %v2071 = vshrl.u32 %v1782, 16
  %v2073 = vrot.slane %v2071, 7
  %v2074 = vshll.u32 %v1782, 16
  %v2076 = vor.u32 %v2073, %v2074
  %v2077 = vsel %vm507, %v2069, %v2076
  %v2079 = vshrl.u32 %v1783, 16
  %v2081 = vrot.slane %v2079, 7
  %v2082 = vrot.slane %v2081, 4
  %v2084 = vshrl.u32 %v1784, 16
  %v2086 = vrot.slane %v2084, 7
  %v2087 = vshll.u32 %v1784, 16
  %v2089 = vor.u32 %v2086, %v2087
  %v2090 = vsel %vm507, %v2082, %v2089
  %v2091 = vrot.slane %v2086, 4
  %v2093 = vshrl.u32 %v1785, 16
  %v2095 = vrot.slane %v2093, 7
  %v2096 = vshll.u32 %v1785, 16
  %v2098 = vor.u32 %v2095, %v2096
  %v2099 = vsel %vm507, %v2091, %v2098
  %v2101 = vshrl.u32 %v1786, 16
  %v2103 = vrot.slane %v2101, 7
  %v2104 = vrot.slane %v2103, 4
  %v2106 = vshrl.u32 %v1787, 16
  %v2108 = vrot.slane %v2106, 7
  %v2109 = vshll.u32 %v1787, 16
  %v2111 = vor.u32 %v2108, %v2109
  %v2112 = vsel %vm507, %v2104, %v2111
  %v2113 = vrot.slane %v2108, 4
  %v2115 = vshrl.u32 %v1788, 16
  %v2117 = vrot.slane %v2115, 7
  %v2118 = vshll.u32 %v1788, 16
  %v2120 = vor.u32 %v2117, %v2118
  %v2121 = vsel %vm507, %v2113, %v2120
  %v2123 = vshrl.u32 %v1789, 16
  %v2125 = vrot.slane %v2123, 7
  %v2126 = vrot.slane %v2125, 4
  %v2128 = vshrl.u32 %v1790, 16
  %v2130 = vrot.slane %v2128, 7
  %v2131 = vshll.u32 %v1790, 16
  %v2133 = vor.u32 %v2130, %v2131
  %v2134 = vsel %vm507, %v2126, %v2133
  %v2135 = vrot.slane %v2130, 4
  %v2137 = vshrl.u32 %v1791, 16
  %v2139 = vrot.slane %v2137, 7
  %v2140 = vshll.u32 %v1791, 16
  %v2142 = vor.u32 %v2139, %v2140
  %v2143 = vsel %vm507, %v2135, %v2142
  %v2144 = vld [vmem:[%s1743 + $0xc] sm:$0x1]
  %v2145 = vld [vmem:[%s1743 + $0x1c] sm:$0x1]
  %v2146 = vld [vmem:[%s1743 + $0x2c] sm:$0x1]
  %v2147 = vld [vmem:[%s1743 + $0x3c] sm:$0x1]
  %v2148 = vld [vmem:[%s1743 + $0x4c] sm:$0x1]
  %v2149 = vld [vmem:[%s1743 + $0x5c] sm:$0x1]
  %v2150 = vld [vmem:[%s1743 + $0x6c] sm:$0x1]
  %v2151 = vld [vmem:[%s1743 + $0x7c] sm:$0x1]
  %v2152 = vld [vmem:[%s1743 + $0x8c] sm:$0x1]
  %v2153 = vld [vmem:[%s1743 + $0x9c] sm:$0x1]
  %v2154 = vld [vmem:[%s1743 + $0xac] sm:$0x1]
  %v2155 = vld [vmem:[%s1743 + $0xbc] sm:$0x1]
  %v2156 = vld [vmem:[%s1743 + $0xcc] sm:$0x1]
  %v2157 = vld [vmem:[%s1743 + $0xdc] sm:$0x1]
  %v2158 = vld [vmem:[%s1743 + $0xec] sm:$0x1]
  %v2159 = vld [vmem:[%s1743 + $0xfc] sm:$0x1]
  %v2160 = vrot.slane %v1798, 4
  %v2161 = vrot.slane %v1801, 5
  %v2162 = vor.u32 %v2160, %v2161
  %v2163 = vrot.slane %v2162, 4
  %v2164 = vrot.slane %v1810, 5
  %v2165 = vsel %vm878, %v2163, %v2164
  %v2166 = vrot.slane %v1807, 4
  %v2167 = vor.u32 %v2166, %v2164
  %v2168 = vrot.slane %v2167, 4
  %v2170 = vshll.u32 %v2144, 16
  %v2172 = vrot.slane %v2170, 5
  %v2173 = vsel %vm878, %v2168, %v2172
  %v2174 = vrot.slane %v1820, 4
  %v2175 = vrot.slane %v1823, 5
  %v2176 = vor.u32 %v2174, %v2175
  %v2177 = vrot.slane %v2176, 4
  %v2178 = vrot.slane %v1832, 5
  %v2179 = vsel %vm878, %v2177, %v2178
  %v2180 = vrot.slane %v1829, 4
  %v2181 = vor.u32 %v2180, %v2178
  %v2182 = vrot.slane %v2181, 4
  %v2184 = vshll.u32 %v2145, 16
  %v2186 = vrot.slane %v2184, 5
  %v2187 = vsel %vm878, %v2182, %v2186
  %v2188 = vrot.slane %v1842, 4
  %v2189 = vrot.slane %v1845, 5
  %v2190 = vor.u32 %v2188, %v2189
  %v2191 = vrot.slane %v2190, 4
  %v2192 = vrot.slane %v1854, 5
  %v2193 = vsel %vm878, %v2191, %v2192
  %v2194 = vrot.slane %v1851, 4
  %v2195 = vor.u32 %v2194, %v2192
  %v2196 = vrot.slane %v2195, 4
  %v2198 = vshll.u32 %v2146, 16
  %v2200 = vrot.slane %v2198, 5
  %v2201 = vsel %vm878, %v2196, %v2200
  %v2202 = vrot.slane %v1864, 4
  %v2203 = vrot.slane %v1867, 5
  %v2204 = vor.u32 %v2202, %v2203
  %v2205 = vrot.slane %v2204, 4
  %v2206 = vrot.slane %v1876, 5
  %v2207 = vsel %vm878, %v2205, %v2206
  %v2208 = vrot.slane %v1873, 4
  %v2209 = vor.u32 %v2208, %v2206
  %v2210 = vrot.slane %v2209, 4
  %v2212 = vshll.u32 %v2147, 16
  %v2214 = vrot.slane %v2212, 5
  %v2215 = vsel %vm878, %v2210, %v2214
  %v2216 = vrot.slane %v1886, 4
  %v2217 = vrot.slane %v1889, 5
  %v2218 = vor.u32 %v2216, %v2217
  %v2219 = vrot.slane %v2218, 4
  %v2220 = vrot.slane %v1898, 5
  %v2221 = vsel %vm878, %v2219, %v2220
  %v2222 = vrot.slane %v1895, 4
  %v2223 = vor.u32 %v2222, %v2220
  %v2224 = vrot.slane %v2223, 4
  %v2226 = vshll.u32 %v2148, 16
  %v2228 = vrot.slane %v2226, 5
  %v2229 = vsel %vm878, %v2224, %v2228
  %v2230 = vrot.slane %v1908, 4
  %v2231 = vrot.slane %v1911, 5
  %v2232 = vor.u32 %v2230, %v2231
  %v2233 = vrot.slane %v2232, 4
  %v2234 = vrot.slane %v1920, 5
  %v2235 = vsel %vm878, %v2233, %v2234
  %v2236 = vrot.slane %v1917, 4
  %v2237 = vor.u32 %v2236, %v2234
  %v2238 = vrot.slane %v2237, 4
  %v2240 = vshll.u32 %v2149, 16
  %v2242 = vrot.slane %v2240, 5
  %v2243 = vsel %vm878, %v2238, %v2242
  %v2244 = vrot.slane %v1930, 4
  %v2245 = vrot.slane %v1933, 5
  %v2246 = vor.u32 %v2244, %v2245
  %v2247 = vrot.slane %v2246, 4
  %v2248 = vrot.slane %v1942, 5
  %v2249 = vsel %vm878, %v2247, %v2248
  %v2250 = vrot.slane %v1939, 4
  %v2251 = vor.u32 %v2250, %v2248
  %v2252 = vrot.slane %v2251, 4
  %v2254 = vshll.u32 %v2150, 16
  %v2256 = vrot.slane %v2254, 5
  %v2257 = vsel %vm878, %v2252, %v2256
  %v2258 = vrot.slane %v1952, 4
  %v2259 = vrot.slane %v1955, 5
  %v2260 = vor.u32 %v2258, %v2259
  %v2261 = vrot.slane %v2260, 4
  %v2262 = vrot.slane %v1964, 5
  %v2263 = vsel %vm878, %v2261, %v2262
  %v2264 = vrot.slane %v1961, 4
  %v2265 = vor.u32 %v2264, %v2262
  %v2266 = vrot.slane %v2265, 4
  %v2268 = vshll.u32 %v2151, 16
  %v2270 = vrot.slane %v2268, 5
  %v2271 = vsel %vm878, %v2266, %v2270
  %v2272 = vrot.slane %v1974, 4
  %v2273 = vrot.slane %v1977, 5
  %v2274 = vor.u32 %v2272, %v2273
  %v2275 = vrot.slane %v2274, 4
  %v2276 = vrot.slane %v1986, 5
  %v2277 = vsel %vm878, %v2275, %v2276
  %v2278 = vrot.slane %v1983, 4
  %v2279 = vor.u32 %v2278, %v2276
  %v2280 = vrot.slane %v2279, 4
  %v2282 = vshll.u32 %v2152, 16
  %v2284 = vrot.slane %v2282, 5
  %v2285 = vsel %vm878, %v2280, %v2284
  %v2286 = vrot.slane %v1996, 4
  %v2287 = vrot.slane %v1999, 5
  %v2288 = vor.u32 %v2286, %v2287
  %v2289 = vrot.slane %v2288, 4
  %v2290 = vrot.slane %v2008, 5
  %v2291 = vsel %vm878, %v2289, %v2290
  %v2292 = vrot.slane %v2005, 4
  %v2293 = vor.u32 %v2292, %v2290
  %v2294 = vrot.slane %v2293, 4
  %v2296 = vshll.u32 %v2153, 16
  %v2298 = vrot.slane %v2296, 5
  %v2299 = vsel %vm878, %v2294, %v2298
  %v2300 = vrot.slane %v2018, 4
  %v2301 = vrot.slane %v2021, 5
  %v2302 = vor.u32 %v2300, %v2301
  %v2303 = vrot.slane %v2302, 4
  %v2304 = vrot.slane %v2030, 5
  %v2305 = vsel %vm878, %v2303, %v2304
  %v2306 = vrot.slane %v2027, 4
  %v2307 = vor.u32 %v2306, %v2304
  %v2308 = vrot.slane %v2307, 4
  %v2310 = vshll.u32 %v2154, 16
  %v2312 = vrot.slane %v2310, 5
  %v2313 = vsel %vm878, %v2308, %v2312
  %v2314 = vrot.slane %v2040, 4
  %v2315 = vrot.slane %v2043, 5
  %v2316 = vor.u32 %v2314, %v2315
  %v2317 = vrot.slane %v2316, 4
  %v2318 = vrot.slane %v2052, 5
  %v2319 = vsel %vm878, %v2317, %v2318
  %v2320 = vrot.slane %v2049, 4
  %v2321 = vor.u32 %v2320, %v2318
  %v2322 = vrot.slane %v2321, 4
  %v2324 = vshll.u32 %v2155, 16
  %v2326 = vrot.slane %v2324, 5
  %v2327 = vsel %vm878, %v2322, %v2326
  %v2328 = vrot.slane %v2062, 4
  %v2329 = vrot.slane %v2065, 5
  %v2330 = vor.u32 %v2328, %v2329
  %v2331 = vrot.slane %v2330, 4
  %v2332 = vrot.slane %v2074, 5
  %v2333 = vsel %vm878, %v2331, %v2332
  %v2334 = vrot.slane %v2071, 4
  %v2335 = vor.u32 %v2334, %v2332
  %v2336 = vrot.slane %v2335, 4
  %v2338 = vshll.u32 %v2156, 16
  %v2340 = vrot.slane %v2338, 5
  %v2341 = vsel %vm878, %v2336, %v2340
  %v2342 = vrot.slane %v2084, 4
  %v2343 = vrot.slane %v2087, 5
  %v2344 = vor.u32 %v2342, %v2343
  %v2345 = vrot.slane %v2344, 4
  %v2346 = vrot.slane %v2096, 5
  %v2347 = vsel %vm878, %v2345, %v2346
  %v2348 = vrot.slane %v2093, 4
  %v2349 = vor.u32 %v2348, %v2346
  %v2350 = vrot.slane %v2349, 4
  %v2352 = vshll.u32 %v2157, 16
  %v2354 = vrot.slane %v2352, 5
  %v2355 = vsel %vm878, %v2350, %v2354
  %v2356 = vrot.slane %v2106, 4
  %v2357 = vrot.slane %v2109, 5
  %v2358 = vor.u32 %v2356, %v2357
  %v2359 = vrot.slane %v2358, 4
  %v2360 = vrot.slane %v2118, 5
  %v2361 = vsel %vm878, %v2359, %v2360
  %v2362 = vrot.slane %v2115, 4
  %v2363 = vor.u32 %v2362, %v2360
  %v2364 = vrot.slane %v2363, 4
  %v2366 = vshll.u32 %v2158, 16
  %v2368 = vrot.slane %v2366, 5
  %v2369 = vsel %vm878, %v2364, %v2368
  %v2370 = vrot.slane %v2128, 4
  %v2371 = vrot.slane %v2131, 5
  %v2372 = vor.u32 %v2370, %v2371
  %v2373 = vrot.slane %v2372, 4
  %v2374 = vrot.slane %v2140, 5
  %v2375 = vsel %vm878, %v2373, %v2374
  %v2376 = vrot.slane %v2137, 4
  %v2377 = vor.u32 %v2376, %v2374
  %v2378 = vrot.slane %v2377, 4
  %v2380 = vshll.u32 %v2159, 16
  %v2382 = vrot.slane %v2380, 5
  %v2383 = vsel %vm878, %v2378, %v2382
  %v2384 = vunpack.c.l.b16 %v520
  %v2385 = vunpack.c.l.b16 %v529
  %v2386 = vunpack.c.l.b16 %v542
  %v2387 = vunpack.c.l.b16 %v551
  %v2388 = vunpack.c.l.b16 %v564
  %v2389 = vunpack.c.l.b16 %v573
  %v2390 = vunpack.c.l.b16 %v586
  %v2391 = vunpack.c.l.b16 %v595
  %v2392 = vunpack.c.l.b16 %v608
  %v2393 = vunpack.c.l.b16 %v617
  %v2394 = vunpack.c.l.b16 %v630
  %v2395 = vunpack.c.l.b16 %v639
  %v2396 = vunpack.c.l.b16 %v652
  %v2397 = vunpack.c.l.b16 %v661
  %v2398 = vunpack.c.l.b16 %v674
  %v2399 = vunpack.c.l.b16 %v683
  %v2400 = vunpack.c.l.b16 %v696
  %v2401 = vunpack.c.l.b16 %v705
  %v2402 = vunpack.c.l.b16 %v718
  %v2403 = vunpack.c.l.b16 %v727
  %v2404 = vunpack.c.l.b16 %v740
  %v2405 = vunpack.c.l.b16 %v749
  %v2406 = vunpack.c.l.b16 %v762
  %v2407 = vunpack.c.l.b16 %v771
  %v2408 = vunpack.c.l.b16 %v784
  %v2409 = vunpack.c.l.b16 %v793
  %v2410 = vunpack.c.l.b16 %v806
  %v2411 = vunpack.c.l.b16 %v815
  %v2412 = vunpack.c.l.b16 %v828
  %v2413 = vunpack.c.l.b16 %v837
  %v2414 = vunpack.c.l.b16 %v850
  %v2415 = vunpack.c.l.b16 %v859
  %v2416 = vpack.c.b16 %v2385, %v2384
  %v2417 = vpack.c.b16 %v2387, %v2386
  %v2418 = vpack.c.b16 %v2389, %v2388
  %v2419 = vpack.c.b16 %v2391, %v2390
  %v2420 = vpack.c.b16 %v2393, %v2392
  %v2421 = vpack.c.b16 %v2395, %v2394
  %v2422 = vpack.c.b16 %v2397, %v2396
  %v2423 = vpack.c.b16 %v2399, %v2398
  %v2424 = vpack.c.b16 %v2401, %v2400
  %v2425 = vpack.c.b16 %v2403, %v2402
  %v2426 = vpack.c.b16 %v2405, %v2404
  %v2427 = vpack.c.b16 %v2407, %v2406
  %v2428 = vpack.c.b16 %v2409, %v2408
  %v2429 = vpack.c.b16 %v2411, %v2410
  %v2430 = vpack.c.b16 %v2413, %v2412
  %v2431 = vpack.c.b16 %v2415, %v2414
  %v2480 = vunpack.c.l.b16 %v458
  %v2481 = vunpack.c.l.b16 %v459
  %v2482 = vunpack.c.l.b16 %v461
  %v2483 = vunpack.c.l.b16 %v462
  %v2484 = vunpack.c.l.b16 %v464
  %v2485 = vunpack.c.l.b16 %v465
  %v2486 = vunpack.c.l.b16 %v467
  %v2487 = vunpack.c.l.b16 %v468
  %v2488 = vunpack.c.l.b16 %v470
  %v2489 = vunpack.c.l.b16 %v471
  %v2490 = vunpack.c.l.b16 %v473
  %v2491 = vunpack.c.l.b16 %v474
  %v2492 = vunpack.c.l.b16 %v476
  %v2493 = vunpack.c.l.b16 %v477
  %v2494 = vunpack.c.l.b16 %v479
  %v2495 = vunpack.c.l.b16 %v480
  %v2496 = vunpack.c.l.b16 %v482
  %v2497 = vunpack.c.l.b16 %v483
  %v2498 = vunpack.c.l.b16 %v485
  %v2499 = vunpack.c.l.b16 %v486
  %v2500 = vunpack.c.l.b16 %v488
  %v2501 = vunpack.c.l.b16 %v489
  %v2502 = vunpack.c.l.b16 %v491
  %v2503 = vunpack.c.l.b16 %v492
  %v2504 = vunpack.c.l.b16 %v494
  %v2505 = vunpack.c.l.b16 %v495
  %v2506 = vunpack.c.l.b16 %v497
  %v2507 = vunpack.c.l.b16 %v498
  %v2508 = vunpack.c.l.b16 %v500
  %v2509 = vunpack.c.l.b16 %v501
  %v2510 = vunpack.c.l.b16 %v503
  %v2511 = vunpack.c.l.b16 %v504
  %v2512 = vpack.c.b16 %v2481, %v2480
  %v2513 = vpack.c.b16 %v2483, %v2482
  %v2514 = vpack.c.b16 %v2485, %v2484
  %v2515 = vpack.c.b16 %v2487, %v2486
  %v2516 = vpack.c.b16 %v2489, %v2488
  %v2517 = vpack.c.b16 %v2491, %v2490
  %v2518 = vpack.c.b16 %v2493, %v2492
  %v2519 = vpack.c.b16 %v2495, %v2494
  %v2520 = vpack.c.b16 %v2497, %v2496
  %v2521 = vpack.c.b16 %v2499, %v2498
  %v2522 = vpack.c.b16 %v2501, %v2500
  %v2523 = vpack.c.b16 %v2503, %v2502
  %v2524 = vpack.c.b16 %v2505, %v2504
  %v2525 = vpack.c.b16 %v2507, %v2506
  %v2526 = vpack.c.b16 %v2509, %v2508
  %v2527 = vpack.c.b16 %v2511, %v2510
  %v2544 = vunpack.c.l.b16 %v884
  %v2545 = vunpack.c.l.b16 %v892
  %v2546 = vunpack.c.l.b16 %v898
  %v2547 = vunpack.c.l.b16 %v906
  %v2548 = vunpack.c.l.b16 %v912
  %v2549 = vunpack.c.l.b16 %v920
  %v2550 = vunpack.c.l.b16 %v926
  %v2551 = vunpack.c.l.b16 %v934
  %v2552 = vunpack.c.l.b16 %v940
  %v2553 = vunpack.c.l.b16 %v948
  %v2554 = vunpack.c.l.b16 %v954
  %v2555 = vunpack.c.l.b16 %v962
  %v2556 = vunpack.c.l.b16 %v968
  %v2557 = vunpack.c.l.b16 %v976
  %v2558 = vunpack.c.l.b16 %v982
  %v2559 = vunpack.c.l.b16 %v990
  %v2560 = vunpack.c.l.b16 %v996
  %v2561 = vunpack.c.l.b16 %v1004
  %v2562 = vunpack.c.l.b16 %v1010
  %v2563 = vunpack.c.l.b16 %v1018
  %v2564 = vunpack.c.l.b16 %v1024
  %v2565 = vunpack.c.l.b16 %v1032
  %v2566 = vunpack.c.l.b16 %v1038
  %v2567 = vunpack.c.l.b16 %v1046
  %v2568 = vunpack.c.l.b16 %v1052
  %v2569 = vunpack.c.l.b16 %v1060
  %v2570 = vunpack.c.l.b16 %v1066
  %v2571 = vunpack.c.l.b16 %v1074
  %v2572 = vunpack.c.l.b16 %v1080
  %v2573 = vunpack.c.l.b16 %v1088
  %v2574 = vunpack.c.l.b16 %v1094
  %v2575 = vunpack.c.l.b16 %v1102
  %v2576 = vpack.c.b16 %v2545, %v2544
  %v2577 = vpack.c.b16 %v2547, %v2546
  %v2578 = vpack.c.b16 %v2549, %v2548
  %v2579 = vpack.c.b16 %v2551, %v2550
  %v2580 = vpack.c.b16 %v2553, %v2552
  %v2581 = vpack.c.b16 %v2555, %v2554
  %v2582 = vpack.c.b16 %v2557, %v2556
  %v2583 = vpack.c.b16 %v2559, %v2558
  %v2584 = vpack.c.b16 %v2561, %v2560
  %v2585 = vpack.c.b16 %v2563, %v2562
  %v2586 = vpack.c.b16 %v2565, %v2564
  %v2587 = vpack.c.b16 %v2567, %v2566
  %v2588 = vpack.c.b16 %v2569, %v2568
  %v2589 = vpack.c.b16 %v2571, %v2570
  %v2590 = vpack.c.b16 %v2573, %v2572
  %v2591 = vpack.c.b16 %v2575, %v2574
  %v2608 = vunpack.c.l.b16 %v1163
  %v2609 = vunpack.c.l.b16 %v1172
  %v2610 = vunpack.c.l.b16 %v1185
  %v2611 = vunpack.c.l.b16 %v1194
  %v2612 = vunpack.c.l.b16 %v1207
  %v2613 = vunpack.c.l.b16 %v1216
  %v2614 = vunpack.c.l.b16 %v1229
  %v2615 = vunpack.c.l.b16 %v1238
  %v2616 = vunpack.c.l.b16 %v1251
  %v2617 = vunpack.c.l.b16 %v1260
  %v2618 = vunpack.c.l.b16 %v1273
  %v2619 = vunpack.c.l.b16 %v1282
  %v2620 = vunpack.c.l.b16 %v1295
  %v2621 = vunpack.c.l.b16 %v1304
  %v2622 = vunpack.c.l.b16 %v1317
  %v2623 = vunpack.c.l.b16 %v1326
  %v2624 = vunpack.c.l.b16 %v1339
  %v2625 = vunpack.c.l.b16 %v1348
  %v2626 = vunpack.c.l.b16 %v1361
  %v2627 = vunpack.c.l.b16 %v1370
  %v2628 = vunpack.c.l.b16 %v1383
  %v2629 = vunpack.c.l.b16 %v1392
  %v2630 = vunpack.c.l.b16 %v1405
  %v2631 = vunpack.c.l.b16 %v1414
  %v2632 = vunpack.c.l.b16 %v1427
  %v2633 = vunpack.c.l.b16 %v1436
  %v2634 = vunpack.c.l.b16 %v1449
  %v2635 = vunpack.c.l.b16 %v1458
  %v2636 = vunpack.c.l.b16 %v1471
  %v2637 = vunpack.c.l.b16 %v1480
  %v2638 = vunpack.c.l.b16 %v1493
  %v2639 = vunpack.c.l.b16 %v1502
  %v2640 = vpack.c.b16 %v2609, %v2608
  %v2641 = vpack.c.b16 %v2611, %v2610
  %v2642 = vpack.c.b16 %v2613, %v2612
  %v2643 = vpack.c.b16 %v2615, %v2614
  %v2644 = vpack.c.b16 %v2617, %v2616
  %v2645 = vpack.c.b16 %v2619, %v2618
  %v2646 = vpack.c.b16 %v2621, %v2620
  %v2647 = vpack.c.b16 %v2623, %v2622
  %v2648 = vpack.c.b16 %v2625, %v2624
  %v2649 = vpack.c.b16 %v2627, %v2626
  %v2650 = vpack.c.b16 %v2629, %v2628
  %v2651 = vpack.c.b16 %v2631, %v2630
  %v2652 = vpack.c.b16 %v2633, %v2632
  %v2653 = vpack.c.b16 %v2635, %v2634
  %v2654 = vpack.c.b16 %v2637, %v2636
  %v2655 = vpack.c.b16 %v2639, %v2638
  %v2704 = vunpack.c.l.b16 %v1104
  %v2705 = vunpack.c.l.b16 %v1105
  %v2706 = vunpack.c.l.b16 %v1107
  %v2707 = vunpack.c.l.b16 %v1108
  %v2708 = vunpack.c.l.b16 %v1110
  %v2709 = vunpack.c.l.b16 %v1111
  %v2710 = vunpack.c.l.b16 %v1113
  %v2711 = vunpack.c.l.b16 %v1114
  %v2712 = vunpack.c.l.b16 %v1116
  %v2713 = vunpack.c.l.b16 %v1117
  %v2714 = vunpack.c.l.b16 %v1119
  %v2715 = vunpack.c.l.b16 %v1120
  %v2716 = vunpack.c.l.b16 %v1122
  %v2717 = vunpack.c.l.b16 %v1123
  %v2718 = vunpack.c.l.b16 %v1125
  %v2719 = vunpack.c.l.b16 %v1126
  %v2720 = vunpack.c.l.b16 %v1128
  %v2721 = vunpack.c.l.b16 %v1129
  %v2722 = vunpack.c.l.b16 %v1131
  %v2723 = vunpack.c.l.b16 %v1132
  %v2724 = vunpack.c.l.b16 %v1134
  %v2725 = vunpack.c.l.b16 %v1135
  %v2726 = vunpack.c.l.b16 %v1137
  %v2727 = vunpack.c.l.b16 %v1138
  %v2728 = vunpack.c.l.b16 %v1140
  %v2729 = vunpack.c.l.b16 %v1141
  %v2730 = vunpack.c.l.b16 %v1143
  %v2731 = vunpack.c.l.b16 %v1144
  %v2732 = vunpack.c.l.b16 %v1146
  %v2733 = vunpack.c.l.b16 %v1147
  %v2734 = vunpack.c.l.b16 %v1149
  %v2735 = vunpack.c.l.b16 %v1150
  %v2736 = vpack.c.b16 %v2705, %v2704
  %v2737 = vpack.c.b16 %v2707, %v2706
  %v2738 = vpack.c.b16 %v2709, %v2708
  %v2739 = vpack.c.b16 %v2711, %v2710
  %v2740 = vpack.c.b16 %v2713, %v2712
  %v2741 = vpack.c.b16 %v2715, %v2714
  %v2742 = vpack.c.b16 %v2717, %v2716
  %v2743 = vpack.c.b16 %v2719, %v2718
  %v2744 = vpack.c.b16 %v2721, %v2720
  %v2745 = vpack.c.b16 %v2723, %v2722
  %v2746 = vpack.c.b16 %v2725, %v2724
  %v2747 = vpack.c.b16 %v2727, %v2726
  %v2748 = vpack.c.b16 %v2729, %v2728
  %v2749 = vpack.c.b16 %v2731, %v2730
  %v2750 = vpack.c.b16 %v2733, %v2732
  %v2751 = vpack.c.b16 %v2735, %v2734
  %v2768 = vunpack.c.l.b16 %v1524
  %v2769 = vunpack.c.l.b16 %v1532
  %v2770 = vunpack.c.l.b16 %v1538
  %v2771 = vunpack.c.l.b16 %v1546
  %v2772 = vunpack.c.l.b16 %v1552
  %v2773 = vunpack.c.l.b16 %v1560
  %v2774 = vunpack.c.l.b16 %v1566
  %v2775 = vunpack.c.l.b16 %v1574
  %v2776 = vunpack.c.l.b16 %v1580
  %v2777 = vunpack.c.l.b16 %v1588
  %v2778 = vunpack.c.l.b16 %v1594
  %v2779 = vunpack.c.l.b16 %v1602
  %v2780 = vunpack.c.l.b16 %v1608
  %v2781 = vunpack.c.l.b16 %v1616
  %v2782 = vunpack.c.l.b16 %v1622
  %v2783 = vunpack.c.l.b16 %v1630
  %v2784 = vunpack.c.l.b16 %v1636
  %v2785 = vunpack.c.l.b16 %v1644
  %v2786 = vunpack.c.l.b16 %v1650
  %v2787 = vunpack.c.l.b16 %v1658
  %v2788 = vunpack.c.l.b16 %v1664
  %v2789 = vunpack.c.l.b16 %v1672
  %v2790 = vunpack.c.l.b16 %v1678
  %v2791 = vunpack.c.l.b16 %v1686
  %v2792 = vunpack.c.l.b16 %v1692
  %v2793 = vunpack.c.l.b16 %v1700
  %v2794 = vunpack.c.l.b16 %v1706
  %v2795 = vunpack.c.l.b16 %v1714
  %v2796 = vunpack.c.l.b16 %v1720
  %v2797 = vunpack.c.l.b16 %v1728
  %v2798 = vunpack.c.l.b16 %v1734
  %v2799 = vunpack.c.l.b16 %v1742
  %v2800 = vpack.c.b16 %v2769, %v2768
  %v2801 = vpack.c.b16 %v2771, %v2770
  %v2802 = vpack.c.b16 %v2773, %v2772
  %v2803 = vpack.c.b16 %v2775, %v2774
  %v2804 = vpack.c.b16 %v2777, %v2776
  %v2805 = vpack.c.b16 %v2779, %v2778
  %v2806 = vpack.c.b16 %v2781, %v2780
  %v2807 = vpack.c.b16 %v2783, %v2782
  %v2808 = vpack.c.b16 %v2785, %v2784
  %v2809 = vpack.c.b16 %v2787, %v2786
  %v2810 = vpack.c.b16 %v2789, %v2788
  %v2811 = vpack.c.b16 %v2791, %v2790
  %v2812 = vpack.c.b16 %v2793, %v2792
  %v2813 = vpack.c.b16 %v2795, %v2794
  %v2814 = vpack.c.b16 %v2797, %v2796
  %v2815 = vpack.c.b16 %v2799, %v2798
  %v2832 = vunpack.c.l.b16 %v1804
  %v2833 = vunpack.c.l.b16 %v1813
  %v2834 = vunpack.c.l.b16 %v1826
  %v2835 = vunpack.c.l.b16 %v1835
  %v2836 = vunpack.c.l.b16 %v1848
  %v2837 = vunpack.c.l.b16 %v1857
  %v2838 = vunpack.c.l.b16 %v1870
  %v2839 = vunpack.c.l.b16 %v1879
  %v2840 = vunpack.c.l.b16 %v1892
  %v2841 = vunpack.c.l.b16 %v1901
  %v2842 = vunpack.c.l.b16 %v1914
  %v2843 = vunpack.c.l.b16 %v1923
  %v2844 = vunpack.c.l.b16 %v1936
  %v2845 = vunpack.c.l.b16 %v1945
  %v2846 = vunpack.c.l.b16 %v1958
  %v2847 = vunpack.c.l.b16 %v1967
  %v2848 = vunpack.c.l.b16 %v1980
  %v2849 = vunpack.c.l.b16 %v1989
  %v2850 = vunpack.c.l.b16 %v2002
  %v2851 = vunpack.c.l.b16 %v2011
  %v2852 = vunpack.c.l.b16 %v2024
  %v2853 = vunpack.c.l.b16 %v2033
  %v2854 = vunpack.c.l.b16 %v2046
  %v2855 = vunpack.c.l.b16 %v2055
  %v2856 = vunpack.c.l.b16 %v2068
  %v2857 = vunpack.c.l.b16 %v2077
  %v2858 = vunpack.c.l.b16 %v2090
  %v2859 = vunpack.c.l.b16 %v2099
  %v2860 = vunpack.c.l.b16 %v2112
  %v2861 = vunpack.c.l.b16 %v2121
  %v2862 = vunpack.c.l.b16 %v2134
  %v2863 = vunpack.c.l.b16 %v2143
  %v2864 = vpack.c.b16 %v2833, %v2832
  %v2865 = vpack.c.b16 %v2835, %v2834
  %v2866 = vpack.c.b16 %v2837, %v2836
  %v2867 = vpack.c.b16 %v2839, %v2838
  %v2868 = vpack.c.b16 %v2841, %v2840
  %v2869 = vpack.c.b16 %v2843, %v2842
  %v2870 = vpack.c.b16 %v2845, %v2844
  %v2871 = vpack.c.b16 %v2847, %v2846
  %v2872 = vpack.c.b16 %v2849, %v2848
  %v2873 = vpack.c.b16 %v2851, %v2850
  %v2874 = vpack.c.b16 %v2853, %v2852
  %v2875 = vpack.c.b16 %v2855, %v2854
  %v2876 = vpack.c.b16 %v2857, %v2856
  %v2877 = vpack.c.b16 %v2859, %v2858
  %v2878 = vpack.c.b16 %v2861, %v2860
  %v2879 = vpack.c.b16 %v2863, %v2862
  %v2928 = vunpack.c.l.b16 %v1745
  %v2929 = vunpack.c.l.b16 %v1746
  %v2930 = vunpack.c.l.b16 %v1748
  %v2931 = vunpack.c.l.b16 %v1749
  %v2932 = vunpack.c.l.b16 %v1751
  %v2933 = vunpack.c.l.b16 %v1752
  %v2934 = vunpack.c.l.b16 %v1754
  %v2935 = vunpack.c.l.b16 %v1755
  %v2936 = vunpack.c.l.b16 %v1757
  %v2937 = vunpack.c.l.b16 %v1758
  %v2938 = vunpack.c.l.b16 %v1760
  %v2939 = vunpack.c.l.b16 %v1761
  %v2940 = vunpack.c.l.b16 %v1763
  %v2941 = vunpack.c.l.b16 %v1764
  %v2942 = vunpack.c.l.b16 %v1766
  %v2943 = vunpack.c.l.b16 %v1767
  %v2944 = vunpack.c.l.b16 %v1769
  %v2945 = vunpack.c.l.b16 %v1770
  %v2946 = vunpack.c.l.b16 %v1772
  %v2947 = vunpack.c.l.b16 %v1773
  %v2948 = vunpack.c.l.b16 %v1775
  %v2949 = vunpack.c.l.b16 %v1776
  %v2950 = vunpack.c.l.b16 %v1778
  %v2951 = vunpack.c.l.b16 %v1779
  %v2952 = vunpack.c.l.b16 %v1781
  %v2953 = vunpack.c.l.b16 %v1782
  %v2954 = vunpack.c.l.b16 %v1784
  %v2955 = vunpack.c.l.b16 %v1785
  %v2956 = vunpack.c.l.b16 %v1787
  %v2957 = vunpack.c.l.b16 %v1788
  %v2958 = vunpack.c.l.b16 %v1790
  %v2959 = vunpack.c.l.b16 %v1791
  %v2960 = vpack.c.b16 %v2929, %v2928
  %v2961 = vpack.c.b16 %v2931, %v2930
  %v2962 = vpack.c.b16 %v2933, %v2932
  %v2963 = vpack.c.b16 %v2935, %v2934
  %v2964 = vpack.c.b16 %v2937, %v2936
  %v2965 = vpack.c.b16 %v2939, %v2938
  %v2966 = vpack.c.b16 %v2941, %v2940
  %v2967 = vpack.c.b16 %v2943, %v2942
  %v2968 = vpack.c.b16 %v2945, %v2944
  %v2969 = vpack.c.b16 %v2947, %v2946
  %v2970 = vpack.c.b16 %v2949, %v2948
  %v2971 = vpack.c.b16 %v2951, %v2950
  %v2972 = vpack.c.b16 %v2953, %v2952
  %v2973 = vpack.c.b16 %v2955, %v2954
  %v2974 = vpack.c.b16 %v2957, %v2956
  %v2975 = vpack.c.b16 %v2959, %v2958
  %v2992 = vunpack.c.l.b16 %v2165
  %v2993 = vunpack.c.l.b16 %v2173
  %v2994 = vunpack.c.l.b16 %v2179
  %v2995 = vunpack.c.l.b16 %v2187
  %v2996 = vunpack.c.l.b16 %v2193
  %v2997 = vunpack.c.l.b16 %v2201
  %v2998 = vunpack.c.l.b16 %v2207
  %v2999 = vunpack.c.l.b16 %v2215
  %v3000 = vunpack.c.l.b16 %v2221
  %v3001 = vunpack.c.l.b16 %v2229
  %v3002 = vunpack.c.l.b16 %v2235
  %v3003 = vunpack.c.l.b16 %v2243
  %v3004 = vunpack.c.l.b16 %v2249
  %v3005 = vunpack.c.l.b16 %v2257
  %v3006 = vunpack.c.l.b16 %v2263
  %v3007 = vunpack.c.l.b16 %v2271
  %v3008 = vunpack.c.l.b16 %v2277
  %v3009 = vunpack.c.l.b16 %v2285
  %v3010 = vunpack.c.l.b16 %v2291
  %v3011 = vunpack.c.l.b16 %v2299
  %v3012 = vunpack.c.l.b16 %v2305
  %v3013 = vunpack.c.l.b16 %v2313
  %v3014 = vunpack.c.l.b16 %v2319
  %v3015 = vunpack.c.l.b16 %v2327
  %v3016 = vunpack.c.l.b16 %v2333
  %v3017 = vunpack.c.l.b16 %v2341
  %v3018 = vunpack.c.l.b16 %v2347
  %v3019 = vunpack.c.l.b16 %v2355
  %v3020 = vunpack.c.l.b16 %v2361
  %v3021 = vunpack.c.l.b16 %v2369
  %v3022 = vunpack.c.l.b16 %v2375
  %v3023 = vunpack.c.l.b16 %v2383
  %v3024 = vpack.c.b16 %v2993, %v2992
  %v3025 = vpack.c.b16 %v2995, %v2994
  %v3026 = vpack.c.b16 %v2997, %v2996
  %v3027 = vpack.c.b16 %v2999, %v2998
  %v3028 = vpack.c.b16 %v3001, %v3000
  %v3029 = vpack.c.b16 %v3003, %v3002
  %v3030 = vpack.c.b16 %v3005, %v3004
  %v3031 = vpack.c.b16 %v3007, %v3006
  %v3032 = vpack.c.b16 %v3009, %v3008
  %v3033 = vpack.c.b16 %v3011, %v3010
  %v3034 = vpack.c.b16 %v3013, %v3012
  %v3035 = vpack.c.b16 %v3015, %v3014
  %v3036 = vpack.c.b16 %v3017, %v3016
  %v3037 = vpack.c.b16 %v3019, %v3018
  %v3038 = vpack.c.b16 %v3021, %v3020
  %v3039 = vpack.c.b16 %v3023, %v3022
  %v3200 = vunpack.c.l.b16 %v68
  %v3201 = vunpack.c.l.b16 %v69
  %v3202 = vunpack.c.l.b16 %v70
  %v3203 = vunpack.c.l.b16 %v71
  %v3204 = vunpack.c.l.b16 %v72
  %v3205 = vunpack.c.l.b16 %v73
  %v3206 = vunpack.c.l.b16 %v74
  %v3207 = vunpack.c.l.b16 %v75
  %v3208 = vunpack.c.l.b16 %v76
  %v3209 = vunpack.c.l.b16 %v77
  %v3210 = vunpack.c.l.b16 %v78
  %v3211 = vunpack.c.l.b16 %v79
  %v3212 = vunpack.c.l.b16 %v80
  %v3213 = vunpack.c.l.b16 %v81
  %v3214 = vunpack.c.l.b16 %v82
  %v3215 = vunpack.c.l.b16 %v83
  %v3216 = vunpack.c.l.b16 %v84
  %v3217 = vunpack.c.l.b16 %v85
  %v3218 = vunpack.c.l.b16 %v86
  %v3219 = vunpack.c.l.b16 %v87
  %v3220 = vunpack.c.l.b16 %v88
  %v3221 = vunpack.c.l.b16 %v89
  %v3222 = vunpack.c.l.b16 %v90
  %v3223 = vunpack.c.l.b16 %v91
  %v3224 = vunpack.c.l.b16 %v92
  %v3225 = vunpack.c.l.b16 %v93
  %v3226 = vunpack.c.l.b16 %v94
  %v3227 = vunpack.c.l.b16 %v95
  %v3228 = vunpack.c.l.b16 %v96
  %v3229 = vunpack.c.l.b16 %v97
  %v3230 = vunpack.c.l.b16 %v98
  %v3231 = vunpack.c.l.b16 %v99
  %v3232 = vunpack.c.l.b16 %v100
  %v3233 = vunpack.c.l.b16 %v101
  %v3234 = vunpack.c.l.b16 %v102
  %v3235 = vunpack.c.l.b16 %v103
  %v3236 = vunpack.c.l.b16 %v104
  %v3237 = vunpack.c.l.b16 %v105
  %v3238 = vunpack.c.l.b16 %v106
  %v3239 = vunpack.c.l.b16 %v107
  %v3240 = vunpack.c.l.b16 %v108
  %v3241 = vunpack.c.l.b16 %v109
  %v3242 = vunpack.c.l.b16 %v110
  %v3243 = vunpack.c.l.b16 %v111
  %v3244 = vunpack.c.l.b16 %v112
  %v3245 = vunpack.c.l.b16 %v113
  %v3246 = vunpack.c.l.b16 %v114
  %v3247 = vunpack.c.l.b16 %v115
  %v3248 = vunpack.c.l.b16 %v116
  %v3249 = vunpack.c.l.b16 %v117
  %v3250 = vunpack.c.l.b16 %v118
  %v3251 = vunpack.c.l.b16 %v119
  %v3252 = vunpack.c.l.b16 %v120
  %v3253 = vunpack.c.l.b16 %v121
  %v3254 = vunpack.c.l.b16 %v122
  %v3255 = vunpack.c.l.b16 %v123
  %v3256 = vunpack.c.l.b16 %v124
  %v3257 = vunpack.c.l.b16 %v125
  %v3258 = vunpack.c.l.b16 %v126
  %v3259 = vunpack.c.l.b16 %v127
  %v3260 = vunpack.c.l.b16 %v128
  %v3261 = vunpack.c.l.b16 %v129
  %v3262 = vunpack.c.l.b16 %v130
  %v3263 = vunpack.c.l.b16 %v131
  %v3264 = vunpack.c.l.b16 %v132
  %v3265 = vunpack.c.l.b16 %v133
  %v3266 = vunpack.c.l.b16 %v134
  %v3267 = vunpack.c.l.b16 %v135
  %v3268 = vunpack.c.l.b16 %v136
  %v3269 = vunpack.c.l.b16 %v137
  %v3270 = vunpack.c.l.b16 %v138
  %v3271 = vunpack.c.l.b16 %v139
  %v3272 = vunpack.c.l.b16 %v140
  %v3273 = vunpack.c.l.b16 %v141
  %v3274 = vunpack.c.l.b16 %v142
  %v3275 = vunpack.c.l.b16 %v143
  %v3276 = vunpack.c.l.b16 %v144
  %v3277 = vunpack.c.l.b16 %v145
  %v3278 = vunpack.c.l.b16 %v146
  %v3279 = vunpack.c.l.b16 %v147
  %v3280 = vunpack.c.l.b16 %v148
  %v3281 = vunpack.c.l.b16 %v149
  %v3282 = vunpack.c.l.b16 %v150
  %v3283 = vunpack.c.l.b16 %v151
  %v3284 = vunpack.c.l.b16 %v152
  %v3285 = vunpack.c.l.b16 %v153
  %v3286 = vunpack.c.l.b16 %v154
  %v3287 = vunpack.c.l.b16 %v155
  %v3288 = vunpack.c.l.b16 %v156
  %v3289 = vunpack.c.l.b16 %v157
  %v3290 = vunpack.c.l.b16 %v158
  %v3291 = vunpack.c.l.b16 %v159
  %v3292 = vunpack.c.l.b16 %v160
  %v3293 = vunpack.c.l.b16 %v161
  %v3294 = vunpack.c.l.b16 %v162
  %v3295 = vunpack.c.l.b16 %v163
  %v3296 = vunpack.c.l.b16 %v164
  %v3297 = vunpack.c.l.b16 %v165
  %v3298 = vunpack.c.l.b16 %v166
  %v3299 = vunpack.c.l.b16 %v167
  %v3300 = vunpack.c.l.b16 %v168
  %v3301 = vunpack.c.l.b16 %v169
  %v3302 = vunpack.c.l.b16 %v170
  %v3303 = vunpack.c.l.b16 %v171
  %v3304 = vunpack.c.l.b16 %v172
  %v3305 = vunpack.c.l.b16 %v173
  %v3306 = vunpack.c.l.b16 %v174
  %v3307 = vunpack.c.l.b16 %v175
  %v3308 = vunpack.c.l.b16 %v176
  %v3309 = vunpack.c.l.b16 %v177
  %v3310 = vunpack.c.l.b16 %v178
  %v3311 = vunpack.c.l.b16 %v179
  %v3312 = vunpack.c.l.b16 %v180
  %v3313 = vunpack.c.l.b16 %v181
  %v3314 = vunpack.c.l.b16 %v182
  %v3315 = vunpack.c.l.b16 %v183
  %v3316 = vunpack.c.l.b16 %v184
  %v3317 = vunpack.c.l.b16 %v185
  %v3318 = vunpack.c.l.b16 %v186
  %v3319 = vunpack.c.l.b16 %v187
  %v3320 = vunpack.c.l.b16 %v188
  %v3321 = vunpack.c.l.b16 %v189
  %v3322 = vunpack.c.l.b16 %v190
  %v3323 = vunpack.c.l.b16 %v191
  %v3324 = vunpack.c.l.b16 %v192
  %v3325 = vunpack.c.l.b16 %v193
  %v3326 = vunpack.c.l.b16 %v194
  %v3327 = vunpack.c.l.b16 %v195
  %v3328 = vunpack.c.l.b16 %v196
  %v3329 = vunpack.c.l.b16 %v197
  %v3330 = vunpack.c.l.b16 %v198
  %v3331 = vunpack.c.l.b16 %v199
  %v3332 = vunpack.c.l.b16 %v200
  %v3333 = vunpack.c.l.b16 %v201
  %v3334 = vunpack.c.l.b16 %v202
  %v3335 = vunpack.c.l.b16 %v203
  %v3336 = vunpack.c.l.b16 %v204
  %v3337 = vunpack.c.l.b16 %v205
  %v3338 = vunpack.c.l.b16 %v206
  %v3339 = vunpack.c.l.b16 %v207
  %v3340 = vunpack.c.l.b16 %v208
  %v3341 = vunpack.c.l.b16 %v209
  %v3342 = vunpack.c.l.b16 %v210
  %v3343 = vunpack.c.l.b16 %v211
  %v3344 = vpack.c.b16 %v3201, %v3200
  %v3345 = vpack.c.b16 %v3203, %v3202
  %v3346 = vpack.c.b16 %v3205, %v3204
  %v3347 = vpack.c.b16 %v3207, %v3206
  %v3348 = vpack.c.b16 %v3209, %v3208
  %v3349 = vpack.c.b16 %v3211, %v3210
  %v3350 = vpack.c.b16 %v3213, %v3212
  %v3351 = vpack.c.b16 %v3215, %v3214
  %v3352 = vpack.c.b16 %v3217, %v3216
  %v3353 = vpack.c.b16 %v3219, %v3218
  %v3354 = vpack.c.b16 %v3221, %v3220
  %v3355 = vpack.c.b16 %v3223, %v3222
  %v3356 = vpack.c.b16 %v3225, %v3224
  %v3357 = vpack.c.b16 %v3227, %v3226
  %v3358 = vpack.c.b16 %v3229, %v3228
  %v3359 = vpack.c.b16 %v3231, %v3230
  %v3360 = vpack.c.b16 %v3233, %v3232
  %v3361 = vpack.c.b16 %v3235, %v3234
  %v3362 = vpack.c.b16 %v3237, %v3236
  %v3363 = vpack.c.b16 %v3239, %v3238
  %v3364 = vpack.c.b16 %v3241, %v3240
  %v3365 = vpack.c.b16 %v3243, %v3242
  %v3366 = vpack.c.b16 %v3245, %v3244
  %v3367 = vpack.c.b16 %v3247, %v3246
  %v3368 = vpack.c.b16 %v3249, %v3248
  %v3369 = vpack.c.b16 %v3251, %v3250
  %v3370 = vpack.c.b16 %v3253, %v3252
  %v3371 = vpack.c.b16 %v3255, %v3254
  %v3372 = vpack.c.b16 %v3257, %v3256
  %v3373 = vpack.c.b16 %v3259, %v3258
  %v3374 = vpack.c.b16 %v3261, %v3260
  %v3375 = vpack.c.b16 %v3263, %v3262
  %v3376 = vpack.c.b16 %v3265, %v3264
  %v3377 = vpack.c.b16 %v3267, %v3266
  %v3378 = vpack.c.b16 %v3269, %v3268
  %v3379 = vpack.c.b16 %v3271, %v3270
  %v3380 = vpack.c.b16 %v3273, %v3272
  %v3381 = vpack.c.b16 %v3275, %v3274
  %v3382 = vpack.c.b16 %v3277, %v3276
  %v3383 = vpack.c.b16 %v3279, %v3278
  %v3384 = vpack.c.b16 %v3281, %v3280
  %v3385 = vpack.c.b16 %v3283, %v3282
  %v3386 = vpack.c.b16 %v3285, %v3284
  %v3387 = vpack.c.b16 %v3287, %v3286
  %v3388 = vpack.c.b16 %v3289, %v3288
  %v3389 = vpack.c.b16 %v3291, %v3290
  %v3390 = vpack.c.b16 %v3293, %v3292
  %v3391 = vpack.c.b16 %v3295, %v3294
  %v3392 = vpack.c.b16 %v3297, %v3296
  %v3393 = vpack.c.b16 %v3299, %v3298
  %v3394 = vpack.c.b16 %v3301, %v3300
  %v3395 = vpack.c.b16 %v3303, %v3302
  %v3396 = vpack.c.b16 %v3305, %v3304
  %v3397 = vpack.c.b16 %v3307, %v3306
  %v3398 = vpack.c.b16 %v3309, %v3308
  %v3399 = vpack.c.b16 %v3311, %v3310
  %v3400 = vpack.c.b16 %v3313, %v3312
  %v3401 = vpack.c.b16 %v3315, %v3314
  %v3402 = vpack.c.b16 %v3317, %v3316
  %v3403 = vpack.c.b16 %v3319, %v3318
  %v3404 = vpack.c.b16 %v3321, %v3320
  %v3405 = vpack.c.b16 %v3323, %v3322
  %v3406 = vpack.c.b16 %v3325, %v3324
  %v3407 = vpack.c.b16 %v3327, %v3326
  %v3408 = vpack.c.b16 %v3329, %v3328
  %v3409 = vpack.c.b16 %v3331, %v3330
  %v3410 = vpack.c.b16 %v3333, %v3332
  %v3411 = vpack.c.b16 %v3335, %v3334
  %v3412 = vpack.c.b16 %v3337, %v3336
  %v3413 = vpack.c.b16 %v3339, %v3338
  %v3414 = vpack.c.b16 %v3341, %v3340
  %v3415 = vpack.c.b16 %v3343, %v3342
  %3488 = vmatpush.bf16.msra.mxu0 %v3351
  %3489 = vmatpush.bf16.msra.mxu0 %v3350
  %3490 = vmatpush.bf16.msra.mxu0 %v3349
  %3491 = vmatpush.bf16.msra.mxu0 %v3348
  %3492 = vmatpush.bf16.msra.mxu0 %v3347
  %3493 = vmatpush.bf16.msra.mxu0 %v3346
  %3494 = vmatpush.bf16.msra.mxu0 %v3345
  %3495 = vmatpush.bf16.msra.mxu0 %v3344
  %3496 = vmatmul.bf16.gmra.mxu0 %v2416
  %v3497 = vpop.f32.mrf.mxu0
  %v3498 = vadd.f32 0.0, %v3497
  %v3499 = vpop.f32.mrf.mxu0
  %v3500 = vadd.f32 0.0, %v3499
  %3501 = vmatmul.bf16.gmra.mxu0 %v2417
  %v3502 = vpop.f32.mrf.mxu0
  %v3503 = vadd.f32 0.0, %v3502
  %v3504 = vpop.f32.mrf.mxu0
  %v3505 = vadd.f32 0.0, %v3504
  %3506 = vmatmul.bf16.gmra.mxu0 %v2418
  %v3507 = vpop.f32.mrf.mxu0
  %v3508 = vadd.f32 0.0, %v3507
  %v3509 = vpop.f32.mrf.mxu0
  %v3510 = vadd.f32 0.0, %v3509
  %3511 = vmatmul.bf16.gmra.mxu0 %v2419
  %v3512 = vpop.f32.mrf.mxu0
  %v3513 = vadd.f32 0.0, %v3512
  %v3514 = vpop.f32.mrf.mxu0
  %v3515 = vadd.f32 0.0, %v3514
  %3516 = vmatmul.bf16.gmra.mxu0 %v2420
  %v3517 = vpop.f32.mrf.mxu0
  %v3518 = vadd.f32 0.0, %v3517
  %v3519 = vpop.f32.mrf.mxu0
  %v3520 = vadd.f32 0.0, %v3519
  %3521 = vmatmul.bf16.gmra.mxu0 %v2421
  %v3522 = vpop.f32.mrf.mxu0
  %v3523 = vadd.f32 0.0, %v3522
  %v3524 = vpop.f32.mrf.mxu0
  %v3525 = vadd.f32 0.0, %v3524
  %3526 = vmatmul.bf16.gmra.mxu0 %v2422
  %v3527 = vpop.f32.mrf.mxu0
  %v3528 = vadd.f32 0.0, %v3527
  %v3529 = vpop.f32.mrf.mxu0
  %v3530 = vadd.f32 0.0, %v3529
  %3531 = vmatmul.bf16.gmra.mxu0 %v2423
  %v3532 = vpop.f32.mrf.mxu0
  %v3533 = vadd.f32 0.0, %v3532
  %v3534 = vpop.f32.mrf.mxu0
  %v3535 = vadd.f32 0.0, %v3534
  %3536 = vmatmul.bf16.gmra.mxu0 %v2424
  %v3537 = vpop.f32.mrf.mxu0
  %v3538 = vadd.f32 0.0, %v3537
  %v3539 = vpop.f32.mrf.mxu0
  %v3540 = vadd.f32 0.0, %v3539
  %3541 = vmatmul.bf16.gmra.mxu0 %v2425
  %v3542 = vpop.f32.mrf.mxu0
  %v3543 = vadd.f32 0.0, %v3542
  %v3544 = vpop.f32.mrf.mxu0
  %v3545 = vadd.f32 0.0, %v3544
  %3546 = vmatmul.bf16.gmra.mxu0 %v2426
  %v3547 = vpop.f32.mrf.mxu0
  %v3548 = vadd.f32 0.0, %v3547
  %v3549 = vpop.f32.mrf.mxu0
  %v3550 = vadd.f32 0.0, %v3549
  %3551 = vmatmul.bf16.gmra.mxu0 %v2427
  %v3552 = vpop.f32.mrf.mxu0
  %v3553 = vadd.f32 0.0, %v3552
  %v3554 = vpop.f32.mrf.mxu0
  %v3555 = vadd.f32 0.0, %v3554
  %3556 = vmatmul.bf16.gmra.mxu0 %v2428
  %v3557 = vpop.f32.mrf.mxu0
  %v3558 = vadd.f32 0.0, %v3557
  %v3559 = vpop.f32.mrf.mxu0
  %v3560 = vadd.f32 0.0, %v3559
  %3561 = vmatmul.bf16.gmra.mxu0 %v2429
  %v3562 = vpop.f32.mrf.mxu0
  %v3563 = vadd.f32 0.0, %v3562
  %v3564 = vpop.f32.mrf.mxu0
  %v3565 = vadd.f32 0.0, %v3564
  %3566 = vmatmul.bf16.gmra.mxu0 %v2430
  %v3567 = vpop.f32.mrf.mxu0
  %v3568 = vadd.f32 0.0, %v3567
  %v3569 = vpop.f32.mrf.mxu0
  %v3570 = vadd.f32 0.0, %v3569
  %3571 = vmatmul.bf16.gmra.mxu0 %v2431
  %v3572 = vpop.f32.mrf.mxu0
  %v3573 = vadd.f32 0.0, %v3572
  %v3574 = vpop.f32.mrf.mxu0
  %v3575 = vadd.f32 0.0, %v3574
  %3576 = vdwg.mxu0
  %3577 = vmatpush.bf16.msra.mxu0 %v3359
  %3578 = vmatpush.bf16.msra.mxu0 %v3358
  %3579 = vmatpush.bf16.msra.mxu0 %v3357
  %3580 = vmatpush.bf16.msra.mxu0 %v3356
  %3581 = vmatpush.bf16.msra.mxu0 %v3355
  %3582 = vmatpush.bf16.msra.mxu0 %v3354
  %3583 = vmatpush.bf16.msra.mxu0 %v3353
  %3584 = vmatpush.bf16.msra.mxu0 %v3352
  %3585 = vmatmul.bf16.gmra.mxu0 %v2512
  %v3586 = vpop.f32.mrf.mxu0
  %v3587 = vadd.f32 %v3498, %v3586
  %v3588 = vpop.f32.mrf.mxu0
  %v3589 = vadd.f32 %v3500, %v3588
  %3590 = vmatmul.bf16.gmra.mxu0 %v2513
  %v3591 = vpop.f32.mrf.mxu0
  %v3592 = vadd.f32 %v3503, %v3591
  %v3593 = vpop.f32.mrf.mxu0
  %v3594 = vadd.f32 %v3505, %v3593
  %3595 = vmatmul.bf16.gmra.mxu0 %v2514
  %v3596 = vpop.f32.mrf.mxu0
  %v3597 = vadd.f32 %v3508, %v3596
  %v3598 = vpop.f32.mrf.mxu0
  %v3599 = vadd.f32 %v3510, %v3598
  %3600 = vmatmul.bf16.gmra.mxu0 %v2515
  %v3601 = vpop.f32.mrf.mxu0
  %v3602 = vadd.f32 %v3513, %v3601
  %v3603 = vpop.f32.mrf.mxu0
  %v3604 = vadd.f32 %v3515, %v3603
  %3605 = vmatmul.bf16.gmra.mxu0 %v2516
  %v3606 = vpop.f32.mrf.mxu0
  %v3607 = vadd.f32 %v3518, %v3606
  %v3608 = vpop.f32.mrf.mxu0
  %v3609 = vadd.f32 %v3520, %v3608
  %3610 = vmatmul.bf16.gmra.mxu0 %v2517
  %v3611 = vpop.f32.mrf.mxu0
  %v3612 = vadd.f32 %v3523, %v3611
  %v3613 = vpop.f32.mrf.mxu0
  %v3614 = vadd.f32 %v3525, %v3613
  %3615 = vmatmul.bf16.gmra.mxu0 %v2518
  %v3616 = vpop.f32.mrf.mxu0
  %v3617 = vadd.f32 %v3528, %v3616
  %v3618 = vpop.f32.mrf.mxu0
  %v3619 = vadd.f32 %v3530, %v3618
  %3620 = vmatmul.bf16.gmra.mxu0 %v2519
  %v3621 = vpop.f32.mrf.mxu0
  %v3622 = vadd.f32 %v3533, %v3621
  %v3623 = vpop.f32.mrf.mxu0
  %v3624 = vadd.f32 %v3535, %v3623
  %3625 = vmatmul.bf16.gmra.mxu0 %v2520
  %v3626 = vpop.f32.mrf.mxu0
  %v3627 = vadd.f32 %v3538, %v3626
  %v3628 = vpop.f32.mrf.mxu0
  %v3629 = vadd.f32 %v3540, %v3628
  %3630 = vmatmul.bf16.gmra.mxu0 %v2521
  %v3631 = vpop.f32.mrf.mxu0
  %v3632 = vadd.f32 %v3543, %v3631
  %v3633 = vpop.f32.mrf.mxu0
  %v3634 = vadd.f32 %v3545, %v3633
  %3635 = vmatmul.bf16.gmra.mxu0 %v2522
  %v3636 = vpop.f32.mrf.mxu0
  %v3637 = vadd.f32 %v3548, %v3636
  %v3638 = vpop.f32.mrf.mxu0
  %v3639 = vadd.f32 %v3550, %v3638
  %3640 = vmatmul.bf16.gmra.mxu0 %v2523
  %v3641 = vpop.f32.mrf.mxu0
  %v3642 = vadd.f32 %v3553, %v3641
  %v3643 = vpop.f32.mrf.mxu0
  %v3644 = vadd.f32 %v3555, %v3643
  %3645 = vmatmul.bf16.gmra.mxu0 %v2524
  %v3646 = vpop.f32.mrf.mxu0
  %v3647 = vadd.f32 %v3558, %v3646
  %v3648 = vpop.f32.mrf.mxu0
  %v3649 = vadd.f32 %v3560, %v3648
  %3650 = vmatmul.bf16.gmra.mxu0 %v2525
  %v3651 = vpop.f32.mrf.mxu0
  %v3652 = vadd.f32 %v3563, %v3651
  %v3653 = vpop.f32.mrf.mxu0
  %v3654 = vadd.f32 %v3565, %v3653
  %3655 = vmatmul.bf16.gmra.mxu0 %v2526
  %v3656 = vpop.f32.mrf.mxu0
  %v3657 = vadd.f32 %v3568, %v3656
  %v3658 = vpop.f32.mrf.mxu0
  %v3659 = vadd.f32 %v3570, %v3658
  %3660 = vmatmul.bf16.gmra.mxu0 %v2527
  %v3661 = vpop.f32.mrf.mxu0
  %v3662 = vadd.f32 %v3573, %v3661
  %v3663 = vpop.f32.mrf.mxu0
  %v3664 = vadd.f32 %v3575, %v3663
  %3665 = vdwg.mxu0
  %3666 = vmatpush.bf16.msra.mxu0 %v3367
  %3667 = vmatpush.bf16.msra.mxu0 %v3366
  %3668 = vmatpush.bf16.msra.mxu0 %v3365
  %3669 = vmatpush.bf16.msra.mxu0 %v3364
  %3670 = vmatpush.bf16.msra.mxu0 %v3363
  %3671 = vmatpush.bf16.msra.mxu0 %v3362
  %3672 = vmatpush.bf16.msra.mxu0 %v3361
  %3673 = vmatpush.bf16.msra.mxu0 %v3360
  %3674 = vmatmul.bf16.gmra.mxu0 %v2576
  %v3675 = vpop.f32.mrf.mxu0
  %v3676 = vadd.f32 %v3587, %v3675
  %v3677 = vpop.f32.mrf.mxu0
  %v3678 = vadd.f32 %v3589, %v3677
  %3679 = vmatmul.bf16.gmra.mxu0 %v2577
  %v3680 = vpop.f32.mrf.mxu0
  %v3681 = vadd.f32 %v3592, %v3680
  %v3682 = vpop.f32.mrf.mxu0
  %v3683 = vadd.f32 %v3594, %v3682
  %3684 = vmatmul.bf16.gmra.mxu0 %v2578
  %v3685 = vpop.f32.mrf.mxu0
  %v3686 = vadd.f32 %v3597, %v3685
  %v3687 = vpop.f32.mrf.mxu0
  %v3688 = vadd.f32 %v3599, %v3687
  %3689 = vmatmul.bf16.gmra.mxu0 %v2579
  %v3690 = vpop.f32.mrf.mxu0
  %v3691 = vadd.f32 %v3602, %v3690
  %v3692 = vpop.f32.mrf.mxu0
  %v3693 = vadd.f32 %v3604, %v3692
  %3694 = vmatmul.bf16.gmra.mxu0 %v2580
  %v3695 = vpop.f32.mrf.mxu0
  %v3696 = vadd.f32 %v3607, %v3695
  %v3697 = vpop.f32.mrf.mxu0
  %v3698 = vadd.f32 %v3609, %v3697
  %3699 = vmatmul.bf16.gmra.mxu0 %v2581
  %v3700 = vpop.f32.mrf.mxu0
  %v3701 = vadd.f32 %v3612, %v3700
  %v3702 = vpop.f32.mrf.mxu0
  %v3703 = vadd.f32 %v3614, %v3702
  %3704 = vmatmul.bf16.gmra.mxu0 %v2582
  %v3705 = vpop.f32.mrf.mxu0
  %v3706 = vadd.f32 %v3617, %v3705
  %v3707 = vpop.f32.mrf.mxu0
  %v3708 = vadd.f32 %v3619, %v3707
  %3709 = vmatmul.bf16.gmra.mxu0 %v2583
  %v3710 = vpop.f32.mrf.mxu0
  %v3711 = vadd.f32 %v3622, %v3710
  %v3712 = vpop.f32.mrf.mxu0
  %v3713 = vadd.f32 %v3624, %v3712
  %3714 = vmatmul.bf16.gmra.mxu0 %v2584
  %v3715 = vpop.f32.mrf.mxu0
  %v3716 = vadd.f32 %v3627, %v3715
  %v3717 = vpop.f32.mrf.mxu0
  %v3718 = vadd.f32 %v3629, %v3717
  %3719 = vmatmul.bf16.gmra.mxu0 %v2585
  %v3720 = vpop.f32.mrf.mxu0
  %v3721 = vadd.f32 %v3632, %v3720
  %v3722 = vpop.f32.mrf.mxu0
  %v3723 = vadd.f32 %v3634, %v3722
  %3724 = vmatmul.bf16.gmra.mxu0 %v2586
  %v3725 = vpop.f32.mrf.mxu0
  %v3726 = vadd.f32 %v3637, %v3725
  %v3727 = vpop.f32.mrf.mxu0
  %v3728 = vadd.f32 %v3639, %v3727
  %3729 = vmatmul.bf16.gmra.mxu0 %v2587
  %v3730 = vpop.f32.mrf.mxu0
  %v3731 = vadd.f32 %v3642, %v3730
  %v3732 = vpop.f32.mrf.mxu0
  %v3733 = vadd.f32 %v3644, %v3732
  %3734 = vmatmul.bf16.gmra.mxu0 %v2588
  %v3735 = vpop.f32.mrf.mxu0
  %v3736 = vadd.f32 %v3647, %v3735
  %v3737 = vpop.f32.mrf.mxu0
  %v3738 = vadd.f32 %v3649, %v3737
  %3739 = vmatmul.bf16.gmra.mxu0 %v2589
  %v3740 = vpop.f32.mrf.mxu0
  %v3741 = vadd.f32 %v3652, %v3740
  %v3742 = vpop.f32.mrf.mxu0
  %v3743 = vadd.f32 %v3654, %v3742
  %3744 = vmatmul.bf16.gmra.mxu0 %v2590
  %v3745 = vpop.f32.mrf.mxu0
  %v3746 = vadd.f32 %v3657, %v3745
  %v3747 = vpop.f32.mrf.mxu0
  %v3748 = vadd.f32 %v3659, %v3747
  %3749 = vmatmul.bf16.gmra.mxu0 %v2591
  %v3750 = vpop.f32.mrf.mxu0
  %v3751 = vadd.f32 %v3662, %v3750
  %v3752 = vpop.f32.mrf.mxu0
  %v3753 = vadd.f32 %v3664, %v3752
  %3754 = vdwg.mxu0
  %3755 = vmatpush.bf16.msra.mxu0 %v3375
  %3756 = vmatpush.bf16.msra.mxu0 %v3374
  %3757 = vmatpush.bf16.msra.mxu0 %v3373
  %3758 = vmatpush.bf16.msra.mxu0 %v3372
  %3759 = vmatpush.bf16.msra.mxu0 %v3371
  %3760 = vmatpush.bf16.msra.mxu0 %v3370
  %3761 = vmatpush.bf16.msra.mxu0 %v3369
  %3762 = vmatpush.bf16.msra.mxu0 %v3368
  %3763 = vmatmul.bf16.gmra.mxu0 %v2640
  %v3764 = vpop.f32.mrf.mxu0
  %v3765 = vadd.f32 %v3676, %v3764
  %v3766 = vpop.f32.mrf.mxu0
  %v3767 = vadd.f32 %v3678, %v3766
  %3768 = vmatmul.bf16.gmra.mxu0 %v2641
  %v3769 = vpop.f32.mrf.mxu0
  %v3770 = vadd.f32 %v3681, %v3769
  %v3771 = vpop.f32.mrf.mxu0
  %v3772 = vadd.f32 %v3683, %v3771
  %3773 = vmatmul.bf16.gmra.mxu0 %v2642
  %v3774 = vpop.f32.mrf.mxu0
  %v3775 = vadd.f32 %v3686, %v3774
  %v3776 = vpop.f32.mrf.mxu0
  %v3777 = vadd.f32 %v3688, %v3776
  %3778 = vmatmul.bf16.gmra.mxu0 %v2643
  %v3779 = vpop.f32.mrf.mxu0
  %v3780 = vadd.f32 %v3691, %v3779
  %v3781 = vpop.f32.mrf.mxu0
  %v3782 = vadd.f32 %v3693, %v3781
  %3783 = vmatmul.bf16.gmra.mxu0 %v2644
  %v3784 = vpop.f32.mrf.mxu0
  %v3785 = vadd.f32 %v3696, %v3784
  %v3786 = vpop.f32.mrf.mxu0
  %v3787 = vadd.f32 %v3698, %v3786
  %3788 = vmatmul.bf16.gmra.mxu0 %v2645
  %v3789 = vpop.f32.mrf.mxu0
  %v3790 = vadd.f32 %v3701, %v3789
  %v3791 = vpop.f32.mrf.mxu0
  %v3792 = vadd.f32 %v3703, %v3791
  %3793 = vmatmul.bf16.gmra.mxu0 %v2646
  %v3794 = vpop.f32.mrf.mxu0
  %v3795 = vadd.f32 %v3706, %v3794
  %v3796 = vpop.f32.mrf.mxu0
  %v3797 = vadd.f32 %v3708, %v3796
  %3798 = vmatmul.bf16.gmra.mxu0 %v2647
  %v3799 = vpop.f32.mrf.mxu0
  %v3800 = vadd.f32 %v3711, %v3799
  %v3801 = vpop.f32.mrf.mxu0
  %v3802 = vadd.f32 %v3713, %v3801
  %3803 = vmatmul.bf16.gmra.mxu0 %v2648
  %v3804 = vpop.f32.mrf.mxu0
  %v3805 = vadd.f32 %v3716, %v3804
  %v3806 = vpop.f32.mrf.mxu0
  %v3807 = vadd.f32 %v3718, %v3806
  %3808 = vmatmul.bf16.gmra.mxu0 %v2649
  %v3809 = vpop.f32.mrf.mxu0
  %v3810 = vadd.f32 %v3721, %v3809
  %v3811 = vpop.f32.mrf.mxu0
  %v3812 = vadd.f32 %v3723, %v3811
  %3813 = vmatmul.bf16.gmra.mxu0 %v2650
  %v3814 = vpop.f32.mrf.mxu0
  %v3815 = vadd.f32 %v3726, %v3814
  %v3816 = vpop.f32.mrf.mxu0
  %v3817 = vadd.f32 %v3728, %v3816
  %3818 = vmatmul.bf16.gmra.mxu0 %v2651
  %v3819 = vpop.f32.mrf.mxu0
  %v3820 = vadd.f32 %v3731, %v3819
  %v3821 = vpop.f32.mrf.mxu0
  %v3822 = vadd.f32 %v3733, %v3821
  %3823 = vmatmul.bf16.gmra.mxu0 %v2652
  %v3824 = vpop.f32.mrf.mxu0
  %v3825 = vadd.f32 %v3736, %v3824
  %v3826 = vpop.f32.mrf.mxu0
  %v3827 = vadd.f32 %v3738, %v3826
  %3828 = vmatmul.bf16.gmra.mxu0 %v2653
  %v3829 = vpop.f32.mrf.mxu0
  %v3830 = vadd.f32 %v3741, %v3829
  %v3831 = vpop.f32.mrf.mxu0
  %v3832 = vadd.f32 %v3743, %v3831
  %3833 = vmatmul.bf16.gmra.mxu0 %v2654
  %v3834 = vpop.f32.mrf.mxu0
  %v3835 = vadd.f32 %v3746, %v3834
  %v3836 = vpop.f32.mrf.mxu0
  %v3837 = vadd.f32 %v3748, %v3836
  %3838 = vmatmul.bf16.gmra.mxu0 %v2655
  %v3839 = vpop.f32.mrf.mxu0
  %v3840 = vadd.f32 %v3751, %v3839
  %v3841 = vpop.f32.mrf.mxu0
  %v3842 = vadd.f32 %v3753, %v3841
  %3843 = vdwg.mxu0
  %3844 = vmatpush.bf16.msra.mxu0 %v3383
  %3845 = vmatpush.bf16.msra.mxu0 %v3382
  %3846 = vmatpush.bf16.msra.mxu0 %v3381
  %3847 = vmatpush.bf16.msra.mxu0 %v3380
  %3848 = vmatpush.bf16.msra.mxu0 %v3379
  %3849 = vmatpush.bf16.msra.mxu0 %v3378
  %3850 = vmatpush.bf16.msra.mxu0 %v3377
  %3851 = vmatpush.bf16.msra.mxu0 %v3376
  %3852 = vmatmul.bf16.gmra.mxu0 %v2736
  %v3853 = vpop.f32.mrf.mxu0
  %v3854 = vadd.f32 %v3765, %v3853
  %v3855 = vpop.f32.mrf.mxu0
  %v3856 = vadd.f32 %v3767, %v3855
  %3857 = vmatmul.bf16.gmra.mxu0 %v2737
  %v3858 = vpop.f32.mrf.mxu0
  %v3859 = vadd.f32 %v3770, %v3858
  %v3860 = vpop.f32.mrf.mxu0
  %v3861 = vadd.f32 %v3772, %v3860
  %3862 = vmatmul.bf16.gmra.mxu0 %v2738
  %v3863 = vpop.f32.mrf.mxu0
  %v3864 = vadd.f32 %v3775, %v3863
  %v3865 = vpop.f32.mrf.mxu0
  %v3866 = vadd.f32 %v3777, %v3865
  %3867 = vmatmul.bf16.gmra.mxu0 %v2739
  %v3868 = vpop.f32.mrf.mxu0
  %v3869 = vadd.f32 %v3780, %v3868
  %v3870 = vpop.f32.mrf.mxu0
  %v3871 = vadd.f32 %v3782, %v3870
  %3872 = vmatmul.bf16.gmra.mxu0 %v2740
  %v3873 = vpop.f32.mrf.mxu0
  %v3874 = vadd.f32 %v3785, %v3873
  %v3875 = vpop.f32.mrf.mxu0
  %v3876 = vadd.f32 %v3787, %v3875
  %3877 = vmatmul.bf16.gmra.mxu0 %v2741
  %v3878 = vpop.f32.mrf.mxu0
  %v3879 = vadd.f32 %v3790, %v3878
  %v3880 = vpop.f32.mrf.mxu0
  %v3881 = vadd.f32 %v3792, %v3880
  %3882 = vmatmul.bf16.gmra.mxu0 %v2742
  %v3883 = vpop.f32.mrf.mxu0
  %v3884 = vadd.f32 %v3795, %v3883
  %v3885 = vpop.f32.mrf.mxu0
  %v3886 = vadd.f32 %v3797, %v3885
  %3887 = vmatmul.bf16.gmra.mxu0 %v2743
  %v3888 = vpop.f32.mrf.mxu0
  %v3889 = vadd.f32 %v3800, %v3888
  %v3890 = vpop.f32.mrf.mxu0
  %v3891 = vadd.f32 %v3802, %v3890
  %3892 = vmatmul.bf16.gmra.mxu0 %v2744
  %v3893 = vpop.f32.mrf.mxu0
  %v3894 = vadd.f32 %v3805, %v3893
  %v3895 = vpop.f32.mrf.mxu0
  %v3896 = vadd.f32 %v3807, %v3895
  %3897 = vmatmul.bf16.gmra.mxu0 %v2745
  %v3898 = vpop.f32.mrf.mxu0
  %v3899 = vadd.f32 %v3810, %v3898
  %v3900 = vpop.f32.mrf.mxu0
  %v3901 = vadd.f32 %v3812, %v3900
  %3902 = vmatmul.bf16.gmra.mxu0 %v2746
  %v3903 = vpop.f32.mrf.mxu0
  %v3904 = vadd.f32 %v3815, %v3903
  %v3905 = vpop.f32.mrf.mxu0
  %v3906 = vadd.f32 %v3817, %v3905
  %3907 = vmatmul.bf16.gmra.mxu0 %v2747
  %v3908 = vpop.f32.mrf.mxu0
  %v3909 = vadd.f32 %v3820, %v3908
  %v3910 = vpop.f32.mrf.mxu0
  %v3911 = vadd.f32 %v3822, %v3910
  %3912 = vmatmul.bf16.gmra.mxu0 %v2748
  %v3913 = vpop.f32.mrf.mxu0
  %v3914 = vadd.f32 %v3825, %v3913
  %v3915 = vpop.f32.mrf.mxu0
  %v3916 = vadd.f32 %v3827, %v3915
  %3917 = vmatmul.bf16.gmra.mxu0 %v2749
  %v3918 = vpop.f32.mrf.mxu0
  %v3919 = vadd.f32 %v3830, %v3918
  %v3920 = vpop.f32.mrf.mxu0
  %v3921 = vadd.f32 %v3832, %v3920
  %3922 = vmatmul.bf16.gmra.mxu0 %v2750
  %v3923 = vpop.f32.mrf.mxu0
  %v3924 = vadd.f32 %v3835, %v3923
  %v3925 = vpop.f32.mrf.mxu0
  %v3926 = vadd.f32 %v3837, %v3925
  %3927 = vmatmul.bf16.gmra.mxu0 %v2751
  %v3928 = vpop.f32.mrf.mxu0
  %v3929 = vadd.f32 %v3840, %v3928
  %v3930 = vpop.f32.mrf.mxu0
  %v3931 = vadd.f32 %v3842, %v3930
  %3932 = vdwg.mxu0
  %3933 = vmatpush.bf16.msra.mxu0 %v3391
  %3934 = vmatpush.bf16.msra.mxu0 %v3390
  %3935 = vmatpush.bf16.msra.mxu0 %v3389
  %3936 = vmatpush.bf16.msra.mxu0 %v3388
  %3937 = vmatpush.bf16.msra.mxu0 %v3387
  %3938 = vmatpush.bf16.msra.mxu0 %v3386
  %3939 = vmatpush.bf16.msra.mxu0 %v3385
  %3940 = vmatpush.bf16.msra.mxu0 %v3384
  %3941 = vmatmul.bf16.gmra.mxu0 %v2800
  %v3942 = vpop.f32.mrf.mxu0
  %v3943 = vadd.f32 %v3854, %v3942
  %v3944 = vpop.f32.mrf.mxu0
  %v3945 = vadd.f32 %v3856, %v3944
  %3946 = vmatmul.bf16.gmra.mxu0 %v2801
  %v3947 = vpop.f32.mrf.mxu0
  %v3948 = vadd.f32 %v3859, %v3947
  %v3949 = vpop.f32.mrf.mxu0
  %v3950 = vadd.f32 %v3861, %v3949
  %3951 = vmatmul.bf16.gmra.mxu0 %v2802
  %v3952 = vpop.f32.mrf.mxu0
  %v3953 = vadd.f32 %v3864, %v3952
  %v3954 = vpop.f32.mrf.mxu0
  %v3955 = vadd.f32 %v3866, %v3954
  %3956 = vmatmul.bf16.gmra.mxu0 %v2803
  %v3957 = vpop.f32.mrf.mxu0
  %v3958 = vadd.f32 %v3869, %v3957
  %v3959 = vpop.f32.mrf.mxu0
  %v3960 = vadd.f32 %v3871, %v3959
  %3961 = vmatmul.bf16.gmra.mxu0 %v2804
  %v3962 = vpop.f32.mrf.mxu0
  %v3963 = vadd.f32 %v3874, %v3962
  %v3964 = vpop.f32.mrf.mxu0
  %v3965 = vadd.f32 %v3876, %v3964
  %3966 = vmatmul.bf16.gmra.mxu0 %v2805
  %v3967 = vpop.f32.mrf.mxu0
  %v3968 = vadd.f32 %v3879, %v3967
  %v3969 = vpop.f32.mrf.mxu0
  %v3970 = vadd.f32 %v3881, %v3969
  %3971 = vmatmul.bf16.gmra.mxu0 %v2806
  %v3972 = vpop.f32.mrf.mxu0
  %v3973 = vadd.f32 %v3884, %v3972
  %v3974 = vpop.f32.mrf.mxu0
  %v3975 = vadd.f32 %v3886, %v3974
  %3976 = vmatmul.bf16.gmra.mxu0 %v2807
  %v3977 = vpop.f32.mrf.mxu0
  %v3978 = vadd.f32 %v3889, %v3977
  %v3979 = vpop.f32.mrf.mxu0
  %v3980 = vadd.f32 %v3891, %v3979
  %3981 = vmatmul.bf16.gmra.mxu0 %v2808
  %v3982 = vpop.f32.mrf.mxu0
  %v3983 = vadd.f32 %v3894, %v3982
  %v3984 = vpop.f32.mrf.mxu0
  %v3985 = vadd.f32 %v3896, %v3984
  %3986 = vmatmul.bf16.gmra.mxu0 %v2809
  %v3987 = vpop.f32.mrf.mxu0
  %v3988 = vadd.f32 %v3899, %v3987
  %v3989 = vpop.f32.mrf.mxu0
  %v3990 = vadd.f32 %v3901, %v3989
  %3991 = vmatmul.bf16.gmra.mxu0 %v2810
  %v3992 = vpop.f32.mrf.mxu0
  %v3993 = vadd.f32 %v3904, %v3992
  %v3994 = vpop.f32.mrf.mxu0
  %v3995 = vadd.f32 %v3906, %v3994
  %3996 = vmatmul.bf16.gmra.mxu0 %v2811
  %v3997 = vpop.f32.mrf.mxu0
  %v3998 = vadd.f32 %v3909, %v3997
  %v3999 = vpop.f32.mrf.mxu0
  %v4000 = vadd.f32 %v3911, %v3999
  %4001 = vmatmul.bf16.gmra.mxu0 %v2812
  %v4002 = vpop.f32.mrf.mxu0
  %v4003 = vadd.f32 %v3914, %v4002
  %v4004 = vpop.f32.mrf.mxu0
  %v4005 = vadd.f32 %v3916, %v4004
  %4006 = vmatmul.bf16.gmra.mxu0 %v2813
  %v4007 = vpop.f32.mrf.mxu0
  %v4008 = vadd.f32 %v3919, %v4007
  %v4009 = vpop.f32.mrf.mxu0
  %v4010 = vadd.f32 %v3921, %v4009
  %4011 = vmatmul.bf16.gmra.mxu0 %v2814
  %v4012 = vpop.f32.mrf.mxu0
  %v4013 = vadd.f32 %v3924, %v4012
  %v4014 = vpop.f32.mrf.mxu0
  %v4015 = vadd.f32 %v3926, %v4014
  %4016 = vmatmul.bf16.gmra.mxu0 %v2815
  %v4017 = vpop.f32.mrf.mxu0
  %v4018 = vadd.f32 %v3929, %v4017
  %v4019 = vpop.f32.mrf.mxu0
  %v4020 = vadd.f32 %v3931, %v4019
  %4021 = vdwg.mxu0
  %4022 = vmatpush.bf16.msra.mxu0 %v3399
  %4023 = vmatpush.bf16.msra.mxu0 %v3398
  %4024 = vmatpush.bf16.msra.mxu0 %v3397
  %4025 = vmatpush.bf16.msra.mxu0 %v3396
  %4026 = vmatpush.bf16.msra.mxu0 %v3395
  %4027 = vmatpush.bf16.msra.mxu0 %v3394
  %4028 = vmatpush.bf16.msra.mxu0 %v3393
  %4029 = vmatpush.bf16.msra.mxu0 %v3392
  %4030 = vmatmul.bf16.gmra.mxu0 %v2864
  %v4031 = vpop.f32.mrf.mxu0
  %v4032 = vadd.f32 %v3943, %v4031
  %v4033 = vpop.f32.mrf.mxu0
  %v4034 = vadd.f32 %v3945, %v4033
  %4035 = vmatmul.bf16.gmra.mxu0 %v2865
  %v4036 = vpop.f32.mrf.mxu0
  %v4037 = vadd.f32 %v3948, %v4036
  %v4038 = vpop.f32.mrf.mxu0
  %v4039 = vadd.f32 %v3950, %v4038
  %4040 = vmatmul.bf16.gmra.mxu0 %v2866
  %v4041 = vpop.f32.mrf.mxu0
  %v4042 = vadd.f32 %v3953, %v4041
  %v4043 = vpop.f32.mrf.mxu0
  %v4044 = vadd.f32 %v3955, %v4043
  %4045 = vmatmul.bf16.gmra.mxu0 %v2867
  %v4046 = vpop.f32.mrf.mxu0
  %v4047 = vadd.f32 %v3958, %v4046
  %v4048 = vpop.f32.mrf.mxu0
  %v4049 = vadd.f32 %v3960, %v4048
  %4050 = vmatmul.bf16.gmra.mxu0 %v2868
  %v4051 = vpop.f32.mrf.mxu0
  %v4052 = vadd.f32 %v3963, %v4051
  %v4053 = vpop.f32.mrf.mxu0
  %v4054 = vadd.f32 %v3965, %v4053
  %4055 = vmatmul.bf16.gmra.mxu0 %v2869
  %v4056 = vpop.f32.mrf.mxu0
  %v4057 = vadd.f32 %v3968, %v4056
  %v4058 = vpop.f32.mrf.mxu0
  %v4059 = vadd.f32 %v3970, %v4058
  %4060 = vmatmul.bf16.gmra.mxu0 %v2870
  %v4061 = vpop.f32.mrf.mxu0
  %v4062 = vadd.f32 %v3973, %v4061
  %v4063 = vpop.f32.mrf.mxu0
  %v4064 = vadd.f32 %v3975, %v4063
  %4065 = vmatmul.bf16.gmra.mxu0 %v2871
  %v4066 = vpop.f32.mrf.mxu0
  %v4067 = vadd.f32 %v3978, %v4066
  %v4068 = vpop.f32.mrf.mxu0
  %v4069 = vadd.f32 %v3980, %v4068
  %4070 = vmatmul.bf16.gmra.mxu0 %v2872
  %v4071 = vpop.f32.mrf.mxu0
  %v4072 = vadd.f32 %v3983, %v4071
  %v4073 = vpop.f32.mrf.mxu0
  %v4074 = vadd.f32 %v3985, %v4073
  %4075 = vmatmul.bf16.gmra.mxu0 %v2873
  %v4076 = vpop.f32.mrf.mxu0
  %v4077 = vadd.f32 %v3988, %v4076
  %v4078 = vpop.f32.mrf.mxu0
  %v4079 = vadd.f32 %v3990, %v4078
  %4080 = vmatmul.bf16.gmra.mxu0 %v2874
  %v4081 = vpop.f32.mrf.mxu0
  %v4082 = vadd.f32 %v3993, %v4081
  %v4083 = vpop.f32.mrf.mxu0
  %v4084 = vadd.f32 %v3995, %v4083
  %4085 = vmatmul.bf16.gmra.mxu0 %v2875
  %v4086 = vpop.f32.mrf.mxu0
  %v4087 = vadd.f32 %v3998, %v4086
  %v4088 = vpop.f32.mrf.mxu0
  %v4089 = vadd.f32 %v4000, %v4088
  %4090 = vmatmul.bf16.gmra.mxu0 %v2876
  %v4091 = vpop.f32.mrf.mxu0
  %v4092 = vadd.f32 %v4003, %v4091
  %v4093 = vpop.f32.mrf.mxu0
  %v4094 = vadd.f32 %v4005, %v4093
  %4095 = vmatmul.bf16.gmra.mxu0 %v2877
  %v4096 = vpop.f32.mrf.mxu0
  %v4097 = vadd.f32 %v4008, %v4096
  %v4098 = vpop.f32.mrf.mxu0
  %v4099 = vadd.f32 %v4010, %v4098
  %4100 = vmatmul.bf16.gmra.mxu0 %v2878
  %v4101 = vpop.f32.mrf.mxu0
  %v4102 = vadd.f32 %v4013, %v4101
  %v4103 = vpop.f32.mrf.mxu0
  %v4104 = vadd.f32 %v4015, %v4103
  %4105 = vmatmul.bf16.gmra.mxu0 %v2879
  %v4106 = vpop.f32.mrf.mxu0
  %v4107 = vadd.f32 %v4018, %v4106
  %v4108 = vpop.f32.mrf.mxu0
  %v4109 = vadd.f32 %v4020, %v4108
  %4110 = vdwg.mxu0
  %4111 = vmatpush.bf16.msra.mxu0 %v3407
  %4112 = vmatpush.bf16.msra.mxu0 %v3406
  %4113 = vmatpush.bf16.msra.mxu0 %v3405
  %4114 = vmatpush.bf16.msra.mxu0 %v3404
  %4115 = vmatpush.bf16.msra.mxu0 %v3403
  %4116 = vmatpush.bf16.msra.mxu0 %v3402
  %4117 = vmatpush.bf16.msra.mxu0 %v3401
  %4118 = vmatpush.bf16.msra.mxu0 %v3400
  %4119 = vmatmul.bf16.gmra.mxu0 %v2960
  %v4120 = vpop.f32.mrf.mxu0
  %v4121 = vadd.f32 %v4032, %v4120
  %v4122 = vpop.f32.mrf.mxu0
  %v4123 = vadd.f32 %v4034, %v4122
  %4124 = vmatmul.bf16.gmra.mxu0 %v2961
  %v4125 = vpop.f32.mrf.mxu0
  %v4126 = vadd.f32 %v4037, %v4125
  %v4127 = vpop.f32.mrf.mxu0
  %v4128 = vadd.f32 %v4039, %v4127
  %4129 = vmatmul.bf16.gmra.mxu0 %v2962
  %v4130 = vpop.f32.mrf.mxu0
  %v4131 = vadd.f32 %v4042, %v4130
  %v4132 = vpop.f32.mrf.mxu0
  %v4133 = vadd.f32 %v4044, %v4132
  %4134 = vmatmul.bf16.gmra.mxu0 %v2963
  %v4135 = vpop.f32.mrf.mxu0
  %v4136 = vadd.f32 %v4047, %v4135
  %v4137 = vpop.f32.mrf.mxu0
  %v4138 = vadd.f32 %v4049, %v4137
  %4139 = vmatmul.bf16.gmra.mxu0 %v2964
  %v4140 = vpop.f32.mrf.mxu0
  %v4141 = vadd.f32 %v4052, %v4140
  %v4142 = vpop.f32.mrf.mxu0
  %v4143 = vadd.f32 %v4054, %v4142
  %4144 = vmatmul.bf16.gmra.mxu0 %v2965
  %v4145 = vpop.f32.mrf.mxu0
  %v4146 = vadd.f32 %v4057, %v4145
  %v4147 = vpop.f32.mrf.mxu0
  %v4148 = vadd.f32 %v4059, %v4147
  %4149 = vmatmul.bf16.gmra.mxu0 %v2966
  %v4150 = vpop.f32.mrf.mxu0
  %v4151 = vadd.f32 %v4062, %v4150
  %v4152 = vpop.f32.mrf.mxu0
  %v4153 = vadd.f32 %v4064, %v4152
  %4154 = vmatmul.bf16.gmra.mxu0 %v2967
  %v4155 = vpop.f32.mrf.mxu0
  %v4156 = vadd.f32 %v4067, %v4155
  %v4157 = vpop.f32.mrf.mxu0
  %v4158 = vadd.f32 %v4069, %v4157
  %4159 = vmatmul.bf16.gmra.mxu0 %v2968
  %v4160 = vpop.f32.mrf.mxu0
  %v4161 = vadd.f32 %v4072, %v4160
  %v4162 = vpop.f32.mrf.mxu0
  %v4163 = vadd.f32 %v4074, %v4162
  %4164 = vmatmul.bf16.gmra.mxu0 %v2969
  %v4165 = vpop.f32.mrf.mxu0
  %v4166 = vadd.f32 %v4077, %v4165
  %v4167 = vpop.f32.mrf.mxu0
  %v4168 = vadd.f32 %v4079, %v4167
  %4169 = vmatmul.bf16.gmra.mxu0 %v2970
  %v4170 = vpop.f32.mrf.mxu0
  %v4171 = vadd.f32 %v4082, %v4170
  %v4172 = vpop.f32.mrf.mxu0
  %v4173 = vadd.f32 %v4084, %v4172
  %4174 = vmatmul.bf16.gmra.mxu0 %v2971
  %v4175 = vpop.f32.mrf.mxu0
  %v4176 = vadd.f32 %v4087, %v4175
  %v4177 = vpop.f32.mrf.mxu0
  %v4178 = vadd.f32 %v4089, %v4177
  %4179 = vmatmul.bf16.gmra.mxu0 %v2972
  %v4180 = vpop.f32.mrf.mxu0
  %v4181 = vadd.f32 %v4092, %v4180
  %v4182 = vpop.f32.mrf.mxu0
  %v4183 = vadd.f32 %v4094, %v4182
  %4184 = vmatmul.bf16.gmra.mxu0 %v2973
  %v4185 = vpop.f32.mrf.mxu0
  %v4186 = vadd.f32 %v4097, %v4185
  %v4187 = vpop.f32.mrf.mxu0
  %v4188 = vadd.f32 %v4099, %v4187
  %4189 = vmatmul.bf16.gmra.mxu0 %v2974
  %v4190 = vpop.f32.mrf.mxu0
  %v4191 = vadd.f32 %v4102, %v4190
  %v4192 = vpop.f32.mrf.mxu0
  %v4193 = vadd.f32 %v4104, %v4192
  %4194 = vmatmul.bf16.gmra.mxu0 %v2975
  %v4195 = vpop.f32.mrf.mxu0
  %v4196 = vadd.f32 %v4107, %v4195
  %v4197 = vpop.f32.mrf.mxu0
  %v4198 = vadd.f32 %v4109, %v4197
  %4199 = vdwg.mxu0
  %4200 = vmatpush.bf16.msra.mxu0 %v3415
  %4201 = vmatpush.bf16.msra.mxu0 %v3414
  %4202 = vmatpush.bf16.msra.mxu0 %v3413
  %4203 = vmatpush.bf16.msra.mxu0 %v3412
  %4204 = vmatpush.bf16.msra.mxu0 %v3411
  %4205 = vmatpush.bf16.msra.mxu0 %v3410
  %4206 = vmatpush.bf16.msra.mxu0 %v3409
  %4207 = vmatpush.bf16.msra.mxu0 %v3408
  %4208 = vmatmul.bf16.gmra.mxu0 %v3024
  %v4209 = vpop.f32.mrf.mxu0
  %v4210 = vadd.f32 %v4121, %v4209
  %v4211 = vpop.f32.mrf.mxu0
  %v4212 = vadd.f32 %v4123, %v4211
  %4213 = vmatmul.bf16.gmra.mxu0 %v3025
  %v4214 = vpop.f32.mrf.mxu0
  %v4215 = vadd.f32 %v4126, %v4214
  %v4216 = vpop.f32.mrf.mxu0
  %v4217 = vadd.f32 %v4128, %v4216
  %4218 = vmatmul.bf16.gmra.mxu0 %v3026
  %v4219 = vpop.f32.mrf.mxu0
  %v4220 = vadd.f32 %v4131, %v4219
  %v4221 = vpop.f32.mrf.mxu0
  %v4222 = vadd.f32 %v4133, %v4221
  %4223 = vmatmul.bf16.gmra.mxu0 %v3027
  %v4224 = vpop.f32.mrf.mxu0
  %v4225 = vadd.f32 %v4136, %v4224
  %v4226 = vpop.f32.mrf.mxu0
  %v4227 = vadd.f32 %v4138, %v4226
  %4228 = vmatmul.bf16.gmra.mxu0 %v3028
  %v4229 = vpop.f32.mrf.mxu0
  %v4230 = vadd.f32 %v4141, %v4229
  %v4231 = vpop.f32.mrf.mxu0
  %v4232 = vadd.f32 %v4143, %v4231
  %4233 = vmatmul.bf16.gmra.mxu0 %v3029
  %v4234 = vpop.f32.mrf.mxu0
  %v4235 = vadd.f32 %v4146, %v4234
  %v4236 = vpop.f32.mrf.mxu0
  %v4237 = vadd.f32 %v4148, %v4236
  %4238 = vmatmul.bf16.gmra.mxu0 %v3030
  %v4239 = vpop.f32.mrf.mxu0
  %v4240 = vadd.f32 %v4151, %v4239
  %v4241 = vpop.f32.mrf.mxu0
  %v4242 = vadd.f32 %v4153, %v4241
  %4243 = vmatmul.bf16.gmra.mxu0 %v3031
  %v4244 = vpop.f32.mrf.mxu0
  %v4245 = vadd.f32 %v4156, %v4244
  %v4246 = vpop.f32.mrf.mxu0
  %v4247 = vadd.f32 %v4158, %v4246
  %4248 = vmatmul.bf16.gmra.mxu0 %v3032
  %v4249 = vpop.f32.mrf.mxu0
  %v4250 = vadd.f32 %v4161, %v4249
  %v4251 = vpop.f32.mrf.mxu0
  %v4252 = vadd.f32 %v4163, %v4251
  %4253 = vmatmul.bf16.gmra.mxu0 %v3033
  %v4254 = vpop.f32.mrf.mxu0
  %v4255 = vadd.f32 %v4166, %v4254
  %v4256 = vpop.f32.mrf.mxu0
  %v4257 = vadd.f32 %v4168, %v4256
  %4258 = vmatmul.bf16.gmra.mxu0 %v3034
  %v4259 = vpop.f32.mrf.mxu0
  %v4260 = vadd.f32 %v4171, %v4259
  %v4261 = vpop.f32.mrf.mxu0
  %v4262 = vadd.f32 %v4173, %v4261
  %4263 = vmatmul.bf16.gmra.mxu0 %v3035
  %v4264 = vpop.f32.mrf.mxu0
  %v4265 = vadd.f32 %v4176, %v4264
  %v4266 = vpop.f32.mrf.mxu0
  %v4267 = vadd.f32 %v4178, %v4266
  %4268 = vmatmul.bf16.gmra.mxu0 %v3036
  %v4269 = vpop.f32.mrf.mxu0
  %v4270 = vadd.f32 %v4181, %v4269
  %v4271 = vpop.f32.mrf.mxu0
  %v4272 = vadd.f32 %v4183, %v4271
  %4273 = vmatmul.bf16.gmra.mxu0 %v3037
  %v4274 = vpop.f32.mrf.mxu0
  %v4275 = vadd.f32 %v4186, %v4274
  %v4276 = vpop.f32.mrf.mxu0
  %v4277 = vadd.f32 %v4188, %v4276
  %4278 = vmatmul.bf16.gmra.mxu0 %v3038
  %v4279 = vpop.f32.mrf.mxu0
  %v4280 = vadd.f32 %v4191, %v4279
  %v4281 = vpop.f32.mrf.mxu0
  %v4282 = vadd.f32 %v4193, %v4281
  %4283 = vmatmul.bf16.gmra.mxu0 %v3039
  %v4284 = vpop.f32.mrf.mxu0
  %v4285 = vadd.f32 %v4196, %v4284
  %v4286 = vpop.f32.mrf.mxu0
  %v4287 = vadd.f32 %v4198, %v4286
  %4288 = vdwg.mxu0
  %v4290 = vperm.slane %v356, 0
  %v4292 = vmul.f32 %v4210, %v4290
  %v4293 = vmul.f32 %v4212, %v4290
  %v4294 = vmul.f32 %v4215, %v4290
  %v4295 = vmul.f32 %v4217, %v4290
  %v4296 = vmul.f32 %v4220, %v4290
  %v4297 = vmul.f32 %v4222, %v4290
  %v4298 = vmul.f32 %v4225, %v4290
  %v4299 = vmul.f32 %v4227, %v4290
  %v4300 = vmul.f32 %v4230, %v4290
  %v4301 = vmul.f32 %v4232, %v4290
  %v4302 = vmul.f32 %v4235, %v4290
  %v4303 = vmul.f32 %v4237, %v4290
  %v4304 = vmul.f32 %v4240, %v4290
  %v4305 = vmul.f32 %v4242, %v4290
  %v4306 = vmul.f32 %v4245, %v4290
  %v4307 = vmul.f32 %v4247, %v4290
  %v4308 = vmul.f32 %v4250, %v4290
  %v4309 = vmul.f32 %v4252, %v4290
  %v4310 = vmul.f32 %v4255, %v4290
  %v4311 = vmul.f32 %v4257, %v4290
  %v4312 = vmul.f32 %v4260, %v4290
  %v4313 = vmul.f32 %v4262, %v4290
  %v4314 = vmul.f32 %v4265, %v4290
  %v4315 = vmul.f32 %v4267, %v4290
  %v4316 = vmul.f32 %v4270, %v4290
  %v4317 = vmul.f32 %v4272, %v4290
  %v4318 = vmul.f32 %v4275, %v4290
  %v4319 = vmul.f32 %v4277, %v4290
  %v4320 = vmul.f32 %v4280, %v4290
  %v4321 = vmul.f32 %v4282, %v4290
  %v4322 = vmul.f32 %v4285, %v4290
  %v4323 = vmul.f32 %v4287, %v4290
  %v4325 = vperm.slane %v357, 0
  %v4327 = vadd.f32 %v4292, %v4325
  %v4328 = vadd.f32 %v4293, %v4325
  %v4329 = vadd.f32 %v4294, %v4325
  %v4330 = vadd.f32 %v4295, %v4325
  %v4331 = vadd.f32 %v4296, %v4325
  %v4332 = vadd.f32 %v4297, %v4325
  %v4333 = vadd.f32 %v4298, %v4325
  %v4334 = vadd.f32 %v4299, %v4325
  %v4335 = vadd.f32 %v4300, %v4325
  %v4336 = vadd.f32 %v4301, %v4325
  %v4337 = vadd.f32 %v4302, %v4325
  %v4338 = vadd.f32 %v4303, %v4325
  %v4339 = vadd.f32 %v4304, %v4325
  %v4340 = vadd.f32 %v4305, %v4325
  %v4341 = vadd.f32 %v4306, %v4325
  %v4342 = vadd.f32 %v4307, %v4325
  %v4343 = vadd.f32 %v4308, %v4325
  %v4344 = vadd.f32 %v4309, %v4325
  %v4345 = vadd.f32 %v4310, %v4325
  %v4346 = vadd.f32 %v4311, %v4325
  %v4347 = vadd.f32 %v4312, %v4325
  %v4348 = vadd.f32 %v4313, %v4325
  %v4349 = vadd.f32 %v4314, %v4325
  %v4350 = vadd.f32 %v4315, %v4325
  %v4351 = vadd.f32 %v4316, %v4325
  %v4352 = vadd.f32 %v4317, %v4325
  %v4353 = vadd.f32 %v4318, %v4325
  %v4354 = vadd.f32 %v4319, %v4325
  %v4355 = vadd.f32 %v4320, %v4325
  %v4356 = vadd.f32 %v4321, %v4325
  %v4357 = vadd.f32 %v4322, %v4325
  %v4358 = vadd.f32 %v4323, %v4325
  %v4359 = vmax.f32 %v4327, 0.0
  %v4360 = vmax.f32 %v4328, 0.0
  %v4361 = vmax.f32 %v4329, 0.0
  %v4362 = vmax.f32 %v4330, 0.0
  %v4363 = vmax.f32 %v4331, 0.0
  %v4364 = vmax.f32 %v4332, 0.0
  %v4365 = vmax.f32 %v4333, 0.0
  %v4366 = vmax.f32 %v4334, 0.0
  %v4367 = vmax.f32 %v4335, 0.0
  %v4368 = vmax.f32 %v4336, 0.0
  %v4369 = vmax.f32 %v4337, 0.0
  %v4370 = vmax.f32 %v4338, 0.0
  %v4371 = vmax.f32 %v4339, 0.0
  %v4372 = vmax.f32 %v4340, 0.0
  %v4373 = vmax.f32 %v4341, 0.0
  %v4374 = vmax.f32 %v4342, 0.0
  %v4375 = vmax.f32 %v4343, 0.0
  %v4376 = vmax.f32 %v4344, 0.0
  %v4377 = vmax.f32 %v4345, 0.0
  %v4378 = vmax.f32 %v4346, 0.0
  %v4379 = vmax.f32 %v4347, 0.0
  %v4380 = vmax.f32 %v4348, 0.0
  %v4381 = vmax.f32 %v4349, 0.0
  %v4382 = vmax.f32 %v4350, 0.0
  %v4383 = vmax.f32 %v4351, 0.0
  %v4384 = vmax.f32 %v4352, 0.0
  %v4385 = vmax.f32 %v4353, 0.0
  %v4386 = vmax.f32 %v4354, 0.0
  %v4387 = vmax.f32 %v4355, 0.0
  %v4388 = vmax.f32 %v4356, 0.0
  %v4389 = vmax.f32 %v4357, 0.0
  %v4390 = vmax.f32 %v4358, 0.0
  %v4391 = vpack.c.bf16 %v4359, %v4359
  %v4392 = vpack.c.bf16 %v4360, %v4360
  %v4393 = vpack.c.bf16 %v4361, %v4361
  %v4394 = vpack.c.bf16 %v4362, %v4362
  %v4395 = vpack.c.bf16 %v4363, %v4363
  %v4396 = vpack.c.bf16 %v4364, %v4364
  %v4397 = vpack.c.bf16 %v4365, %v4365
  %v4398 = vpack.c.bf16 %v4366, %v4366
  %v4399 = vpack.c.bf16 %v4367, %v4367
  %v4400 = vpack.c.bf16 %v4368, %v4368
  %v4401 = vpack.c.bf16 %v4369, %v4369
  %v4402 = vpack.c.bf16 %v4370, %v4370
  %v4403 = vpack.c.bf16 %v4371, %v4371
  %v4404 = vpack.c.bf16 %v4372, %v4372
  %v4405 = vpack.c.bf16 %v4373, %v4373
  %v4406 = vpack.c.bf16 %v4374, %v4374
  %v4407 = vpack.c.bf16 %v4375, %v4375
  %v4408 = vpack.c.bf16 %v4376, %v4376
  %v4409 = vpack.c.bf16 %v4377, %v4377
  %v4410 = vpack.c.bf16 %v4378, %v4378
  %v4411 = vpack.c.bf16 %v4379, %v4379
  %v4412 = vpack.c.bf16 %v4380, %v4380
  %v4413 = vpack.c.bf16 %v4381, %v4381
  %v4414 = vpack.c.bf16 %v4382, %v4382
  %v4415 = vpack.c.bf16 %v4383, %v4383
  %v4416 = vpack.c.bf16 %v4384, %v4384
  %v4417 = vpack.c.bf16 %v4385, %v4385
  %v4418 = vpack.c.bf16 %v4386, %v4386
  %v4419 = vpack.c.bf16 %v4387, %v4387
  %v4420 = vpack.c.bf16 %v4388, %v4388
  %v4421 = vpack.c.bf16 %v4389, %v4389
  %v4422 = vpack.c.bf16 %v4390, %v4390
  %4423 = vst [vmem:[%s424 + $0x4] sm:$0xf] %v4391
  %4424 = vst [vmem:[%s424 + $0x8] sm:$0xf] %v4392
  %4425 = vst [vmem:[%s424 + $0x14] sm:$0xf] %v4393
  %4426 = vst [vmem:[%s424 + $0x18] sm:$0xf] %v4394
  %4427 = vst [vmem:[%s424 + $0x24] sm:$0xf] %v4395
  %4428 = vst [vmem:[%s424 + $0x28] sm:$0xf] %v4396
  %4429 = vst [vmem:[%s424 + $0x34] sm:$0xf] %v4397
  %4430 = vst [vmem:[%s424 + $0x38] sm:$0xf] %v4398
  %4431 = vst [vmem:[%s424 + $0x44] sm:$0xf] %v4399
  %4432 = vst [vmem:[%s424 + $0x48] sm:$0xf] %v4400
  %4433 = vst [vmem:[%s424 + $0x54] sm:$0xf] %v4401
  %4434 = vst [vmem:[%s424 + $0x58] sm:$0xf] %v4402
  %4435 = vst [vmem:[%s424 + $0x64] sm:$0xf] %v4403
  %4436 = vst [vmem:[%s424 + $0x68] sm:$0xf] %v4404
  %4437 = vst [vmem:[%s424 + $0x74] sm:$0xf] %v4405
  %4438 = vst [vmem:[%s424 + $0x78] sm:$0xf] %v4406
  %4439 = vst [vmem:[%s424 + $0x84] sm:$0xf] %v4407
  %4440 = vst [vmem:[%s424 + $0x88] sm:$0xf] %v4408
  %4441 = vst [vmem:[%s424 + $0x94] sm:$0xf] %v4409
  %4442 = vst [vmem:[%s424 + $0x98] sm:$0xf] %v4410
  %4443 = vst [vmem:[%s424 + $0xa4] sm:$0xf] %v4411
  %4444 = vst [vmem:[%s424 + $0xa8] sm:$0xf] %v4412
  %4445 = vst [vmem:[%s424 + $0xb4] sm:$0xf] %v4413
  %4446 = vst [vmem:[%s424 + $0xb8] sm:$0xf] %v4414
  %4447 = vst [vmem:[%s424 + $0xc4] sm:$0xf] %v4415
  %4448 = vst [vmem:[%s424 + $0xc8] sm:$0xf] %v4416
  %4449 = vst [vmem:[%s424 + $0xd4] sm:$0xf] %v4417
  %4450 = vst [vmem:[%s424 + $0xd8] sm:$0xf] %v4418
  %4451 = vst [vmem:[%s424 + $0xe4] sm:$0xf] %v4419
  %4452 = vst [vmem:[%s424 + $0xe8] sm:$0xf] %v4420
  %4453 = vst [vmem:[%s424 + $0xf4] sm:$0xf] %v4421
  %4454 = vst [vmem:[%s424 + $0xf8] sm:$0xf] %v4422
  %v4455 = vld [vmem:[#allocation2] sm:$0x8]
  %v4456 = vld [vmem:[#allocation2 + $0x4] sm:$0xf]
  %v4457 = vld [vmem:[#allocation2 + $0x8] sm:$0xf]
  %v4458 = vld [vmem:[#allocation2 + $0x10] sm:$0x8]
  %v4459 = vld [vmem:[#allocation2 + $0x14] sm:$0xf]
  %v4460 = vld [vmem:[#allocation2 + $0x18] sm:$0xf]
  %v4461 = vld [vmem:[#allocation2 + $0x20] sm:$0x8]
  %v4462 = vld [vmem:[#allocation2 + $0x24] sm:$0xf]
  %v4463 = vld [vmem:[#allocation2 + $0x28] sm:$0xf]
  %v4464 = vld [vmem:[#allocation2 + $0x30] sm:$0x8]
  %v4465 = vld [vmem:[#allocation2 + $0x34] sm:$0xf]
  %v4466 = vld [vmem:[#allocation2 + $0x38] sm:$0xf]
  %v4467 = vld [vmem:[#allocation2 + $0x40] sm:$0x8]
  %v4468 = vld [vmem:[#allocation2 + $0x44] sm:$0xf]
  %v4469 = vld [vmem:[#allocation2 + $0x48] sm:$0xf]
  %v4470 = vld [vmem:[#allocation2 + $0x50] sm:$0x8]
  %v4471 = vld [vmem:[#allocation2 + $0x54] sm:$0xf]
  %v4472 = vld [vmem:[#allocation2 + $0x58] sm:$0xf]
  %v4473 = vld [vmem:[#allocation2 + $0x60] sm:$0x8]
  %v4474 = vld [vmem:[#allocation2 + $0x64] sm:$0xf]
  %v4475 = vld [vmem:[#allocation2 + $0x68] sm:$0xf]
  %v4476 = vld [vmem:[#allocation2 + $0x70] sm:$0x8]
  %v4477 = vld [vmem:[#allocation2 + $0x74] sm:$0xf]
  %v4478 = vld [vmem:[#allocation2 + $0x78] sm:$0xf]
  %v4479 = vld [vmem:[#allocation2 + $0x80] sm:$0x8]
  %v4480 = vld [vmem:[#allocation2 + $0x84] sm:$0xf]
  %v4481 = vld [vmem:[#allocation2 + $0x88] sm:$0xf]
  %v4482 = vld [vmem:[#allocation2 + $0x90] sm:$0x8]
  %v4483 = vld [vmem:[#allocation2 + $0x94] sm:$0xf]
  %v4484 = vld [vmem:[#allocation2 + $0x98] sm:$0xf]
  %v4485 = vld [vmem:[#allocation2 + $0xa0] sm:$0x8]
  %v4486 = vld [vmem:[#allocation2 + $0xa4] sm:$0xf]
  %v4487 = vld [vmem:[#allocation2 + $0xa8] sm:$0xf]
  %v4488 = vld [vmem:[#allocation2 + $0xb0] sm:$0x8]
  %v4489 = vld [vmem:[#allocation2 + $0xb4] sm:$0xf]
  %v4490 = vld [vmem:[#allocation2 + $0xb8] sm:$0xf]
  %v4491 = vld [vmem:[#allocation2 + $0xc0] sm:$0x8]
  %v4492 = vld [vmem:[#allocation2 + $0xc4] sm:$0xf]
  %v4493 = vld [vmem:[#allocation2 + $0xc8] sm:$0xf]
  %v4494 = vld [vmem:[#allocation2 + $0xd0] sm:$0x8]
  %v4495 = vld [vmem:[#allocation2 + $0xd4] sm:$0xf]
  %v4496 = vld [vmem:[#allocation2 + $0xd8] sm:$0xf]
  %v4497 = vld [vmem:[#allocation2 + $0xe0] sm:$0x8]
  %v4498 = vld [vmem:[#allocation2 + $0xe4] sm:$0xf]
  %v4499 = vld [vmem:[#allocation2 + $0xe8] sm:$0xf]
  %v4500 = vld [vmem:[#allocation2 + $0xf0] sm:$0x8]
  %v4501 = vld [vmem:[#allocation2 + $0xf4] sm:$0xf]
  %v4502 = vld [vmem:[#allocation2 + $0xf8] sm:$0xf]
  %v4504 = vshrl.u32 %v4455, 16
  %v4506 = vrot.slane %v4504, 7
  %v4507 = vrot.slane %v4506, 4
  %v4509 = vshrl.u32 %v4456, 16
  %v4511 = vrot.slane %v4509, 7
  %v4512 = vshll.u32 %v4456, 16
  %v4514 = vor.u32 %v4511, %v4512
  %v4515 = vsel %vm507, %v4507, %v4514
  %v4516 = vrot.slane %v4511, 4
  %v4518 = vshrl.u32 %v4457, 16
  %v4520 = vrot.slane %v4518, 7
  %v4521 = vshll.u32 %v4457, 16
  %v4523 = vor.u32 %v4520, %v4521
  %v4524 = vsel %vm507, %v4516, %v4523
  %v4526 = vshrl.u32 %v4458, 16
  %v4528 = vrot.slane %v4526, 7
  %v4529 = vrot.slane %v4528, 4
  %v4531 = vshrl.u32 %v4459, 16
  %v4533 = vrot.slane %v4531, 7
  %v4534 = vshll.u32 %v4459, 16
  %v4536 = vor.u32 %v4533, %v4534
  %v4537 = vsel %vm507, %v4529, %v4536
  %v4538 = vrot.slane %v4533, 4
  %v4540 = vshrl.u32 %v4460, 16
  %v4542 = vrot.slane %v4540, 7
  %v4543 = vshll.u32 %v4460, 16
  %v4545 = vor.u32 %v4542, %v4543
  %v4546 = vsel %vm507, %v4538, %v4545
  %v4548 = vshrl.u32 %v4461, 16
  %v4550 = vrot.slane %v4548, 7
  %v4551 = vrot.slane %v4550, 4
  %v4553 = vshrl.u32 %v4462, 16
  %v4555 = vrot.slane %v4553, 7
  %v4556 = vshll.u32 %v4462, 16
  %v4558 = vor.u32 %v4555, %v4556
  %v4559 = vsel %vm507, %v4551, %v4558
  %v4560 = vrot.slane %v4555, 4
  %v4562 = vshrl.u32 %v4463, 16
  %v4564 = vrot.slane %v4562, 7
  %v4565 = vshll.u32 %v4463, 16
  %v4567 = vor.u32 %v4564, %v4565
  %v4568 = vsel %vm507, %v4560, %v4567
  %v4570 = vshrl.u32 %v4464, 16
  %v4572 = vrot.slane %v4570, 7
  %v4573 = vrot.slane %v4572, 4
  %v4575 = vshrl.u32 %v4465, 16
  %v4577 = vrot.slane %v4575, 7
  %v4578 = vshll.u32 %v4465, 16
  %v4580 = vor.u32 %v4577, %v4578
  %v4581 = vsel %vm507, %v4573, %v4580
  %v4582 = vrot.slane %v4577, 4
  %v4584 = vshrl.u32 %v4466, 16
  %v4586 = vrot.slane %v4584, 7
  %v4587 = vshll.u32 %v4466, 16
  %v4589 = vor.u32 %v4586, %v4587
  %v4590 = vsel %vm507, %v4582, %v4589
  %v4592 = vshrl.u32 %v4467, 16
  %v4594 = vrot.slane %v4592, 7
  %v4595 = vrot.slane %v4594, 4
  %v4597 = vshrl.u32 %v4468, 16
  %v4599 = vrot.slane %v4597, 7
  %v4600 = vshll.u32 %v4468, 16
  %v4602 = vor.u32 %v4599, %v4600
  %v4603 = vsel %vm507, %v4595, %v4602
  %v4604 = vrot.slane %v4599, 4
  %v4606 = vshrl.u32 %v4469, 16
  %v4608 = vrot.slane %v4606, 7
  %v4609 = vshll.u32 %v4469, 16
  %v4611 = vor.u32 %v4608, %v4609
  %v4612 = vsel %vm507, %v4604, %v4611
  %v4614 = vshrl.u32 %v4470, 16
  %v4616 = vrot.slane %v4614, 7
  %v4617 = vrot.slane %v4616, 4
  %v4619 = vshrl.u32 %v4471, 16
  %v4621 = vrot.slane %v4619, 7
  %v4622 = vshll.u32 %v4471, 16
  %v4624 = vor.u32 %v4621, %v4622
  %v4625 = vsel %vm507, %v4617, %v4624
  %v4626 = vrot.slane %v4621, 4
  %v4628 = vshrl.u32 %v4472, 16
  %v4630 = vrot.slane %v4628, 7
  %v4631 = vshll.u32 %v4472, 16
  %v4633 = vor.u32 %v4630, %v4631
  %v4634 = vsel %vm507, %v4626, %v4633
  %v4636 = vshrl.u32 %v4473, 16
  %v4638 = vrot.slane %v4636, 7
  %v4639 = vrot.slane %v4638, 4
  %v4641 = vshrl.u32 %v4474, 16
  %v4643 = vrot.slane %v4641, 7
  %v4644 = vshll.u32 %v4474, 16
  %v4646 = vor.u32 %v4643, %v4644
  %v4647 = vsel %vm507, %v4639, %v4646
  %v4648 = vrot.slane %v4643, 4
  %v4650 = vshrl.u32 %v4475, 16
  %v4652 = vrot.slane %v4650, 7
  %v4653 = vshll.u32 %v4475, 16
  %v4655 = vor.u32 %v4652, %v4653
  %v4656 = vsel %vm507, %v4648, %v4655
  %v4658 = vshrl.u32 %v4476, 16
  %v4660 = vrot.slane %v4658, 7
  %v4661 = vrot.slane %v4660, 4
  %v4663 = vshrl.u32 %v4477, 16
  %v4665 = vrot.slane %v4663, 7
  %v4666 = vshll.u32 %v4477, 16
  %v4668 = vor.u32 %v4665, %v4666
  %v4669 = vsel %vm507, %v4661, %v4668
  %v4670 = vrot.slane %v4665, 4
  %v4672 = vshrl.u32 %v4478, 16
  %v4674 = vrot.slane %v4672, 7
  %v4675 = vshll.u32 %v4478, 16
  %v4677 = vor.u32 %v4674, %v4675
  %v4678 = vsel %vm507, %v4670, %v4677
  %v4680 = vshrl.u32 %v4479, 16
  %v4682 = vrot.slane %v4680, 7
  %v4683 = vrot.slane %v4682, 4
  %v4685 = vshrl.u32 %v4480, 16
  %v4687 = vrot.slane %v4685, 7
  %v4688 = vshll.u32 %v4480, 16
  %v4690 = vor.u32 %v4687, %v4688
  %v4691 = vsel %vm507, %v4683, %v4690
  %v4692 = vrot.slane %v4687, 4
  %v4694 = vshrl.u32 %v4481, 16
  %v4696 = vrot.slane %v4694, 7
  %v4697 = vshll.u32 %v4481, 16
  %v4699 = vor.u32 %v4696, %v4697
  %v4700 = vsel %vm507, %v4692, %v4699
  %v4702 = vshrl.u32 %v4482, 16
  %v4704 = vrot.slane %v4702, 7
  %v4705 = vrot.slane %v4704, 4
  %v4707 = vshrl.u32 %v4483, 16
  %v4709 = vrot.slane %v4707, 7
  %v4710 = vshll.u32 %v4483, 16
  %v4712 = vor.u32 %v4709, %v4710
  %v4713 = vsel %vm507, %v4705, %v4712
  %v4714 = vrot.slane %v4709, 4
  %v4716 = vshrl.u32 %v4484, 16
  %v4718 = vrot.slane %v4716, 7
  %v4719 = vshll.u32 %v4484, 16
  %v4721 = vor.u32 %v4718, %v4719
  %v4722 = vsel %vm507, %v4714, %v4721
  %v4724 = vshrl.u32 %v4485, 16
  %v4726 = vrot.slane %v4724, 7
  %v4727 = vrot.slane %v4726, 4
  %v4729 = vshrl.u32 %v4486, 16
  %v4731 = vrot.slane %v4729, 7
  %v4732 = vshll.u32 %v4486, 16
  %v4734 = vor.u32 %v4731, %v4732
  %v4735 = vsel %vm507, %v4727, %v4734
  %v4736 = vrot.slane %v4731, 4
  %v4738 = vshrl.u32 %v4487, 16
  %v4740 = vrot.slane %v4738, 7
  %v4741 = vshll.u32 %v4487, 16
  %v4743 = vor.u32 %v4740, %v4741
  %v4744 = vsel %vm507, %v4736, %v4743
  %v4746 = vshrl.u32 %v4488, 16
  %v4748 = vrot.slane %v4746, 7
  %v4749 = vrot.slane %v4748, 4
  %v4751 = vshrl.u32 %v4489, 16
  %v4753 = vrot.slane %v4751, 7
  %v4754 = vshll.u32 %v4489, 16
  %v4756 = vor.u32 %v4753, %v4754
  %v4757 = vsel %vm507, %v4749, %v4756
  %v4758 = vrot.slane %v4753, 4
  %v4760 = vshrl.u32 %v4490, 16
  %v4762 = vrot.slane %v4760, 7
  %v4763 = vshll.u32 %v4490, 16
  %v4765 = vor.u32 %v4762, %v4763
  %v4766 = vsel %vm507, %v4758, %v4765
  %v4768 = vshrl.u32 %v4491, 16
  %v4770 = vrot.slane %v4768, 7
  %v4771 = vrot.slane %v4770, 4
  %v4773 = vshrl.u32 %v4492, 16
  %v4775 = vrot.slane %v4773, 7
  %v4776 = vshll.u32 %v4492, 16
  %v4778 = vor.u32 %v4775, %v4776
  %v4779 = vsel %vm507, %v4771, %v4778
  %v4780 = vrot.slane %v4775, 4
  %v4782 = vshrl.u32 %v4493, 16
  %v4784 = vrot.slane %v4782, 7
  %v4785 = vshll.u32 %v4493, 16
  %v4787 = vor.u32 %v4784, %v4785
  %v4788 = vsel %vm507, %v4780, %v4787
  %v4790 = vshrl.u32 %v4494, 16
  %v4792 = vrot.slane %v4790, 7
  %v4793 = vrot.slane %v4792, 4
  %v4795 = vshrl.u32 %v4495, 16
  %v4797 = vrot.slane %v4795, 7
  %v4798 = vshll.u32 %v4495, 16
  %v4800 = vor.u32 %v4797, %v4798
  %v4801 = vsel %vm507, %v4793, %v4800
  %v4802 = vrot.slane %v4797, 4
  %v4804 = vshrl.u32 %v4496, 16
  %v4806 = vrot.slane %v4804, 7
  %v4807 = vshll.u32 %v4496, 16
  %v4809 = vor.u32 %v4806, %v4807
  %v4810 = vsel %vm507, %v4802, %v4809
  %v4812 = vshrl.u32 %v4497, 16
  %v4814 = vrot.slane %v4812, 7
  %v4815 = vrot.slane %v4814, 4
  %v4817 = vshrl.u32 %v4498, 16
  %v4819 = vrot.slane %v4817, 7
  %v4820 = vshll.u32 %v4498, 16
  %v4822 = vor.u32 %v4819, %v4820
  %v4823 = vsel %vm507, %v4815, %v4822
  %v4824 = vrot.slane %v4819, 4
  %v4826 = vshrl.u32 %v4499, 16
  %v4828 = vrot.slane %v4826, 7
  %v4829 = vshll.u32 %v4499, 16
  %v4831 = vor.u32 %v4828, %v4829
  %v4832 = vsel %vm507, %v4824, %v4831
  %v4834 = vshrl.u32 %v4500, 16
  %v4836 = vrot.slane %v4834, 7
  %v4837 = vrot.slane %v4836, 4
  %v4839 = vshrl.u32 %v4501, 16
  %v4841 = vrot.slane %v4839, 7
  %v4842 = vshll.u32 %v4501, 16
  %v4844 = vor.u32 %v4841, %v4842
  %v4845 = vsel %vm507, %v4837, %v4844
  %v4846 = vrot.slane %v4841, 4
  %v4848 = vshrl.u32 %v4502, 16
  %v4850 = vrot.slane %v4848, 7
  %v4851 = vshll.u32 %v4502, 16
  %v4853 = vor.u32 %v4850, %v4851
  %v4854 = vsel %vm507, %v4846, %v4853
  %v4855 = vld [vmem:[#allocation2 + $0xc] sm:$0x1]
  %v4856 = vld [vmem:[#allocation2 + $0x1c] sm:$0x1]
  %v4857 = vld [vmem:[#allocation2 + $0x2c] sm:$0x1]
  %v4858 = vld [vmem:[#allocation2 + $0x3c] sm:$0x1]
  %v4859 = vld [vmem:[#allocation2 + $0x4c] sm:$0x1]
  %v4860 = vld [vmem:[#allocation2 + $0x5c] sm:$0x1]
  %v4861 = vld [vmem:[#allocation2 + $0x6c] sm:$0x1]
  %v4862 = vld [vmem:[#allocation2 + $0x7c] sm:$0x1]
  %v4863 = vld [vmem:[#allocation2 + $0x8c] sm:$0x1]
  %v4864 = vld [vmem:[#allocation2 + $0x9c] sm:$0x1]
  %v4865 = vld [vmem:[#allocation2 + $0xac] sm:$0x1]
  %v4866 = vld [vmem:[#allocation2 + $0xbc] sm:$0x1]
  %v4867 = vld [vmem:[#allocation2 + $0xcc] sm:$0x1]
  %v4868 = vld [vmem:[#allocation2 + $0xdc] sm:$0x1]
  %v4869 = vld [vmem:[#allocation2 + $0xec] sm:$0x1]
  %v4870 = vld [vmem:[#allocation2 + $0xfc] sm:$0x1]
  %v4871 = vrot.slane %v4509, 4
  %v4872 = vrot.slane %v4512, 5
  %v4873 = vor.u32 %v4871, %v4872
  %v4874 = vrot.slane %v4873, 4
  %v4875 = vrot.slane %v4521, 5
  %v4876 = vsel %vm878, %v4874, %v4875
  %v4877 = vrot.slane %v4518, 4
  %v4878 = vor.u32 %v4877, %v4875
  %v4879 = vrot.slane %v4878, 4
  %v4881 = vshll.u32 %v4855, 16
  %v4883 = vrot.slane %v4881, 5
  %v4884 = vsel %vm878, %v4879, %v4883
  %v4885 = vrot.slane %v4531, 4
  %v4886 = vrot.slane %v4534, 5
  %v4887 = vor.u32 %v4885, %v4886
  %v4888 = vrot.slane %v4887, 4
  %v4889 = vrot.slane %v4543, 5
  %v4890 = vsel %vm878, %v4888, %v4889
  %v4891 = vrot.slane %v4540, 4
  %v4892 = vor.u32 %v4891, %v4889
  %v4893 = vrot.slane %v4892, 4
  %v4895 = vshll.u32 %v4856, 16
  %v4897 = vrot.slane %v4895, 5
  %v4898 = vsel %vm878, %v4893, %v4897
  %v4899 = vrot.slane %v4553, 4
  %v4900 = vrot.slane %v4556, 5
  %v4901 = vor.u32 %v4899, %v4900
  %v4902 = vrot.slane %v4901, 4
  %v4903 = vrot.slane %v4565, 5
  %v4904 = vsel %vm878, %v4902, %v4903
  %v4905 = vrot.slane %v4562, 4
  %v4906 = vor.u32 %v4905, %v4903
  %v4907 = vrot.slane %v4906, 4
  %v4909 = vshll.u32 %v4857, 16
  %v4911 = vrot.slane %v4909, 5
  %v4912 = vsel %vm878, %v4907, %v4911
  %v4913 = vrot.slane %v4575, 4
  %v4914 = vrot.slane %v4578, 5
  %v4915 = vor.u32 %v4913, %v4914
  %v4916 = vrot.slane %v4915, 4
  %v4917 = vrot.slane %v4587, 5
  %v4918 = vsel %vm878, %v4916, %v4917
  %v4919 = vrot.slane %v4584, 4
  %v4920 = vor.u32 %v4919, %v4917
  %v4921 = vrot.slane %v4920, 4
  %v4923 = vshll.u32 %v4858, 16
  %v4925 = vrot.slane %v4923, 5
  %v4926 = vsel %vm878, %v4921, %v4925
  %v4927 = vrot.slane %v4597, 4
  %v4928 = vrot.slane %v4600, 5
  %v4929 = vor.u32 %v4927, %v4928
  %v4930 = vrot.slane %v4929, 4
  %v4931 = vrot.slane %v4609, 5
  %v4932 = vsel %vm878, %v4930, %v4931
  %v4933 = vrot.slane %v4606, 4
  %v4934 = vor.u32 %v4933, %v4931
  %v4935 = vrot.slane %v4934, 4
  %v4937 = vshll.u32 %v4859, 16
  %v4939 = vrot.slane %v4937, 5
  %v4940 = vsel %vm878, %v4935, %v4939
  %v4941 = vrot.slane %v4619, 4
  %v4942 = vrot.slane %v4622, 5
  %v4943 = vor.u32 %v4941, %v4942
  %v4944 = vrot.slane %v4943, 4
  %v4945 = vrot.slane %v4631, 5
  %v4946 = vsel %vm878, %v4944, %v4945
  %v4947 = vrot.slane %v4628, 4
  %v4948 = vor.u32 %v4947, %v4945
  %v4949 = vrot.slane %v4948, 4
  %v4951 = vshll.u32 %v4860, 16
  %v4953 = vrot.slane %v4951, 5
  %v4954 = vsel %vm878, %v4949, %v4953
  %v4955 = vrot.slane %v4641, 4
  %v4956 = vrot.slane %v4644, 5
  %v4957 = vor.u32 %v4955, %v4956
  %v4958 = vrot.slane %v4957, 4
  %v4959 = vrot.slane %v4653, 5
  %v4960 = vsel %vm878, %v4958, %v4959
  %v4961 = vrot.slane %v4650, 4
  %v4962 = vor.u32 %v4961, %v4959
  %v4963 = vrot.slane %v4962, 4
  %v4965 = vshll.u32 %v4861, 16
  %v4967 = vrot.slane %v4965, 5
  %v4968 = vsel %vm878, %v4963, %v4967
  %v4969 = vrot.slane %v4663, 4
  %v4970 = vrot.slane %v4666, 5
  %v4971 = vor.u32 %v4969, %v4970
  %v4972 = vrot.slane %v4971, 4
  %v4973 = vrot.slane %v4675, 5
  %v4974 = vsel %vm878, %v4972, %v4973
  %v4975 = vrot.slane %v4672, 4
  %v4976 = vor.u32 %v4975, %v4973
  %v4977 = vrot.slane %v4976, 4
  %v4979 = vshll.u32 %v4862, 16
  %v4981 = vrot.slane %v4979, 5
  %v4982 = vsel %vm878, %v4977, %v4981
  %v4983 = vrot.slane %v4685, 4
  %v4984 = vrot.slane %v4688, 5
  %v4985 = vor.u32 %v4983, %v4984
  %v4986 = vrot.slane %v4985, 4
  %v4987 = vrot.slane %v4697, 5
  %v4988 = vsel %vm878, %v4986, %v4987
  %v4989 = vrot.slane %v4694, 4
  %v4990 = vor.u32 %v4989, %v4987
  %v4991 = vrot.slane %v4990, 4
  %v4993 = vshll.u32 %v4863, 16
  %v4995 = vrot.slane %v4993, 5
  %v4996 = vsel %vm878, %v4991, %v4995
  %v4997 = vrot.slane %v4707, 4
  %v4998 = vrot.slane %v4710, 5
  %v4999 = vor.u32 %v4997, %v4998
  %v5000 = vrot.slane %v4999, 4
  %v5001 = vrot.slane %v4719, 5
  %v5002 = vsel %vm878, %v5000, %v5001
  %v5003 = vrot.slane %v4716, 4
  %v5004 = vor.u32 %v5003, %v5001
  %v5005 = vrot.slane %v5004, 4
  %v5007 = vshll.u32 %v4864, 16
  %v5009 = vrot.slane %v5007, 5
  %v5010 = vsel %vm878, %v5005, %v5009
  %v5011 = vrot.slane %v4729, 4
  %v5012 = vrot.slane %v4732, 5
  %v5013 = vor.u32 %v5011, %v5012
  %v5014 = vrot.slane %v5013, 4
  %v5015 = vrot.slane %v4741, 5
  %v5016 = vsel %vm878, %v5014, %v5015
  %v5017 = vrot.slane %v4738, 4
  %v5018 = vor.u32 %v5017, %v5015
  %v5019 = vrot.slane %v5018, 4
  %v5021 = vshll.u32 %v4865, 16
  %v5023 = vrot.slane %v5021, 5
  %v5024 = vsel %vm878, %v5019, %v5023
  %v5025 = vrot.slane %v4751, 4
  %v5026 = vrot.slane %v4754, 5
  %v5027 = vor.u32 %v5025, %v5026
  %v5028 = vrot.slane %v5027, 4
  %v5029 = vrot.slane %v4763, 5
  %v5030 = vsel %vm878, %v5028, %v5029
  %v5031 = vrot.slane %v4760, 4
  %v5032 = vor.u32 %v5031, %v5029
  %v5033 = vrot.slane %v5032, 4
  %v5035 = vshll.u32 %v4866, 16
  %v5037 = vrot.slane %v5035, 5
  %v5038 = vsel %vm878, %v5033, %v5037
  %v5039 = vrot.slane %v4773, 4
  %v5040 = vrot.slane %v4776, 5
  %v5041 = vor.u32 %v5039, %v5040
  %v5042 = vrot.slane %v5041, 4
  %v5043 = vrot.slane %v4785, 5
  %v5044 = vsel %vm878, %v5042, %v5043
  %v5045 = vrot.slane %v4782, 4
  %v5046 = vor.u32 %v5045, %v5043
  %v5047 = vrot.slane %v5046, 4
  %v5049 = vshll.u32 %v4867, 16
  %v5051 = vrot.slane %v5049, 5
  %v5052 = vsel %vm878, %v5047, %v5051
  %v5053 = vrot.slane %v4795, 4
  %v5054 = vrot.slane %v4798, 5
  %v5055 = vor.u32 %v5053, %v5054
  %v5056 = vrot.slane %v5055, 4
  %v5057 = vrot.slane %v4807, 5
  %v5058 = vsel %vm878, %v5056, %v5057
  %v5059 = vrot.slane %v4804, 4
  %v5060 = vor.u32 %v5059, %v5057
  %v5061 = vrot.slane %v5060, 4
  %v5063 = vshll.u32 %v4868, 16
  %v5065 = vrot.slane %v5063, 5
  %v5066 = vsel %vm878, %v5061, %v5065
  %v5067 = vrot.slane %v4817, 4
  %v5068 = vrot.slane %v4820, 5
  %v5069 = vor.u32 %v5067, %v5068
  %v5070 = vrot.slane %v5069, 4
  %v5071 = vrot.slane %v4829, 5
  %v5072 = vsel %vm878, %v5070, %v5071
  %v5073 = vrot.slane %v4826, 4
  %v5074 = vor.u32 %v5073, %v5071
  %v5075 = vrot.slane %v5074, 4
  %v5077 = vshll.u32 %v4869, 16
  %v5079 = vrot.slane %v5077, 5
  %v5080 = vsel %vm878, %v5075, %v5079
  %v5081 = vrot.slane %v4839, 4
  %v5082 = vrot.slane %v4842, 5
  %v5083 = vor.u32 %v5081, %v5082
  %v5084 = vrot.slane %v5083, 4
  %v5085 = vrot.slane %v4851, 5
  %v5086 = vsel %vm878, %v5084, %v5085
  %v5087 = vrot.slane %v4848, 4
  %v5088 = vor.u32 %v5087, %v5085
  %v5089 = vrot.slane %v5088, 4
  %v5091 = vshll.u32 %v4870, 16
  %v5093 = vrot.slane %v5091, 5
  %v5094 = vsel %vm878, %v5089, %v5093
  %v5095 = vld [vmem:[%s424] sm:$0x8]
  %v5096 = vld [vmem:[%s424 + $0x4] sm:$0xf]
  %v5097 = vld [vmem:[%s424 + $0x8] sm:$0xf]
  %v5098 = vld [vmem:[%s424 + $0x10] sm:$0x8]
  %v5099 = vld [vmem:[%s424 + $0x14] sm:$0xf]
  %v5100 = vld [vmem:[%s424 + $0x18] sm:$0xf]
  %v5101 = vld [vmem:[%s424 + $0x20] sm:$0x8]
  %v5102 = vld [vmem:[%s424 + $0x24] sm:$0xf]
  %v5103 = vld [vmem:[%s424 + $0x28] sm:$0xf]
  %v5104 = vld [vmem:[%s424 + $0x30] sm:$0x8]
  %v5105 = vld [vmem:[%s424 + $0x34] sm:$0xf]
  %v5106 = vld [vmem:[%s424 + $0x38] sm:$0xf]
  %v5107 = vld [vmem:[%s424 + $0x40] sm:$0x8]
  %v5108 = vld [vmem:[%s424 + $0x44] sm:$0xf]
  %v5109 = vld [vmem:[%s424 + $0x48] sm:$0xf]
  %v5110 = vld [vmem:[%s424 + $0x50] sm:$0x8]
  %v5111 = vld [vmem:[%s424 + $0x54] sm:$0xf]
  %v5112 = vld [vmem:[%s424 + $0x58] sm:$0xf]
  %v5113 = vld [vmem:[%s424 + $0x60] sm:$0x8]
  %v5114 = vld [vmem:[%s424 + $0x64] sm:$0xf]
  %v5115 = vld [vmem:[%s424 + $0x68] sm:$0xf]
  %v5116 = vld [vmem:[%s424 + $0x70] sm:$0x8]
  %v5117 = vld [vmem:[%s424 + $0x74] sm:$0xf]
  %v5118 = vld [vmem:[%s424 + $0x78] sm:$0xf]
  %v5119 = vld [vmem:[%s424 + $0x80] sm:$0x8]
  %v5120 = vld [vmem:[%s424 + $0x84] sm:$0xf]
  %v5121 = vld [vmem:[%s424 + $0x88] sm:$0xf]
  %v5122 = vld [vmem:[%s424 + $0x90] sm:$0x8]
  %v5123 = vld [vmem:[%s424 + $0x94] sm:$0xf]
  %v5124 = vld [vmem:[%s424 + $0x98] sm:$0xf]
  %v5125 = vld [vmem:[%s424 + $0xa0] sm:$0x8]
  %v5126 = vld [vmem:[%s424 + $0xa4] sm:$0xf]
  %v5127 = vld [vmem:[%s424 + $0xa8] sm:$0xf]
  %v5128 = vld [vmem:[%s424 + $0xb0] sm:$0x8]
  %v5129 = vld [vmem:[%s424 + $0xb4] sm:$0xf]
  %v5130 = vld [vmem:[%s424 + $0xb8] sm:$0xf]
  %v5131 = vld [vmem:[%s424 + $0xc0] sm:$0x8]
  %v5132 = vld [vmem:[%s424 + $0xc4] sm:$0xf]
  %v5133 = vld [vmem:[%s424 + $0xc8] sm:$0xf]
  %v5134 = vld [vmem:[%s424 + $0xd0] sm:$0x8]
  %v5135 = vld [vmem:[%s424 + $0xd4] sm:$0xf]
  %v5136 = vld [vmem:[%s424 + $0xd8] sm:$0xf]
  %v5137 = vld [vmem:[%s424 + $0xe0] sm:$0x8]
  %v5138 = vld [vmem:[%s424 + $0xe4] sm:$0xf]
  %v5139 = vld [vmem:[%s424 + $0xe8] sm:$0xf]
  %v5140 = vld [vmem:[%s424 + $0xf0] sm:$0x8]
  %v5141 = vld [vmem:[%s424 + $0xf4] sm:$0xf]
  %v5142 = vld [vmem:[%s424 + $0xf8] sm:$0xf]
  %v5144 = vshrl.u32 %v5095, 16
  %v5146 = vrot.slane %v5144, 7
  %v5147 = vrot.slane %v5146, 4
  %v5149 = vshrl.u32 %v5096, 16
  %v5151 = vrot.slane %v5149, 7
  %v5152 = vshll.u32 %v5096, 16
  %v5154 = vor.u32 %v5151, %v5152
  %v5155 = vsel %vm507, %v5147, %v5154
  %v5156 = vrot.slane %v5151, 4
  %v5158 = vshrl.u32 %v5097, 16
  %v5160 = vrot.slane %v5158, 7
  %v5161 = vshll.u32 %v5097, 16
  %v5163 = vor.u32 %v5160, %v5161
  %v5164 = vsel %vm507, %v5156, %v5163
  %v5166 = vshrl.u32 %v5098, 16
  %v5168 = vrot.slane %v5166, 7
  %v5169 = vrot.slane %v5168, 4
  %v5171 = vshrl.u32 %v5099, 16
  %v5173 = vrot.slane %v5171, 7
  %v5174 = vshll.u32 %v5099, 16
  %v5176 = vor.u32 %v5173, %v5174
  %v5177 = vsel %vm507, %v5169, %v5176
  %v5178 = vrot.slane %v5173, 4
  %v5180 = vshrl.u32 %v5100, 16
  %v5182 = vrot.slane %v5180, 7
  %v5183 = vshll.u32 %v5100, 16
  %v5185 = vor.u32 %v5182, %v5183
  %v5186 = vsel %vm507, %v5178, %v5185
  %v5188 = vshrl.u32 %v5101, 16
  %v5190 = vrot.slane %v5188, 7
  %v5191 = vrot.slane %v5190, 4
  %v5193 = vshrl.u32 %v5102, 16
  %v5195 = vrot.slane %v5193, 7
  %v5196 = vshll.u32 %v5102, 16
  %v5198 = vor.u32 %v5195, %v5196
  %v5199 = vsel %vm507, %v5191, %v5198
  %v5200 = vrot.slane %v5195, 4
  %v5202 = vshrl.u32 %v5103, 16
  %v5204 = vrot.slane %v5202, 7
  %v5205 = vshll.u32 %v5103, 16
  %v5207 = vor.u32 %v5204, %v5205
  %v5208 = vsel %vm507, %v5200, %v5207
  %v5210 = vshrl.u32 %v5104, 16
  %v5212 = vrot.slane %v5210, 7
  %v5213 = vrot.slane %v5212, 4
  %v5215 = vshrl.u32 %v5105, 16
  %v5217 = vrot.slane %v5215, 7
  %v5218 = vshll.u32 %v5105, 16
  %v5220 = vor.u32 %v5217, %v5218
  %v5221 = vsel %vm507, %v5213, %v5220
  %v5222 = vrot.slane %v5217, 4
  %v5224 = vshrl.u32 %v5106, 16
  %v5226 = vrot.slane %v5224, 7
  %v5227 = vshll.u32 %v5106, 16
  %v5229 = vor.u32 %v5226, %v5227
  %v5230 = vsel %vm507, %v5222, %v5229
  %v5232 = vshrl.u32 %v5107, 16
  %v5234 = vrot.slane %v5232, 7
  %v5235 = vrot.slane %v5234, 4
  %v5237 = vshrl.u32 %v5108, 16
  %v5239 = vrot.slane %v5237, 7
  %v5240 = vshll.u32 %v5108, 16
  %v5242 = vor.u32 %v5239, %v5240
  %v5243 = vsel %vm507, %v5235, %v5242
  %v5244 = vrot.slane %v5239, 4
  %v5246 = vshrl.u32 %v5109, 16
  %v5248 = vrot.slane %v5246, 7
  %v5249 = vshll.u32 %v5109, 16
  %v5251 = vor.u32 %v5248, %v5249
  %v5252 = vsel %vm507, %v5244, %v5251
  %v5254 = vshrl.u32 %v5110, 16
  %v5256 = vrot.slane %v5254, 7
  %v5257 = vrot.slane %v5256, 4
  %v5259 = vshrl.u32 %v5111, 16
  %v5261 = vrot.slane %v5259, 7
  %v5262 = vshll.u32 %v5111, 16
  %v5264 = vor.u32 %v5261, %v5262
  %v5265 = vsel %vm507, %v5257, %v5264
  %v5266 = vrot.slane %v5261, 4
  %v5268 = vshrl.u32 %v5112, 16
  %v5270 = vrot.slane %v5268, 7
  %v5271 = vshll.u32 %v5112, 16
  %v5273 = vor.u32 %v5270, %v5271
  %v5274 = vsel %vm507, %v5266, %v5273
  %v5276 = vshrl.u32 %v5113, 16
  %v5278 = vrot.slane %v5276, 7
  %v5279 = vrot.slane %v5278, 4
  %v5281 = vshrl.u32 %v5114, 16
  %v5283 = vrot.slane %v5281, 7
  %v5284 = vshll.u32 %v5114, 16
  %v5286 = vor.u32 %v5283, %v5284
  %v5287 = vsel %vm507, %v5279, %v5286
  %v5288 = vrot.slane %v5283, 4
  %v5290 = vshrl.u32 %v5115, 16
  %v5292 = vrot.slane %v5290, 7
  %v5293 = vshll.u32 %v5115, 16
  %v5295 = vor.u32 %v5292, %v5293
  %v5296 = vsel %vm507, %v5288, %v5295
  %v5298 = vshrl.u32 %v5116, 16
  %v5300 = vrot.slane %v5298, 7
  %v5301 = vrot.slane %v5300, 4
  %v5303 = vshrl.u32 %v5117, 16
  %v5305 = vrot.slane %v5303, 7
  %v5306 = vshll.u32 %v5117, 16
  %v5308 = vor.u32 %v5305, %v5306
  %v5309 = vsel %vm507, %v5301, %v5308
  %v5310 = vrot.slane %v5305, 4
  %v5312 = vshrl.u32 %v5118, 16
  %v5314 = vrot.slane %v5312, 7
  %v5315 = vshll.u32 %v5118, 16
  %v5317 = vor.u32 %v5314, %v5315
  %v5318 = vsel %vm507, %v5310, %v5317
  %v5320 = vshrl.u32 %v5119, 16
  %v5322 = vrot.slane %v5320, 7
  %v5323 = vrot.slane %v5322, 4
  %v5325 = vshrl.u32 %v5120, 16
  %v5327 = vrot.slane %v5325, 7
  %v5328 = vshll.u32 %v5120, 16
  %v5330 = vor.u32 %v5327, %v5328
  %v5331 = vsel %vm507, %v5323, %v5330
  %v5332 = vrot.slane %v5327, 4
  %v5334 = vshrl.u32 %v5121, 16
  %v5336 = vrot.slane %v5334, 7
  %v5337 = vshll.u32 %v5121, 16
  %v5339 = vor.u32 %v5336, %v5337
  %v5340 = vsel %vm507, %v5332, %v5339
  %v5342 = vshrl.u32 %v5122, 16
  %v5344 = vrot.slane %v5342, 7
  %v5345 = vrot.slane %v5344, 4
  %v5347 = vshrl.u32 %v5123, 16
  %v5349 = vrot.slane %v5347, 7
  %v5350 = vshll.u32 %v5123, 16
  %v5352 = vor.u32 %v5349, %v5350
  %v5353 = vsel %vm507, %v5345, %v5352
  %v5354 = vrot.slane %v5349, 4
  %v5356 = vshrl.u32 %v5124, 16
  %v5358 = vrot.slane %v5356, 7
  %v5359 = vshll.u32 %v5124, 16
  %v5361 = vor.u32 %v5358, %v5359
  %v5362 = vsel %vm507, %v5354, %v5361
  %v5364 = vshrl.u32 %v5125, 16
  %v5366 = vrot.slane %v5364, 7
  %v5367 = vrot.slane %v5366, 4
  %v5369 = vshrl.u32 %v5126, 16
  %v5371 = vrot.slane %v5369, 7
  %v5372 = vshll.u32 %v5126, 16
  %v5374 = vor.u32 %v5371, %v5372
  %v5375 = vsel %vm507, %v5367, %v5374
  %v5376 = vrot.slane %v5371, 4
  %v5378 = vshrl.u32 %v5127, 16
  %v5380 = vrot.slane %v5378, 7
  %v5381 = vshll.u32 %v5127, 16
  %v5383 = vor.u32 %v5380, %v5381
  %v5384 = vsel %vm507, %v5376, %v5383
  %v5386 = vshrl.u32 %v5128, 16
  %v5388 = vrot.slane %v5386, 7
  %v5389 = vrot.slane %v5388, 4
  %v5391 = vshrl.u32 %v5129, 16
  %v5393 = vrot.slane %v5391, 7
  %v5394 = vshll.u32 %v5129, 16
  %v5396 = vor.u32 %v5393, %v5394
  %v5397 = vsel %vm507, %v5389, %v5396
  %v5398 = vrot.slane %v5393, 4
  %v5400 = vshrl.u32 %v5130, 16
  %v5402 = vrot.slane %v5400, 7
  %v5403 = vshll.u32 %v5130, 16
  %v5405 = vor.u32 %v5402, %v5403
  %v5406 = vsel %vm507, %v5398, %v5405
  %v5408 = vshrl.u32 %v5131, 16
  %v5410 = vrot.slane %v5408, 7
  %v5411 = vrot.slane %v5410, 4
  %v5413 = vshrl.u32 %v5132, 16
  %v5415 = vrot.slane %v5413, 7
  %v5416 = vshll.u32 %v5132, 16
  %v5418 = vor.u32 %v5415, %v5416
  %v5419 = vsel %vm507, %v5411, %v5418
  %v5420 = vrot.slane %v5415, 4
  %v5422 = vshrl.u32 %v5133, 16
  %v5424 = vrot.slane %v5422, 7
  %v5425 = vshll.u32 %v5133, 16
  %v5427 = vor.u32 %v5424, %v5425
  %v5428 = vsel %vm507, %v5420, %v5427
  %v5430 = vshrl.u32 %v5134, 16
  %v5432 = vrot.slane %v5430, 7
  %v5433 = vrot.slane %v5432, 4
  %v5435 = vshrl.u32 %v5135, 16
  %v5437 = vrot.slane %v5435, 7
  %v5438 = vshll.u32 %v5135, 16
  %v5440 = vor.u32 %v5437, %v5438
  %v5441 = vsel %vm507, %v5433, %v5440
  %v5442 = vrot.slane %v5437, 4
  %v5444 = vshrl.u32 %v5136, 16
  %v5446 = vrot.slane %v5444, 7
  %v5447 = vshll.u32 %v5136, 16
  %v5449 = vor.u32 %v5446, %v5447
  %v5450 = vsel %vm507, %v5442, %v5449
  %v5452 = vshrl.u32 %v5137, 16
  %v5454 = vrot.slane %v5452, 7
  %v5455 = vrot.slane %v5454, 4
  %v5457 = vshrl.u32 %v5138, 16
  %v5459 = vrot.slane %v5457, 7
  %v5460 = vshll.u32 %v5138, 16
  %v5462 = vor.u32 %v5459, %v5460
  %v5463 = vsel %vm507, %v5455, %v5462
  %v5464 = vrot.slane %v5459, 4
  %v5466 = vshrl.u32 %v5139, 16
  %v5468 = vrot.slane %v5466, 7
  %v5469 = vshll.u32 %v5139, 16
  %v5471 = vor.u32 %v5468, %v5469
  %v5472 = vsel %vm507, %v5464, %v5471
  %v5474 = vshrl.u32 %v5140, 16
  %v5476 = vrot.slane %v5474, 7
  %v5477 = vrot.slane %v5476, 4
  %v5479 = vshrl.u32 %v5141, 16
  %v5481 = vrot.slane %v5479, 7
  %v5482 = vshll.u32 %v5141, 16
  %v5484 = vor.u32 %v5481, %v5482
  %v5485 = vsel %vm507, %v5477, %v5484
  %v5486 = vrot.slane %v5481, 4
  %v5488 = vshrl.u32 %v5142, 16
  %v5490 = vrot.slane %v5488, 7
  %v5491 = vshll.u32 %v5142, 16
  %v5493 = vor.u32 %v5490, %v5491
  %v5494 = vsel %vm507, %v5486, %v5493
  %v5495 = vld [vmem:[%s424 + $0xc] sm:$0x1]
  %v5496 = vld [vmem:[%s424 + $0x1c] sm:$0x1]
  %v5497 = vld [vmem:[%s424 + $0x2c] sm:$0x1]
  %v5498 = vld [vmem:[%s424 + $0x3c] sm:$0x1]
  %v5499 = vld [vmem:[%s424 + $0x4c] sm:$0x1]
  %v5500 = vld [vmem:[%s424 + $0x5c] sm:$0x1]
  %v5501 = vld [vmem:[%s424 + $0x6c] sm:$0x1]
  %v5502 = vld [vmem:[%s424 + $0x7c] sm:$0x1]
  %v5503 = vld [vmem:[%s424 + $0x8c] sm:$0x1]
  %v5504 = vld [vmem:[%s424 + $0x9c] sm:$0x1]
  %v5505 = vld [vmem:[%s424 + $0xac] sm:$0x1]
  %v5506 = vld [vmem:[%s424 + $0xbc] sm:$0x1]
  %v5507 = vld [vmem:[%s424 + $0xcc] sm:$0x1]
  %v5508 = vld [vmem:[%s424 + $0xdc] sm:$0x1]
  %v5509 = vld [vmem:[%s424 + $0xec] sm:$0x1]
  %v5510 = vld [vmem:[%s424 + $0xfc] sm:$0x1]
  %v5511 = vrot.slane %v5149, 4
  %v5512 = vrot.slane %v5152, 5
  %v5513 = vor.u32 %v5511, %v5512
  %v5514 = vrot.slane %v5513, 4
  %v5515 = vrot.slane %v5161, 5
  %v5516 = vsel %vm878, %v5514, %v5515
  %v5517 = vrot.slane %v5158, 4
  %v5518 = vor.u32 %v5517, %v5515
  %v5519 = vrot.slane %v5518, 4
  %v5521 = vshll.u32 %v5495, 16
  %v5523 = vrot.slane %v5521, 5
  %v5524 = vsel %vm878, %v5519, %v5523
  %v5525 = vrot.slane %v5171, 4
  %v5526 = vrot.slane %v5174, 5
  %v5527 = vor.u32 %v5525, %v5526
  %v5528 = vrot.slane %v5527, 4
  %v5529 = vrot.slane %v5183, 5
  %v5530 = vsel %vm878, %v5528, %v5529
  %v5531 = vrot.slane %v5180, 4
  %v5532 = vor.u32 %v5531, %v5529
  %v5533 = vrot.slane %v5532, 4
  %v5535 = vshll.u32 %v5496, 16
  %v5537 = vrot.slane %v5535, 5
  %v5538 = vsel %vm878, %v5533, %v5537
  %v5539 = vrot.slane %v5193, 4
  %v5540 = vrot.slane %v5196, 5
  %v5541 = vor.u32 %v5539, %v5540
  %v5542 = vrot.slane %v5541, 4
  %v5543 = vrot.slane %v5205, 5
  %v5544 = vsel %vm878, %v5542, %v5543
  %v5545 = vrot.slane %v5202, 4
  %v5546 = vor.u32 %v5545, %v5543
  %v5547 = vrot.slane %v5546, 4
  %v5549 = vshll.u32 %v5497, 16
  %v5551 = vrot.slane %v5549, 5
  %v5552 = vsel %vm878, %v5547, %v5551
  %v5553 = vrot.slane %v5215, 4
  %v5554 = vrot.slane %v5218, 5
  %v5555 = vor.u32 %v5553, %v5554
  %v5556 = vrot.slane %v5555, 4
  %v5557 = vrot.slane %v5227, 5
  %v5558 = vsel %vm878, %v5556, %v5557
  %v5559 = vrot.slane %v5224, 4
  %v5560 = vor.u32 %v5559, %v5557
  %v5561 = vrot.slane %v5560, 4
  %v5563 = vshll.u32 %v5498, 16
  %v5565 = vrot.slane %v5563, 5
  %v5566 = vsel %vm878, %v5561, %v5565
  %v5567 = vrot.slane %v5237, 4
  %v5568 = vrot.slane %v5240, 5
  %v5569 = vor.u32 %v5567, %v5568
  %v5570 = vrot.slane %v5569, 4
  %v5571 = vrot.slane %v5249, 5
  %v5572 = vsel %vm878, %v5570, %v5571
  %v5573 = vrot.slane %v5246, 4
  %v5574 = vor.u32 %v5573, %v5571
  %v5575 = vrot.slane %v5574, 4
  %v5577 = vshll.u32 %v5499, 16
  %v5579 = vrot.slane %v5577, 5
  %v5580 = vsel %vm878, %v5575, %v5579
  %v5581 = vrot.slane %v5259, 4
  %v5582 = vrot.slane %v5262, 5
  %v5583 = vor.u32 %v5581, %v5582
  %v5584 = vrot.slane %v5583, 4
  %v5585 = vrot.slane %v5271, 5
  %v5586 = vsel %vm878, %v5584, %v5585
  %v5587 = vrot.slane %v5268, 4
  %v5588 = vor.u32 %v5587, %v5585
  %v5589 = vrot.slane %v5588, 4
  %v5591 = vshll.u32 %v5500, 16
  %v5593 = vrot.slane %v5591, 5
  %v5594 = vsel %vm878, %v5589, %v5593
  %v5595 = vrot.slane %v5281, 4
  %v5596 = vrot.slane %v5284, 5
  %v5597 = vor.u32 %v5595, %v5596
  %v5598 = vrot.slane %v5597, 4
  %v5599 = vrot.slane %v5293, 5
  %v5600 = vsel %vm878, %v5598, %v5599
  %v5601 = vrot.slane %v5290, 4
  %v5602 = vor.u32 %v5601, %v5599
  %v5603 = vrot.slane %v5602, 4
  %v5605 = vshll.u32 %v5501, 16
  %v5607 = vrot.slane %v5605, 5
  %v5608 = vsel %vm878, %v5603, %v5607
  %v5609 = vrot.slane %v5303, 4
  %v5610 = vrot.slane %v5306, 5
  %v5611 = vor.u32 %v5609, %v5610
  %v5612 = vrot.slane %v5611, 4
  %v5613 = vrot.slane %v5315, 5
  %v5614 = vsel %vm878, %v5612, %v5613
  %v5615 = vrot.slane %v5312, 4
  %v5616 = vor.u32 %v5615, %v5613
  %v5617 = vrot.slane %v5616, 4
  %v5619 = vshll.u32 %v5502, 16
  %v5621 = vrot.slane %v5619, 5
  %v5622 = vsel %vm878, %v5617, %v5621
  %v5623 = vrot.slane %v5325, 4
  %v5624 = vrot.slane %v5328, 5
  %v5625 = vor.u32 %v5623, %v5624
  %v5626 = vrot.slane %v5625, 4
  %v5627 = vrot.slane %v5337, 5
  %v5628 = vsel %vm878, %v5626, %v5627
  %v5629 = vrot.slane %v5334, 4
  %v5630 = vor.u32 %v5629, %v5627
  %v5631 = vrot.slane %v5630, 4
  %v5633 = vshll.u32 %v5503, 16
  %v5635 = vrot.slane %v5633, 5
  %v5636 = vsel %vm878, %v5631, %v5635
  %v5637 = vrot.slane %v5347, 4
  %v5638 = vrot.slane %v5350, 5
  %v5639 = vor.u32 %v5637, %v5638
  %v5640 = vrot.slane %v5639, 4
  %v5641 = vrot.slane %v5359, 5
  %v5642 = vsel %vm878, %v5640, %v5641
  %v5643 = vrot.slane %v5356, 4
  %v5644 = vor.u32 %v5643, %v5641
  %v5645 = vrot.slane %v5644, 4
  %v5647 = vshll.u32 %v5504, 16
  %v5649 = vrot.slane %v5647, 5
  %v5650 = vsel %vm878, %v5645, %v5649
  %v5651 = vrot.slane %v5369, 4
  %v5652 = vrot.slane %v5372, 5
  %v5653 = vor.u32 %v5651, %v5652
  %v5654 = vrot.slane %v5653, 4
  %v5655 = vrot.slane %v5381, 5
  %v5656 = vsel %vm878, %v5654, %v5655
  %v5657 = vrot.slane %v5378, 4
  %v5658 = vor.u32 %v5657, %v5655
  %v5659 = vrot.slane %v5658, 4
  %v5661 = vshll.u32 %v5505, 16
  %v5663 = vrot.slane %v5661, 5
  %v5664 = vsel %vm878, %v5659, %v5663
  %v5665 = vrot.slane %v5391, 4
  %v5666 = vrot.slane %v5394, 5
  %v5667 = vor.u32 %v5665, %v5666
  %v5668 = vrot.slane %v5667, 4
  %v5669 = vrot.slane %v5403, 5
  %v5670 = vsel %vm878, %v5668, %v5669
  %v5671 = vrot.slane %v5400, 4
  %v5672 = vor.u32 %v5671, %v5669
  %v5673 = vrot.slane %v5672, 4
  %v5675 = vshll.u32 %v5506, 16
  %v5677 = vrot.slane %v5675, 5
  %v5678 = vsel %vm878, %v5673, %v5677
  %v5679 = vrot.slane %v5413, 4
  %v5680 = vrot.slane %v5416, 5
  %v5681 = vor.u32 %v5679, %v5680
  %v5682 = vrot.slane %v5681, 4
  %v5683 = vrot.slane %v5425, 5
  %v5684 = vsel %vm878, %v5682, %v5683
  %v5685 = vrot.slane %v5422, 4
  %v5686 = vor.u32 %v5685, %v5683
  %v5687 = vrot.slane %v5686, 4
  %v5689 = vshll.u32 %v5507, 16
  %v5691 = vrot.slane %v5689, 5
  %v5692 = vsel %vm878, %v5687, %v5691
  %v5693 = vrot.slane %v5435, 4
  %v5694 = vrot.slane %v5438, 5
  %v5695 = vor.u32 %v5693, %v5694
  %v5696 = vrot.slane %v5695, 4
  %v5697 = vrot.slane %v5447, 5
  %v5698 = vsel %vm878, %v5696, %v5697
  %v5699 = vrot.slane %v5444, 4
  %v5700 = vor.u32 %v5699, %v5697
  %v5701 = vrot.slane %v5700, 4
  %v5703 = vshll.u32 %v5508, 16
  %v5705 = vrot.slane %v5703, 5
  %v5706 = vsel %vm878, %v5701, %v5705
  %v5707 = vrot.slane %v5457, 4
  %v5708 = vrot.slane %v5460, 5
  %v5709 = vor.u32 %v5707, %v5708
  %v5710 = vrot.slane %v5709, 4
  %v5711 = vrot.slane %v5469, 5
  %v5712 = vsel %vm878, %v5710, %v5711
  %v5713 = vrot.slane %v5466, 4
  %v5714 = vor.u32 %v5713, %v5711
  %v5715 = vrot.slane %v5714, 4
  %v5717 = vshll.u32 %v5509, 16
  %v5719 = vrot.slane %v5717, 5
  %v5720 = vsel %vm878, %v5715, %v5719
  %v5721 = vrot.slane %v5479, 4
  %v5722 = vrot.slane %v5482, 5
  %v5723 = vor.u32 %v5721, %v5722
  %v5724 = vrot.slane %v5723, 4
  %v5725 = vrot.slane %v5491, 5
  %v5726 = vsel %vm878, %v5724, %v5725
  %v5727 = vrot.slane %v5488, 4
  %v5728 = vor.u32 %v5727, %v5725
  %v5729 = vrot.slane %v5728, 4
  %v5731 = vshll.u32 %v5510, 16
  %v5733 = vrot.slane %v5731, 5
  %v5734 = vsel %vm878, %v5729, %v5733
  %v5735 = vld [vmem:[%s1743] sm:$0x8]
  %v5736 = vld [vmem:[%s1743 + $0x4] sm:$0xf]
  %v5737 = vld [vmem:[%s1743 + $0x8] sm:$0xf]
  %v5738 = vld [vmem:[%s1743 + $0x10] sm:$0x8]
  %v5739 = vld [vmem:[%s1743 + $0x14] sm:$0xf]
  %v5740 = vld [vmem:[%s1743 + $0x18] sm:$0xf]
  %v5741 = vld [vmem:[%s1743 + $0x20] sm:$0x8]
  %v5742 = vld [vmem:[%s1743 + $0x24] sm:$0xf]
  %v5743 = vld [vmem:[%s1743 + $0x28] sm:$0xf]
  %v5744 = vld [vmem:[%s1743 + $0x30] sm:$0x8]
  %v5745 = vld [vmem:[%s1743 + $0x34] sm:$0xf]
  %v5746 = vld [vmem:[%s1743 + $0x38] sm:$0xf]
  %v5747 = vld [vmem:[%s1743 + $0x40] sm:$0x8]
  %v5748 = vld [vmem:[%s1743 + $0x44] sm:$0xf]
  %v5749 = vld [vmem:[%s1743 + $0x48] sm:$0xf]
  %v5750 = vld [vmem:[%s1743 + $0x50] sm:$0x8]
  %v5751 = vld [vmem:[%s1743 + $0x54] sm:$0xf]
  %v5752 = vld [vmem:[%s1743 + $0x58] sm:$0xf]
  %v5753 = vld [vmem:[%s1743 + $0x60] sm:$0x8]
  %v5754 = vld [vmem:[%s1743 + $0x64] sm:$0xf]
  %v5755 = vld [vmem:[%s1743 + $0x68] sm:$0xf]
  %v5756 = vld [vmem:[%s1743 + $0x70] sm:$0x8]
  %v5757 = vld [vmem:[%s1743 + $0x74] sm:$0xf]
  %v5758 = vld [vmem:[%s1743 + $0x78] sm:$0xf]
  %v5759 = vld [vmem:[%s1743 + $0x80] sm:$0x8]
  %v5760 = vld [vmem:[%s1743 + $0x84] sm:$0xf]
  %v5761 = vld [vmem:[%s1743 + $0x88] sm:$0xf]
  %v5762 = vld [vmem:[%s1743 + $0x90] sm:$0x8]
  %v5763 = vld [vmem:[%s1743 + $0x94] sm:$0xf]
  %v5764 = vld [vmem:[%s1743 + $0x98] sm:$0xf]
  %v5765 = vld [vmem:[%s1743 + $0xa0] sm:$0x8]
  %v5766 = vld [vmem:[%s1743 + $0xa4] sm:$0xf]
  %v5767 = vld [vmem:[%s1743 + $0xa8] sm:$0xf]
  %v5768 = vld [vmem:[%s1743 + $0xb0] sm:$0x8]
  %v5769 = vld [vmem:[%s1743 + $0xb4] sm:$0xf]
  %v5770 = vld [vmem:[%s1743 + $0xb8] sm:$0xf]
  %v5771 = vld [vmem:[%s1743 + $0xc0] sm:$0x8]
  %v5772 = vld [vmem:[%s1743 + $0xc4] sm:$0xf]
  %v5773 = vld [vmem:[%s1743 + $0xc8] sm:$0xf]
  %v5774 = vld [vmem:[%s1743 + $0xd0] sm:$0x8]
  %v5775 = vld [vmem:[%s1743 + $0xd4] sm:$0xf]
  %v5776 = vld [vmem:[%s1743 + $0xd8] sm:$0xf]
  %v5777 = vld [vmem:[%s1743 + $0xe0] sm:$0x8]
  %v5778 = vld [vmem:[%s1743 + $0xe4] sm:$0xf]
  %v5779 = vld [vmem:[%s1743 + $0xe8] sm:$0xf]
  %v5780 = vld [vmem:[%s1743 + $0xf0] sm:$0x8]
  %v5781 = vld [vmem:[%s1743 + $0xf4] sm:$0xf]
  %v5782 = vld [vmem:[%s1743 + $0xf8] sm:$0xf]
  %v5784 = vshrl.u32 %v5735, 16
  %v5786 = vrot.slane %v5784, 7
  %v5787 = vrot.slane %v5786, 4
  %v5789 = vshrl.u32 %v5736, 16
  %v5791 = vrot.slane %v5789, 7
  %v5792 = vshll.u32 %v5736, 16
  %v5794 = vor.u32 %v5791, %v5792
  %v5795 = vsel %vm507, %v5787, %v5794
  %v5796 = vrot.slane %v5791, 4
  %v5798 = vshrl.u32 %v5737, 16
  %v5800 = vrot.slane %v5798, 7
  %v5801 = vshll.u32 %v5737, 16
  %v5803 = vor.u32 %v5800, %v5801
  %v5804 = vsel %vm507, %v5796, %v5803
  %v5806 = vshrl.u32 %v5738, 16
  %v5808 = vrot.slane %v5806, 7
  %v5809 = vrot.slane %v5808, 4
  %v5811 = vshrl.u32 %v5739, 16
  %v5813 = vrot.slane %v5811, 7
  %v5814 = vshll.u32 %v5739, 16
  %v5816 = vor.u32 %v5813, %v5814
  %v5817 = vsel %vm507, %v5809, %v5816
  %v5818 = vrot.slane %v5813, 4
  %v5820 = vshrl.u32 %v5740, 16
  %v5822 = vrot.slane %v5820, 7
  %v5823 = vshll.u32 %v5740, 16
  %v5825 = vor.u32 %v5822, %v5823
  %v5826 = vsel %vm507, %v5818, %v5825
  %v5828 = vshrl.u32 %v5741, 16
  %v5830 = vrot.slane %v5828, 7
  %v5831 = vrot.slane %v5830, 4
  %v5833 = vshrl.u32 %v5742, 16
  %v5835 = vrot.slane %v5833, 7
  %v5836 = vshll.u32 %v5742, 16
  %v5838 = vor.u32 %v5835, %v5836
  %v5839 = vsel %vm507, %v5831, %v5838
  %v5840 = vrot.slane %v5835, 4
  %v5842 = vshrl.u32 %v5743, 16
  %v5844 = vrot.slane %v5842, 7
  %v5845 = vshll.u32 %v5743, 16
  %v5847 = vor.u32 %v5844, %v5845
  %v5848 = vsel %vm507, %v5840, %v5847
  %v5850 = vshrl.u32 %v5744, 16
  %v5852 = vrot.slane %v5850, 7
  %v5853 = vrot.slane %v5852, 4
  %v5855 = vshrl.u32 %v5745, 16
  %v5857 = vrot.slane %v5855, 7
  %v5858 = vshll.u32 %v5745, 16
  %v5860 = vor.u32 %v5857, %v5858
  %v5861 = vsel %vm507, %v5853, %v5860
  %v5862 = vrot.slane %v5857, 4
  %v5864 = vshrl.u32 %v5746, 16
  %v5866 = vrot.slane %v5864, 7
  %v5867 = vshll.u32 %v5746, 16
  %v5869 = vor.u32 %v5866, %v5867
  %v5870 = vsel %vm507, %v5862, %v5869
  %v5872 = vshrl.u32 %v5747, 16
  %v5874 = vrot.slane %v5872, 7
  %v5875 = vrot.slane %v5874, 4
  %v5877 = vshrl.u32 %v5748, 16
  %v5879 = vrot.slane %v5877, 7
  %v5880 = vshll.u32 %v5748, 16
  %v5882 = vor.u32 %v5879, %v5880
  %v5883 = vsel %vm507, %v5875, %v5882
  %v5884 = vrot.slane %v5879, 4
  %v5886 = vshrl.u32 %v5749, 16
  %v5888 = vrot.slane %v5886, 7
  %v5889 = vshll.u32 %v5749, 16
  %v5891 = vor.u32 %v5888, %v5889
  %v5892 = vsel %vm507, %v5884, %v5891
  %v5894 = vshrl.u32 %v5750, 16
  %v5896 = vrot.slane %v5894, 7
  %v5897 = vrot.slane %v5896, 4
  %v5899 = vshrl.u32 %v5751, 16
  %v5901 = vrot.slane %v5899, 7
  %v5902 = vshll.u32 %v5751, 16
  %v5904 = vor.u32 %v5901, %v5902
  %v5905 = vsel %vm507, %v5897, %v5904
  %v5906 = vrot.slane %v5901, 4
  %v5908 = vshrl.u32 %v5752, 16
  %v5910 = vrot.slane %v5908, 7
  %v5911 = vshll.u32 %v5752, 16
  %v5913 = vor.u32 %v5910, %v5911
  %v5914 = vsel %vm507, %v5906, %v5913
  %v5916 = vshrl.u32 %v5753, 16
  %v5918 = vrot.slane %v5916, 7
  %v5919 = vrot.slane %v5918, 4
  %v5921 = vshrl.u32 %v5754, 16
  %v5923 = vrot.slane %v5921, 7
  %v5924 = vshll.u32 %v5754, 16
  %v5926 = vor.u32 %v5923, %v5924
  %v5927 = vsel %vm507, %v5919, %v5926
  %v5928 = vrot.slane %v5923, 4
  %v5930 = vshrl.u32 %v5755, 16
  %v5932 = vrot.slane %v5930, 7
  %v5933 = vshll.u32 %v5755, 16
  %v5935 = vor.u32 %v5932, %v5933
  %v5936 = vsel %vm507, %v5928, %v5935
  %v5938 = vshrl.u32 %v5756, 16
  %v5940 = vrot.slane %v5938, 7
  %v5941 = vrot.slane %v5940, 4
  %v5943 = vshrl.u32 %v5757, 16
  %v5945 = vrot.slane %v5943, 7
  %v5946 = vshll.u32 %v5757, 16
  %v5948 = vor.u32 %v5945, %v5946
  %v5949 = vsel %vm507, %v5941, %v5948
  %v5950 = vrot.slane %v5945, 4
  %v5952 = vshrl.u32 %v5758, 16
  %v5954 = vrot.slane %v5952, 7
  %v5955 = vshll.u32 %v5758, 16
  %v5957 = vor.u32 %v5954, %v5955
  %v5958 = vsel %vm507, %v5950, %v5957
  %v5960 = vshrl.u32 %v5759, 16
  %v5962 = vrot.slane %v5960, 7
  %v5963 = vrot.slane %v5962, 4
  %v5965 = vshrl.u32 %v5760, 16
  %v5967 = vrot.slane %v5965, 7
  %v5968 = vshll.u32 %v5760, 16
  %v5970 = vor.u32 %v5967, %v5968
  %v5971 = vsel %vm507, %v5963, %v5970
  %v5972 = vrot.slane %v5967, 4
  %v5974 = vshrl.u32 %v5761, 16
  %v5976 = vrot.slane %v5974, 7
  %v5977 = vshll.u32 %v5761, 16
  %v5979 = vor.u32 %v5976, %v5977
  %v5980 = vsel %vm507, %v5972, %v5979
  %v5982 = vshrl.u32 %v5762, 16
  %v5984 = vrot.slane %v5982, 7
  %v5985 = vrot.slane %v5984, 4
  %v5987 = vshrl.u32 %v5763, 16
  %v5989 = vrot.slane %v5987, 7
  %v5990 = vshll.u32 %v5763, 16
  %v5992 = vor.u32 %v5989, %v5990
  %v5993 = vsel %vm507, %v5985, %v5992
  %v5994 = vrot.slane %v5989, 4
  %v5996 = vshrl.u32 %v5764, 16
  %v5998 = vrot.slane %v5996, 7
  %v5999 = vshll.u32 %v5764, 16
  %v6001 = vor.u32 %v5998, %v5999
  %v6002 = vsel %vm507, %v5994, %v6001
  %v6004 = vshrl.u32 %v5765, 16
  %v6006 = vrot.slane %v6004, 7
  %v6007 = vrot.slane %v6006, 4
  %v6009 = vshrl.u32 %v5766, 16
  %v6011 = vrot.slane %v6009, 7
  %v6012 = vshll.u32 %v5766, 16
  %v6014 = vor.u32 %v6011, %v6012
  %v6015 = vsel %vm507, %v6007, %v6014
  %v6016 = vrot.slane %v6011, 4
  %v6018 = vshrl.u32 %v5767, 16
  %v6020 = vrot.slane %v6018, 7
  %v6021 = vshll.u32 %v5767, 16
  %v6023 = vor.u32 %v6020, %v6021
  %v6024 = vsel %vm507, %v6016, %v6023
  %v6026 = vshrl.u32 %v5768, 16
  %v6028 = vrot.slane %v6026, 7
  %v6029 = vrot.slane %v6028, 4
  %v6031 = vshrl.u32 %v5769, 16
  %v6033 = vrot.slane %v6031, 7
  %v6034 = vshll.u32 %v5769, 16
  %v6036 = vor.u32 %v6033, %v6034
  %v6037 = vsel %vm507, %v6029, %v6036
  %v6038 = vrot.slane %v6033, 4
  %v6040 = vshrl.u32 %v5770, 16
  %v6042 = vrot.slane %v6040, 7
  %v6043 = vshll.u32 %v5770, 16
  %v6045 = vor.u32 %v6042, %v6043
  %v6046 = vsel %vm507, %v6038, %v6045
  %v6048 = vshrl.u32 %v5771, 16
  %v6050 = vrot.slane %v6048, 7
  %v6051 = vrot.slane %v6050, 4
  %v6053 = vshrl.u32 %v5772, 16
  %v6055 = vrot.slane %v6053, 7
  %v6056 = vshll.u32 %v5772, 16
  %v6058 = vor.u32 %v6055, %v6056
  %v6059 = vsel %vm507, %v6051, %v6058
  %v6060 = vrot.slane %v6055, 4
  %v6062 = vshrl.u32 %v5773, 16
  %v6064 = vrot.slane %v6062, 7
  %v6065 = vshll.u32 %v5773, 16
  %v6067 = vor.u32 %v6064, %v6065
  %v6068 = vsel %vm507, %v6060, %v6067
  %v6070 = vshrl.u32 %v5774, 16
  %v6072 = vrot.slane %v6070, 7
  %v6073 = vrot.slane %v6072, 4
  %v6075 = vshrl.u32 %v5775, 16
  %v6077 = vrot.slane %v6075, 7
  %v6078 = vshll.u32 %v5775, 16
  %v6080 = vor.u32 %v6077, %v6078
  %v6081 = vsel %vm507, %v6073, %v6080
  %v6082 = vrot.slane %v6077, 4
  %v6084 = vshrl.u32 %v5776, 16
  %v6086 = vrot.slane %v6084, 7
  %v6087 = vshll.u32 %v5776, 16
  %v6089 = vor.u32 %v6086, %v6087
  %v6090 = vsel %vm507, %v6082, %v6089
  %v6092 = vshrl.u32 %v5777, 16
  %v6094 = vrot.slane %v6092, 7
  %v6095 = vrot.slane %v6094, 4
  %v6097 = vshrl.u32 %v5778, 16
  %v6099 = vrot.slane %v6097, 7
  %v6100 = vshll.u32 %v5778, 16
  %v6102 = vor.u32 %v6099, %v6100
  %v6103 = vsel %vm507, %v6095, %v6102
  %v6104 = vrot.slane %v6099, 4
  %v6106 = vshrl.u32 %v5779, 16
  %v6108 = vrot.slane %v6106, 7
  %v6109 = vshll.u32 %v5779, 16
  %v6111 = vor.u32 %v6108, %v6109
  %v6112 = vsel %vm507, %v6104, %v6111
  %v6114 = vshrl.u32 %v5780, 16
  %v6116 = vrot.slane %v6114, 7
  %v6117 = vrot.slane %v6116, 4
  %v6119 = vshrl.u32 %v5781, 16
  %v6121 = vrot.slane %v6119, 7
  %v6122 = vshll.u32 %v5781, 16
  %v6124 = vor.u32 %v6121, %v6122
  %v6125 = vsel %vm507, %v6117, %v6124
  %v6126 = vrot.slane %v6121, 4
  %v6128 = vshrl.u32 %v5782, 16
  %v6130 = vrot.slane %v6128, 7
  %v6131 = vshll.u32 %v5782, 16
  %v6133 = vor.u32 %v6130, %v6131
  %v6134 = vsel %vm507, %v6126, %v6133
  %v6135 = vld [vmem:[%s1743 + $0xc] sm:$0x1]
  %v6136 = vld [vmem:[%s1743 + $0x1c] sm:$0x1]
  %v6137 = vld [vmem:[%s1743 + $0x2c] sm:$0x1]
  %v6138 = vld [vmem:[%s1743 + $0x3c] sm:$0x1]
  %v6139 = vld [vmem:[%s1743 + $0x4c] sm:$0x1]
  %v6140 = vld [vmem:[%s1743 + $0x5c] sm:$0x1]
  %v6141 = vld [vmem:[%s1743 + $0x6c] sm:$0x1]
  %v6142 = vld [vmem:[%s1743 + $0x7c] sm:$0x1]
  %v6143 = vld [vmem:[%s1743 + $0x8c] sm:$0x1]
  %v6144 = vld [vmem:[%s1743 + $0x9c] sm:$0x1]
  %v6145 = vld [vmem:[%s1743 + $0xac] sm:$0x1]
  %v6146 = vld [vmem:[%s1743 + $0xbc] sm:$0x1]
  %v6147 = vld [vmem:[%s1743 + $0xcc] sm:$0x1]
  %v6148 = vld [vmem:[%s1743 + $0xdc] sm:$0x1]
  %v6149 = vld [vmem:[%s1743 + $0xec] sm:$0x1]
  %v6150 = vld [vmem:[%s1743 + $0xfc] sm:$0x1]
  %v6151 = vrot.slane %v5789, 4
  %v6152 = vrot.slane %v5792, 5
  %v6153 = vor.u32 %v6151, %v6152
  %v6154 = vrot.slane %v6153, 4
  %v6155 = vrot.slane %v5801, 5
  %v6156 = vsel %vm878, %v6154, %v6155
  %v6157 = vrot.slane %v5798, 4
  %v6158 = vor.u32 %v6157, %v6155
  %v6159 = vrot.slane %v6158, 4
  %v6161 = vshll.u32 %v6135, 16
  %v6163 = vrot.slane %v6161, 5
  %v6164 = vsel %vm878, %v6159, %v6163
  %v6165 = vrot.slane %v5811, 4
  %v6166 = vrot.slane %v5814, 5
  %v6167 = vor.u32 %v6165, %v6166
  %v6168 = vrot.slane %v6167, 4
  %v6169 = vrot.slane %v5823, 5
  %v6170 = vsel %vm878, %v6168, %v6169
  %v6171 = vrot.slane %v5820, 4
  %v6172 = vor.u32 %v6171, %v6169
  %v6173 = vrot.slane %v6172, 4
  %v6175 = vshll.u32 %v6136, 16
  %v6177 = vrot.slane %v6175, 5
  %v6178 = vsel %vm878, %v6173, %v6177
  %v6179 = vrot.slane %v5833, 4
  %v6180 = vrot.slane %v5836, 5
  %v6181 = vor.u32 %v6179, %v6180
  %v6182 = vrot.slane %v6181, 4
  %v6183 = vrot.slane %v5845, 5
  %v6184 = vsel %vm878, %v6182, %v6183
  %v6185 = vrot.slane %v5842, 4
  %v6186 = vor.u32 %v6185, %v6183
  %v6187 = vrot.slane %v6186, 4
  %v6189 = vshll.u32 %v6137, 16
  %v6191 = vrot.slane %v6189, 5
  %v6192 = vsel %vm878, %v6187, %v6191
  %v6193 = vrot.slane %v5855, 4
  %v6194 = vrot.slane %v5858, 5
  %v6195 = vor.u32 %v6193, %v6194
  %v6196 = vrot.slane %v6195, 4
  %v6197 = vrot.slane %v5867, 5
  %v6198 = vsel %vm878, %v6196, %v6197
  %v6199 = vrot.slane %v5864, 4
  %v6200 = vor.u32 %v6199, %v6197
  %v6201 = vrot.slane %v6200, 4
  %v6203 = vshll.u32 %v6138, 16
  %v6205 = vrot.slane %v6203, 5
  %v6206 = vsel %vm878, %v6201, %v6205
  %v6207 = vrot.slane %v5877, 4
  %v6208 = vrot.slane %v5880, 5
  %v6209 = vor.u32 %v6207, %v6208
  %v6210 = vrot.slane %v6209, 4
  %v6211 = vrot.slane %v5889, 5
  %v6212 = vsel %vm878, %v6210, %v6211
  %v6213 = vrot.slane %v5886, 4
  %v6214 = vor.u32 %v6213, %v6211
  %v6215 = vrot.slane %v6214, 4
  %v6217 = vshll.u32 %v6139, 16
  %v6219 = vrot.slane %v6217, 5
  %v6220 = vsel %vm878, %v6215, %v6219
  %v6221 = vrot.slane %v5899, 4
  %v6222 = vrot.slane %v5902, 5
  %v6223 = vor.u32 %v6221, %v6222
  %v6224 = vrot.slane %v6223, 4
  %v6225 = vrot.slane %v5911, 5
  %v6226 = vsel %vm878, %v6224, %v6225
  %v6227 = vrot.slane %v5908, 4
  %v6228 = vor.u32 %v6227, %v6225
  %v6229 = vrot.slane %v6228, 4
  %v6231 = vshll.u32 %v6140, 16
  %v6233 = vrot.slane %v6231, 5
  %v6234 = vsel %vm878, %v6229, %v6233
  %v6235 = vrot.slane %v5921, 4
  %v6236 = vrot.slane %v5924, 5
  %v6237 = vor.u32 %v6235, %v6236
  %v6238 = vrot.slane %v6237, 4
  %v6239 = vrot.slane %v5933, 5
  %v6240 = vsel %vm878, %v6238, %v6239
  %v6241 = vrot.slane %v5930, 4
  %v6242 = vor.u32 %v6241, %v6239
  %v6243 = vrot.slane %v6242, 4
  %v6245 = vshll.u32 %v6141, 16
  %v6247 = vrot.slane %v6245, 5
  %v6248 = vsel %vm878, %v6243, %v6247
  %v6249 = vrot.slane %v5943, 4
  %v6250 = vrot.slane %v5946, 5
  %v6251 = vor.u32 %v6249, %v6250
  %v6252 = vrot.slane %v6251, 4
  %v6253 = vrot.slane %v5955, 5
  %v6254 = vsel %vm878, %v6252, %v6253
  %v6255 = vrot.slane %v5952, 4
  %v6256 = vor.u32 %v6255, %v6253
  %v6257 = vrot.slane %v6256, 4
  %v6259 = vshll.u32 %v6142, 16
  %v6261 = vrot.slane %v6259, 5
  %v6262 = vsel %vm878, %v6257, %v6261
  %v6263 = vrot.slane %v5965, 4
  %v6264 = vrot.slane %v5968, 5
  %v6265 = vor.u32 %v6263, %v6264
  %v6266 = vrot.slane %v6265, 4
  %v6267 = vrot.slane %v5977, 5
  %v6268 = vsel %vm878, %v6266, %v6267
  %v6269 = vrot.slane %v5974, 4
  %v6270 = vor.u32 %v6269, %v6267
  %v6271 = vrot.slane %v6270, 4
  %v6273 = vshll.u32 %v6143, 16
  %v6275 = vrot.slane %v6273, 5
  %v6276 = vsel %vm878, %v6271, %v6275
  %v6277 = vrot.slane %v5987, 4
  %v6278 = vrot.slane %v5990, 5
  %v6279 = vor.u32 %v6277, %v6278
  %v6280 = vrot.slane %v6279, 4
  %v6281 = vrot.slane %v5999, 5
  %v6282 = vsel %vm878, %v6280, %v6281
  %v6283 = vrot.slane %v5996, 4
  %v6284 = vor.u32 %v6283, %v6281
  %v6285 = vrot.slane %v6284, 4
  %v6287 = vshll.u32 %v6144, 16
  %v6289 = vrot.slane %v6287, 5
  %v6290 = vsel %vm878, %v6285, %v6289
  %v6291 = vrot.slane %v6009, 4
  %v6292 = vrot.slane %v6012, 5
  %v6293 = vor.u32 %v6291, %v6292
  %v6294 = vrot.slane %v6293, 4
  %v6295 = vrot.slane %v6021, 5
  %v6296 = vsel %vm878, %v6294, %v6295
  %v6297 = vrot.slane %v6018, 4
  %v6298 = vor.u32 %v6297, %v6295
  %v6299 = vrot.slane %v6298, 4
  %v6301 = vshll.u32 %v6145, 16
  %v6303 = vrot.slane %v6301, 5
  %v6304 = vsel %vm878, %v6299, %v6303
  %v6305 = vrot.slane %v6031, 4
  %v6306 = vrot.slane %v6034, 5
  %v6307 = vor.u32 %v6305, %v6306
  %v6308 = vrot.slane %v6307, 4
  %v6309 = vrot.slane %v6043, 5
  %v6310 = vsel %vm878, %v6308, %v6309
  %v6311 = vrot.slane %v6040, 4
  %v6312 = vor.u32 %v6311, %v6309
  %v6313 = vrot.slane %v6312, 4
  %v6315 = vshll.u32 %v6146, 16
  %v6317 = vrot.slane %v6315, 5
  %v6318 = vsel %vm878, %v6313, %v6317
  %v6319 = vrot.slane %v6053, 4
  %v6320 = vrot.slane %v6056, 5
  %v6321 = vor.u32 %v6319, %v6320
  %v6322 = vrot.slane %v6321, 4
  %v6323 = vrot.slane %v6065, 5
  %v6324 = vsel %vm878, %v6322, %v6323
  %v6325 = vrot.slane %v6062, 4
  %v6326 = vor.u32 %v6325, %v6323
  %v6327 = vrot.slane %v6326, 4
  %v6329 = vshll.u32 %v6147, 16
  %v6331 = vrot.slane %v6329, 5
  %v6332 = vsel %vm878, %v6327, %v6331
  %v6333 = vrot.slane %v6075, 4
  %v6334 = vrot.slane %v6078, 5
  %v6335 = vor.u32 %v6333, %v6334
  %v6336 = vrot.slane %v6335, 4
  %v6337 = vrot.slane %v6087, 5
  %v6338 = vsel %vm878, %v6336, %v6337
  %v6339 = vrot.slane %v6084, 4
  %v6340 = vor.u32 %v6339, %v6337
  %v6341 = vrot.slane %v6340, 4
  %v6343 = vshll.u32 %v6148, 16
  %v6345 = vrot.slane %v6343, 5
  %v6346 = vsel %vm878, %v6341, %v6345
  %v6347 = vrot.slane %v6097, 4
  %v6348 = vrot.slane %v6100, 5
  %v6349 = vor.u32 %v6347, %v6348
  %v6350 = vrot.slane %v6349, 4
  %v6351 = vrot.slane %v6109, 5
  %v6352 = vsel %vm878, %v6350, %v6351
  %v6353 = vrot.slane %v6106, 4
  %v6354 = vor.u32 %v6353, %v6351
  %v6355 = vrot.slane %v6354, 4
  %v6357 = vshll.u32 %v6149, 16
  %v6359 = vrot.slane %v6357, 5
  %v6360 = vsel %vm878, %v6355, %v6359
  %v6361 = vrot.slane %v6119, 4
  %v6362 = vrot.slane %v6122, 5
  %v6363 = vor.u32 %v6361, %v6362
  %v6364 = vrot.slane %v6363, 4
  %v6365 = vrot.slane %v6131, 5
  %v6366 = vsel %vm878, %v6364, %v6365
  %v6367 = vrot.slane %v6128, 4
  %v6368 = vor.u32 %v6367, %v6365
  %v6369 = vrot.slane %v6368, 4
  %v6371 = vshll.u32 %v6150, 16
  %v6373 = vrot.slane %v6371, 5
  %v6374 = vsel %vm878, %v6369, %v6373
  %v6375 = vunpack.c.l.b16 %v4515
  %v6376 = vunpack.c.l.b16 %v4524
  %v6377 = vunpack.c.l.b16 %v4537
  %v6378 = vunpack.c.l.b16 %v4546
  %v6379 = vunpack.c.l.b16 %v4559
  %v6380 = vunpack.c.l.b16 %v4568
  %v6381 = vunpack.c.l.b16 %v4581
  %v6382 = vunpack.c.l.b16 %v4590
  %v6383 = vunpack.c.l.b16 %v4603
  %v6384 = vunpack.c.l.b16 %v4612
  %v6385 = vunpack.c.l.b16 %v4625
  %v6386 = vunpack.c.l.b16 %v4634
  %v6387 = vunpack.c.l.b16 %v4647
  %v6388 = vunpack.c.l.b16 %v4656
  %v6389 = vunpack.c.l.b16 %v4669
  %v6390 = vunpack.c.l.b16 %v4678
  %v6391 = vunpack.c.l.b16 %v4691
  %v6392 = vunpack.c.l.b16 %v4700
  %v6393 = vunpack.c.l.b16 %v4713
  %v6394 = vunpack.c.l.b16 %v4722
  %v6395 = vunpack.c.l.b16 %v4735
  %v6396 = vunpack.c.l.b16 %v4744
  %v6397 = vunpack.c.l.b16 %v4757
  %v6398 = vunpack.c.l.b16 %v4766
  %v6399 = vunpack.c.l.b16 %v4779
  %v6400 = vunpack.c.l.b16 %v4788
  %v6401 = vunpack.c.l.b16 %v4801
  %v6402 = vunpack.c.l.b16 %v4810
  %v6403 = vunpack.c.l.b16 %v4823
  %v6404 = vunpack.c.l.b16 %v4832
  %v6405 = vunpack.c.l.b16 %v4845
  %v6406 = vunpack.c.l.b16 %v4854
  %v6407 = vpack.c.b16 %v6376, %v6375
  %v6408 = vpack.c.b16 %v6378, %v6377
  %v6409 = vpack.c.b16 %v6380, %v6379
  %v6410 = vpack.c.b16 %v6382, %v6381
  %v6411 = vpack.c.b16 %v6384, %v6383
  %v6412 = vpack.c.b16 %v6386, %v6385
  %v6413 = vpack.c.b16 %v6388, %v6387
  %v6414 = vpack.c.b16 %v6390, %v6389
  %v6415 = vpack.c.b16 %v6392, %v6391
  %v6416 = vpack.c.b16 %v6394, %v6393
  %v6417 = vpack.c.b16 %v6396, %v6395
  %v6418 = vpack.c.b16 %v6398, %v6397
  %v6419 = vpack.c.b16 %v6400, %v6399
  %v6420 = vpack.c.b16 %v6402, %v6401
  %v6421 = vpack.c.b16 %v6404, %v6403
  %v6422 = vpack.c.b16 %v6406, %v6405
  %v6471 = vunpack.c.l.b16 %v4456
  %v6472 = vunpack.c.l.b16 %v4457
  %v6473 = vunpack.c.l.b16 %v4459
  %v6474 = vunpack.c.l.b16 %v4460
  %v6475 = vunpack.c.l.b16 %v4462
  %v6476 = vunpack.c.l.b16 %v4463
  %v6477 = vunpack.c.l.b16 %v4465
  %v6478 = vunpack.c.l.b16 %v4466
  %v6479 = vunpack.c.l.b16 %v4468
  %v6480 = vunpack.c.l.b16 %v4469
  %v6481 = vunpack.c.l.b16 %v4471
  %v6482 = vunpack.c.l.b16 %v4472
  %v6483 = vunpack.c.l.b16 %v4474
  %v6484 = vunpack.c.l.b16 %v4475
  %v6485 = vunpack.c.l.b16 %v4477
  %v6486 = vunpack.c.l.b16 %v4478
  %v6487 = vunpack.c.l.b16 %v4480
  %v6488 = vunpack.c.l.b16 %v4481
  %v6489 = vunpack.c.l.b16 %v4483
  %v6490 = vunpack.c.l.b16 %v4484
  %v6491 = vunpack.c.l.b16 %v4486
  %v6492 = vunpack.c.l.b16 %v4487
  %v6493 = vunpack.c.l.b16 %v4489
  %v6494 = vunpack.c.l.b16 %v4490
  %v6495 = vunpack.c.l.b16 %v4492
  %v6496 = vunpack.c.l.b16 %v4493
  %v6497 = vunpack.c.l.b16 %v4495
  %v6498 = vunpack.c.l.b16 %v4496
  %v6499 = vunpack.c.l.b16 %v4498
  %v6500 = vunpack.c.l.b16 %v4499
  %v6501 = vunpack.c.l.b16 %v4501
  %v6502 = vunpack.c.l.b16 %v4502
  %v6503 = vpack.c.b16 %v6472, %v6471
  %v6504 = vpack.c.b16 %v6474, %v6473
  %v6505 = vpack.c.b16 %v6476, %v6475
  %v6506 = vpack.c.b16 %v6478, %v6477
  %v6507 = vpack.c.b16 %v6480, %v6479
  %v6508 = vpack.c.b16 %v6482, %v6481
  %v6509 = vpack.c.b16 %v6484, %v6483
  %v6510 = vpack.c.b16 %v6486, %v6485
  %v6511 = vpack.c.b16 %v6488, %v6487
  %v6512 = vpack.c.b16 %v6490, %v6489
  %v6513 = vpack.c.b16 %v6492, %v6491
  %v6514 = vpack.c.b16 %v6494, %v6493
  %v6515 = vpack.c.b16 %v6496, %v6495
  %v6516 = vpack.c.b16 %v6498, %v6497
  %v6517 = vpack.c.b16 %v6500, %v6499
  %v6518 = vpack.c.b16 %v6502, %v6501
  %v6535 = vunpack.c.l.b16 %v4876
  %v6536 = vunpack.c.l.b16 %v4884
  %v6537 = vunpack.c.l.b16 %v4890
  %v6538 = vunpack.c.l.b16 %v4898
  %v6539 = vunpack.c.l.b16 %v4904
  %v6540 = vunpack.c.l.b16 %v4912
  %v6541 = vunpack.c.l.b16 %v4918
  %v6542 = vunpack.c.l.b16 %v4926
  %v6543 = vunpack.c.l.b16 %v4932
  %v6544 = vunpack.c.l.b16 %v4940
  %v6545 = vunpack.c.l.b16 %v4946
  %v6546 = vunpack.c.l.b16 %v4954
  %v6547 = vunpack.c.l.b16 %v4960
  %v6548 = vunpack.c.l.b16 %v4968
  %v6549 = vunpack.c.l.b16 %v4974
  %v6550 = vunpack.c.l.b16 %v4982
  %v6551 = vunpack.c.l.b16 %v4988
  %v6552 = vunpack.c.l.b16 %v4996
  %v6553 = vunpack.c.l.b16 %v5002
  %v6554 = vunpack.c.l.b16 %v5010
  %v6555 = vunpack.c.l.b16 %v5016
  %v6556 = vunpack.c.l.b16 %v5024
  %v6557 = vunpack.c.l.b16 %v5030
  %v6558 = vunpack.c.l.b16 %v5038
  %v6559 = vunpack.c.l.b16 %v5044
  %v6560 = vunpack.c.l.b16 %v5052
  %v6561 = vunpack.c.l.b16 %v5058
  %v6562 = vunpack.c.l.b16 %v5066
  %v6563 = vunpack.c.l.b16 %v5072
  %v6564 = vunpack.c.l.b16 %v5080
  %v6565 = vunpack.c.l.b16 %v5086
  %v6566 = vunpack.c.l.b16 %v5094
  %v6567 = vpack.c.b16 %v6536, %v6535
  %v6568 = vpack.c.b16 %v6538, %v6537
  %v6569 = vpack.c.b16 %v6540, %v6539
  %v6570 = vpack.c.b16 %v6542, %v6541
  %v6571 = vpack.c.b16 %v6544, %v6543
  %v6572 = vpack.c.b16 %v6546, %v6545
  %v6573 = vpack.c.b16 %v6548, %v6547
  %v6574 = vpack.c.b16 %v6550, %v6549
  %v6575 = vpack.c.b16 %v6552, %v6551
  %v6576 = vpack.c.b16 %v6554, %v6553
  %v6577 = vpack.c.b16 %v6556, %v6555
  %v6578 = vpack.c.b16 %v6558, %v6557
  %v6579 = vpack.c.b16 %v6560, %v6559
  %v6580 = vpack.c.b16 %v6562, %v6561
  %v6581 = vpack.c.b16 %v6564, %v6563
  %v6582 = vpack.c.b16 %v6566, %v6565
  %v6599 = vunpack.c.l.b16 %v5155
  %v6600 = vunpack.c.l.b16 %v5164
  %v6601 = vunpack.c.l.b16 %v5177
  %v6602 = vunpack.c.l.b16 %v5186
  %v6603 = vunpack.c.l.b16 %v5199
  %v6604 = vunpack.c.l.b16 %v5208
  %v6605 = vunpack.c.l.b16 %v5221
  %v6606 = vunpack.c.l.b16 %v5230
  %v6607 = vunpack.c.l.b16 %v5243
  %v6608 = vunpack.c.l.b16 %v5252
  %v6609 = vunpack.c.l.b16 %v5265
  %v6610 = vunpack.c.l.b16 %v5274
  %v6611 = vunpack.c.l.b16 %v5287
  %v6612 = vunpack.c.l.b16 %v5296
  %v6613 = vunpack.c.l.b16 %v5309
  %v6614 = vunpack.c.l.b16 %v5318
  %v6615 = vunpack.c.l.b16 %v5331
  %v6616 = vunpack.c.l.b16 %v5340
  %v6617 = vunpack.c.l.b16 %v5353
  %v6618 = vunpack.c.l.b16 %v5362
  %v6619 = vunpack.c.l.b16 %v5375
  %v6620 = vunpack.c.l.b16 %v5384
  %v6621 = vunpack.c.l.b16 %v5397
  %v6622 = vunpack.c.l.b16 %v5406
  %v6623 = vunpack.c.l.b16 %v5419
  %v6624 = vunpack.c.l.b16 %v5428
  %v6625 = vunpack.c.l.b16 %v5441
  %v6626 = vunpack.c.l.b16 %v5450
  %v6627 = vunpack.c.l.b16 %v5463
  %v6628 = vunpack.c.l.b16 %v5472
  %v6629 = vunpack.c.l.b16 %v5485
  %v6630 = vunpack.c.l.b16 %v5494
  %v6631 = vpack.c.b16 %v6600, %v6599
  %v6632 = vpack.c.b16 %v6602, %v6601
  %v6633 = vpack.c.b16 %v6604, %v6603
  %v6634 = vpack.c.b16 %v6606, %v6605
  %v6635 = vpack.c.b16 %v6608, %v6607
  %v6636 = vpack.c.b16 %v6610, %v6609
  %v6637 = vpack.c.b16 %v6612, %v6611
  %v6638 = vpack.c.b16 %v6614, %v6613
  %v6639 = vpack.c.b16 %v6616, %v6615
  %v6640 = vpack.c.b16 %v6618, %v6617
  %v6641 = vpack.c.b16 %v6620, %v6619
  %v6642 = vpack.c.b16 %v6622, %v6621
  %v6643 = vpack.c.b16 %v6624, %v6623
  %v6644 = vpack.c.b16 %v6626, %v6625
  %v6645 = vpack.c.b16 %v6628, %v6627
  %v6646 = vpack.c.b16 %v6630, %v6629
  %v6695 = vunpack.c.l.b16 %v5096
  %v6696 = vunpack.c.l.b16 %v5097
  %v6697 = vunpack.c.l.b16 %v5099
  %v6698 = vunpack.c.l.b16 %v5100
  %v6699 = vunpack.c.l.b16 %v5102
  %v6700 = vunpack.c.l.b16 %v5103
  %v6701 = vunpack.c.l.b16 %v5105
  %v6702 = vunpack.c.l.b16 %v5106
  %v6703 = vunpack.c.l.b16 %v5108
  %v6704 = vunpack.c.l.b16 %v5109
  %v6705 = vunpack.c.l.b16 %v5111
  %v6706 = vunpack.c.l.b16 %v5112
  %v6707 = vunpack.c.l.b16 %v5114
  %v6708 = vunpack.c.l.b16 %v5115
  %v6709 = vunpack.c.l.b16 %v5117
  %v6710 = vunpack.c.l.b16 %v5118
  %v6711 = vunpack.c.l.b16 %v5120
  %v6712 = vunpack.c.l.b16 %v5121
  %v6713 = vunpack.c.l.b16 %v5123
  %v6714 = vunpack.c.l.b16 %v5124
  %v6715 = vunpack.c.l.b16 %v5126
  %v6716 = vunpack.c.l.b16 %v5127
  %v6717 = vunpack.c.l.b16 %v5129
  %v6718 = vunpack.c.l.b16 %v5130
  %v6719 = vunpack.c.l.b16 %v5132
  %v6720 = vunpack.c.l.b16 %v5133
  %v6721 = vunpack.c.l.b16 %v5135
  %v6722 = vunpack.c.l.b16 %v5136
  %v6723 = vunpack.c.l.b16 %v5138
  %v6724 = vunpack.c.l.b16 %v5139
  %v6725 = vunpack.c.l.b16 %v5141
  %v6726 = vunpack.c.l.b16 %v5142
  %v6727 = vpack.c.b16 %v6696, %v6695
  %v6728 = vpack.c.b16 %v6698, %v6697
  %v6729 = vpack.c.b16 %v6700, %v6699
  %v6730 = vpack.c.b16 %v6702, %v6701
  %v6731 = vpack.c.b16 %v6704, %v6703
  %v6732 = vpack.c.b16 %v6706, %v6705
  %v6733 = vpack.c.b16 %v6708, %v6707
  %v6734 = vpack.c.b16 %v6710, %v6709
  %v6735 = vpack.c.b16 %v6712, %v6711
  %v6736 = vpack.c.b16 %v6714, %v6713
  %v6737 = vpack.c.b16 %v6716, %v6715
  %v6738 = vpack.c.b16 %v6718, %v6717
  %v6739 = vpack.c.b16 %v6720, %v6719
  %v6740 = vpack.c.b16 %v6722, %v6721
  %v6741 = vpack.c.b16 %v6724, %v6723
  %v6742 = vpack.c.b16 %v6726, %v6725
  %v6759 = vunpack.c.l.b16 %v5516
  %v6760 = vunpack.c.l.b16 %v5524
  %v6761 = vunpack.c.l.b16 %v5530
  %v6762 = vunpack.c.l.b16 %v5538
  %v6763 = vunpack.c.l.b16 %v5544
  %v6764 = vunpack.c.l.b16 %v5552
  %v6765 = vunpack.c.l.b16 %v5558
  %v6766 = vunpack.c.l.b16 %v5566
  %v6767 = vunpack.c.l.b16 %v5572
  %v6768 = vunpack.c.l.b16 %v5580
  %v6769 = vunpack.c.l.b16 %v5586
  %v6770 = vunpack.c.l.b16 %v5594
  %v6771 = vunpack.c.l.b16 %v5600
  %v6772 = vunpack.c.l.b16 %v5608
  %v6773 = vunpack.c.l.b16 %v5614
  %v6774 = vunpack.c.l.b16 %v5622
  %v6775 = vunpack.c.l.b16 %v5628
  %v6776 = vunpack.c.l.b16 %v5636
  %v6777 = vunpack.c.l.b16 %v5642
  %v6778 = vunpack.c.l.b16 %v5650
  %v6779 = vunpack.c.l.b16 %v5656
  %v6780 = vunpack.c.l.b16 %v5664
  %v6781 = vunpack.c.l.b16 %v5670
  %v6782 = vunpack.c.l.b16 %v5678
  %v6783 = vunpack.c.l.b16 %v5684
  %v6784 = vunpack.c.l.b16 %v5692
  %v6785 = vunpack.c.l.b16 %v5698
  %v6786 = vunpack.c.l.b16 %v5706
  %v6787 = vunpack.c.l.b16 %v5712
  %v6788 = vunpack.c.l.b16 %v5720
  %v6789 = vunpack.c.l.b16 %v5726
  %v6790 = vunpack.c.l.b16 %v5734
  %v6791 = vpack.c.b16 %v6760, %v6759
  %v6792 = vpack.c.b16 %v6762, %v6761
  %v6793 = vpack.c.b16 %v6764, %v6763
  %v6794 = vpack.c.b16 %v6766, %v6765
  %v6795 = vpack.c.b16 %v6768, %v6767
  %v6796 = vpack.c.b16 %v6770, %v6769
  %v6797 = vpack.c.b16 %v6772, %v6771
  %v6798 = vpack.c.b16 %v6774, %v6773
  %v6799 = vpack.c.b16 %v6776, %v6775
  %v6800 = vpack.c.b16 %v6778, %v6777
  %v6801 = vpack.c.b16 %v6780, %v6779
  %v6802 = vpack.c.b16 %v6782, %v6781
  %v6803 = vpack.c.b16 %v6784, %v6783
  %v6804 = vpack.c.b16 %v6786, %v6785
  %v6805 = vpack.c.b16 %v6788, %v6787
  %v6806 = vpack.c.b16 %v6790, %v6789
  %v6823 = vunpack.c.l.b16 %v5795
  %v6824 = vunpack.c.l.b16 %v5804
  %v6825 = vunpack.c.l.b16 %v5817
  %v6826 = vunpack.c.l.b16 %v5826
  %v6827 = vunpack.c.l.b16 %v5839
  %v6828 = vunpack.c.l.b16 %v5848
  %v6829 = vunpack.c.l.b16 %v5861
  %v6830 = vunpack.c.l.b16 %v5870
  %v6831 = vunpack.c.l.b16 %v5883
  %v6832 = vunpack.c.l.b16 %v5892
  %v6833 = vunpack.c.l.b16 %v5905
  %v6834 = vunpack.c.l.b16 %v5914
  %v6835 = vunpack.c.l.b16 %v5927
  %v6836 = vunpack.c.l.b16 %v5936
  %v6837 = vunpack.c.l.b16 %v5949
  %v6838 = vunpack.c.l.b16 %v5958
  %v6839 = vunpack.c.l.b16 %v5971
  %v6840 = vunpack.c.l.b16 %v5980
  %v6841 = vunpack.c.l.b16 %v5993
  %v6842 = vunpack.c.l.b16 %v6002
  %v6843 = vunpack.c.l.b16 %v6015
  %v6844 = vunpack.c.l.b16 %v6024
  %v6845 = vunpack.c.l.b16 %v6037
  %v6846 = vunpack.c.l.b16 %v6046
  %v6847 = vunpack.c.l.b16 %v6059
  %v6848 = vunpack.c.l.b16 %v6068
  %v6849 = vunpack.c.l.b16 %v6081
  %v6850 = vunpack.c.l.b16 %v6090
  %v6851 = vunpack.c.l.b16 %v6103
  %v6852 = vunpack.c.l.b16 %v6112
  %v6853 = vunpack.c.l.b16 %v6125
  %v6854 = vunpack.c.l.b16 %v6134
  %v6855 = vpack.c.b16 %v6824, %v6823
  %v6856 = vpack.c.b16 %v6826, %v6825
  %v6857 = vpack.c.b16 %v6828, %v6827
  %v6858 = vpack.c.b16 %v6830, %v6829
  %v6859 = vpack.c.b16 %v6832, %v6831
  %v6860 = vpack.c.b16 %v6834, %v6833
  %v6861 = vpack.c.b16 %v6836, %v6835
  %v6862 = vpack.c.b16 %v6838, %v6837
  %v6863 = vpack.c.b16 %v6840, %v6839
  %v6864 = vpack.c.b16 %v6842, %v6841
  %v6865 = vpack.c.b16 %v6844, %v6843
  %v6866 = vpack.c.b16 %v6846, %v6845
  %v6867 = vpack.c.b16 %v6848, %v6847
  %v6868 = vpack.c.b16 %v6850, %v6849
  %v6869 = vpack.c.b16 %v6852, %v6851
  %v6870 = vpack.c.b16 %v6854, %v6853
  %v6919 = vunpack.c.l.b16 %v5736
  %v6920 = vunpack.c.l.b16 %v5737
  %v6921 = vunpack.c.l.b16 %v5739
  %v6922 = vunpack.c.l.b16 %v5740
  %v6923 = vunpack.c.l.b16 %v5742
  %v6924 = vunpack.c.l.b16 %v5743
  %v6925 = vunpack.c.l.b16 %v5745
  %v6926 = vunpack.c.l.b16 %v5746
  %v6927 = vunpack.c.l.b16 %v5748
  %v6928 = vunpack.c.l.b16 %v5749
  %v6929 = vunpack.c.l.b16 %v5751
  %v6930 = vunpack.c.l.b16 %v5752
  %v6931 = vunpack.c.l.b16 %v5754
  %v6932 = vunpack.c.l.b16 %v5755
  %v6933 = vunpack.c.l.b16 %v5757
  %v6934 = vunpack.c.l.b16 %v5758
  %v6935 = vunpack.c.l.b16 %v5760
  %v6936 = vunpack.c.l.b16 %v5761
  %v6937 = vunpack.c.l.b16 %v5763
  %v6938 = vunpack.c.l.b16 %v5764
  %v6939 = vunpack.c.l.b16 %v5766
  %v6940 = vunpack.c.l.b16 %v5767
  %v6941 = vunpack.c.l.b16 %v5769
  %v6942 = vunpack.c.l.b16 %v5770
  %v6943 = vunpack.c.l.b16 %v5772
  %v6944 = vunpack.c.l.b16 %v5773
  %v6945 = vunpack.c.l.b16 %v5775
  %v6946 = vunpack.c.l.b16 %v5776
  %v6947 = vunpack.c.l.b16 %v5778
  %v6948 = vunpack.c.l.b16 %v5779
  %v6949 = vunpack.c.l.b16 %v5781
  %v6950 = vunpack.c.l.b16 %v5782
  %v6951 = vpack.c.b16 %v6920, %v6919
  %v6952 = vpack.c.b16 %v6922, %v6921
  %v6953 = vpack.c.b16 %v6924, %v6923
  %v6954 = vpack.c.b16 %v6926, %v6925
  %v6955 = vpack.c.b16 %v6928, %v6927
  %v6956 = vpack.c.b16 %v6930, %v6929
  %v6957 = vpack.c.b16 %v6932, %v6931
  %v6958 = vpack.c.b16 %v6934, %v6933
  %v6959 = vpack.c.b16 %v6936, %v6935
  %v6960 = vpack.c.b16 %v6938, %v6937
  %v6961 = vpack.c.b16 %v6940, %v6939
  %v6962 = vpack.c.b16 %v6942, %v6941
  %v6963 = vpack.c.b16 %v6944, %v6943
  %v6964 = vpack.c.b16 %v6946, %v6945
  %v6965 = vpack.c.b16 %v6948, %v6947
  %v6966 = vpack.c.b16 %v6950, %v6949
  %v6983 = vunpack.c.l.b16 %v6156
  %v6984 = vunpack.c.l.b16 %v6164
  %v6985 = vunpack.c.l.b16 %v6170
  %v6986 = vunpack.c.l.b16 %v6178
  %v6987 = vunpack.c.l.b16 %v6184
  %v6988 = vunpack.c.l.b16 %v6192
  %v6989 = vunpack.c.l.b16 %v6198
  %v6990 = vunpack.c.l.b16 %v6206
  %v6991 = vunpack.c.l.b16 %v6212
  %v6992 = vunpack.c.l.b16 %v6220
  %v6993 = vunpack.c.l.b16 %v6226
  %v6994 = vunpack.c.l.b16 %v6234
  %v6995 = vunpack.c.l.b16 %v6240
  %v6996 = vunpack.c.l.b16 %v6248
  %v6997 = vunpack.c.l.b16 %v6254
  %v6998 = vunpack.c.l.b16 %v6262
  %v6999 = vunpack.c.l.b16 %v6268
  %v7000 = vunpack.c.l.b16 %v6276
  %v7001 = vunpack.c.l.b16 %v6282
  %v7002 = vunpack.c.l.b16 %v6290
  %v7003 = vunpack.c.l.b16 %v6296
  %v7004 = vunpack.c.l.b16 %v6304
  %v7005 = vunpack.c.l.b16 %v6310
  %v7006 = vunpack.c.l.b16 %v6318
  %v7007 = vunpack.c.l.b16 %v6324
  %v7008 = vunpack.c.l.b16 %v6332
  %v7009 = vunpack.c.l.b16 %v6338
  %v7010 = vunpack.c.l.b16 %v6346
  %v7011 = vunpack.c.l.b16 %v6352
  %v7012 = vunpack.c.l.b16 %v6360
  %v7013 = vunpack.c.l.b16 %v6366
  %v7014 = vunpack.c.l.b16 %v6374
  %v7015 = vpack.c.b16 %v6984, %v6983
  %v7016 = vpack.c.b16 %v6986, %v6985
  %v7017 = vpack.c.b16 %v6988, %v6987
  %v7018 = vpack.c.b16 %v6990, %v6989
  %v7019 = vpack.c.b16 %v6992, %v6991
  %v7020 = vpack.c.b16 %v6994, %v6993
  %v7021 = vpack.c.b16 %v6996, %v6995
  %v7022 = vpack.c.b16 %v6998, %v6997
  %v7023 = vpack.c.b16 %v7000, %v6999
  %v7024 = vpack.c.b16 %v7002, %v7001
  %v7025 = vpack.c.b16 %v7004, %v7003
  %v7026 = vpack.c.b16 %v7006, %v7005
  %v7027 = vpack.c.b16 %v7008, %v7007
  %v7028 = vpack.c.b16 %v7010, %v7009
  %v7029 = vpack.c.b16 %v7012, %v7011
  %v7030 = vpack.c.b16 %v7014, %v7013
  %v7191 = vunpack.c.l.b16 %v212
  %v7192 = vunpack.c.l.b16 %v213
  %v7193 = vunpack.c.l.b16 %v214
  %v7194 = vunpack.c.l.b16 %v215
  %v7195 = vunpack.c.l.b16 %v216
  %v7196 = vunpack.c.l.b16 %v217
  %v7197 = vunpack.c.l.b16 %v218
  %v7198 = vunpack.c.l.b16 %v219
  %v7199 = vunpack.c.l.b16 %v220
  %v7200 = vunpack.c.l.b16 %v221
  %v7201 = vunpack.c.l.b16 %v222
  %v7202 = vunpack.c.l.b16 %v223
  %v7203 = vunpack.c.l.b16 %v224
  %v7204 = vunpack.c.l.b16 %v225
  %v7205 = vunpack.c.l.b16 %v226
  %v7206 = vunpack.c.l.b16 %v227
  %v7207 = vunpack.c.l.b16 %v228
  %v7208 = vunpack.c.l.b16 %v229
  %v7209 = vunpack.c.l.b16 %v230
  %v7210 = vunpack.c.l.b16 %v231
  %v7211 = vunpack.c.l.b16 %v232
  %v7212 = vunpack.c.l.b16 %v233
  %v7213 = vunpack.c.l.b16 %v234
  %v7214 = vunpack.c.l.b16 %v235
  %v7215 = vunpack.c.l.b16 %v236
  %v7216 = vunpack.c.l.b16 %v237
  %v7217 = vunpack.c.l.b16 %v238
  %v7218 = vunpack.c.l.b16 %v239
  %v7219 = vunpack.c.l.b16 %v240
  %v7220 = vunpack.c.l.b16 %v241
  %v7221 = vunpack.c.l.b16 %v242
  %v7222 = vunpack.c.l.b16 %v243
  %v7223 = vunpack.c.l.b16 %v244
  %v7224 = vunpack.c.l.b16 %v245
  %v7225 = vunpack.c.l.b16 %v246
  %v7226 = vunpack.c.l.b16 %v247
  %v7227 = vunpack.c.l.b16 %v248
  %v7228 = vunpack.c.l.b16 %v249
  %v7229 = vunpack.c.l.b16 %v250
  %v7230 = vunpack.c.l.b16 %v251
  %v7231 = vunpack.c.l.b16 %v252
  %v7232 = vunpack.c.l.b16 %v253
  %v7233 = vunpack.c.l.b16 %v254
  %v7234 = vunpack.c.l.b16 %v255
  %v7235 = vunpack.c.l.b16 %v256
  %v7236 = vunpack.c.l.b16 %v257
  %v7237 = vunpack.c.l.b16 %v258
  %v7238 = vunpack.c.l.b16 %v259
  %v7239 = vunpack.c.l.b16 %v260
  %v7240 = vunpack.c.l.b16 %v261
  %v7241 = vunpack.c.l.b16 %v262
  %v7242 = vunpack.c.l.b16 %v263
  %v7243 = vunpack.c.l.b16 %v264
  %v7244 = vunpack.c.l.b16 %v265
  %v7245 = vunpack.c.l.b16 %v266
  %v7246 = vunpack.c.l.b16 %v267
  %v7247 = vunpack.c.l.b16 %v268
  %v7248 = vunpack.c.l.b16 %v269
  %v7249 = vunpack.c.l.b16 %v270
  %v7250 = vunpack.c.l.b16 %v271
  %v7251 = vunpack.c.l.b16 %v272
  %v7252 = vunpack.c.l.b16 %v273
  %v7253 = vunpack.c.l.b16 %v274
  %v7254 = vunpack.c.l.b16 %v275
  %v7255 = vunpack.c.l.b16 %v276
  %v7256 = vunpack.c.l.b16 %v277
  %v7257 = vunpack.c.l.b16 %v278
  %v7258 = vunpack.c.l.b16 %v279
  %v7259 = vunpack.c.l.b16 %v280
  %v7260 = vunpack.c.l.b16 %v281
  %v7261 = vunpack.c.l.b16 %v282
  %v7262 = vunpack.c.l.b16 %v283
  %v7263 = vunpack.c.l.b16 %v284
  %v7264 = vunpack.c.l.b16 %v285
  %v7265 = vunpack.c.l.b16 %v286
  %v7266 = vunpack.c.l.b16 %v287
  %v7267 = vunpack.c.l.b16 %v288
  %v7268 = vunpack.c.l.b16 %v289
  %v7269 = vunpack.c.l.b16 %v290
  %v7270 = vunpack.c.l.b16 %v291
  %v7271 = vunpack.c.l.b16 %v292
  %v7272 = vunpack.c.l.b16 %v293
  %v7273 = vunpack.c.l.b16 %v294
  %v7274 = vunpack.c.l.b16 %v295
  %v7275 = vunpack.c.l.b16 %v296
  %v7276 = vunpack.c.l.b16 %v297
  %v7277 = vunpack.c.l.b16 %v298
  %v7278 = vunpack.c.l.b16 %v299
  %v7279 = vunpack.c.l.b16 %v300
  %v7280 = vunpack.c.l.b16 %v301
  %v7281 = vunpack.c.l.b16 %v302
  %v7282 = vunpack.c.l.b16 %v303
  %v7283 = vunpack.c.l.b16 %v304
  %v7284 = vunpack.c.l.b16 %v305
  %v7285 = vunpack.c.l.b16 %v306
  %v7286 = vunpack.c.l.b16 %v307
  %v7287 = vunpack.c.l.b16 %v308
  %v7288 = vunpack.c.l.b16 %v309
  %v7289 = vunpack.c.l.b16 %v310
  %v7290 = vunpack.c.l.b16 %v311
  %v7291 = vunpack.c.l.b16 %v312
  %v7292 = vunpack.c.l.b16 %v313
  %v7293 = vunpack.c.l.b16 %v314
  %v7294 = vunpack.c.l.b16 %v315
  %v7295 = vunpack.c.l.b16 %v316
  %v7296 = vunpack.c.l.b16 %v317
  %v7297 = vunpack.c.l.b16 %v318
  %v7298 = vunpack.c.l.b16 %v319
  %v7299 = vunpack.c.l.b16 %v320
  %v7300 = vunpack.c.l.b16 %v321
  %v7301 = vunpack.c.l.b16 %v322
  %v7302 = vunpack.c.l.b16 %v323
  %v7303 = vunpack.c.l.b16 %v324
  %v7304 = vunpack.c.l.b16 %v325
  %v7305 = vunpack.c.l.b16 %v326
  %v7306 = vunpack.c.l.b16 %v327
  %v7307 = vunpack.c.l.b16 %v328
  %v7308 = vunpack.c.l.b16 %v329
  %v7309 = vunpack.c.l.b16 %v330
  %v7310 = vunpack.c.l.b16 %v331
  %v7311 = vunpack.c.l.b16 %v332
  %v7312 = vunpack.c.l.b16 %v333
  %v7313 = vunpack.c.l.b16 %v334
  %v7314 = vunpack.c.l.b16 %v335
  %v7315 = vunpack.c.l.b16 %v336
  %v7316 = vunpack.c.l.b16 %v337
  %v7317 = vunpack.c.l.b16 %v338
  %v7318 = vunpack.c.l.b16 %v339
  %v7319 = vunpack.c.l.b16 %v340
  %v7320 = vunpack.c.l.b16 %v341
  %v7321 = vunpack.c.l.b16 %v342
  %v7322 = vunpack.c.l.b16 %v343
  %v7323 = vunpack.c.l.b16 %v344
  %v7324 = vunpack.c.l.b16 %v345
  %v7325 = vunpack.c.l.b16 %v346
  %v7326 = vunpack.c.l.b16 %v347
  %v7327 = vunpack.c.l.b16 %v348
  %v7328 = vunpack.c.l.b16 %v349
  %v7329 = vunpack.c.l.b16 %v350
  %v7330 = vunpack.c.l.b16 %v351
  %v7331 = vunpack.c.l.b16 %v352
  %v7332 = vunpack.c.l.b16 %v353
  %v7333 = vunpack.c.l.b16 %v354
  %v7334 = vunpack.c.l.b16 %v355
  %v7335 = vpack.c.b16 %v7192, %v7191
  %v7336 = vpack.c.b16 %v7194, %v7193
  %v7337 = vpack.c.b16 %v7196, %v7195
  %v7338 = vpack.c.b16 %v7198, %v7197
  %v7339 = vpack.c.b16 %v7200, %v7199
  %v7340 = vpack.c.b16 %v7202, %v7201
  %v7341 = vpack.c.b16 %v7204, %v7203
  %v7342 = vpack.c.b16 %v7206, %v7205
  %v7343 = vpack.c.b16 %v7208, %v7207
  %v7344 = vpack.c.b16 %v7210, %v7209
  %v7345 = vpack.c.b16 %v7212, %v7211
  %v7346 = vpack.c.b16 %v7214, %v7213
  %v7347 = vpack.c.b16 %v7216, %v7215
  %v7348 = vpack.c.b16 %v7218, %v7217
  %v7349 = vpack.c.b16 %v7220, %v7219
  %v7350 = vpack.c.b16 %v7222, %v7221
  %v7351 = vpack.c.b16 %v7224, %v7223
  %v7352 = vpack.c.b16 %v7226, %v7225
  %v7353 = vpack.c.b16 %v7228, %v7227
  %v7354 = vpack.c.b16 %v7230, %v7229
  %v7355 = vpack.c.b16 %v7232, %v7231
  %v7356 = vpack.c.b16 %v7234, %v7233
  %v7357 = vpack.c.b16 %v7236, %v7235
  %v7358 = vpack.c.b16 %v7238, %v7237
  %v7359 = vpack.c.b16 %v7240, %v7239
  %v7360 = vpack.c.b16 %v7242, %v7241
  %v7361 = vpack.c.b16 %v7244, %v7243
  %v7362 = vpack.c.b16 %v7246, %v7245
  %v7363 = vpack.c.b16 %v7248, %v7247
  %v7364 = vpack.c.b16 %v7250, %v7249
  %v7365 = vpack.c.b16 %v7252, %v7251
  %v7366 = vpack.c.b16 %v7254, %v7253
  %v7367 = vpack.c.b16 %v7256, %v7255
  %v7368 = vpack.c.b16 %v7258, %v7257
  %v7369 = vpack.c.b16 %v7260, %v7259
  %v7370 = vpack.c.b16 %v7262, %v7261
  %v7371 = vpack.c.b16 %v7264, %v7263
  %v7372 = vpack.c.b16 %v7266, %v7265
  %v7373 = vpack.c.b16 %v7268, %v7267
  %v7374 = vpack.c.b16 %v7270, %v7269
  %v7375 = vpack.c.b16 %v7272, %v7271
  %v7376 = vpack.c.b16 %v7274, %v7273
  %v7377 = vpack.c.b16 %v7276, %v7275
  %v7378 = vpack.c.b16 %v7278, %v7277
  %v7379 = vpack.c.b16 %v7280, %v7279
  %v7380 = vpack.c.b16 %v7282, %v7281
  %v7381 = vpack.c.b16 %v7284, %v7283
  %v7382 = vpack.c.b16 %v7286, %v7285
  %v7383 = vpack.c.b16 %v7288, %v7287
  %v7384 = vpack.c.b16 %v7290, %v7289
  %v7385 = vpack.c.b16 %v7292, %v7291
  %v7386 = vpack.c.b16 %v7294, %v7293
  %v7387 = vpack.c.b16 %v7296, %v7295
  %v7388 = vpack.c.b16 %v7298, %v7297
  %v7389 = vpack.c.b16 %v7300, %v7299
  %v7390 = vpack.c.b16 %v7302, %v7301
  %v7391 = vpack.c.b16 %v7304, %v7303
  %v7392 = vpack.c.b16 %v7306, %v7305
  %v7393 = vpack.c.b16 %v7308, %v7307
  %v7394 = vpack.c.b16 %v7310, %v7309
  %v7395 = vpack.c.b16 %v7312, %v7311
  %v7396 = vpack.c.b16 %v7314, %v7313
  %v7397 = vpack.c.b16 %v7316, %v7315
  %v7398 = vpack.c.b16 %v7318, %v7317
  %v7399 = vpack.c.b16 %v7320, %v7319
  %v7400 = vpack.c.b16 %v7322, %v7321
  %v7401 = vpack.c.b16 %v7324, %v7323
  %v7402 = vpack.c.b16 %v7326, %v7325
  %v7403 = vpack.c.b16 %v7328, %v7327
  %v7404 = vpack.c.b16 %v7330, %v7329
  %v7405 = vpack.c.b16 %v7332, %v7331
  %v7406 = vpack.c.b16 %v7334, %v7333
  %7479 = vmatpush.bf16.msra.mxu0 %v7342
  %7480 = vmatpush.bf16.msra.mxu0 %v7341
  %7481 = vmatpush.bf16.msra.mxu0 %v7340
  %7482 = vmatpush.bf16.msra.mxu0 %v7339
  %7483 = vmatpush.bf16.msra.mxu0 %v7338
  %7484 = vmatpush.bf16.msra.mxu0 %v7337
  %7485 = vmatpush.bf16.msra.mxu0 %v7336
  %7486 = vmatpush.bf16.msra.mxu0 %v7335
  %7487 = vmatmul.bf16.gmra.mxu0 %v6407
  %v7488 = vpop.f32.mrf.mxu0
  %v7489 = vadd.f32 0.0, %v7488
  %v7490 = vpop.f32.mrf.mxu0
  %v7491 = vadd.f32 0.0, %v7490
  %7492 = vmatmul.bf16.gmra.mxu0 %v6408
  %v7493 = vpop.f32.mrf.mxu0
  %v7494 = vadd.f32 0.0, %v7493
  %v7495 = vpop.f32.mrf.mxu0
  %v7496 = vadd.f32 0.0, %v7495
  %7497 = vmatmul.bf16.gmra.mxu0 %v6409
  %v7498 = vpop.f32.mrf.mxu0
  %v7499 = vadd.f32 0.0, %v7498
  %v7500 = vpop.f32.mrf.mxu0
  %v7501 = vadd.f32 0.0, %v7500
  %7502 = vmatmul.bf16.gmra.mxu0 %v6410
  %v7503 = vpop.f32.mrf.mxu0
  %v7504 = vadd.f32 0.0, %v7503
  %v7505 = vpop.f32.mrf.mxu0
  %v7506 = vadd.f32 0.0, %v7505
  %7507 = vmatmul.bf16.gmra.mxu0 %v6411
  %v7508 = vpop.f32.mrf.mxu0
  %v7509 = vadd.f32 0.0, %v7508
  %v7510 = vpop.f32.mrf.mxu0
  %v7511 = vadd.f32 0.0, %v7510
  %7512 = vmatmul.bf16.gmra.mxu0 %v6412
  %v7513 = vpop.f32.mrf.mxu0
  %v7514 = vadd.f32 0.0, %v7513
  %v7515 = vpop.f32.mrf.mxu0
  %v7516 = vadd.f32 0.0, %v7515
  %7517 = vmatmul.bf16.gmra.mxu0 %v6413
  %v7518 = vpop.f32.mrf.mxu0
  %v7519 = vadd.f32 0.0, %v7518
  %v7520 = vpop.f32.mrf.mxu0
  %v7521 = vadd.f32 0.0, %v7520
  %7522 = vmatmul.bf16.gmra.mxu0 %v6414
  %v7523 = vpop.f32.mrf.mxu0
  %v7524 = vadd.f32 0.0, %v7523
  %v7525 = vpop.f32.mrf.mxu0
  %v7526 = vadd.f32 0.0, %v7525
  %7527 = vmatmul.bf16.gmra.mxu0 %v6415
  %v7528 = vpop.f32.mrf.mxu0
  %v7529 = vadd.f32 0.0, %v7528
  %v7530 = vpop.f32.mrf.mxu0
  %v7531 = vadd.f32 0.0, %v7530
  %7532 = vmatmul.bf16.gmra.mxu0 %v6416
  %v7533 = vpop.f32.mrf.mxu0
  %v7534 = vadd.f32 0.0, %v7533
  %v7535 = vpop.f32.mrf.mxu0
  %v7536 = vadd.f32 0.0, %v7535
  %7537 = vmatmul.bf16.gmra.mxu0 %v6417
  %v7538 = vpop.f32.mrf.mxu0
  %v7539 = vadd.f32 0.0, %v7538
  %v7540 = vpop.f32.mrf.mxu0
  %v7541 = vadd.f32 0.0, %v7540
  %7542 = vmatmul.bf16.gmra.mxu0 %v6418
  %v7543 = vpop.f32.mrf.mxu0
  %v7544 = vadd.f32 0.0, %v7543
  %v7545 = vpop.f32.mrf.mxu0
  %v7546 = vadd.f32 0.0, %v7545
  %7547 = vmatmul.bf16.gmra.mxu0 %v6419
  %v7548 = vpop.f32.mrf.mxu0
  %v7549 = vadd.f32 0.0, %v7548
  %v7550 = vpop.f32.mrf.mxu0
  %v7551 = vadd.f32 0.0, %v7550
  %7552 = vmatmul.bf16.gmra.mxu0 %v6420
  %v7553 = vpop.f32.mrf.mxu0
  %v7554 = vadd.f32 0.0, %v7553
  %v7555 = vpop.f32.mrf.mxu0
  %v7556 = vadd.f32 0.0, %v7555
  %7557 = vmatmul.bf16.gmra.mxu0 %v6421
  %v7558 = vpop.f32.mrf.mxu0
  %v7559 = vadd.f32 0.0, %v7558
  %v7560 = vpop.f32.mrf.mxu0
  %v7561 = vadd.f32 0.0, %v7560
  %7562 = vmatmul.bf16.gmra.mxu0 %v6422
  %v7563 = vpop.f32.mrf.mxu0
  %v7564 = vadd.f32 0.0, %v7563
  %v7565 = vpop.f32.mrf.mxu0
  %v7566 = vadd.f32 0.0, %v7565
  %7567 = vdwg.mxu0
  %7568 = vmatpush.bf16.msra.mxu0 %v7350
  %7569 = vmatpush.bf16.msra.mxu0 %v7349
  %7570 = vmatpush.bf16.msra.mxu0 %v7348
  %7571 = vmatpush.bf16.msra.mxu0 %v7347
  %7572 = vmatpush.bf16.msra.mxu0 %v7346
  %7573 = vmatpush.bf16.msra.mxu0 %v7345
  %7574 = vmatpush.bf16.msra.mxu0 %v7344
  %7575 = vmatpush.bf16.msra.mxu0 %v7343
  %7576 = vmatmul.bf16.gmra.mxu0 %v6503
  %v7577 = vpop.f32.mrf.mxu0
  %v7578 = vadd.f32 %v7489, %v7577
  %v7579 = vpop.f32.mrf.mxu0
  %v7580 = vadd.f32 %v7491, %v7579
  %7581 = vmatmul.bf16.gmra.mxu0 %v6504
  %v7582 = vpop.f32.mrf.mxu0
  %v7583 = vadd.f32 %v7494, %v7582
  %v7584 = vpop.f32.mrf.mxu0
  %v7585 = vadd.f32 %v7496, %v7584
  %7586 = vmatmul.bf16.gmra.mxu0 %v6505
  %v7587 = vpop.f32.mrf.mxu0
  %v7588 = vadd.f32 %v7499, %v7587
  %v7589 = vpop.f32.mrf.mxu0
  %v7590 = vadd.f32 %v7501, %v7589
  %7591 = vmatmul.bf16.gmra.mxu0 %v6506
  %v7592 = vpop.f32.mrf.mxu0
  %v7593 = vadd.f32 %v7504, %v7592
  %v7594 = vpop.f32.mrf.mxu0
  %v7595 = vadd.f32 %v7506, %v7594
  %7596 = vmatmul.bf16.gmra.mxu0 %v6507
  %v7597 = vpop.f32.mrf.mxu0
  %v7598 = vadd.f32 %v7509, %v7597
  %v7599 = vpop.f32.mrf.mxu0
  %v7600 = vadd.f32 %v7511, %v7599
  %7601 = vmatmul.bf16.gmra.mxu0 %v6508
  %v7602 = vpop.f32.mrf.mxu0
  %v7603 = vadd.f32 %v7514, %v7602
  %v7604 = vpop.f32.mrf.mxu0
  %v7605 = vadd.f32 %v7516, %v7604
  %7606 = vmatmul.bf16.gmra.mxu0 %v6509
  %v7607 = vpop.f32.mrf.mxu0
  %v7608 = vadd.f32 %v7519, %v7607
  %v7609 = vpop.f32.mrf.mxu0
  %v7610 = vadd.f32 %v7521, %v7609
  %7611 = vmatmul.bf16.gmra.mxu0 %v6510
  %v7612 = vpop.f32.mrf.mxu0
  %v7613 = vadd.f32 %v7524, %v7612
  %v7614 = vpop.f32.mrf.mxu0
  %v7615 = vadd.f32 %v7526, %v7614
  %7616 = vmatmul.bf16.gmra.mxu0 %v6511
  %v7617 = vpop.f32.mrf.mxu0
  %v7618 = vadd.f32 %v7529, %v7617
  %v7619 = vpop.f32.mrf.mxu0
  %v7620 = vadd.f32 %v7531, %v7619
  %7621 = vmatmul.bf16.gmra.mxu0 %v6512
  %v7622 = vpop.f32.mrf.mxu0
  %v7623 = vadd.f32 %v7534, %v7622
  %v7624 = vpop.f32.mrf.mxu0
  %v7625 = vadd.f32 %v7536, %v7624
  %7626 = vmatmul.bf16.gmra.mxu0 %v6513
  %v7627 = vpop.f32.mrf.mxu0
  %v7628 = vadd.f32 %v7539, %v7627
  %v7629 = vpop.f32.mrf.mxu0
  %v7630 = vadd.f32 %v7541, %v7629
  %7631 = vmatmul.bf16.gmra.mxu0 %v6514
  %v7632 = vpop.f32.mrf.mxu0
  %v7633 = vadd.f32 %v7544, %v7632
  %v7634 = vpop.f32.mrf.mxu0
  %v7635 = vadd.f32 %v7546, %v7634
  %7636 = vmatmul.bf16.gmra.mxu0 %v6515
  %v7637 = vpop.f32.mrf.mxu0
  %v7638 = vadd.f32 %v7549, %v7637
  %v7639 = vpop.f32.mrf.mxu0
  %v7640 = vadd.f32 %v7551, %v7639
  %7641 = vmatmul.bf16.gmra.mxu0 %v6516
  %v7642 = vpop.f32.mrf.mxu0
  %v7643 = vadd.f32 %v7554, %v7642
  %v7644 = vpop.f32.mrf.mxu0
  %v7645 = vadd.f32 %v7556, %v7644
  %7646 = vmatmul.bf16.gmra.mxu0 %v6517
  %v7647 = vpop.f32.mrf.mxu0
  %v7648 = vadd.f32 %v7559, %v7647
  %v7649 = vpop.f32.mrf.mxu0
  %v7650 = vadd.f32 %v7561, %v7649
  %7651 = vmatmul.bf16.gmra.mxu0 %v6518
  %v7652 = vpop.f32.mrf.mxu0
  %v7653 = vadd.f32 %v7564, %v7652
  %v7654 = vpop.f32.mrf.mxu0
  %v7655 = vadd.f32 %v7566, %v7654
  %7656 = vdwg.mxu0
  %7657 = vmatpush.bf16.msra.mxu0 %v7358
  %7658 = vmatpush.bf16.msra.mxu0 %v7357
  %7659 = vmatpush.bf16.msra.mxu0 %v7356
  %7660 = vmatpush.bf16.msra.mxu0 %v7355
  %7661 = vmatpush.bf16.msra.mxu0 %v7354
  %7662 = vmatpush.bf16.msra.mxu0 %v7353
  %7663 = vmatpush.bf16.msra.mxu0 %v7352
  %7664 = vmatpush.bf16.msra.mxu0 %v7351
  %7665 = vmatmul.bf16.gmra.mxu0 %v6567
  %v7666 = vpop.f32.mrf.mxu0
  %v7667 = vadd.f32 %v7578, %v7666
  %v7668 = vpop.f32.mrf.mxu0
  %v7669 = vadd.f32 %v7580, %v7668
  %7670 = vmatmul.bf16.gmra.mxu0 %v6568
  %v7671 = vpop.f32.mrf.mxu0
  %v7672 = vadd.f32 %v7583, %v7671
  %v7673 = vpop.f32.mrf.mxu0
  %v7674 = vadd.f32 %v7585, %v7673
  %7675 = vmatmul.bf16.gmra.mxu0 %v6569
  %v7676 = vpop.f32.mrf.mxu0
  %v7677 = vadd.f32 %v7588, %v7676
  %v7678 = vpop.f32.mrf.mxu0
  %v7679 = vadd.f32 %v7590, %v7678
  %7680 = vmatmul.bf16.gmra.mxu0 %v6570
  %v7681 = vpop.f32.mrf.mxu0
  %v7682 = vadd.f32 %v7593, %v7681
  %v7683 = vpop.f32.mrf.mxu0
  %v7684 = vadd.f32 %v7595, %v7683
  %7685 = vmatmul.bf16.gmra.mxu0 %v6571
  %v7686 = vpop.f32.mrf.mxu0
  %v7687 = vadd.f32 %v7598, %v7686
  %v7688 = vpop.f32.mrf.mxu0
  %v7689 = vadd.f32 %v7600, %v7688
  %7690 = vmatmul.bf16.gmra.mxu0 %v6572
  %v7691 = vpop.f32.mrf.mxu0
  %v7692 = vadd.f32 %v7603, %v7691
  %v7693 = vpop.f32.mrf.mxu0
  %v7694 = vadd.f32 %v7605, %v7693
  %7695 = vmatmul.bf16.gmra.mxu0 %v6573
  %v7696 = vpop.f32.mrf.mxu0
  %v7697 = vadd.f32 %v7608, %v7696
  %v7698 = vpop.f32.mrf.mxu0
  %v7699 = vadd.f32 %v7610, %v7698
  %7700 = vmatmul.bf16.gmra.mxu0 %v6574
  %v7701 = vpop.f32.mrf.mxu0
  %v7702 = vadd.f32 %v7613, %v7701
  %v7703 = vpop.f32.mrf.mxu0
  %v7704 = vadd.f32 %v7615, %v7703
  %7705 = vmatmul.bf16.gmra.mxu0 %v6575
  %v7706 = vpop.f32.mrf.mxu0
  %v7707 = vadd.f32 %v7618, %v7706
  %v7708 = vpop.f32.mrf.mxu0
  %v7709 = vadd.f32 %v7620, %v7708
  %7710 = vmatmul.bf16.gmra.mxu0 %v6576
  %v7711 = vpop.f32.mrf.mxu0
  %v7712 = vadd.f32 %v7623, %v7711
  %v7713 = vpop.f32.mrf.mxu0
  %v7714 = vadd.f32 %v7625, %v7713
  %7715 = vmatmul.bf16.gmra.mxu0 %v6577
  %v7716 = vpop.f32.mrf.mxu0
  %v7717 = vadd.f32 %v7628, %v7716
  %v7718 = vpop.f32.mrf.mxu0
  %v7719 = vadd.f32 %v7630, %v7718
  %7720 = vmatmul.bf16.gmra.mxu0 %v6578
  %v7721 = vpop.f32.mrf.mxu0
  %v7722 = vadd.f32 %v7633, %v7721
  %v7723 = vpop.f32.mrf.mxu0
  %v7724 = vadd.f32 %v7635, %v7723
  %7725 = vmatmul.bf16.gmra.mxu0 %v6579
  %v7726 = vpop.f32.mrf.mxu0
  %v7727 = vadd.f32 %v7638, %v7726
  %v7728 = vpop.f32.mrf.mxu0
  %v7729 = vadd.f32 %v7640, %v7728
  %7730 = vmatmul.bf16.gmra.mxu0 %v6580
  %v7731 = vpop.f32.mrf.mxu0
  %v7732 = vadd.f32 %v7643, %v7731
  %v7733 = vpop.f32.mrf.mxu0
  %v7734 = vadd.f32 %v7645, %v7733
  %7735 = vmatmul.bf16.gmra.mxu0 %v6581
  %v7736 = vpop.f32.mrf.mxu0
  %v7737 = vadd.f32 %v7648, %v7736
  %v7738 = vpop.f32.mrf.mxu0
  %v7739 = vadd.f32 %v7650, %v7738
  %7740 = vmatmul.bf16.gmra.mxu0 %v6582
  %v7741 = vpop.f32.mrf.mxu0
  %v7742 = vadd.f32 %v7653, %v7741
  %v7743 = vpop.f32.mrf.mxu0
  %v7744 = vadd.f32 %v7655, %v7743
  %7745 = vdwg.mxu0
  %7746 = vmatpush.bf16.msra.mxu0 %v7366
  %7747 = vmatpush.bf16.msra.mxu0 %v7365
  %7748 = vmatpush.bf16.msra.mxu0 %v7364
  %7749 = vmatpush.bf16.msra.mxu0 %v7363
  %7750 = vmatpush.bf16.msra.mxu0 %v7362
  %7751 = vmatpush.bf16.msra.mxu0 %v7361
  %7752 = vmatpush.bf16.msra.mxu0 %v7360
  %7753 = vmatpush.bf16.msra.mxu0 %v7359
  %7754 = vmatmul.bf16.gmra.mxu0 %v6631
  %v7755 = vpop.f32.mrf.mxu0
  %v7756 = vadd.f32 %v7667, %v7755
  %v7757 = vpop.f32.mrf.mxu0
  %v7758 = vadd.f32 %v7669, %v7757
  %7759 = vmatmul.bf16.gmra.mxu0 %v6632
  %v7760 = vpop.f32.mrf.mxu0
  %v7761 = vadd.f32 %v7672, %v7760
  %v7762 = vpop.f32.mrf.mxu0
  %v7763 = vadd.f32 %v7674, %v7762
  %7764 = vmatmul.bf16.gmra.mxu0 %v6633
  %v7765 = vpop.f32.mrf.mxu0
  %v7766 = vadd.f32 %v7677, %v7765
  %v7767 = vpop.f32.mrf.mxu0
  %v7768 = vadd.f32 %v7679, %v7767
  %7769 = vmatmul.bf16.gmra.mxu0 %v6634
  %v7770 = vpop.f32.mrf.mxu0
  %v7771 = vadd.f32 %v7682, %v7770
  %v7772 = vpop.f32.mrf.mxu0
  %v7773 = vadd.f32 %v7684, %v7772
  %7774 = vmatmul.bf16.gmra.mxu0 %v6635
  %v7775 = vpop.f32.mrf.mxu0
  %v7776 = vadd.f32 %v7687, %v7775
  %v7777 = vpop.f32.mrf.mxu0
  %v7778 = vadd.f32 %v7689, %v7777
  %7779 = vmatmul.bf16.gmra.mxu0 %v6636
  %v7780 = vpop.f32.mrf.mxu0
  %v7781 = vadd.f32 %v7692, %v7780
  %v7782 = vpop.f32.mrf.mxu0
  %v7783 = vadd.f32 %v7694, %v7782
  %7784 = vmatmul.bf16.gmra.mxu0 %v6637
  %v7785 = vpop.f32.mrf.mxu0
  %v7786 = vadd.f32 %v7697, %v7785
  %v7787 = vpop.f32.mrf.mxu0
  %v7788 = vadd.f32 %v7699, %v7787
  %7789 = vmatmul.bf16.gmra.mxu0 %v6638
  %v7790 = vpop.f32.mrf.mxu0
  %v7791 = vadd.f32 %v7702, %v7790
  %v7792 = vpop.f32.mrf.mxu0
  %v7793 = vadd.f32 %v7704, %v7792
  %7794 = vmatmul.bf16.gmra.mxu0 %v6639
  %v7795 = vpop.f32.mrf.mxu0
  %v7796 = vadd.f32 %v7707, %v7795
  %v7797 = vpop.f32.mrf.mxu0
  %v7798 = vadd.f32 %v7709, %v7797
  %7799 = vmatmul.bf16.gmra.mxu0 %v6640
  %v7800 = vpop.f32.mrf.mxu0
  %v7801 = vadd.f32 %v7712, %v7800
  %v7802 = vpop.f32.mrf.mxu0
  %v7803 = vadd.f32 %v7714, %v7802
  %7804 = vmatmul.bf16.gmra.mxu0 %v6641
  %v7805 = vpop.f32.mrf.mxu0
  %v7806 = vadd.f32 %v7717, %v7805
  %v7807 = vpop.f32.mrf.mxu0
  %v7808 = vadd.f32 %v7719, %v7807
  %7809 = vmatmul.bf16.gmra.mxu0 %v6642
  %v7810 = vpop.f32.mrf.mxu0
  %v7811 = vadd.f32 %v7722, %v7810
  %v7812 = vpop.f32.mrf.mxu0
  %v7813 = vadd.f32 %v7724, %v7812
  %7814 = vmatmul.bf16.gmra.mxu0 %v6643
  %v7815 = vpop.f32.mrf.mxu0
  %v7816 = vadd.f32 %v7727, %v7815
  %v7817 = vpop.f32.mrf.mxu0
  %v7818 = vadd.f32 %v7729, %v7817
  %7819 = vmatmul.bf16.gmra.mxu0 %v6644
  %v7820 = vpop.f32.mrf.mxu0
  %v7821 = vadd.f32 %v7732, %v7820
  %v7822 = vpop.f32.mrf.mxu0
  %v7823 = vadd.f32 %v7734, %v7822
  %7824 = vmatmul.bf16.gmra.mxu0 %v6645
  %v7825 = vpop.f32.mrf.mxu0
  %v7826 = vadd.f32 %v7737, %v7825
  %v7827 = vpop.f32.mrf.mxu0
  %v7828 = vadd.f32 %v7739, %v7827
  %7829 = vmatmul.bf16.gmra.mxu0 %v6646
  %v7830 = vpop.f32.mrf.mxu0
  %v7831 = vadd.f32 %v7742, %v7830
  %v7832 = vpop.f32.mrf.mxu0
  %v7833 = vadd.f32 %v7744, %v7832
  %7834 = vdwg.mxu0
  %7835 = vmatpush.bf16.msra.mxu0 %v7374
  %7836 = vmatpush.bf16.msra.mxu0 %v7373
  %7837 = vmatpush.bf16.msra.mxu0 %v7372
  %7838 = vmatpush.bf16.msra.mxu0 %v7371
  %7839 = vmatpush.bf16.msra.mxu0 %v7370
  %7840 = vmatpush.bf16.msra.mxu0 %v7369
  %7841 = vmatpush.bf16.msra.mxu0 %v7368
  %7842 = vmatpush.bf16.msra.mxu0 %v7367
  %7843 = vmatmul.bf16.gmra.mxu0 %v6727
  %v7844 = vpop.f32.mrf.mxu0
  %v7845 = vadd.f32 %v7756, %v7844
  %v7846 = vpop.f32.mrf.mxu0
  %v7847 = vadd.f32 %v7758, %v7846
  %7848 = vmatmul.bf16.gmra.mxu0 %v6728
  %v7849 = vpop.f32.mrf.mxu0
  %v7850 = vadd.f32 %v7761, %v7849
  %v7851 = vpop.f32.mrf.mxu0
  %v7852 = vadd.f32 %v7763, %v7851
  %7853 = vmatmul.bf16.gmra.mxu0 %v6729
  %v7854 = vpop.f32.mrf.mxu0
  %v7855 = vadd.f32 %v7766, %v7854
  %v7856 = vpop.f32.mrf.mxu0
  %v7857 = vadd.f32 %v7768, %v7856
  %7858 = vmatmul.bf16.gmra.mxu0 %v6730
  %v7859 = vpop.f32.mrf.mxu0
  %v7860 = vadd.f32 %v7771, %v7859
  %v7861 = vpop.f32.mrf.mxu0
  %v7862 = vadd.f32 %v7773, %v7861
  %7863 = vmatmul.bf16.gmra.mxu0 %v6731
  %v7864 = vpop.f32.mrf.mxu0
  %v7865 = vadd.f32 %v7776, %v7864
  %v7866 = vpop.f32.mrf.mxu0
  %v7867 = vadd.f32 %v7778, %v7866
  %7868 = vmatmul.bf16.gmra.mxu0 %v6732
  %v7869 = vpop.f32.mrf.mxu0
  %v7870 = vadd.f32 %v7781, %v7869
  %v7871 = vpop.f32.mrf.mxu0
  %v7872 = vadd.f32 %v7783, %v7871
  %7873 = vmatmul.bf16.gmra.mxu0 %v6733
  %v7874 = vpop.f32.mrf.mxu0
  %v7875 = vadd.f32 %v7786, %v7874
  %v7876 = vpop.f32.mrf.mxu0
  %v7877 = vadd.f32 %v7788, %v7876
  %7878 = vmatmul.bf16.gmra.mxu0 %v6734
  %v7879 = vpop.f32.mrf.mxu0
  %v7880 = vadd.f32 %v7791, %v7879
  %v7881 = vpop.f32.mrf.mxu0
  %v7882 = vadd.f32 %v7793, %v7881
  %7883 = vmatmul.bf16.gmra.mxu0 %v6735
  %v7884 = vpop.f32.mrf.mxu0
  %v7885 = vadd.f32 %v7796, %v7884
  %v7886 = vpop.f32.mrf.mxu0
  %v7887 = vadd.f32 %v7798, %v7886
  %7888 = vmatmul.bf16.gmra.mxu0 %v6736
  %v7889 = vpop.f32.mrf.mxu0
  %v7890 = vadd.f32 %v7801, %v7889
  %v7891 = vpop.f32.mrf.mxu0
  %v7892 = vadd.f32 %v7803, %v7891
  %7893 = vmatmul.bf16.gmra.mxu0 %v6737
  %v7894 = vpop.f32.mrf.mxu0
  %v7895 = vadd.f32 %v7806, %v7894
  %v7896 = vpop.f32.mrf.mxu0
  %v7897 = vadd.f32 %v7808, %v7896
  %7898 = vmatmul.bf16.gmra.mxu0 %v6738
  %v7899 = vpop.f32.mrf.mxu0
  %v7900 = vadd.f32 %v7811, %v7899
  %v7901 = vpop.f32.mrf.mxu0
  %v7902 = vadd.f32 %v7813, %v7901
  %7903 = vmatmul.bf16.gmra.mxu0 %v6739
  %v7904 = vpop.f32.mrf.mxu0
  %v7905 = vadd.f32 %v7816, %v7904
  %v7906 = vpop.f32.mrf.mxu0
  %v7907 = vadd.f32 %v7818, %v7906
  %7908 = vmatmul.bf16.gmra.mxu0 %v6740
  %v7909 = vpop.f32.mrf.mxu0
  %v7910 = vadd.f32 %v7821, %v7909
  %v7911 = vpop.f32.mrf.mxu0
  %v7912 = vadd.f32 %v7823, %v7911
  %7913 = vmatmul.bf16.gmra.mxu0 %v6741
  %v7914 = vpop.f32.mrf.mxu0
  %v7915 = vadd.f32 %v7826, %v7914
  %v7916 = vpop.f32.mrf.mxu0
  %v7917 = vadd.f32 %v7828, %v7916
  %7918 = vmatmul.bf16.gmra.mxu0 %v6742
  %v7919 = vpop.f32.mrf.mxu0
  %v7920 = vadd.f32 %v7831, %v7919
  %v7921 = vpop.f32.mrf.mxu0
  %v7922 = vadd.f32 %v7833, %v7921
  %7923 = vdwg.mxu0
  %7924 = vmatpush.bf16.msra.mxu0 %v7382
  %7925 = vmatpush.bf16.msra.mxu0 %v7381
  %7926 = vmatpush.bf16.msra.mxu0 %v7380
  %7927 = vmatpush.bf16.msra.mxu0 %v7379
  %7928 = vmatpush.bf16.msra.mxu0 %v7378
  %7929 = vmatpush.bf16.msra.mxu0 %v7377
  %7930 = vmatpush.bf16.msra.mxu0 %v7376
  %7931 = vmatpush.bf16.msra.mxu0 %v7375
  %7932 = vmatmul.bf16.gmra.mxu0 %v6791
  %v7933 = vpop.f32.mrf.mxu0
  %v7934 = vadd.f32 %v7845, %v7933
  %v7935 = vpop.f32.mrf.mxu0
  %v7936 = vadd.f32 %v7847, %v7935
  %7937 = vmatmul.bf16.gmra.mxu0 %v6792
  %v7938 = vpop.f32.mrf.mxu0
  %v7939 = vadd.f32 %v7850, %v7938
  %v7940 = vpop.f32.mrf.mxu0
  %v7941 = vadd.f32 %v7852, %v7940
  %7942 = vmatmul.bf16.gmra.mxu0 %v6793
  %v7943 = vpop.f32.mrf.mxu0
  %v7944 = vadd.f32 %v7855, %v7943
  %v7945 = vpop.f32.mrf.mxu0
  %v7946 = vadd.f32 %v7857, %v7945
  %7947 = vmatmul.bf16.gmra.mxu0 %v6794
  %v7948 = vpop.f32.mrf.mxu0
  %v7949 = vadd.f32 %v7860, %v7948
  %v7950 = vpop.f32.mrf.mxu0
  %v7951 = vadd.f32 %v7862, %v7950
  %7952 = vmatmul.bf16.gmra.mxu0 %v6795
  %v7953 = vpop.f32.mrf.mxu0
  %v7954 = vadd.f32 %v7865, %v7953
  %v7955 = vpop.f32.mrf.mxu0
  %v7956 = vadd.f32 %v7867, %v7955
  %7957 = vmatmul.bf16.gmra.mxu0 %v6796
  %v7958 = vpop.f32.mrf.mxu0
  %v7959 = vadd.f32 %v7870, %v7958
  %v7960 = vpop.f32.mrf.mxu0
  %v7961 = vadd.f32 %v7872, %v7960
  %7962 = vmatmul.bf16.gmra.mxu0 %v6797
  %v7963 = vpop.f32.mrf.mxu0
  %v7964 = vadd.f32 %v7875, %v7963
  %v7965 = vpop.f32.mrf.mxu0
  %v7966 = vadd.f32 %v7877, %v7965
  %7967 = vmatmul.bf16.gmra.mxu0 %v6798
  %v7968 = vpop.f32.mrf.mxu0
  %v7969 = vadd.f32 %v7880, %v7968
  %v7970 = vpop.f32.mrf.mxu0
  %v7971 = vadd.f32 %v7882, %v7970
  %7972 = vmatmul.bf16.gmra.mxu0 %v6799
  %v7973 = vpop.f32.mrf.mxu0
  %v7974 = vadd.f32 %v7885, %v7973
  %v7975 = vpop.f32.mrf.mxu0
  %v7976 = vadd.f32 %v7887, %v7975
  %7977 = vmatmul.bf16.gmra.mxu0 %v6800
  %v7978 = vpop.f32.mrf.mxu0
  %v7979 = vadd.f32 %v7890, %v7978
  %v7980 = vpop.f32.mrf.mxu0
  %v7981 = vadd.f32 %v7892, %v7980
  %7982 = vmatmul.bf16.gmra.mxu0 %v6801
  %v7983 = vpop.f32.mrf.mxu0
  %v7984 = vadd.f32 %v7895, %v7983
  %v7985 = vpop.f32.mrf.mxu0
  %v7986 = vadd.f32 %v7897, %v7985
  %7987 = vmatmul.bf16.gmra.mxu0 %v6802
  %v7988 = vpop.f32.mrf.mxu0
  %v7989 = vadd.f32 %v7900, %v7988
  %v7990 = vpop.f32.mrf.mxu0
  %v7991 = vadd.f32 %v7902, %v7990
  %7992 = vmatmul.bf16.gmra.mxu0 %v6803
  %v7993 = vpop.f32.mrf.mxu0
  %v7994 = vadd.f32 %v7905, %v7993
  %v7995 = vpop.f32.mrf.mxu0
  %v7996 = vadd.f32 %v7907, %v7995
  %7997 = vmatmul.bf16.gmra.mxu0 %v6804
  %v7998 = vpop.f32.mrf.mxu0
  %v7999 = vadd.f32 %v7910, %v7998
  %v8000 = vpop.f32.mrf.mxu0
  %v8001 = vadd.f32 %v7912, %v8000
  %8002 = vmatmul.bf16.gmra.mxu0 %v6805
  %v8003 = vpop.f32.mrf.mxu0
  %v8004 = vadd.f32 %v7915, %v8003
  %v8005 = vpop.f32.mrf.mxu0
  %v8006 = vadd.f32 %v7917, %v8005
  %8007 = vmatmul.bf16.gmra.mxu0 %v6806
  %v8008 = vpop.f32.mrf.mxu0
  %v8009 = vadd.f32 %v7920, %v8008
  %v8010 = vpop.f32.mrf.mxu0
  %v8011 = vadd.f32 %v7922, %v8010
  %8012 = vdwg.mxu0
  %8013 = vmatpush.bf16.msra.mxu0 %v7390
  %8014 = vmatpush.bf16.msra.mxu0 %v7389
  %8015 = vmatpush.bf16.msra.mxu0 %v7388
  %8016 = vmatpush.bf16.msra.mxu0 %v7387
  %8017 = vmatpush.bf16.msra.mxu0 %v7386
  %8018 = vmatpush.bf16.msra.mxu0 %v7385
  %8019 = vmatpush.bf16.msra.mxu0 %v7384
  %8020 = vmatpush.bf16.msra.mxu0 %v7383
  %8021 = vmatmul.bf16.gmra.mxu0 %v6855
  %v8022 = vpop.f32.mrf.mxu0
  %v8023 = vadd.f32 %v7934, %v8022
  %v8024 = vpop.f32.mrf.mxu0
  %v8025 = vadd.f32 %v7936, %v8024
  %8026 = vmatmul.bf16.gmra.mxu0 %v6856
  %v8027 = vpop.f32.mrf.mxu0
  %v8028 = vadd.f32 %v7939, %v8027
  %v8029 = vpop.f32.mrf.mxu0
  %v8030 = vadd.f32 %v7941, %v8029
  %8031 = vmatmul.bf16.gmra.mxu0 %v6857
  %v8032 = vpop.f32.mrf.mxu0
  %v8033 = vadd.f32 %v7944, %v8032
  %v8034 = vpop.f32.mrf.mxu0
  %v8035 = vadd.f32 %v7946, %v8034
  %8036 = vmatmul.bf16.gmra.mxu0 %v6858
  %v8037 = vpop.f32.mrf.mxu0
  %v8038 = vadd.f32 %v7949, %v8037
  %v8039 = vpop.f32.mrf.mxu0
  %v8040 = vadd.f32 %v7951, %v8039
  %8041 = vmatmul.bf16.gmra.mxu0 %v6859
  %v8042 = vpop.f32.mrf.mxu0
  %v8043 = vadd.f32 %v7954, %v8042
  %v8044 = vpop.f32.mrf.mxu0
  %v8045 = vadd.f32 %v7956, %v8044
  %8046 = vmatmul.bf16.gmra.mxu0 %v6860
  %v8047 = vpop.f32.mrf.mxu0
  %v8048 = vadd.f32 %v7959, %v8047
  %v8049 = vpop.f32.mrf.mxu0
  %v8050 = vadd.f32 %v7961, %v8049
  %8051 = vmatmul.bf16.gmra.mxu0 %v6861
  %v8052 = vpop.f32.mrf.mxu0
  %v8053 = vadd.f32 %v7964, %v8052
  %v8054 = vpop.f32.mrf.mxu0
  %v8055 = vadd.f32 %v7966, %v8054
  %8056 = vmatmul.bf16.gmra.mxu0 %v6862
  %v8057 = vpop.f32.mrf.mxu0
  %v8058 = vadd.f32 %v7969, %v8057
  %v8059 = vpop.f32.mrf.mxu0
  %v8060 = vadd.f32 %v7971, %v8059
  %8061 = vmatmul.bf16.gmra.mxu0 %v6863
  %v8062 = vpop.f32.mrf.mxu0
  %v8063 = vadd.f32 %v7974, %v8062
  %v8064 = vpop.f32.mrf.mxu0
  %v8065 = vadd.f32 %v7976, %v8064
  %8066 = vmatmul.bf16.gmra.mxu0 %v6864
  %v8067 = vpop.f32.mrf.mxu0
  %v8068 = vadd.f32 %v7979, %v8067
  %v8069 = vpop.f32.mrf.mxu0
  %v8070 = vadd.f32 %v7981, %v8069
  %8071 = vmatmul.bf16.gmra.mxu0 %v6865
  %v8072 = vpop.f32.mrf.mxu0
  %v8073 = vadd.f32 %v7984, %v8072
  %v8074 = vpop.f32.mrf.mxu0
  %v8075 = vadd.f32 %v7986, %v8074
  %8076 = vmatmul.bf16.gmra.mxu0 %v6866
  %v8077 = vpop.f32.mrf.mxu0
  %v8078 = vadd.f32 %v7989, %v8077
  %v8079 = vpop.f32.mrf.mxu0
  %v8080 = vadd.f32 %v7991, %v8079
  %8081 = vmatmul.bf16.gmra.mxu0 %v6867
  %v8082 = vpop.f32.mrf.mxu0
  %v8083 = vadd.f32 %v7994, %v8082
  %v8084 = vpop.f32.mrf.mxu0
  %v8085 = vadd.f32 %v7996, %v8084
  %8086 = vmatmul.bf16.gmra.mxu0 %v6868
  %v8087 = vpop.f32.mrf.mxu0
  %v8088 = vadd.f32 %v7999, %v8087
  %v8089 = vpop.f32.mrf.mxu0
  %v8090 = vadd.f32 %v8001, %v8089
  %8091 = vmatmul.bf16.gmra.mxu0 %v6869
  %v8092 = vpop.f32.mrf.mxu0
  %v8093 = vadd.f32 %v8004, %v8092
  %v8094 = vpop.f32.mrf.mxu0
  %v8095 = vadd.f32 %v8006, %v8094
  %8096 = vmatmul.bf16.gmra.mxu0 %v6870
  %v8097 = vpop.f32.mrf.mxu0
  %v8098 = vadd.f32 %v8009, %v8097
  %v8099 = vpop.f32.mrf.mxu0
  %v8100 = vadd.f32 %v8011, %v8099
  %8101 = vdwg.mxu0
  %8102 = vmatpush.bf16.msra.mxu0 %v7398
  %8103 = vmatpush.bf16.msra.mxu0 %v7397
  %8104 = vmatpush.bf16.msra.mxu0 %v7396
  %8105 = vmatpush.bf16.msra.mxu0 %v7395
  %8106 = vmatpush.bf16.msra.mxu0 %v7394
  %8107 = vmatpush.bf16.msra.mxu0 %v7393
  %8108 = vmatpush.bf16.msra.mxu0 %v7392
  %8109 = vmatpush.bf16.msra.mxu0 %v7391
  %8110 = vmatmul.bf16.gmra.mxu0 %v6951
  %v8111 = vpop.f32.mrf.mxu0
  %v8112 = vadd.f32 %v8023, %v8111
  %v8113 = vpop.f32.mrf.mxu0
  %v8114 = vadd.f32 %v8025, %v8113
  %8115 = vmatmul.bf16.gmra.mxu0 %v6952
  %v8116 = vpop.f32.mrf.mxu0
  %v8117 = vadd.f32 %v8028, %v8116
  %v8118 = vpop.f32.mrf.mxu0
  %v8119 = vadd.f32 %v8030, %v8118
  %8120 = vmatmul.bf16.gmra.mxu0 %v6953
  %v8121 = vpop.f32.mrf.mxu0
  %v8122 = vadd.f32 %v8033, %v8121
  %v8123 = vpop.f32.mrf.mxu0
  %v8124 = vadd.f32 %v8035, %v8123
  %8125 = vmatmul.bf16.gmra.mxu0 %v6954
  %v8126 = vpop.f32.mrf.mxu0
  %v8127 = vadd.f32 %v8038, %v8126
  %v8128 = vpop.f32.mrf.mxu0
  %v8129 = vadd.f32 %v8040, %v8128
  %8130 = vmatmul.bf16.gmra.mxu0 %v6955
  %v8131 = vpop.f32.mrf.mxu0
  %v8132 = vadd.f32 %v8043, %v8131
  %v8133 = vpop.f32.mrf.mxu0
  %v8134 = vadd.f32 %v8045, %v8133
  %8135 = vmatmul.bf16.gmra.mxu0 %v6956
  %v8136 = vpop.f32.mrf.mxu0
  %v8137 = vadd.f32 %v8048, %v8136
  %v8138 = vpop.f32.mrf.mxu0
  %v8139 = vadd.f32 %v8050, %v8138
  %8140 = vmatmul.bf16.gmra.mxu0 %v6957
  %v8141 = vpop.f32.mrf.mxu0
  %v8142 = vadd.f32 %v8053, %v8141
  %v8143 = vpop.f32.mrf.mxu0
  %v8144 = vadd.f32 %v8055, %v8143
  %8145 = vmatmul.bf16.gmra.mxu0 %v6958
  %v8146 = vpop.f32.mrf.mxu0
  %v8147 = vadd.f32 %v8058, %v8146
  %v8148 = vpop.f32.mrf.mxu0
  %v8149 = vadd.f32 %v8060, %v8148
  %8150 = vmatmul.bf16.gmra.mxu0 %v6959
  %v8151 = vpop.f32.mrf.mxu0
  %v8152 = vadd.f32 %v8063, %v8151
  %v8153 = vpop.f32.mrf.mxu0
  %v8154 = vadd.f32 %v8065, %v8153
  %8155 = vmatmul.bf16.gmra.mxu0 %v6960
  %v8156 = vpop.f32.mrf.mxu0
  %v8157 = vadd.f32 %v8068, %v8156
  %v8158 = vpop.f32.mrf.mxu0
  %v8159 = vadd.f32 %v8070, %v8158
  %8160 = vmatmul.bf16.gmra.mxu0 %v6961
  %v8161 = vpop.f32.mrf.mxu0
  %v8162 = vadd.f32 %v8073, %v8161
  %v8163 = vpop.f32.mrf.mxu0
  %v8164 = vadd.f32 %v8075, %v8163
  %8165 = vmatmul.bf16.gmra.mxu0 %v6962
  %v8166 = vpop.f32.mrf.mxu0
  %v8167 = vadd.f32 %v8078, %v8166
  %v8168 = vpop.f32.mrf.mxu0
  %v8169 = vadd.f32 %v8080, %v8168
  %8170 = vmatmul.bf16.gmra.mxu0 %v6963
  %v8171 = vpop.f32.mrf.mxu0
  %v8172 = vadd.f32 %v8083, %v8171
  %v8173 = vpop.f32.mrf.mxu0
  %v8174 = vadd.f32 %v8085, %v8173
  %8175 = vmatmul.bf16.gmra.mxu0 %v6964
  %v8176 = vpop.f32.mrf.mxu0
  %v8177 = vadd.f32 %v8088, %v8176
  %v8178 = vpop.f32.mrf.mxu0
  %v8179 = vadd.f32 %v8090, %v8178
  %8180 = vmatmul.bf16.gmra.mxu0 %v6965
  %v8181 = vpop.f32.mrf.mxu0
  %v8182 = vadd.f32 %v8093, %v8181
  %v8183 = vpop.f32.mrf.mxu0
  %v8184 = vadd.f32 %v8095, %v8183
  %8185 = vmatmul.bf16.gmra.mxu0 %v6966
  %v8186 = vpop.f32.mrf.mxu0
  %v8187 = vadd.f32 %v8098, %v8186
  %v8188 = vpop.f32.mrf.mxu0
  %v8189 = vadd.f32 %v8100, %v8188
  %8190 = vdwg.mxu0
  %8191 = vmatpush.bf16.msra.mxu0 %v7406
  %8192 = vmatpush.bf16.msra.mxu0 %v7405
  %8193 = vmatpush.bf16.msra.mxu0 %v7404
  %8194 = vmatpush.bf16.msra.mxu0 %v7403
  %8195 = vmatpush.bf16.msra.mxu0 %v7402
  %8196 = vmatpush.bf16.msra.mxu0 %v7401
  %8197 = vmatpush.bf16.msra.mxu0 %v7400
  %8198 = vmatpush.bf16.msra.mxu0 %v7399
  %8199 = vmatmul.bf16.gmra.mxu0 %v7015
  %v8200 = vpop.f32.mrf.mxu0
  %v8201 = vadd.f32 %v8112, %v8200
  %v8202 = vpop.f32.mrf.mxu0
  %v8203 = vadd.f32 %v8114, %v8202
  %8204 = vmatmul.bf16.gmra.mxu0 %v7016
  %v8205 = vpop.f32.mrf.mxu0
  %v8206 = vadd.f32 %v8117, %v8205
  %v8207 = vpop.f32.mrf.mxu0
  %v8208 = vadd.f32 %v8119, %v8207
  %8209 = vmatmul.bf16.gmra.mxu0 %v7017
  %v8210 = vpop.f32.mrf.mxu0
  %v8211 = vadd.f32 %v8122, %v8210
  %v8212 = vpop.f32.mrf.mxu0
  %v8213 = vadd.f32 %v8124, %v8212
  %8214 = vmatmul.bf16.gmra.mxu0 %v7018
  %v8215 = vpop.f32.mrf.mxu0
  %v8216 = vadd.f32 %v8127, %v8215
  %v8217 = vpop.f32.mrf.mxu0
  %v8218 = vadd.f32 %v8129, %v8217
  %8219 = vmatmul.bf16.gmra.mxu0 %v7019
  %v8220 = vpop.f32.mrf.mxu0
  %v8221 = vadd.f32 %v8132, %v8220
  %v8222 = vpop.f32.mrf.mxu0
  %v8223 = vadd.f32 %v8134, %v8222
  %8224 = vmatmul.bf16.gmra.mxu0 %v7020
  %v8225 = vpop.f32.mrf.mxu0
  %v8226 = vadd.f32 %v8137, %v8225
  %v8227 = vpop.f32.mrf.mxu0
  %v8228 = vadd.f32 %v8139, %v8227
  %8229 = vmatmul.bf16.gmra.mxu0 %v7021
  %v8230 = vpop.f32.mrf.mxu0
  %v8231 = vadd.f32 %v8142, %v8230
  %v8232 = vpop.f32.mrf.mxu0
  %v8233 = vadd.f32 %v8144, %v8232
  %8234 = vmatmul.bf16.gmra.mxu0 %v7022
  %v8235 = vpop.f32.mrf.mxu0
  %v8236 = vadd.f32 %v8147, %v8235
  %v8237 = vpop.f32.mrf.mxu0
  %v8238 = vadd.f32 %v8149, %v8237
  %8239 = vmatmul.bf16.gmra.mxu0 %v7023
  %v8240 = vpop.f32.mrf.mxu0
  %v8241 = vadd.f32 %v8152, %v8240
  %v8242 = vpop.f32.mrf.mxu0
  %v8243 = vadd.f32 %v8154, %v8242
  %8244 = vmatmul.bf16.gmra.mxu0 %v7024
  %v8245 = vpop.f32.mrf.mxu0
  %v8246 = vadd.f32 %v8157, %v8245
  %v8247 = vpop.f32.mrf.mxu0
  %v8248 = vadd.f32 %v8159, %v8247
  %8249 = vmatmul.bf16.gmra.mxu0 %v7025
  %v8250 = vpop.f32.mrf.mxu0
  %v8251 = vadd.f32 %v8162, %v8250
  %v8252 = vpop.f32.mrf.mxu0
  %v8253 = vadd.f32 %v8164, %v8252
  %8254 = vmatmul.bf16.gmra.mxu0 %v7026
  %v8255 = vpop.f32.mrf.mxu0
  %v8256 = vadd.f32 %v8167, %v8255
  %v8257 = vpop.f32.mrf.mxu0
  %v8258 = vadd.f32 %v8169, %v8257
  %8259 = vmatmul.bf16.gmra.mxu0 %v7027
  %v8260 = vpop.f32.mrf.mxu0
  %v8261 = vadd.f32 %v8172, %v8260
  %v8262 = vpop.f32.mrf.mxu0
  %v8263 = vadd.f32 %v8174, %v8262
  %8264 = vmatmul.bf16.gmra.mxu0 %v7028
  %v8265 = vpop.f32.mrf.mxu0
  %v8266 = vadd.f32 %v8177, %v8265
  %v8267 = vpop.f32.mrf.mxu0
  %v8268 = vadd.f32 %v8179, %v8267
  %8269 = vmatmul.bf16.gmra.mxu0 %v7029
  %v8270 = vpop.f32.mrf.mxu0
  %v8271 = vadd.f32 %v8182, %v8270
  %v8272 = vpop.f32.mrf.mxu0
  %v8273 = vadd.f32 %v8184, %v8272
  %8274 = vmatmul.bf16.gmra.mxu0 %v7030
  %v8275 = vpop.f32.mrf.mxu0
  %v8276 = vadd.f32 %v8187, %v8275
  %v8277 = vpop.f32.mrf.mxu0
  %v8278 = vadd.f32 %v8189, %v8277
  %8279 = vdwg.mxu0
  %v8281 = vperm.slane %v358, 0
  %v8283 = vmul.f32 %v8201, %v8281
  %v8284 = vmul.f32 %v8203, %v8281
  %v8285 = vmul.f32 %v8206, %v8281
  %v8286 = vmul.f32 %v8208, %v8281
  %v8287 = vmul.f32 %v8211, %v8281
  %v8288 = vmul.f32 %v8213, %v8281
  %v8289 = vmul.f32 %v8216, %v8281
  %v8290 = vmul.f32 %v8218, %v8281
  %v8291 = vmul.f32 %v8221, %v8281
  %v8292 = vmul.f32 %v8223, %v8281
  %v8293 = vmul.f32 %v8226, %v8281
  %v8294 = vmul.f32 %v8228, %v8281
  %v8295 = vmul.f32 %v8231, %v8281
  %v8296 = vmul.f32 %v8233, %v8281
  %v8297 = vmul.f32 %v8236, %v8281
  %v8298 = vmul.f32 %v8238, %v8281
  %v8299 = vmul.f32 %v8241, %v8281
  %v8300 = vmul.f32 %v8243, %v8281
  %v8301 = vmul.f32 %v8246, %v8281
  %v8302 = vmul.f32 %v8248, %v8281
  %v8303 = vmul.f32 %v8251, %v8281
  %v8304 = vmul.f32 %v8253, %v8281
  %v8305 = vmul.f32 %v8256, %v8281
  %v8306 = vmul.f32 %v8258, %v8281
  %v8307 = vmul.f32 %v8261, %v8281
  %v8308 = vmul.f32 %v8263, %v8281
  %v8309 = vmul.f32 %v8266, %v8281
  %v8310 = vmul.f32 %v8268, %v8281
  %v8311 = vmul.f32 %v8271, %v8281
  %v8312 = vmul.f32 %v8273, %v8281
  %v8313 = vmul.f32 %v8276, %v8281
  %v8314 = vmul.f32 %v8278, %v8281
  %v8316 = vperm.slane %v359, 0
  %v8318 = vadd.f32 %v8283, %v8316
  %v8319 = vadd.f32 %v8284, %v8316
  %v8320 = vadd.f32 %v8285, %v8316
  %v8321 = vadd.f32 %v8286, %v8316
  %v8322 = vadd.f32 %v8287, %v8316
  %v8323 = vadd.f32 %v8288, %v8316
  %v8324 = vadd.f32 %v8289, %v8316
  %v8325 = vadd.f32 %v8290, %v8316
  %v8326 = vadd.f32 %v8291, %v8316
  %v8327 = vadd.f32 %v8292, %v8316
  %v8328 = vadd.f32 %v8293, %v8316
  %v8329 = vadd.f32 %v8294, %v8316
  %v8330 = vadd.f32 %v8295, %v8316
  %v8331 = vadd.f32 %v8296, %v8316
  %v8332 = vadd.f32 %v8297, %v8316
  %v8333 = vadd.f32 %v8298, %v8316
  %v8334 = vadd.f32 %v8299, %v8316
  %v8335 = vadd.f32 %v8300, %v8316
  %v8336 = vadd.f32 %v8301, %v8316
  %v8337 = vadd.f32 %v8302, %v8316
  %v8338 = vadd.f32 %v8303, %v8316
  %v8339 = vadd.f32 %v8304, %v8316
  %v8340 = vadd.f32 %v8305, %v8316
  %v8341 = vadd.f32 %v8306, %v8316
  %v8342 = vadd.f32 %v8307, %v8316
  %v8343 = vadd.f32 %v8308, %v8316
  %v8344 = vadd.f32 %v8309, %v8316
  %v8345 = vadd.f32 %v8310, %v8316
  %v8346 = vadd.f32 %v8311, %v8316
  %v8347 = vadd.f32 %v8312, %v8316
  %v8348 = vadd.f32 %v8313, %v8316
  %v8349 = vadd.f32 %v8314, %v8316
  %v8350 = vadd.f32 %v8318, %v360
  %v8351 = vadd.f32 %v8319, %v361
  %v8352 = vadd.f32 %v8320, %v362
  %v8353 = vadd.f32 %v8321, %v363
  %v8354 = vadd.f32 %v8322, %v364
  %v8355 = vadd.f32 %v8323, %v365
  %v8356 = vadd.f32 %v8324, %v366
  %v8357 = vadd.f32 %v8325, %v367
  %v8358 = vadd.f32 %v8326, %v368
  %v8359 = vadd.f32 %v8327, %v369
  %v8360 = vadd.f32 %v8328, %v370
  %v8361 = vadd.f32 %v8329, %v371
  %v8362 = vadd.f32 %v8330, %v372
  %v8363 = vadd.f32 %v8331, %v373
  %v8364 = vadd.f32 %v8332, %v374
  %v8365 = vadd.f32 %v8333, %v375
  %v8366 = vadd.f32 %v8334, %v376
  %v8367 = vadd.f32 %v8335, %v377
  %v8368 = vadd.f32 %v8336, %v378
  %v8369 = vadd.f32 %v8337, %v379
  %v8370 = vadd.f32 %v8338, %v380
  %v8371 = vadd.f32 %v8339, %v381
  %v8372 = vadd.f32 %v8340, %v382
  %v8373 = vadd.f32 %v8341, %v383
  %v8374 = vadd.f32 %v8342, %v384
  %v8375 = vadd.f32 %v8343, %v385
  %v8376 = vadd.f32 %v8344, %v386
  %v8377 = vadd.f32 %v8345, %v387
  %v8378 = vadd.f32 %v8346, %v388
  %v8379 = vadd.f32 %v8347, %v389
  %v8380 = vadd.f32 %v8348, %v390
  %v8381 = vadd.f32 %v8349, %v391
  %v8382 = vmax.f32 %v8350, 0.0
  %v8383 = vmax.f32 %v8351, 0.0
  %v8384 = vmax.f32 %v8352, 0.0
  %v8385 = vmax.f32 %v8353, 0.0
  %v8386 = vmax.f32 %v8354, 0.0
  %v8387 = vmax.f32 %v8355, 0.0
  %v8388 = vmax.f32 %v8356, 0.0
  %v8389 = vmax.f32 %v8357, 0.0
  %v8390 = vmax.f32 %v8358, 0.0
  %v8391 = vmax.f32 %v8359, 0.0
  %v8392 = vmax.f32 %v8360, 0.0
  %v8393 = vmax.f32 %v8361, 0.0
  %v8394 = vmax.f32 %v8362, 0.0
  %v8395 = vmax.f32 %v8363, 0.0
  %v8396 = vmax.f32 %v8364, 0.0
  %v8397 = vmax.f32 %v8365, 0.0
  %v8398 = vmax.f32 %v8366, 0.0
  %v8399 = vmax.f32 %v8367, 0.0
  %v8400 = vmax.f32 %v8368, 0.0
  %v8401 = vmax.f32 %v8369, 0.0
  %v8402 = vmax.f32 %v8370, 0.0
  %v8403 = vmax.f32 %v8371, 0.0
  %v8404 = vmax.f32 %v8372, 0.0
  %v8405 = vmax.f32 %v8373, 0.0
  %v8406 = vmax.f32 %v8374, 0.0
  %v8407 = vmax.f32 %v8375, 0.0
  %v8408 = vmax.f32 %v8376, 0.0
  %v8409 = vmax.f32 %v8377, 0.0
  %v8410 = vmax.f32 %v8378, 0.0
  %v8411 = vmax.f32 %v8379, 0.0
  %v8412 = vmax.f32 %v8380, 0.0
  %v8413 = vmax.f32 %v8381, 0.0
  %8414 = vst [vmem:[%s7] sm:$0xff] %v8382
  %8415 = vst [vmem:[%s7 + $0x8] sm:$0xff] %v8383
  %8416 = vst [vmem:[%s7 + $0x10] sm:$0xff] %v8384
  %8417 = vst [vmem:[%s7 + $0x18] sm:$0xff] %v8385
  %8418 = vst [vmem:[%s7 + $0x20] sm:$0xff] %v8386
  %8419 = vst [vmem:[%s7 + $0x28] sm:$0xff] %v8387
  %8420 = vst [vmem:[%s7 + $0x30] sm:$0xff] %v8388
  %8421 = vst [vmem:[%s7 + $0x38] sm:$0xff] %v8389
  %8422 = vst [vmem:[%s7 + $0x40] sm:$0xff] %v8390
  %8423 = vst [vmem:[%s7 + $0x48] sm:$0xff] %v8391
  %8424 = vst [vmem:[%s7 + $0x50] sm:$0xff] %v8392
  %8425 = vst [vmem:[%s7 + $0x58] sm:$0xff] %v8393
  %8426 = vst [vmem:[%s7 + $0x60] sm:$0xff] %v8394
  %8427 = vst [vmem:[%s7 + $0x68] sm:$0xff] %v8395
  %8428 = vst [vmem:[%s7 + $0x70] sm:$0xff] %v8396
  %8429 = vst [vmem:[%s7 + $0x78] sm:$0xff] %v8397
  %8430 = vst [vmem:[%s7 + $0x80] sm:$0xff] %v8398
  %8431 = vst [vmem:[%s7 + $0x88] sm:$0xff] %v8399
  %8432 = vst [vmem:[%s7 + $0x90] sm:$0xff] %v8400
  %8433 = vst [vmem:[%s7 + $0x98] sm:$0xff] %v8401
  %8434 = vst [vmem:[%s7 + $0xa0] sm:$0xff] %v8402
  %8435 = vst [vmem:[%s7 + $0xa8] sm:$0xff] %v8403
  %8436 = vst [vmem:[%s7 + $0xb0] sm:$0xff] %v8404
  %8437 = vst [vmem:[%s7 + $0xb8] sm:$0xff] %v8405
  %8438 = vst [vmem:[%s7 + $0xc0] sm:$0xff] %v8406
  %8439 = vst [vmem:[%s7 + $0xc8] sm:$0xff] %v8407
  %8440 = vst [vmem:[%s7 + $0xd0] sm:$0xff] %v8408
  %8441 = vst [vmem:[%s7 + $0xd8] sm:$0xff] %v8409
  %8442 = vst [vmem:[%s7 + $0xe0] sm:$0xff] %v8410
  %8443 = vst [vmem:[%s7 + $0xe8] sm:$0xff] %v8411
  %8444 = vst [vmem:[%s7 + $0xf0] sm:$0xff] %v8412
  %8445 = vst [vmem:[%s7 + $0xf8] sm:$0xff] %v8413
  %s8446 = scalar_lea.vmem %s0, 256
  %v8447 = vld [vmem:[%s8446] sm:$0xff]
  %v8448 = vld [vmem:[%s8446 + $0x8] sm:$0xff]
  %v8449 = vld [vmem:[%s8446 + $0x10] sm:$0xff]
  %v8450 = vld [vmem:[%s8446 + $0x18] sm:$0xff]
  %v8451 = vld [vmem:[%s8446 + $0x20] sm:$0xff]
  %v8452 = vld [vmem:[%s8446 + $0x28] sm:$0xff]
  %v8453 = vld [vmem:[%s8446 + $0x30] sm:$0xff]
  %v8454 = vld [vmem:[%s8446 + $0x38] sm:$0xff]
  %v8455 = vld [vmem:[%s8446 + $0x40] sm:$0xff]
  %v8456 = vld [vmem:[%s8446 + $0x48] sm:$0xff]
  %v8457 = vld [vmem:[%s8446 + $0x50] sm:$0xff]
  %v8458 = vld [vmem:[%s8446 + $0x58] sm:$0xff]
  %v8459 = vld [vmem:[%s8446 + $0x60] sm:$0xff]
  %v8460 = vld [vmem:[%s8446 + $0x68] sm:$0xff]
  %v8461 = vld [vmem:[%s8446 + $0x70] sm:$0xff]
  %v8462 = vld [vmem:[%s8446 + $0x78] sm:$0xff]
  %v8463 = vld [vmem:[%s8446 + $0x80] sm:$0xff]
  %v8464 = vld [vmem:[%s8446 + $0x88] sm:$0xff]
  %v8465 = vld [vmem:[%s8446 + $0x90] sm:$0xff]
  %v8466 = vld [vmem:[%s8446 + $0x98] sm:$0xff]
  %v8467 = vld [vmem:[%s8446 + $0xa0] sm:$0xff]
  %v8468 = vld [vmem:[%s8446 + $0xa8] sm:$0xff]
  %v8469 = vld [vmem:[%s8446 + $0xb0] sm:$0xff]
  %v8470 = vld [vmem:[%s8446 + $0xb8] sm:$0xff]
  %v8471 = vld [vmem:[%s8446 + $0xc0] sm:$0xff]
  %v8472 = vld [vmem:[%s8446 + $0xc8] sm:$0xff]
  %v8473 = vld [vmem:[%s8446 + $0xd0] sm:$0xff]
  %v8474 = vld [vmem:[%s8446 + $0xd8] sm:$0xff]
  %v8475 = vld [vmem:[%s8446 + $0xe0] sm:$0xff]
  %v8476 = vld [vmem:[%s8446 + $0xe8] sm:$0xff]
  %v8477 = vld [vmem:[%s8446 + $0xf0] sm:$0xff]
  %v8478 = vld [vmem:[%s8446 + $0xf8] sm:$0xff]
  %v8479 = vpack.c.bf16 %v8447, %v8447
  %v8480 = vpack.c.bf16 %v8448, %v8448
  %v8481 = vpack.c.bf16 %v8449, %v8449
  %v8482 = vpack.c.bf16 %v8450, %v8450
  %v8483 = vpack.c.bf16 %v8451, %v8451
  %v8484 = vpack.c.bf16 %v8452, %v8452
  %v8485 = vpack.c.bf16 %v8453, %v8453
  %v8486 = vpack.c.bf16 %v8454, %v8454
  %v8487 = vpack.c.bf16 %v8455, %v8455
  %v8488 = vpack.c.bf16 %v8456, %v8456
  %v8489 = vpack.c.bf16 %v8457, %v8457
  %v8490 = vpack.c.bf16 %v8458, %v8458
  %v8491 = vpack.c.bf16 %v8459, %v8459
  %v8492 = vpack.c.bf16 %v8460, %v8460
  %v8493 = vpack.c.bf16 %v8461, %v8461
  %v8494 = vpack.c.bf16 %v8462, %v8462
  %v8495 = vpack.c.bf16 %v8463, %v8463
  %v8496 = vpack.c.bf16 %v8464, %v8464
  %v8497 = vpack.c.bf16 %v8465, %v8465
  %v8498 = vpack.c.bf16 %v8466, %v8466
  %v8499 = vpack.c.bf16 %v8467, %v8467
  %v8500 = vpack.c.bf16 %v8468, %v8468
  %v8501 = vpack.c.bf16 %v8469, %v8469
  %v8502 = vpack.c.bf16 %v8470, %v8470
  %v8503 = vpack.c.bf16 %v8471, %v8471
  %v8504 = vpack.c.bf16 %v8472, %v8472
  %v8505 = vpack.c.bf16 %v8473, %v8473
  %v8506 = vpack.c.bf16 %v8474, %v8474
  %v8507 = vpack.c.bf16 %v8475, %v8475
  %v8508 = vpack.c.bf16 %v8476, %v8476
  %v8509 = vpack.c.bf16 %v8477, %v8477
  %v8510 = vpack.c.bf16 %v8478, %v8478
  %8511 = vst [vmem:[%s424 + $0x4] sm:$0xf] %v8479
  %8512 = vst [vmem:[%s424 + $0x8] sm:$0xf] %v8480
  %8513 = vst [vmem:[%s424 + $0x14] sm:$0xf] %v8481
  %8514 = vst [vmem:[%s424 + $0x18] sm:$0xf] %v8482
  %8515 = vst [vmem:[%s424 + $0x24] sm:$0xf] %v8483
  %8516 = vst [vmem:[%s424 + $0x28] sm:$0xf] %v8484
  %8517 = vst [vmem:[%s424 + $0x34] sm:$0xf] %v8485
  %8518 = vst [vmem:[%s424 + $0x38] sm:$0xf] %v8486
  %8519 = vst [vmem:[%s424 + $0x44] sm:$0xf] %v8487
  %8520 = vst [vmem:[%s424 + $0x48] sm:$0xf] %v8488
  %8521 = vst [vmem:[%s424 + $0x54] sm:$0xf] %v8489
  %8522 = vst [vmem:[%s424 + $0x58] sm:$0xf] %v8490
  %8523 = vst [vmem:[%s424 + $0x64] sm:$0xf] %v8491
  %8524 = vst [vmem:[%s424 + $0x68] sm:$0xf] %v8492
  %8525 = vst [vmem:[%s424 + $0x74] sm:$0xf] %v8493
  %8526 = vst [vmem:[%s424 + $0x78] sm:$0xf] %v8494
  %8527 = vst [vmem:[%s424 + $0x84] sm:$0xf] %v8495
  %8528 = vst [vmem:[%s424 + $0x88] sm:$0xf] %v8496
  %8529 = vst [vmem:[%s424 + $0x94] sm:$0xf] %v8497
  %8530 = vst [vmem:[%s424 + $0x98] sm:$0xf] %v8498
  %8531 = vst [vmem:[%s424 + $0xa4] sm:$0xf] %v8499
  %8532 = vst [vmem:[%s424 + $0xa8] sm:$0xf] %v8500
  %8533 = vst [vmem:[%s424 + $0xb4] sm:$0xf] %v8501
  %8534 = vst [vmem:[%s424 + $0xb8] sm:$0xf] %v8502
  %8535 = vst [vmem:[%s424 + $0xc4] sm:$0xf] %v8503
  %8536 = vst [vmem:[%s424 + $0xc8] sm:$0xf] %v8504
  %8537 = vst [vmem:[%s424 + $0xd4] sm:$0xf] %v8505
  %8538 = vst [vmem:[%s424 + $0xd8] sm:$0xf] %v8506
  %8539 = vst [vmem:[%s424 + $0xe4] sm:$0xf] %v8507
  %8540 = vst [vmem:[%s424 + $0xe8] sm:$0xf] %v8508
  %8541 = vst [vmem:[%s424 + $0xf4] sm:$0xf] %v8509
  %8542 = vst [vmem:[%s424 + $0xf8] sm:$0xf] %v8510
  %v8543 = vld [vmem:[#allocation2] sm:$0x8]
  %v8544 = vld [vmem:[#allocation2 + $0x4] sm:$0xf]
  %v8545 = vld [vmem:[#allocation2 + $0x8] sm:$0xf]
  %v8546 = vld [vmem:[#allocation2 + $0x10] sm:$0x8]
  %v8547 = vld [vmem:[#allocation2 + $0x14] sm:$0xf]
  %v8548 = vld [vmem:[#allocation2 + $0x18] sm:$0xf]
  %v8549 = vld [vmem:[#allocation2 + $0x20] sm:$0x8]
  %v8550 = vld [vmem:[#allocation2 + $0x24] sm:$0xf]
  %v8551 = vld [vmem:[#allocation2 + $0x28] sm:$0xf]
  %v8552 = vld [vmem:[#allocation2 + $0x30] sm:$0x8]
  %v8553 = vld [vmem:[#allocation2 + $0x34] sm:$0xf]
  %v8554 = vld [vmem:[#allocation2 + $0x38] sm:$0xf]
  %v8555 = vld [vmem:[#allocation2 + $0x40] sm:$0x8]
  %v8556 = vld [vmem:[#allocation2 + $0x44] sm:$0xf]
  %v8557 = vld [vmem:[#allocation2 + $0x48] sm:$0xf]
  %v8558 = vld [vmem:[#allocation2 + $0x50] sm:$0x8]
  %v8559 = vld [vmem:[#allocation2 + $0x54] sm:$0xf]
  %v8560 = vld [vmem:[#allocation2 + $0x58] sm:$0xf]
  %v8561 = vld [vmem:[#allocation2 + $0x60] sm:$0x8]
  %v8562 = vld [vmem:[#allocation2 + $0x64] sm:$0xf]
  %v8563 = vld [vmem:[#allocation2 + $0x68] sm:$0xf]
  %v8564 = vld [vmem:[#allocation2 + $0x70] sm:$0x8]
  %v8565 = vld [vmem:[#allocation2 + $0x74] sm:$0xf]
  %v8566 = vld [vmem:[#allocation2 + $0x78] sm:$0xf]
  %v8567 = vld [vmem:[#allocation2 + $0x80] sm:$0x8]
  %v8568 = vld [vmem:[#allocation2 + $0x84] sm:$0xf]
  %v8569 = vld [vmem:[#allocation2 + $0x88] sm:$0xf]
  %v8570 = vld [vmem:[#allocation2 + $0x90] sm:$0x8]
  %v8571 = vld [vmem:[#allocation2 + $0x94] sm:$0xf]
  %v8572 = vld [vmem:[#allocation2 + $0x98] sm:$0xf]
  %v8573 = vld [vmem:[#allocation2 + $0xa0] sm:$0x8]
  %v8574 = vld [vmem:[#allocation2 + $0xa4] sm:$0xf]
  %v8575 = vld [vmem:[#allocation2 + $0xa8] sm:$0xf]
  %v8576 = vld [vmem:[#allocation2 + $0xb0] sm:$0x8]
  %v8577 = vld [vmem:[#allocation2 + $0xb4] sm:$0xf]
  %v8578 = vld [vmem:[#allocation2 + $0xb8] sm:$0xf]
  %v8579 = vld [vmem:[#allocation2 + $0xc0] sm:$0x8]
  %v8580 = vld [vmem:[#allocation2 + $0xc4] sm:$0xf]
  %v8581 = vld [vmem:[#allocation2 + $0xc8] sm:$0xf]
  %v8582 = vld [vmem:[#allocation2 + $0xd0] sm:$0x8]
  %v8583 = vld [vmem:[#allocation2 + $0xd4] sm:$0xf]
  %v8584 = vld [vmem:[#allocation2 + $0xd8] sm:$0xf]
  %v8585 = vld [vmem:[#allocation2 + $0xe0] sm:$0x8]
  %v8586 = vld [vmem:[#allocation2 + $0xe4] sm:$0xf]
  %v8587 = vld [vmem:[#allocation2 + $0xe8] sm:$0xf]
  %v8588 = vld [vmem:[#allocation2 + $0xf0] sm:$0x8]
  %v8589 = vld [vmem:[#allocation2 + $0xf4] sm:$0xf]
  %v8590 = vld [vmem:[#allocation2 + $0xf8] sm:$0xf]
  %v8592 = vshrl.u32 %v8543, 16
  %v8594 = vrot.slane %v8592, 7
  %v8595 = vrot.slane %v8594, 4
  %v8597 = vshrl.u32 %v8544, 16
  %v8599 = vrot.slane %v8597, 7
  %v8600 = vshll.u32 %v8544, 16
  %v8602 = vor.u32 %v8599, %v8600
  %v8603 = vsel %vm507, %v8595, %v8602
  %v8604 = vrot.slane %v8599, 4
  %v8606 = vshrl.u32 %v8545, 16
  %v8608 = vrot.slane %v8606, 7
  %v8609 = vshll.u32 %v8545, 16
  %v8611 = vor.u32 %v8608, %v8609
  %v8612 = vsel %vm507, %v8604, %v8611
  %v8614 = vshrl.u32 %v8546, 16
  %v8616 = vrot.slane %v8614, 7
  %v8617 = vrot.slane %v8616, 4
  %v8619 = vshrl.u32 %v8547, 16
  %v8621 = vrot.slane %v8619, 7
  %v8622 = vshll.u32 %v8547, 16
  %v8624 = vor.u32 %v8621, %v8622
  %v8625 = vsel %vm507, %v8617, %v8624
  %v8626 = vrot.slane %v8621, 4
  %v8628 = vshrl.u32 %v8548, 16
  %v8630 = vrot.slane %v8628, 7
  %v8631 = vshll.u32 %v8548, 16
  %v8633 = vor.u32 %v8630, %v8631
  %v8634 = vsel %vm507, %v8626, %v8633
  %v8636 = vshrl.u32 %v8549, 16
  %v8638 = vrot.slane %v8636, 7
  %v8639 = vrot.slane %v8638, 4
  %v8641 = vshrl.u32 %v8550, 16
  %v8643 = vrot.slane %v8641, 7
  %v8644 = vshll.u32 %v8550, 16
  %v8646 = vor.u32 %v8643, %v8644
  %v8647 = vsel %vm507, %v8639, %v8646
  %v8648 = vrot.slane %v8643, 4
  %v8650 = vshrl.u32 %v8551, 16
  %v8652 = vrot.slane %v8650, 7
  %v8653 = vshll.u32 %v8551, 16
  %v8655 = vor.u32 %v8652, %v8653
  %v8656 = vsel %vm507, %v8648, %v8655
  %v8658 = vshrl.u32 %v8552, 16
  %v8660 = vrot.slane %v8658, 7
  %v8661 = vrot.slane %v8660, 4
  %v8663 = vshrl.u32 %v8553, 16
  %v8665 = vrot.slane %v8663, 7
  %v8666 = vshll.u32 %v8553, 16
  %v8668 = vor.u32 %v8665, %v8666
  %v8669 = vsel %vm507, %v8661, %v8668
  %v8670 = vrot.slane %v8665, 4
  %v8672 = vshrl.u32 %v8554, 16
  %v8674 = vrot.slane %v8672, 7
  %v8675 = vshll.u32 %v8554, 16
  %v8677 = vor.u32 %v8674, %v8675
  %v8678 = vsel %vm507, %v8670, %v8677
  %v8680 = vshrl.u32 %v8555, 16
  %v8682 = vrot.slane %v8680, 7
  %v8683 = vrot.slane %v8682, 4
  %v8685 = vshrl.u32 %v8556, 16
  %v8687 = vrot.slane %v8685, 7
  %v8688 = vshll.u32 %v8556, 16
  %v8690 = vor.u32 %v8687, %v8688
  %v8691 = vsel %vm507, %v8683, %v8690
  %v8692 = vrot.slane %v8687, 4
  %v8694 = vshrl.u32 %v8557, 16
  %v8696 = vrot.slane %v8694, 7
  %v8697 = vshll.u32 %v8557, 16
  %v8699 = vor.u32 %v8696, %v8697
  %v8700 = vsel %vm507, %v8692, %v8699
  %v8702 = vshrl.u32 %v8558, 16
  %v8704 = vrot.slane %v8702, 7
  %v8705 = vrot.slane %v8704, 4
  %v8707 = vshrl.u32 %v8559, 16
  %v8709 = vrot.slane %v8707, 7
  %v8710 = vshll.u32 %v8559, 16
  %v8712 = vor.u32 %v8709, %v8710
  %v8713 = vsel %vm507, %v8705, %v8712
  %v8714 = vrot.slane %v8709, 4
  %v8716 = vshrl.u32 %v8560, 16
  %v8718 = vrot.slane %v8716, 7
  %v8719 = vshll.u32 %v8560, 16
  %v8721 = vor.u32 %v8718, %v8719
  %v8722 = vsel %vm507, %v8714, %v8721
  %v8724 = vshrl.u32 %v8561, 16
  %v8726 = vrot.slane %v8724, 7
  %v8727 = vrot.slane %v8726, 4
  %v8729 = vshrl.u32 %v8562, 16
  %v8731 = vrot.slane %v8729, 7
  %v8732 = vshll.u32 %v8562, 16
  %v8734 = vor.u32 %v8731, %v8732
  %v8735 = vsel %vm507, %v8727, %v8734
  %v8736 = vrot.slane %v8731, 4
  %v8738 = vshrl.u32 %v8563, 16
  %v8740 = vrot.slane %v8738, 7
  %v8741 = vshll.u32 %v8563, 16
  %v8743 = vor.u32 %v8740, %v8741
  %v8744 = vsel %vm507, %v8736, %v8743
  %v8746 = vshrl.u32 %v8564, 16
  %v8748 = vrot.slane %v8746, 7
  %v8749 = vrot.slane %v8748, 4
  %v8751 = vshrl.u32 %v8565, 16
  %v8753 = vrot.slane %v8751, 7
  %v8754 = vshll.u32 %v8565, 16
  %v8756 = vor.u32 %v8753, %v8754
  %v8757 = vsel %vm507, %v8749, %v8756
  %v8758 = vrot.slane %v8753, 4
  %v8760 = vshrl.u32 %v8566, 16
  %v8762 = vrot.slane %v8760, 7
  %v8763 = vshll.u32 %v8566, 16
  %v8765 = vor.u32 %v8762, %v8763
  %v8766 = vsel %vm507, %v8758, %v8765
  %v8768 = vshrl.u32 %v8567, 16
  %v8770 = vrot.slane %v8768, 7
  %v8771 = vrot.slane %v8770, 4
  %v8773 = vshrl.u32 %v8568, 16
  %v8775 = vrot.slane %v8773, 7
  %v8776 = vshll.u32 %v8568, 16
  %v8778 = vor.u32 %v8775, %v8776
  %v8779 = vsel %vm507, %v8771, %v8778
  %v8780 = vrot.slane %v8775, 4
  %v8782 = vshrl.u32 %v8569, 16
  %v8784 = vrot.slane %v8782, 7
  %v8785 = vshll.u32 %v8569, 16
  %v8787 = vor.u32 %v8784, %v8785
  %v8788 = vsel %vm507, %v8780, %v8787
  %v8790 = vshrl.u32 %v8570, 16
  %v8792 = vrot.slane %v8790, 7
  %v8793 = vrot.slane %v8792, 4
  %v8795 = vshrl.u32 %v8571, 16
  %v8797 = vrot.slane %v8795, 7
  %v8798 = vshll.u32 %v8571, 16
  %v8800 = vor.u32 %v8797, %v8798
  %v8801 = vsel %vm507, %v8793, %v8800
  %v8802 = vrot.slane %v8797, 4
  %v8804 = vshrl.u32 %v8572, 16
  %v8806 = vrot.slane %v8804, 7
  %v8807 = vshll.u32 %v8572, 16
  %v8809 = vor.u32 %v8806, %v8807
  %v8810 = vsel %vm507, %v8802, %v8809
  %v8812 = vshrl.u32 %v8573, 16
  %v8814 = vrot.slane %v8812, 7
  %v8815 = vrot.slane %v8814, 4
  %v8817 = vshrl.u32 %v8574, 16
  %v8819 = vrot.slane %v8817, 7
  %v8820 = vshll.u32 %v8574, 16
  %v8822 = vor.u32 %v8819, %v8820
  %v8823 = vsel %vm507, %v8815, %v8822
  %v8824 = vrot.slane %v8819, 4
  %v8826 = vshrl.u32 %v8575, 16
  %v8828 = vrot.slane %v8826, 7
  %v8829 = vshll.u32 %v8575, 16
  %v8831 = vor.u32 %v8828, %v8829
  %v8832 = vsel %vm507, %v8824, %v8831
  %v8834 = vshrl.u32 %v8576, 16
  %v8836 = vrot.slane %v8834, 7
  %v8837 = vrot.slane %v8836, 4
  %v8839 = vshrl.u32 %v8577, 16
  %v8841 = vrot.slane %v8839, 7
  %v8842 = vshll.u32 %v8577, 16
  %v8844 = vor.u32 %v8841, %v8842
  %v8845 = vsel %vm507, %v8837, %v8844
  %v8846 = vrot.slane %v8841, 4
  %v8848 = vshrl.u32 %v8578, 16
  %v8850 = vrot.slane %v8848, 7
  %v8851 = vshll.u32 %v8578, 16
  %v8853 = vor.u32 %v8850, %v8851
  %v8854 = vsel %vm507, %v8846, %v8853
  %v8856 = vshrl.u32 %v8579, 16
  %v8858 = vrot.slane %v8856, 7
  %v8859 = vrot.slane %v8858, 4
  %v8861 = vshrl.u32 %v8580, 16
  %v8863 = vrot.slane %v8861, 7
  %v8864 = vshll.u32 %v8580, 16
  %v8866 = vor.u32 %v8863, %v8864
  %v8867 = vsel %vm507, %v8859, %v8866
  %v8868 = vrot.slane %v8863, 4
  %v8870 = vshrl.u32 %v8581, 16
  %v8872 = vrot.slane %v8870, 7
  %v8873 = vshll.u32 %v8581, 16
  %v8875 = vor.u32 %v8872, %v8873
  %v8876 = vsel %vm507, %v8868, %v8875
  %v8878 = vshrl.u32 %v8582, 16
  %v8880 = vrot.slane %v8878, 7
  %v8881 = vrot.slane %v8880, 4
  %v8883 = vshrl.u32 %v8583, 16
  %v8885 = vrot.slane %v8883, 7
  %v8886 = vshll.u32 %v8583, 16
  %v8888 = vor.u32 %v8885, %v8886
  %v8889 = vsel %vm507, %v8881, %v8888
  %v8890 = vrot.slane %v8885, 4
  %v8892 = vshrl.u32 %v8584, 16
  %v8894 = vrot.slane %v8892, 7
  %v8895 = vshll.u32 %v8584, 16
  %v8897 = vor.u32 %v8894, %v8895
  %v8898 = vsel %vm507, %v8890, %v8897
  %v8900 = vshrl.u32 %v8585, 16
  %v8902 = vrot.slane %v8900, 7
  %v8903 = vrot.slane %v8902, 4
  %v8905 = vshrl.u32 %v8586, 16
  %v8907 = vrot.slane %v8905, 7
  %v8908 = vshll.u32 %v8586, 16
  %v8910 = vor.u32 %v8907, %v8908
  %v8911 = vsel %vm507, %v8903, %v8910
  %v8912 = vrot.slane %v8907, 4
  %v8914 = vshrl.u32 %v8587, 16
  %v8916 = vrot.slane %v8914, 7
  %v8917 = vshll.u32 %v8587, 16
  %v8919 = vor.u32 %v8916, %v8917
  %v8920 = vsel %vm507, %v8912, %v8919
  %v8922 = vshrl.u32 %v8588, 16
  %v8924 = vrot.slane %v8922, 7
  %v8925 = vrot.slane %v8924, 4
  %v8927 = vshrl.u32 %v8589, 16
  %v8929 = vrot.slane %v8927, 7
  %v8930 = vshll.u32 %v8589, 16
  %v8932 = vor.u32 %v8929, %v8930
  %v8933 = vsel %vm507, %v8925, %v8932
  %v8934 = vrot.slane %v8929, 4
  %v8936 = vshrl.u32 %v8590, 16
  %v8938 = vrot.slane %v8936, 7
  %v8939 = vshll.u32 %v8590, 16
  %v8941 = vor.u32 %v8938, %v8939
  %v8942 = vsel %vm507, %v8934, %v8941
  %v8943 = vld [vmem:[#allocation2 + $0xc] sm:$0x1]
  %v8944 = vld [vmem:[#allocation2 + $0x1c] sm:$0x1]
  %v8945 = vld [vmem:[#allocation2 + $0x2c] sm:$0x1]
  %v8946 = vld [vmem:[#allocation2 + $0x3c] sm:$0x1]
  %v8947 = vld [vmem:[#allocation2 + $0x4c] sm:$0x1]
  %v8948 = vld [vmem:[#allocation2 + $0x5c] sm:$0x1]
  %v8949 = vld [vmem:[#allocation2 + $0x6c] sm:$0x1]
  %v8950 = vld [vmem:[#allocation2 + $0x7c] sm:$0x1]
  %v8951 = vld [vmem:[#allocation2 + $0x8c] sm:$0x1]
  %v8952 = vld [vmem:[#allocation2 + $0x9c] sm:$0x1]
  %v8953 = vld [vmem:[#allocation2 + $0xac] sm:$0x1]
  %v8954 = vld [vmem:[#allocation2 + $0xbc] sm:$0x1]
  %v8955 = vld [vmem:[#allocation2 + $0xcc] sm:$0x1]
  %v8956 = vld [vmem:[#allocation2 + $0xdc] sm:$0x1]
  %v8957 = vld [vmem:[#allocation2 + $0xec] sm:$0x1]
  %v8958 = vld [vmem:[#allocation2 + $0xfc] sm:$0x1]
  %v8959 = vrot.slane %v8597, 4
  %v8960 = vrot.slane %v8600, 5
  %v8961 = vor.u32 %v8959, %v8960
  %v8962 = vrot.slane %v8961, 4
  %v8963 = vrot.slane %v8609, 5
  %v8964 = vsel %vm878, %v8962, %v8963
  %v8965 = vrot.slane %v8606, 4
  %v8966 = vor.u32 %v8965, %v8963
  %v8967 = vrot.slane %v8966, 4
  %v8969 = vshll.u32 %v8943, 16
  %v8971 = vrot.slane %v8969, 5
  %v8972 = vsel %vm878, %v8967, %v8971
  %v8973 = vrot.slane %v8619, 4
  %v8974 = vrot.slane %v8622, 5
  %v8975 = vor.u32 %v8973, %v8974
  %v8976 = vrot.slane %v8975, 4
  %v8977 = vrot.slane %v8631, 5
  %v8978 = vsel %vm878, %v8976, %v8977
  %v8979 = vrot.slane %v8628, 4
  %v8980 = vor.u32 %v8979, %v8977
  %v8981 = vrot.slane %v8980, 4
  %v8983 = vshll.u32 %v8944, 16
  %v8985 = vrot.slane %v8983, 5
  %v8986 = vsel %vm878, %v8981, %v8985
  %v8987 = vrot.slane %v8641, 4
  %v8988 = vrot.slane %v8644, 5
  %v8989 = vor.u32 %v8987, %v8988
  %v8990 = vrot.slane %v8989, 4
  %v8991 = vrot.slane %v8653, 5
  %v8992 = vsel %vm878, %v8990, %v8991
  %v8993 = vrot.slane %v8650, 4
  %v8994 = vor.u32 %v8993, %v8991
  %v8995 = vrot.slane %v8994, 4
  %v8997 = vshll.u32 %v8945, 16
  %v8999 = vrot.slane %v8997, 5
  %v9000 = vsel %vm878, %v8995, %v8999
  %v9001 = vrot.slane %v8663, 4
  %v9002 = vrot.slane %v8666, 5
  %v9003 = vor.u32 %v9001, %v9002
  %v9004 = vrot.slane %v9003, 4
  %v9005 = vrot.slane %v8675, 5
  %v9006 = vsel %vm878, %v9004, %v9005
  %v9007 = vrot.slane %v8672, 4
  %v9008 = vor.u32 %v9007, %v9005
  %v9009 = vrot.slane %v9008, 4
  %v9011 = vshll.u32 %v8946, 16
  %v9013 = vrot.slane %v9011, 5
  %v9014 = vsel %vm878, %v9009, %v9013
  %v9015 = vrot.slane %v8685, 4
  %v9016 = vrot.slane %v8688, 5
  %v9017 = vor.u32 %v9015, %v9016
  %v9018 = vrot.slane %v9017, 4
  %v9019 = vrot.slane %v8697, 5
  %v9020 = vsel %vm878, %v9018, %v9019
  %v9021 = vrot.slane %v8694, 4
  %v9022 = vor.u32 %v9021, %v9019
  %v9023 = vrot.slane %v9022, 4
  %v9025 = vshll.u32 %v8947, 16
  %v9027 = vrot.slane %v9025, 5
  %v9028 = vsel %vm878, %v9023, %v9027
  %v9029 = vrot.slane %v8707, 4
  %v9030 = vrot.slane %v8710, 5
  %v9031 = vor.u32 %v9029, %v9030
  %v9032 = vrot.slane %v9031, 4
  %v9033 = vrot.slane %v8719, 5
  %v9034 = vsel %vm878, %v9032, %v9033
  %v9035 = vrot.slane %v8716, 4
  %v9036 = vor.u32 %v9035, %v9033
  %v9037 = vrot.slane %v9036, 4
  %v9039 = vshll.u32 %v8948, 16
  %v9041 = vrot.slane %v9039, 5
  %v9042 = vsel %vm878, %v9037, %v9041
  %v9043 = vrot.slane %v8729, 4
  %v9044 = vrot.slane %v8732, 5
  %v9045 = vor.u32 %v9043, %v9044
  %v9046 = vrot.slane %v9045, 4
  %v9047 = vrot.slane %v8741, 5
  %v9048 = vsel %vm878, %v9046, %v9047
  %v9049 = vrot.slane %v8738, 4
  %v9050 = vor.u32 %v9049, %v9047
  %v9051 = vrot.slane %v9050, 4
  %v9053 = vshll.u32 %v8949, 16
  %v9055 = vrot.slane %v9053, 5
  %v9056 = vsel %vm878, %v9051, %v9055
  %v9057 = vrot.slane %v8751, 4
  %v9058 = vrot.slane %v8754, 5
  %v9059 = vor.u32 %v9057, %v9058
  %v9060 = vrot.slane %v9059, 4
  %v9061 = vrot.slane %v8763, 5
  %v9062 = vsel %vm878, %v9060, %v9061
  %v9063 = vrot.slane %v8760, 4
  %v9064 = vor.u32 %v9063, %v9061
  %v9065 = vrot.slane %v9064, 4
  %v9067 = vshll.u32 %v8950, 16
  %v9069 = vrot.slane %v9067, 5
  %v9070 = vsel %vm878, %v9065, %v9069
  %v9071 = vrot.slane %v8773, 4
  %v9072 = vrot.slane %v8776, 5
  %v9073 = vor.u32 %v9071, %v9072
  %v9074 = vrot.slane %v9073, 4
  %v9075 = vrot.slane %v8785, 5
  %v9076 = vsel %vm878, %v9074, %v9075
  %v9077 = vrot.slane %v8782, 4
  %v9078 = vor.u32 %v9077, %v9075
  %v9079 = vrot.slane %v9078, 4
  %v9081 = vshll.u32 %v8951, 16
  %v9083 = vrot.slane %v9081, 5
  %v9084 = vsel %vm878, %v9079, %v9083
  %v9085 = vrot.slane %v8795, 4
  %v9086 = vrot.slane %v8798, 5
  %v9087 = vor.u32 %v9085, %v9086
  %v9088 = vrot.slane %v9087, 4
  %v9089 = vrot.slane %v8807, 5
  %v9090 = vsel %vm878, %v9088, %v9089
  %v9091 = vrot.slane %v8804, 4
  %v9092 = vor.u32 %v9091, %v9089
  %v9093 = vrot.slane %v9092, 4
  %v9095 = vshll.u32 %v8952, 16
  %v9097 = vrot.slane %v9095, 5
  %v9098 = vsel %vm878, %v9093, %v9097
  %v9099 = vrot.slane %v8817, 4
  %v9100 = vrot.slane %v8820, 5
  %v9101 = vor.u32 %v9099, %v9100
  %v9102 = vrot.slane %v9101, 4
  %v9103 = vrot.slane %v8829, 5
  %v9104 = vsel %vm878, %v9102, %v9103
  %v9105 = vrot.slane %v8826, 4
  %v9106 = vor.u32 %v9105, %v9103
  %v9107 = vrot.slane %v9106, 4
  %v9109 = vshll.u32 %v8953, 16
  %v9111 = vrot.slane %v9109, 5
  %v9112 = vsel %vm878, %v9107, %v9111
  %v9113 = vrot.slane %v8839, 4
  %v9114 = vrot.slane %v8842, 5
  %v9115 = vor.u32 %v9113, %v9114
  %v9116 = vrot.slane %v9115, 4
  %v9117 = vrot.slane %v8851, 5
  %v9118 = vsel %vm878, %v9116, %v9117
  %v9119 = vrot.slane %v8848, 4
  %v9120 = vor.u32 %v9119, %v9117
  %v9121 = vrot.slane %v9120, 4
  %v9123 = vshll.u32 %v8954, 16
  %v9125 = vrot.slane %v9123, 5
  %v9126 = vsel %vm878, %v9121, %v9125
  %v9127 = vrot.slane %v8861, 4
  %v9128 = vrot.slane %v8864, 5
  %v9129 = vor.u32 %v9127, %v9128
  %v9130 = vrot.slane %v9129, 4
  %v9131 = vrot.slane %v8873, 5
  %v9132 = vsel %vm878, %v9130, %v9131
  %v9133 = vrot.slane %v8870, 4
  %v9134 = vor.u32 %v9133, %v9131
  %v9135 = vrot.slane %v9134, 4
  %v9137 = vshll.u32 %v8955, 16
  %v9139 = vrot.slane %v9137, 5
  %v9140 = vsel %vm878, %v9135, %v9139
  %v9141 = vrot.slane %v8883, 4
  %v9142 = vrot.slane %v8886, 5
  %v9143 = vor.u32 %v9141, %v9142
  %v9144 = vrot.slane %v9143, 4
  %v9145 = vrot.slane %v8895, 5
  %v9146 = vsel %vm878, %v9144, %v9145
  %v9147 = vrot.slane %v8892, 4
  %v9148 = vor.u32 %v9147, %v9145
  %v9149 = vrot.slane %v9148, 4
  %v9151 = vshll.u32 %v8956, 16
  %v9153 = vrot.slane %v9151, 5
  %v9154 = vsel %vm878, %v9149, %v9153
  %v9155 = vrot.slane %v8905, 4
  %v9156 = vrot.slane %v8908, 5
  %v9157 = vor.u32 %v9155, %v9156
  %v9158 = vrot.slane %v9157, 4
  %v9159 = vrot.slane %v8917, 5
  %v9160 = vsel %vm878, %v9158, %v9159
  %v9161 = vrot.slane %v8914, 4
  %v9162 = vor.u32 %v9161, %v9159
  %v9163 = vrot.slane %v9162, 4
  %v9165 = vshll.u32 %v8957, 16
  %v9167 = vrot.slane %v9165, 5
  %v9168 = vsel %vm878, %v9163, %v9167
  %v9169 = vrot.slane %v8927, 4
  %v9170 = vrot.slane %v8930, 5
  %v9171 = vor.u32 %v9169, %v9170
  %v9172 = vrot.slane %v9171, 4
  %v9173 = vrot.slane %v8939, 5
  %v9174 = vsel %vm878, %v9172, %v9173
  %v9175 = vrot.slane %v8936, 4
  %v9176 = vor.u32 %v9175, %v9173
  %v9177 = vrot.slane %v9176, 4
  %v9179 = vshll.u32 %v8958, 16
  %v9181 = vrot.slane %v9179, 5
  %v9182 = vsel %vm878, %v9177, %v9181
  %v9183 = vld [vmem:[%s424] sm:$0x8]
  %v9184 = vld [vmem:[%s424 + $0x4] sm:$0xf]
  %v9185 = vld [vmem:[%s424 + $0x8] sm:$0xf]
  %v9186 = vld [vmem:[%s424 + $0x10] sm:$0x8]
  %v9187 = vld [vmem:[%s424 + $0x14] sm:$0xf]
  %v9188 = vld [vmem:[%s424 + $0x18] sm:$0xf]
  %v9189 = vld [vmem:[%s424 + $0x20] sm:$0x8]
  %v9190 = vld [vmem:[%s424 + $0x24] sm:$0xf]
  %v9191 = vld [vmem:[%s424 + $0x28] sm:$0xf]
  %v9192 = vld [vmem:[%s424 + $0x30] sm:$0x8]
  %v9193 = vld [vmem:[%s424 + $0x34] sm:$0xf]
  %v9194 = vld [vmem:[%s424 + $0x38] sm:$0xf]
  %v9195 = vld [vmem:[%s424 + $0x40] sm:$0x8]
  %v9196 = vld [vmem:[%s424 + $0x44] sm:$0xf]
  %v9197 = vld [vmem:[%s424 + $0x48] sm:$0xf]
  %v9198 = vld [vmem:[%s424 + $0x50] sm:$0x8]
  %v9199 = vld [vmem:[%s424 + $0x54] sm:$0xf]
  %v9200 = vld [vmem:[%s424 + $0x58] sm:$0xf]
  %v9201 = vld [vmem:[%s424 + $0x60] sm:$0x8]
  %v9202 = vld [vmem:[%s424 + $0x64] sm:$0xf]
  %v9203 = vld [vmem:[%s424 + $0x68] sm:$0xf]
  %v9204 = vld [vmem:[%s424 + $0x70] sm:$0x8]
  %v9205 = vld [vmem:[%s424 + $0x74] sm:$0xf]
  %v9206 = vld [vmem:[%s424 + $0x78] sm:$0xf]
  %v9207 = vld [vmem:[%s424 + $0x80] sm:$0x8]
  %v9208 = vld [vmem:[%s424 + $0x84] sm:$0xf]
  %v9209 = vld [vmem:[%s424 + $0x88] sm:$0xf]
  %v9210 = vld [vmem:[%s424 + $0x90] sm:$0x8]
  %v9211 = vld [vmem:[%s424 + $0x94] sm:$0xf]
  %v9212 = vld [vmem:[%s424 + $0x98] sm:$0xf]
  %v9213 = vld [vmem:[%s424 + $0xa0] sm:$0x8]
  %v9214 = vld [vmem:[%s424 + $0xa4] sm:$0xf]
  %v9215 = vld [vmem:[%s424 + $0xa8] sm:$0xf]
  %v9216 = vld [vmem:[%s424 + $0xb0] sm:$0x8]
  %v9217 = vld [vmem:[%s424 + $0xb4] sm:$0xf]
  %v9218 = vld [vmem:[%s424 + $0xb8] sm:$0xf]
  %v9219 = vld [vmem:[%s424 + $0xc0] sm:$0x8]
  %v9220 = vld [vmem:[%s424 + $0xc4] sm:$0xf]
  %v9221 = vld [vmem:[%s424 + $0xc8] sm:$0xf]
  %v9222 = vld [vmem:[%s424 + $0xd0] sm:$0x8]
  %v9223 = vld [vmem:[%s424 + $0xd4] sm:$0xf]
  %v9224 = vld [vmem:[%s424 + $0xd8] sm:$0xf]
  %v9225 = vld [vmem:[%s424 + $0xe0] sm:$0x8]
  %v9226 = vld [vmem:[%s424 + $0xe4] sm:$0xf]
  %v9227 = vld [vmem:[%s424 + $0xe8] sm:$0xf]
  %v9228 = vld [vmem:[%s424 + $0xf0] sm:$0x8]
  %v9229 = vld [vmem:[%s424 + $0xf4] sm:$0xf]
  %v9230 = vld [vmem:[%s424 + $0xf8] sm:$0xf]
  %v9232 = vshrl.u32 %v9183, 16
  %v9234 = vrot.slane %v9232, 7
  %v9235 = vrot.slane %v9234, 4
  %v9237 = vshrl.u32 %v9184, 16
  %v9239 = vrot.slane %v9237, 7
  %v9240 = vshll.u32 %v9184, 16
  %v9242 = vor.u32 %v9239, %v9240
  %v9243 = vsel %vm507, %v9235, %v9242
  %v9244 = vrot.slane %v9239, 4
  %v9246 = vshrl.u32 %v9185, 16
  %v9248 = vrot.slane %v9246, 7
  %v9249 = vshll.u32 %v9185, 16
  %v9251 = vor.u32 %v9248, %v9249
  %v9252 = vsel %vm507, %v9244, %v9251
  %v9254 = vshrl.u32 %v9186, 16
  %v9256 = vrot.slane %v9254, 7
  %v9257 = vrot.slane %v9256, 4
  %v9259 = vshrl.u32 %v9187, 16
  %v9261 = vrot.slane %v9259, 7
  %v9262 = vshll.u32 %v9187, 16
  %v9264 = vor.u32 %v9261, %v9262
  %v9265 = vsel %vm507, %v9257, %v9264
  %v9266 = vrot.slane %v9261, 4
  %v9268 = vshrl.u32 %v9188, 16
  %v9270 = vrot.slane %v9268, 7
  %v9271 = vshll.u32 %v9188, 16
  %v9273 = vor.u32 %v9270, %v9271
  %v9274 = vsel %vm507, %v9266, %v9273
  %v9276 = vshrl.u32 %v9189, 16
  %v9278 = vrot.slane %v9276, 7
  %v9279 = vrot.slane %v9278, 4
  %v9281 = vshrl.u32 %v9190, 16
  %v9283 = vrot.slane %v9281, 7
  %v9284 = vshll.u32 %v9190, 16
  %v9286 = vor.u32 %v9283, %v9284
  %v9287 = vsel %vm507, %v9279, %v9286
  %v9288 = vrot.slane %v9283, 4
  %v9290 = vshrl.u32 %v9191, 16
  %v9292 = vrot.slane %v9290, 7
  %v9293 = vshll.u32 %v9191, 16
  %v9295 = vor.u32 %v9292, %v9293
  %v9296 = vsel %vm507, %v9288, %v9295
  %v9298 = vshrl.u32 %v9192, 16
  %v9300 = vrot.slane %v9298, 7
  %v9301 = vrot.slane %v9300, 4
  %v9303 = vshrl.u32 %v9193, 16
  %v9305 = vrot.slane %v9303, 7
  %v9306 = vshll.u32 %v9193, 16
  %v9308 = vor.u32 %v9305, %v9306
  %v9309 = vsel %vm507, %v9301, %v9308
  %v9310 = vrot.slane %v9305, 4
  %v9312 = vshrl.u32 %v9194, 16
  %v9314 = vrot.slane %v9312, 7
  %v9315 = vshll.u32 %v9194, 16
  %v9317 = vor.u32 %v9314, %v9315
  %v9318 = vsel %vm507, %v9310, %v9317
  %v9320 = vshrl.u32 %v9195, 16
  %v9322 = vrot.slane %v9320, 7
  %v9323 = vrot.slane %v9322, 4
  %v9325 = vshrl.u32 %v9196, 16
  %v9327 = vrot.slane %v9325, 7
  %v9328 = vshll.u32 %v9196, 16
  %v9330 = vor.u32 %v9327, %v9328
  %v9331 = vsel %vm507, %v9323, %v9330
  %v9332 = vrot.slane %v9327, 4
  %v9334 = vshrl.u32 %v9197, 16
  %v9336 = vrot.slane %v9334, 7
  %v9337 = vshll.u32 %v9197, 16
  %v9339 = vor.u32 %v9336, %v9337
  %v9340 = vsel %vm507, %v9332, %v9339
  %v9342 = vshrl.u32 %v9198, 16
  %v9344 = vrot.slane %v9342, 7
  %v9345 = vrot.slane %v9344, 4
  %v9347 = vshrl.u32 %v9199, 16
  %v9349 = vrot.slane %v9347, 7
  %v9350 = vshll.u32 %v9199, 16
  %v9352 = vor.u32 %v9349, %v9350
  %v9353 = vsel %vm507, %v9345, %v9352
  %v9354 = vrot.slane %v9349, 4
  %v9356 = vshrl.u32 %v9200, 16
  %v9358 = vrot.slane %v9356, 7
  %v9359 = vshll.u32 %v9200, 16
  %v9361 = vor.u32 %v9358, %v9359
  %v9362 = vsel %vm507, %v9354, %v9361
  %v9364 = vshrl.u32 %v9201, 16
  %v9366 = vrot.slane %v9364, 7
  %v9367 = vrot.slane %v9366, 4
  %v9369 = vshrl.u32 %v9202, 16
  %v9371 = vrot.slane %v9369, 7
  %v9372 = vshll.u32 %v9202, 16
  %v9374 = vor.u32 %v9371, %v9372
  %v9375 = vsel %vm507, %v9367, %v9374
  %v9376 = vrot.slane %v9371, 4
  %v9378 = vshrl.u32 %v9203, 16
  %v9380 = vrot.slane %v9378, 7
  %v9381 = vshll.u32 %v9203, 16
  %v9383 = vor.u32 %v9380, %v9381
  %v9384 = vsel %vm507, %v9376, %v9383
  %v9386 = vshrl.u32 %v9204, 16
  %v9388 = vrot.slane %v9386, 7
  %v9389 = vrot.slane %v9388, 4
  %v9391 = vshrl.u32 %v9205, 16
  %v9393 = vrot.slane %v9391, 7
  %v9394 = vshll.u32 %v9205, 16
  %v9396 = vor.u32 %v9393, %v9394
  %v9397 = vsel %vm507, %v9389, %v9396
  %v9398 = vrot.slane %v9393, 4
  %v9400 = vshrl.u32 %v9206, 16
  %v9402 = vrot.slane %v9400, 7
  %v9403 = vshll.u32 %v9206, 16
  %v9405 = vor.u32 %v9402, %v9403
  %v9406 = vsel %vm507, %v9398, %v9405
  %v9408 = vshrl.u32 %v9207, 16
  %v9410 = vrot.slane %v9408, 7
  %v9411 = vrot.slane %v9410, 4
  %v9413 = vshrl.u32 %v9208, 16
  %v9415 = vrot.slane %v9413, 7
  %v9416 = vshll.u32 %v9208, 16
  %v9418 = vor.u32 %v9415, %v9416
  %v9419 = vsel %vm507, %v9411, %v9418
  %v9420 = vrot.slane %v9415, 4
  %v9422 = vshrl.u32 %v9209, 16
  %v9424 = vrot.slane %v9422, 7
  %v9425 = vshll.u32 %v9209, 16
  %v9427 = vor.u32 %v9424, %v9425
  %v9428 = vsel %vm507, %v9420, %v9427
  %v9430 = vshrl.u32 %v9210, 16
  %v9432 = vrot.slane %v9430, 7
  %v9433 = vrot.slane %v9432, 4
  %v9435 = vshrl.u32 %v9211, 16
  %v9437 = vrot.slane %v9435, 7
  %v9438 = vshll.u32 %v9211, 16
  %v9440 = vor.u32 %v9437, %v9438
  %v9441 = vsel %vm507, %v9433, %v9440
  %v9442 = vrot.slane %v9437, 4
  %v9444 = vshrl.u32 %v9212, 16
  %v9446 = vrot.slane %v9444, 7
  %v9447 = vshll.u32 %v9212, 16
  %v9449 = vor.u32 %v9446, %v9447
  %v9450 = vsel %vm507, %v9442, %v9449
  %v9452 = vshrl.u32 %v9213, 16
  %v9454 = vrot.slane %v9452, 7
  %v9455 = vrot.slane %v9454, 4
  %v9457 = vshrl.u32 %v9214, 16
  %v9459 = vrot.slane %v9457, 7
  %v9460 = vshll.u32 %v9214, 16
  %v9462 = vor.u32 %v9459, %v9460
  %v9463 = vsel %vm507, %v9455, %v9462
  %v9464 = vrot.slane %v9459, 4
  %v9466 = vshrl.u32 %v9215, 16
  %v9468 = vrot.slane %v9466, 7
  %v9469 = vshll.u32 %v9215, 16
  %v9471 = vor.u32 %v9468, %v9469
  %v9472 = vsel %vm507, %v9464, %v9471
  %v9474 = vshrl.u32 %v9216, 16
  %v9476 = vrot.slane %v9474, 7
  %v9477 = vrot.slane %v9476, 4
  %v9479 = vshrl.u32 %v9217, 16
  %v9481 = vrot.slane %v9479, 7
  %v9482 = vshll.u32 %v9217, 16
  %v9484 = vor.u32 %v9481, %v9482
  %v9485 = vsel %vm507, %v9477, %v9484
  %v9486 = vrot.slane %v9481, 4
  %v9488 = vshrl.u32 %v9218, 16
  %v9490 = vrot.slane %v9488, 7
  %v9491 = vshll.u32 %v9218, 16
  %v9493 = vor.u32 %v9490, %v9491
  %v9494 = vsel %vm507, %v9486, %v9493
  %v9496 = vshrl.u32 %v9219, 16
  %v9498 = vrot.slane %v9496, 7
  %v9499 = vrot.slane %v9498, 4
  %v9501 = vshrl.u32 %v9220, 16
  %v9503 = vrot.slane %v9501, 7
  %v9504 = vshll.u32 %v9220, 16
  %v9506 = vor.u32 %v9503, %v9504
  %v9507 = vsel %vm507, %v9499, %v9506
  %v9508 = vrot.slane %v9503, 4
  %v9510 = vshrl.u32 %v9221, 16
  %v9512 = vrot.slane %v9510, 7
  %v9513 = vshll.u32 %v9221, 16
  %v9515 = vor.u32 %v9512, %v9513
  %v9516 = vsel %vm507, %v9508, %v9515
  %v9518 = vshrl.u32 %v9222, 16
  %v9520 = vrot.slane %v9518, 7
  %v9521 = vrot.slane %v9520, 4
  %v9523 = vshrl.u32 %v9223, 16
  %v9525 = vrot.slane %v9523, 7
  %v9526 = vshll.u32 %v9223, 16
  %v9528 = vor.u32 %v9525, %v9526
  %v9529 = vsel %vm507, %v9521, %v9528
  %v9530 = vrot.slane %v9525, 4
  %v9532 = vshrl.u32 %v9224, 16
  %v9534 = vrot.slane %v9532, 7
  %v9535 = vshll.u32 %v9224, 16
  %v9537 = vor.u32 %v9534, %v9535
  %v9538 = vsel %vm507, %v9530, %v9537
  %v9540 = vshrl.u32 %v9225, 16
  %v9542 = vrot.slane %v9540, 7
  %v9543 = vrot.slane %v9542, 4
  %v9545 = vshrl.u32 %v9226, 16
  %v9547 = vrot.slane %v9545, 7
  %v9548 = vshll.u32 %v9226, 16
  %v9550 = vor.u32 %v9547, %v9548
  %v9551 = vsel %vm507, %v9543, %v9550
  %v9552 = vrot.slane %v9547, 4
  %v9554 = vshrl.u32 %v9227, 16
  %v9556 = vrot.slane %v9554, 7
  %v9557 = vshll.u32 %v9227, 16
  %v9559 = vor.u32 %v9556, %v9557
  %v9560 = vsel %vm507, %v9552, %v9559
  %v9562 = vshrl.u32 %v9228, 16
  %v9564 = vrot.slane %v9562, 7
  %v9565 = vrot.slane %v9564, 4
  %v9567 = vshrl.u32 %v9229, 16
  %v9569 = vrot.slane %v9567, 7
  %v9570 = vshll.u32 %v9229, 16
  %v9572 = vor.u32 %v9569, %v9570
  %v9573 = vsel %vm507, %v9565, %v9572
  %v9574 = vrot.slane %v9569, 4
  %v9576 = vshrl.u32 %v9230, 16
  %v9578 = vrot.slane %v9576, 7
  %v9579 = vshll.u32 %v9230, 16
  %v9581 = vor.u32 %v9578, %v9579
  %v9582 = vsel %vm507, %v9574, %v9581
  %v9583 = vld [vmem:[%s424 + $0xc] sm:$0x1]
  %v9584 = vld [vmem:[%s424 + $0x1c] sm:$0x1]
  %v9585 = vld [vmem:[%s424 + $0x2c] sm:$0x1]
  %v9586 = vld [vmem:[%s424 + $0x3c] sm:$0x1]
  %v9587 = vld [vmem:[%s424 + $0x4c] sm:$0x1]
  %v9588 = vld [vmem:[%s424 + $0x5c] sm:$0x1]
  %v9589 = vld [vmem:[%s424 + $0x6c] sm:$0x1]
  %v9590 = vld [vmem:[%s424 + $0x7c] sm:$0x1]
  %v9591 = vld [vmem:[%s424 + $0x8c] sm:$0x1]
  %v9592 = vld [vmem:[%s424 + $0x9c] sm:$0x1]
  %v9593 = vld [vmem:[%s424 + $0xac] sm:$0x1]
  %v9594 = vld [vmem:[%s424 + $0xbc] sm:$0x1]
  %v9595 = vld [vmem:[%s424 + $0xcc] sm:$0x1]
  %v9596 = vld [vmem:[%s424 + $0xdc] sm:$0x1]
  %v9597 = vld [vmem:[%s424 + $0xec] sm:$0x1]
  %v9598 = vld [vmem:[%s424 + $0xfc] sm:$0x1]
  %v9599 = vrot.slane %v9237, 4
  %v9600 = vrot.slane %v9240, 5
  %v9601 = vor.u32 %v9599, %v9600
  %v9602 = vrot.slane %v9601, 4
  %v9603 = vrot.slane %v9249, 5
  %v9604 = vsel %vm878, %v9602, %v9603
  %v9605 = vrot.slane %v9246, 4
  %v9606 = vor.u32 %v9605, %v9603
  %v9607 = vrot.slane %v9606, 4
  %v9609 = vshll.u32 %v9583, 16
  %v9611 = vrot.slane %v9609, 5
  %v9612 = vsel %vm878, %v9607, %v9611
  %v9613 = vrot.slane %v9259, 4
  %v9614 = vrot.slane %v9262, 5
  %v9615 = vor.u32 %v9613, %v9614
  %v9616 = vrot.slane %v9615, 4
  %v9617 = vrot.slane %v9271, 5
  %v9618 = vsel %vm878, %v9616, %v9617
  %v9619 = vrot.slane %v9268, 4
  %v9620 = vor.u32 %v9619, %v9617
  %v9621 = vrot.slane %v9620, 4
  %v9623 = vshll.u32 %v9584, 16
  %v9625 = vrot.slane %v9623, 5
  %v9626 = vsel %vm878, %v9621, %v9625
  %v9627 = vrot.slane %v9281, 4
  %v9628 = vrot.slane %v9284, 5
  %v9629 = vor.u32 %v9627, %v9628
  %v9630 = vrot.slane %v9629, 4
  %v9631 = vrot.slane %v9293, 5
  %v9632 = vsel %vm878, %v9630, %v9631
  %v9633 = vrot.slane %v9290, 4
  %v9634 = vor.u32 %v9633, %v9631
  %v9635 = vrot.slane %v9634, 4
  %v9637 = vshll.u32 %v9585, 16
  %v9639 = vrot.slane %v9637, 5
  %v9640 = vsel %vm878, %v9635, %v9639
  %v9641 = vrot.slane %v9303, 4
  %v9642 = vrot.slane %v9306, 5
  %v9643 = vor.u32 %v9641, %v9642
  %v9644 = vrot.slane %v9643, 4
  %v9645 = vrot.slane %v9315, 5
  %v9646 = vsel %vm878, %v9644, %v9645
  %v9647 = vrot.slane %v9312, 4
  %v9648 = vor.u32 %v9647, %v9645
  %v9649 = vrot.slane %v9648, 4
  %v9651 = vshll.u32 %v9586, 16
  %v9653 = vrot.slane %v9651, 5
  %v9654 = vsel %vm878, %v9649, %v9653
  %v9655 = vrot.slane %v9325, 4
  %v9656 = vrot.slane %v9328, 5
  %v9657 = vor.u32 %v9655, %v9656
  %v9658 = vrot.slane %v9657, 4
  %v9659 = vrot.slane %v9337, 5
  %v9660 = vsel %vm878, %v9658, %v9659
  %v9661 = vrot.slane %v9334, 4
  %v9662 = vor.u32 %v9661, %v9659
  %v9663 = vrot.slane %v9662, 4
  %v9665 = vshll.u32 %v9587, 16
  %v9667 = vrot.slane %v9665, 5
  %v9668 = vsel %vm878, %v9663, %v9667
  %v9669 = vrot.slane %v9347, 4
  %v9670 = vrot.slane %v9350, 5
  %v9671 = vor.u32 %v9669, %v9670
  %v9672 = vrot.slane %v9671, 4
  %v9673 = vrot.slane %v9359, 5
  %v9674 = vsel %vm878, %v9672, %v9673
  %v9675 = vrot.slane %v9356, 4
  %v9676 = vor.u32 %v9675, %v9673
  %v9677 = vrot.slane %v9676, 4
  %v9679 = vshll.u32 %v9588, 16
  %v9681 = vrot.slane %v9679, 5
  %v9682 = vsel %vm878, %v9677, %v9681
  %v9683 = vrot.slane %v9369, 4
  %v9684 = vrot.slane %v9372, 5
  %v9685 = vor.u32 %v9683, %v9684
  %v9686 = vrot.slane %v9685, 4
  %v9687 = vrot.slane %v9381, 5
  %v9688 = vsel %vm878, %v9686, %v9687
  %v9689 = vrot.slane %v9378, 4
  %v9690 = vor.u32 %v9689, %v9687
  %v9691 = vrot.slane %v9690, 4
  %v9693 = vshll.u32 %v9589, 16
  %v9695 = vrot.slane %v9693, 5
  %v9696 = vsel %vm878, %v9691, %v9695
  %v9697 = vrot.slane %v9391, 4
  %v9698 = vrot.slane %v9394, 5
  %v9699 = vor.u32 %v9697, %v9698
  %v9700 = vrot.slane %v9699, 4
  %v9701 = vrot.slane %v9403, 5
  %v9702 = vsel %vm878, %v9700, %v9701
  %v9703 = vrot.slane %v9400, 4
  %v9704 = vor.u32 %v9703, %v9701
  %v9705 = vrot.slane %v9704, 4
  %v9707 = vshll.u32 %v9590, 16
  %v9709 = vrot.slane %v9707, 5
  %v9710 = vsel %vm878, %v9705, %v9709
  %v9711 = vrot.slane %v9413, 4
  %v9712 = vrot.slane %v9416, 5
  %v9713 = vor.u32 %v9711, %v9712
  %v9714 = vrot.slane %v9713, 4
  %v9715 = vrot.slane %v9425, 5
  %v9716 = vsel %vm878, %v9714, %v9715
  %v9717 = vrot.slane %v9422, 4
  %v9718 = vor.u32 %v9717, %v9715
  %v9719 = vrot.slane %v9718, 4
  %v9721 = vshll.u32 %v9591, 16
  %v9723 = vrot.slane %v9721, 5
  %v9724 = vsel %vm878, %v9719, %v9723
  %v9725 = vrot.slane %v9435, 4
  %v9726 = vrot.slane %v9438, 5
  %v9727 = vor.u32 %v9725, %v9726
  %v9728 = vrot.slane %v9727, 4
  %v9729 = vrot.slane %v9447, 5
  %v9730 = vsel %vm878, %v9728, %v9729
  %v9731 = vrot.slane %v9444, 4
  %v9732 = vor.u32 %v9731, %v9729
  %v9733 = vrot.slane %v9732, 4
  %v9735 = vshll.u32 %v9592, 16
  %v9737 = vrot.slane %v9735, 5
  %v9738 = vsel %vm878, %v9733, %v9737
  %v9739 = vrot.slane %v9457, 4
  %v9740 = vrot.slane %v9460, 5
  %v9741 = vor.u32 %v9739, %v9740
  %v9742 = vrot.slane %v9741, 4
  %v9743 = vrot.slane %v9469, 5
  %v9744 = vsel %vm878, %v9742, %v9743
  %v9745 = vrot.slane %v9466, 4
  %v9746 = vor.u32 %v9745, %v9743
  %v9747 = vrot.slane %v9746, 4
  %v9749 = vshll.u32 %v9593, 16
  %v9751 = vrot.slane %v9749, 5
  %v9752 = vsel %vm878, %v9747, %v9751
  %v9753 = vrot.slane %v9479, 4
  %v9754 = vrot.slane %v9482, 5
  %v9755 = vor.u32 %v9753, %v9754
  %v9756 = vrot.slane %v9755, 4
  %v9757 = vrot.slane %v9491, 5
  %v9758 = vsel %vm878, %v9756, %v9757
  %v9759 = vrot.slane %v9488, 4
  %v9760 = vor.u32 %v9759, %v9757
  %v9761 = vrot.slane %v9760, 4
  %v9763 = vshll.u32 %v9594, 16
  %v9765 = vrot.slane %v9763, 5
  %v9766 = vsel %vm878, %v9761, %v9765
  %v9767 = vrot.slane %v9501, 4
  %v9768 = vrot.slane %v9504, 5
  %v9769 = vor.u32 %v9767, %v9768
  %v9770 = vrot.slane %v9769, 4
  %v9771 = vrot.slane %v9513, 5
  %v9772 = vsel %vm878, %v9770, %v9771
  %v9773 = vrot.slane %v9510, 4
  %v9774 = vor.u32 %v9773, %v9771
  %v9775 = vrot.slane %v9774, 4
  %v9777 = vshll.u32 %v9595, 16
  %v9779 = vrot.slane %v9777, 5
  %v9780 = vsel %vm878, %v9775, %v9779
  %v9781 = vrot.slane %v9523, 4
  %v9782 = vrot.slane %v9526, 5
  %v9783 = vor.u32 %v9781, %v9782
  %v9784 = vrot.slane %v9783, 4
  %v9785 = vrot.slane %v9535, 5
  %v9786 = vsel %vm878, %v9784, %v9785
  %v9787 = vrot.slane %v9532, 4
  %v9788 = vor.u32 %v9787, %v9785
  %v9789 = vrot.slane %v9788, 4
  %v9791 = vshll.u32 %v9596, 16
  %v9793 = vrot.slane %v9791, 5
  %v9794 = vsel %vm878, %v9789, %v9793
  %v9795 = vrot.slane %v9545, 4
  %v9796 = vrot.slane %v9548, 5
  %v9797 = vor.u32 %v9795, %v9796
  %v9798 = vrot.slane %v9797, 4
  %v9799 = vrot.slane %v9557, 5
  %v9800 = vsel %vm878, %v9798, %v9799
  %v9801 = vrot.slane %v9554, 4
  %v9802 = vor.u32 %v9801, %v9799
  %v9803 = vrot.slane %v9802, 4
  %v9805 = vshll.u32 %v9597, 16
  %v9807 = vrot.slane %v9805, 5
  %v9808 = vsel %vm878, %v9803, %v9807
  %v9809 = vrot.slane %v9567, 4
  %v9810 = vrot.slane %v9570, 5
  %v9811 = vor.u32 %v9809, %v9810
  %v9812 = vrot.slane %v9811, 4
  %v9813 = vrot.slane %v9579, 5
  %v9814 = vsel %vm878, %v9812, %v9813
  %v9815 = vrot.slane %v9576, 4
  %v9816 = vor.u32 %v9815, %v9813
  %v9817 = vrot.slane %v9816, 4
  %v9819 = vshll.u32 %v9598, 16
  %v9821 = vrot.slane %v9819, 5
  %v9822 = vsel %vm878, %v9817, %v9821
  %v9823 = vld [vmem:[%s1743] sm:$0x8]
  %v9824 = vld [vmem:[%s1743 + $0x4] sm:$0xf]
  %v9825 = vld [vmem:[%s1743 + $0x8] sm:$0xf]
  %v9826 = vld [vmem:[%s1743 + $0x10] sm:$0x8]
  %v9827 = vld [vmem:[%s1743 + $0x14] sm:$0xf]
  %v9828 = vld [vmem:[%s1743 + $0x18] sm:$0xf]
  %v9829 = vld [vmem:[%s1743 + $0x20] sm:$0x8]
  %v9830 = vld [vmem:[%s1743 + $0x24] sm:$0xf]
  %v9831 = vld [vmem:[%s1743 + $0x28] sm:$0xf]
  %v9832 = vld [vmem:[%s1743 + $0x30] sm:$0x8]
  %v9833 = vld [vmem:[%s1743 + $0x34] sm:$0xf]
  %v9834 = vld [vmem:[%s1743 + $0x38] sm:$0xf]
  %v9835 = vld [vmem:[%s1743 + $0x40] sm:$0x8]
  %v9836 = vld [vmem:[%s1743 + $0x44] sm:$0xf]
  %v9837 = vld [vmem:[%s1743 + $0x48] sm:$0xf]
  %v9838 = vld [vmem:[%s1743 + $0x50] sm:$0x8]
  %v9839 = vld [vmem:[%s1743 + $0x54] sm:$0xf]
  %v9840 = vld [vmem:[%s1743 + $0x58] sm:$0xf]
  %v9841 = vld [vmem:[%s1743 + $0x60] sm:$0x8]
  %v9842 = vld [vmem:[%s1743 + $0x64] sm:$0xf]
  %v9843 = vld [vmem:[%s1743 + $0x68] sm:$0xf]
  %v9844 = vld [vmem:[%s1743 + $0x70] sm:$0x8]
  %v9845 = vld [vmem:[%s1743 + $0x74] sm:$0xf]
  %v9846 = vld [vmem:[%s1743 + $0x78] sm:$0xf]
  %v9847 = vld [vmem:[%s1743 + $0x80] sm:$0x8]
  %v9848 = vld [vmem:[%s1743 + $0x84] sm:$0xf]
  %v9849 = vld [vmem:[%s1743 + $0x88] sm:$0xf]
  %v9850 = vld [vmem:[%s1743 + $0x90] sm:$0x8]
  %v9851 = vld [vmem:[%s1743 + $0x94] sm:$0xf]
  %v9852 = vld [vmem:[%s1743 + $0x98] sm:$0xf]
  %v9853 = vld [vmem:[%s1743 + $0xa0] sm:$0x8]
  %v9854 = vld [vmem:[%s1743 + $0xa4] sm:$0xf]
  %v9855 = vld [vmem:[%s1743 + $0xa8] sm:$0xf]
  %v9856 = vld [vmem:[%s1743 + $0xb0] sm:$0x8]
  %v9857 = vld [vmem:[%s1743 + $0xb4] sm:$0xf]
  %v9858 = vld [vmem:[%s1743 + $0xb8] sm:$0xf]
  %v9859 = vld [vmem:[%s1743 + $0xc0] sm:$0x8]
  %v9860 = vld [vmem:[%s1743 + $0xc4] sm:$0xf]
  %v9861 = vld [vmem:[%s1743 + $0xc8] sm:$0xf]
  %v9862 = vld [vmem:[%s1743 + $0xd0] sm:$0x8]
  %v9863 = vld [vmem:[%s1743 + $0xd4] sm:$0xf]
  %v9864 = vld [vmem:[%s1743 + $0xd8] sm:$0xf]
  %v9865 = vld [vmem:[%s1743 + $0xe0] sm:$0x8]
  %v9866 = vld [vmem:[%s1743 + $0xe4] sm:$0xf]
  %v9867 = vld [vmem:[%s1743 + $0xe8] sm:$0xf]
  %v9868 = vld [vmem:[%s1743 + $0xf0] sm:$0x8]
  %v9869 = vld [vmem:[%s1743 + $0xf4] sm:$0xf]
  %v9870 = vld [vmem:[%s1743 + $0xf8] sm:$0xf]
  %v9872 = vshrl.u32 %v9823, 16
  %v9874 = vrot.slane %v9872, 7
  %v9875 = vrot.slane %v9874, 4
  %v9877 = vshrl.u32 %v9824, 16
  %v9879 = vrot.slane %v9877, 7
  %v9880 = vshll.u32 %v9824, 16
  %v9882 = vor.u32 %v9879, %v9880
  %v9883 = vsel %vm507, %v9875, %v9882
  %v9884 = vrot.slane %v9879, 4
  %v9886 = vshrl.u32 %v9825, 16
  %v9888 = vrot.slane %v9886, 7
  %v9889 = vshll.u32 %v9825, 16
  %v9891 = vor.u32 %v9888, %v9889
  %v9892 = vsel %vm507, %v9884, %v9891
  %v9894 = vshrl.u32 %v9826, 16
  %v9896 = vrot.slane %v9894, 7
  %v9897 = vrot.slane %v9896, 4
  %v9899 = vshrl.u32 %v9827, 16
  %v9901 = vrot.slane %v9899, 7
  %v9902 = vshll.u32 %v9827, 16
  %v9904 = vor.u32 %v9901, %v9902
  %v9905 = vsel %vm507, %v9897, %v9904
  %v9906 = vrot.slane %v9901, 4
  %v9908 = vshrl.u32 %v9828, 16
  %v9910 = vrot.slane %v9908, 7
  %v9911 = vshll.u32 %v9828, 16
  %v9913 = vor.u32 %v9910, %v9911
  %v9914 = vsel %vm507, %v9906, %v9913
  %v9916 = vshrl.u32 %v9829, 16
  %v9918 = vrot.slane %v9916, 7
  %v9919 = vrot.slane %v9918, 4
  %v9921 = vshrl.u32 %v9830, 16
  %v9923 = vrot.slane %v9921, 7
  %v9924 = vshll.u32 %v9830, 16
  %v9926 = vor.u32 %v9923, %v9924
  %v9927 = vsel %vm507, %v9919, %v9926
  %v9928 = vrot.slane %v9923, 4
  %v9930 = vshrl.u32 %v9831, 16
  %v9932 = vrot.slane %v9930, 7
  %v9933 = vshll.u32 %v9831, 16
  %v9935 = vor.u32 %v9932, %v9933
  %v9936 = vsel %vm507, %v9928, %v9935
  %v9938 = vshrl.u32 %v9832, 16
  %v9940 = vrot.slane %v9938, 7
  %v9941 = vrot.slane %v9940, 4
  %v9943 = vshrl.u32 %v9833, 16
  %v9945 = vrot.slane %v9943, 7
  %v9946 = vshll.u32 %v9833, 16
  %v9948 = vor.u32 %v9945, %v9946
  %v9949 = vsel %vm507, %v9941, %v9948
  %v9950 = vrot.slane %v9945, 4
  %v9952 = vshrl.u32 %v9834, 16
  %v9954 = vrot.slane %v9952, 7
  %v9955 = vshll.u32 %v9834, 16
  %v9957 = vor.u32 %v9954, %v9955
  %v9958 = vsel %vm507, %v9950, %v9957
  %v9960 = vshrl.u32 %v9835, 16
  %v9962 = vrot.slane %v9960, 7
  %v9963 = vrot.slane %v9962, 4
  %v9965 = vshrl.u32 %v9836, 16
  %v9967 = vrot.slane %v9965, 7
  %v9968 = vshll.u32 %v9836, 16
  %v9970 = vor.u32 %v9967, %v9968
  %v9971 = vsel %vm507, %v9963, %v9970
  %v9972 = vrot.slane %v9967, 4
  %v9974 = vshrl.u32 %v9837, 16
  %v9976 = vrot.slane %v9974, 7
  %v9977 = vshll.u32 %v9837, 16
  %v9979 = vor.u32 %v9976, %v9977
  %v9980 = vsel %vm507, %v9972, %v9979
  %v9982 = vshrl.u32 %v9838, 16
  %v9984 = vrot.slane %v9982, 7
  %v9985 = vrot.slane %v9984, 4
  %v9987 = vshrl.u32 %v9839, 16
  %v9989 = vrot.slane %v9987, 7
  %v9990 = vshll.u32 %v9839, 16
  %v9992 = vor.u32 %v9989, %v9990
  %v9993 = vsel %vm507, %v9985, %v9992
  %v9994 = vrot.slane %v9989, 4
  %v9996 = vshrl.u32 %v9840, 16
  %v9998 = vrot.slane %v9996, 7
  %v9999 = vshll.u32 %v9840, 16
  %v10001 = vor.u32 %v9998, %v9999
  %v10002 = vsel %vm507, %v9994, %v10001
  %v10004 = vshrl.u32 %v9841, 16
  %v10006 = vrot.slane %v10004, 7
  %v10007 = vrot.slane %v10006, 4
  %v10009 = vshrl.u32 %v9842, 16
  %v10011 = vrot.slane %v10009, 7
  %v10012 = vshll.u32 %v9842, 16
  %v10014 = vor.u32 %v10011, %v10012
  %v10015 = vsel %vm507, %v10007, %v10014
  %v10016 = vrot.slane %v10011, 4
  %v10018 = vshrl.u32 %v9843, 16
  %v10020 = vrot.slane %v10018, 7
  %v10021 = vshll.u32 %v9843, 16
  %v10023 = vor.u32 %v10020, %v10021
  %v10024 = vsel %vm507, %v10016, %v10023
  %v10026 = vshrl.u32 %v9844, 16
  %v10028 = vrot.slane %v10026, 7
  %v10029 = vrot.slane %v10028, 4
  %v10031 = vshrl.u32 %v9845, 16
  %v10033 = vrot.slane %v10031, 7
  %v10034 = vshll.u32 %v9845, 16
  %v10036 = vor.u32 %v10033, %v10034
  %v10037 = vsel %vm507, %v10029, %v10036
  %v10038 = vrot.slane %v10033, 4
  %v10040 = vshrl.u32 %v9846, 16
  %v10042 = vrot.slane %v10040, 7
  %v10043 = vshll.u32 %v9846, 16
  %v10045 = vor.u32 %v10042, %v10043
  %v10046 = vsel %vm507, %v10038, %v10045
  %v10048 = vshrl.u32 %v9847, 16
  %v10050 = vrot.slane %v10048, 7
  %v10051 = vrot.slane %v10050, 4
  %v10053 = vshrl.u32 %v9848, 16
  %v10055 = vrot.slane %v10053, 7
  %v10056 = vshll.u32 %v9848, 16
  %v10058 = vor.u32 %v10055, %v10056
  %v10059 = vsel %vm507, %v10051, %v10058
  %v10060 = vrot.slane %v10055, 4
  %v10062 = vshrl.u32 %v9849, 16
  %v10064 = vrot.slane %v10062, 7
  %v10065 = vshll.u32 %v9849, 16
  %v10067 = vor.u32 %v10064, %v10065
  %v10068 = vsel %vm507, %v10060, %v10067
  %v10070 = vshrl.u32 %v9850, 16
  %v10072 = vrot.slane %v10070, 7
  %v10073 = vrot.slane %v10072, 4
  %v10075 = vshrl.u32 %v9851, 16
  %v10077 = vrot.slane %v10075, 7
  %v10078 = vshll.u32 %v9851, 16
  %v10080 = vor.u32 %v10077, %v10078
  %v10081 = vsel %vm507, %v10073, %v10080
  %v10082 = vrot.slane %v10077, 4
  %v10084 = vshrl.u32 %v9852, 16
  %v10086 = vrot.slane %v10084, 7
  %v10087 = vshll.u32 %v9852, 16
  %v10089 = vor.u32 %v10086, %v10087
  %v10090 = vsel %vm507, %v10082, %v10089
  %v10092 = vshrl.u32 %v9853, 16
  %v10094 = vrot.slane %v10092, 7
  %v10095 = vrot.slane %v10094, 4
  %v10097 = vshrl.u32 %v9854, 16
  %v10099 = vrot.slane %v10097, 7
  %v10100 = vshll.u32 %v9854, 16
  %v10102 = vor.u32 %v10099, %v10100
  %v10103 = vsel %vm507, %v10095, %v10102
  %v10104 = vrot.slane %v10099, 4
  %v10106 = vshrl.u32 %v9855, 16
  %v10108 = vrot.slane %v10106, 7
  %v10109 = vshll.u32 %v9855, 16
  %v10111 = vor.u32 %v10108, %v10109
  %v10112 = vsel %vm507, %v10104, %v10111
  %v10114 = vshrl.u32 %v9856, 16
  %v10116 = vrot.slane %v10114, 7
  %v10117 = vrot.slane %v10116, 4
  %v10119 = vshrl.u32 %v9857, 16
  %v10121 = vrot.slane %v10119, 7
  %v10122 = vshll.u32 %v9857, 16
  %v10124 = vor.u32 %v10121, %v10122
  %v10125 = vsel %vm507, %v10117, %v10124
  %v10126 = vrot.slane %v10121, 4
  %v10128 = vshrl.u32 %v9858, 16
  %v10130 = vrot.slane %v10128, 7
  %v10131 = vshll.u32 %v9858, 16
  %v10133 = vor.u32 %v10130, %v10131
  %v10134 = vsel %vm507, %v10126, %v10133
  %v10136 = vshrl.u32 %v9859, 16
  %v10138 = vrot.slane %v10136, 7
  %v10139 = vrot.slane %v10138, 4
  %v10141 = vshrl.u32 %v9860, 16
  %v10143 = vrot.slane %v10141, 7
  %v10144 = vshll.u32 %v9860, 16
  %v10146 = vor.u32 %v10143, %v10144
  %v10147 = vsel %vm507, %v10139, %v10146
  %v10148 = vrot.slane %v10143, 4
  %v10150 = vshrl.u32 %v9861, 16
  %v10152 = vrot.slane %v10150, 7
  %v10153 = vshll.u32 %v9861, 16
  %v10155 = vor.u32 %v10152, %v10153
  %v10156 = vsel %vm507, %v10148, %v10155
  %v10158 = vshrl.u32 %v9862, 16
  %v10160 = vrot.slane %v10158, 7
  %v10161 = vrot.slane %v10160, 4
  %v10163 = vshrl.u32 %v9863, 16
  %v10165 = vrot.slane %v10163, 7
  %v10166 = vshll.u32 %v9863, 16
  %v10168 = vor.u32 %v10165, %v10166
  %v10169 = vsel %vm507, %v10161, %v10168
  %v10170 = vrot.slane %v10165, 4
  %v10172 = vshrl.u32 %v9864, 16
  %v10174 = vrot.slane %v10172, 7
  %v10175 = vshll.u32 %v9864, 16
  %v10177 = vor.u32 %v10174, %v10175
  %v10178 = vsel %vm507, %v10170, %v10177
  %v10180 = vshrl.u32 %v9865, 16
  %v10182 = vrot.slane %v10180, 7
  %v10183 = vrot.slane %v10182, 4
  %v10185 = vshrl.u32 %v9866, 16
  %v10187 = vrot.slane %v10185, 7
  %v10188 = vshll.u32 %v9866, 16
  %v10190 = vor.u32 %v10187, %v10188
  %v10191 = vsel %vm507, %v10183, %v10190
  %v10192 = vrot.slane %v10187, 4
  %v10194 = vshrl.u32 %v9867, 16
  %v10196 = vrot.slane %v10194, 7
  %v10197 = vshll.u32 %v9867, 16
  %v10199 = vor.u32 %v10196, %v10197
  %v10200 = vsel %vm507, %v10192, %v10199
  %v10202 = vshrl.u32 %v9868, 16
  %v10204 = vrot.slane %v10202, 7
  %v10205 = vrot.slane %v10204, 4
  %v10207 = vshrl.u32 %v9869, 16
  %v10209 = vrot.slane %v10207, 7
  %v10210 = vshll.u32 %v9869, 16
  %v10212 = vor.u32 %v10209, %v10210
  %v10213 = vsel %vm507, %v10205, %v10212
  %v10214 = vrot.slane %v10209, 4
  %v10216 = vshrl.u32 %v9870, 16
  %v10218 = vrot.slane %v10216, 7
  %v10219 = vshll.u32 %v9870, 16
  %v10221 = vor.u32 %v10218, %v10219
  %v10222 = vsel %vm507, %v10214, %v10221
  %v10223 = vld [vmem:[%s1743 + $0xc] sm:$0x1]
  %v10224 = vld [vmem:[%s1743 + $0x1c] sm:$0x1]
  %v10225 = vld [vmem:[%s1743 + $0x2c] sm:$0x1]
  %v10226 = vld [vmem:[%s1743 + $0x3c] sm:$0x1]
  %v10227 = vld [vmem:[%s1743 + $0x4c] sm:$0x1]
  %v10228 = vld [vmem:[%s1743 + $0x5c] sm:$0x1]
  %v10229 = vld [vmem:[%s1743 + $0x6c] sm:$0x1]
  %v10230 = vld [vmem:[%s1743 + $0x7c] sm:$0x1]
  %v10231 = vld [vmem:[%s1743 + $0x8c] sm:$0x1]
  %v10232 = vld [vmem:[%s1743 + $0x9c] sm:$0x1]
  %v10233 = vld [vmem:[%s1743 + $0xac] sm:$0x1]
  %v10234 = vld [vmem:[%s1743 + $0xbc] sm:$0x1]
  %v10235 = vld [vmem:[%s1743 + $0xcc] sm:$0x1]
  %v10236 = vld [vmem:[%s1743 + $0xdc] sm:$0x1]
  %v10237 = vld [vmem:[%s1743 + $0xec] sm:$0x1]
  %v10238 = vld [vmem:[%s1743 + $0xfc] sm:$0x1]
  %v10239 = vrot.slane %v9877, 4
  %v10240 = vrot.slane %v9880, 5
  %v10241 = vor.u32 %v10239, %v10240
  %v10242 = vrot.slane %v10241, 4
  %v10243 = vrot.slane %v9889, 5
  %v10244 = vsel %vm878, %v10242, %v10243
  %v10245 = vrot.slane %v9886, 4
  %v10246 = vor.u32 %v10245, %v10243
  %v10247 = vrot.slane %v10246, 4
  %v10249 = vshll.u32 %v10223, 16
  %v10251 = vrot.slane %v10249, 5
  %v10252 = vsel %vm878, %v10247, %v10251
  %v10253 = vrot.slane %v9899, 4
  %v10254 = vrot.slane %v9902, 5
  %v10255 = vor.u32 %v10253, %v10254
  %v10256 = vrot.slane %v10255, 4
  %v10257 = vrot.slane %v9911, 5
  %v10258 = vsel %vm878, %v10256, %v10257
  %v10259 = vrot.slane %v9908, 4
  %v10260 = vor.u32 %v10259, %v10257
  %v10261 = vrot.slane %v10260, 4
  %v10263 = vshll.u32 %v10224, 16
  %v10265 = vrot.slane %v10263, 5
  %v10266 = vsel %vm878, %v10261, %v10265
  %v10267 = vrot.slane %v9921, 4
  %v10268 = vrot.slane %v9924, 5
  %v10269 = vor.u32 %v10267, %v10268
  %v10270 = vrot.slane %v10269, 4
  %v10271 = vrot.slane %v9933, 5
  %v10272 = vsel %vm878, %v10270, %v10271
  %v10273 = vrot.slane %v9930, 4
  %v10274 = vor.u32 %v10273, %v10271
  %v10275 = vrot.slane %v10274, 4
  %v10277 = vshll.u32 %v10225, 16
  %v10279 = vrot.slane %v10277, 5
  %v10280 = vsel %vm878, %v10275, %v10279
  %v10281 = vrot.slane %v9943, 4
  %v10282 = vrot.slane %v9946, 5
  %v10283 = vor.u32 %v10281, %v10282
  %v10284 = vrot.slane %v10283, 4
  %v10285 = vrot.slane %v9955, 5
  %v10286 = vsel %vm878, %v10284, %v10285
  %v10287 = vrot.slane %v9952, 4
  %v10288 = vor.u32 %v10287, %v10285
  %v10289 = vrot.slane %v10288, 4
  %v10291 = vshll.u32 %v10226, 16
  %v10293 = vrot.slane %v10291, 5
  %v10294 = vsel %vm878, %v10289, %v10293
  %v10295 = vrot.slane %v9965, 4
  %v10296 = vrot.slane %v9968, 5
  %v10297 = vor.u32 %v10295, %v10296
  %v10298 = vrot.slane %v10297, 4
  %v10299 = vrot.slane %v9977, 5
  %v10300 = vsel %vm878, %v10298, %v10299
  %v10301 = vrot.slane %v9974, 4
  %v10302 = vor.u32 %v10301, %v10299
  %v10303 = vrot.slane %v10302, 4
  %v10305 = vshll.u32 %v10227, 16
  %v10307 = vrot.slane %v10305, 5
  %v10308 = vsel %vm878, %v10303, %v10307
  %v10309 = vrot.slane %v9987, 4
  %v10310 = vrot.slane %v9990, 5
  %v10311 = vor.u32 %v10309, %v10310
  %v10312 = vrot.slane %v10311, 4
  %v10313 = vrot.slane %v9999, 5
  %v10314 = vsel %vm878, %v10312, %v10313
  %v10315 = vrot.slane %v9996, 4
  %v10316 = vor.u32 %v10315, %v10313
  %v10317 = vrot.slane %v10316, 4
  %v10319 = vshll.u32 %v10228, 16
  %v10321 = vrot.slane %v10319, 5
  %v10322 = vsel %vm878, %v10317, %v10321
  %v10323 = vrot.slane %v10009, 4
  %v10324 = vrot.slane %v10012, 5
  %v10325 = vor.u32 %v10323, %v10324
  %v10326 = vrot.slane %v10325, 4
  %v10327 = vrot.slane %v10021, 5
  %v10328 = vsel %vm878, %v10326, %v10327
  %v10329 = vrot.slane %v10018, 4
  %v10330 = vor.u32 %v10329, %v10327
  %v10331 = vrot.slane %v10330, 4
  %v10333 = vshll.u32 %v10229, 16
  %v10335 = vrot.slane %v10333, 5
  %v10336 = vsel %vm878, %v10331, %v10335
  %v10337 = vrot.slane %v10031, 4
  %v10338 = vrot.slane %v10034, 5
  %v10339 = vor.u32 %v10337, %v10338
  %v10340 = vrot.slane %v10339, 4
  %v10341 = vrot.slane %v10043, 5
  %v10342 = vsel %vm878, %v10340, %v10341
  %v10343 = vrot.slane %v10040, 4
  %v10344 = vor.u32 %v10343, %v10341
  %v10345 = vrot.slane %v10344, 4
  %v10347 = vshll.u32 %v10230, 16
  %v10349 = vrot.slane %v10347, 5
  %v10350 = vsel %vm878, %v10345, %v10349
  %v10351 = vrot.slane %v10053, 4
  %v10352 = vrot.slane %v10056, 5
  %v10353 = vor.u32 %v10351, %v10352
  %v10354 = vrot.slane %v10353, 4
  %v10355 = vrot.slane %v10065, 5
  %v10356 = vsel %vm878, %v10354, %v10355
  %v10357 = vrot.slane %v10062, 4
  %v10358 = vor.u32 %v10357, %v10355
  %v10359 = vrot.slane %v10358, 4
  %v10361 = vshll.u32 %v10231, 16
  %v10363 = vrot.slane %v10361, 5
  %v10364 = vsel %vm878, %v10359, %v10363
  %v10365 = vrot.slane %v10075, 4
  %v10366 = vrot.slane %v10078, 5
  %v10367 = vor.u32 %v10365, %v10366
  %v10368 = vrot.slane %v10367, 4
  %v10369 = vrot.slane %v10087, 5
  %v10370 = vsel %vm878, %v10368, %v10369
  %v10371 = vrot.slane %v10084, 4
  %v10372 = vor.u32 %v10371, %v10369
  %v10373 = vrot.slane %v10372, 4
  %v10375 = vshll.u32 %v10232, 16
  %v10377 = vrot.slane %v10375, 5
  %v10378 = vsel %vm878, %v10373, %v10377
  %v10379 = vrot.slane %v10097, 4
  %v10380 = vrot.slane %v10100, 5
  %v10381 = vor.u32 %v10379, %v10380
  %v10382 = vrot.slane %v10381, 4
  %v10383 = vrot.slane %v10109, 5
  %v10384 = vsel %vm878, %v10382, %v10383
  %v10385 = vrot.slane %v10106, 4
  %v10386 = vor.u32 %v10385, %v10383
  %v10387 = vrot.slane %v10386, 4
  %v10389 = vshll.u32 %v10233, 16
  %v10391 = vrot.slane %v10389, 5
  %v10392 = vsel %vm878, %v10387, %v10391
  %v10393 = vrot.slane %v10119, 4
  %v10394 = vrot.slane %v10122, 5
  %v10395 = vor.u32 %v10393, %v10394
  %v10396 = vrot.slane %v10395, 4
  %v10397 = vrot.slane %v10131, 5
  %v10398 = vsel %vm878, %v10396, %v10397
  %v10399 = vrot.slane %v10128, 4
  %v10400 = vor.u32 %v10399, %v10397
  %v10401 = vrot.slane %v10400, 4
  %v10403 = vshll.u32 %v10234, 16
  %v10405 = vrot.slane %v10403, 5
  %v10406 = vsel %vm878, %v10401, %v10405
  %v10407 = vrot.slane %v10141, 4
  %v10408 = vrot.slane %v10144, 5
  %v10409 = vor.u32 %v10407, %v10408
  %v10410 = vrot.slane %v10409, 4
  %v10411 = vrot.slane %v10153, 5
  %v10412 = vsel %vm878, %v10410, %v10411
  %v10413 = vrot.slane %v10150, 4
  %v10414 = vor.u32 %v10413, %v10411
  %v10415 = vrot.slane %v10414, 4
  %v10417 = vshll.u32 %v10235, 16
  %v10419 = vrot.slane %v10417, 5
  %v10420 = vsel %vm878, %v10415, %v10419
  %v10421 = vrot.slane %v10163, 4
  %v10422 = vrot.slane %v10166, 5
  %v10423 = vor.u32 %v10421, %v10422
  %v10424 = vrot.slane %v10423, 4
  %v10425 = vrot.slane %v10175, 5
  %v10426 = vsel %vm878, %v10424, %v10425
  %v10427 = vrot.slane %v10172, 4
  %v10428 = vor.u32 %v10427, %v10425
  %v10429 = vrot.slane %v10428, 4
  %v10431 = vshll.u32 %v10236, 16
  %v10433 = vrot.slane %v10431, 5
  %v10434 = vsel %vm878, %v10429, %v10433
  %v10435 = vrot.slane %v10185, 4
  %v10436 = vrot.slane %v10188, 5
  %v10437 = vor.u32 %v10435, %v10436
  %v10438 = vrot.slane %v10437, 4
  %v10439 = vrot.slane %v10197, 5
  %v10440 = vsel %vm878, %v10438, %v10439
  %v10441 = vrot.slane %v10194, 4
  %v10442 = vor.u32 %v10441, %v10439
  %v10443 = vrot.slane %v10442, 4
  %v10445 = vshll.u32 %v10237, 16
  %v10447 = vrot.slane %v10445, 5
  %v10448 = vsel %vm878, %v10443, %v10447
  %v10449 = vrot.slane %v10207, 4
  %v10450 = vrot.slane %v10210, 5
  %v10451 = vor.u32 %v10449, %v10450
  %v10452 = vrot.slane %v10451, 4
  %v10453 = vrot.slane %v10219, 5
  %v10454 = vsel %vm878, %v10452, %v10453
  %v10455 = vrot.slane %v10216, 4
  %v10456 = vor.u32 %v10455, %v10453
  %v10457 = vrot.slane %v10456, 4
  %v10459 = vshll.u32 %v10238, 16
  %v10461 = vrot.slane %v10459, 5
  %v10462 = vsel %vm878, %v10457, %v10461
  %v10463 = vunpack.c.l.b16 %v8603
  %v10464 = vunpack.c.l.b16 %v8612
  %v10465 = vunpack.c.l.b16 %v8625
  %v10466 = vunpack.c.l.b16 %v8634
  %v10467 = vunpack.c.l.b16 %v8647
  %v10468 = vunpack.c.l.b16 %v8656
  %v10469 = vunpack.c.l.b16 %v8669
  %v10470 = vunpack.c.l.b16 %v8678
  %v10471 = vunpack.c.l.b16 %v8691
  %v10472 = vunpack.c.l.b16 %v8700
  %v10473 = vunpack.c.l.b16 %v8713
  %v10474 = vunpack.c.l.b16 %v8722
  %v10475 = vunpack.c.l.b16 %v8735
  %v10476 = vunpack.c.l.b16 %v8744
  %v10477 = vunpack.c.l.b16 %v8757
  %v10478 = vunpack.c.l.b16 %v8766
  %v10479 = vunpack.c.l.b16 %v8779
  %v10480 = vunpack.c.l.b16 %v8788
  %v10481 = vunpack.c.l.b16 %v8801
  %v10482 = vunpack.c.l.b16 %v8810
  %v10483 = vunpack.c.l.b16 %v8823
  %v10484 = vunpack.c.l.b16 %v8832
  %v10485 = vunpack.c.l.b16 %v8845
  %v10486 = vunpack.c.l.b16 %v8854
  %v10487 = vunpack.c.l.b16 %v8867
  %v10488 = vunpack.c.l.b16 %v8876
  %v10489 = vunpack.c.l.b16 %v8889
  %v10490 = vunpack.c.l.b16 %v8898
  %v10491 = vunpack.c.l.b16 %v8911
  %v10492 = vunpack.c.l.b16 %v8920
  %v10493 = vunpack.c.l.b16 %v8933
  %v10494 = vunpack.c.l.b16 %v8942
  %v10495 = vpack.c.b16 %v10464, %v10463
  %v10496 = vpack.c.b16 %v10466, %v10465
  %v10497 = vpack.c.b16 %v10468, %v10467
  %v10498 = vpack.c.b16 %v10470, %v10469
  %v10499 = vpack.c.b16 %v10472, %v10471
  %v10500 = vpack.c.b16 %v10474, %v10473
  %v10501 = vpack.c.b16 %v10476, %v10475
  %v10502 = vpack.c.b16 %v10478, %v10477
  %v10503 = vpack.c.b16 %v10480, %v10479
  %v10504 = vpack.c.b16 %v10482, %v10481
  %v10505 = vpack.c.b16 %v10484, %v10483
  %v10506 = vpack.c.b16 %v10486, %v10485
  %v10507 = vpack.c.b16 %v10488, %v10487
  %v10508 = vpack.c.b16 %v10490, %v10489
  %v10509 = vpack.c.b16 %v10492, %v10491
  %v10510 = vpack.c.b16 %v10494, %v10493
  %v10559 = vunpack.c.l.b16 %v8544
  %v10560 = vunpack.c.l.b16 %v8545
  %v10561 = vunpack.c.l.b16 %v8547
  %v10562 = vunpack.c.l.b16 %v8548
  %v10563 = vunpack.c.l.b16 %v8550
  %v10564 = vunpack.c.l.b16 %v8551
  %v10565 = vunpack.c.l.b16 %v8553
  %v10566 = vunpack.c.l.b16 %v8554
  %v10567 = vunpack.c.l.b16 %v8556
  %v10568 = vunpack.c.l.b16 %v8557
  %v10569 = vunpack.c.l.b16 %v8559
  %v10570 = vunpack.c.l.b16 %v8560
  %v10571 = vunpack.c.l.b16 %v8562
  %v10572 = vunpack.c.l.b16 %v8563
  %v10573 = vunpack.c.l.b16 %v8565
  %v10574 = vunpack.c.l.b16 %v8566
  %v10575 = vunpack.c.l.b16 %v8568
  %v10576 = vunpack.c.l.b16 %v8569
  %v10577 = vunpack.c.l.b16 %v8571
  %v10578 = vunpack.c.l.b16 %v8572
  %v10579 = vunpack.c.l.b16 %v8574
  %v10580 = vunpack.c.l.b16 %v8575
  %v10581 = vunpack.c.l.b16 %v8577
  %v10582 = vunpack.c.l.b16 %v8578
  %v10583 = vunpack.c.l.b16 %v8580
  %v10584 = vunpack.c.l.b16 %v8581
  %v10585 = vunpack.c.l.b16 %v8583
  %v10586 = vunpack.c.l.b16 %v8584
  %v10587 = vunpack.c.l.b16 %v8586
  %v10588 = vunpack.c.l.b16 %v8587
  %v10589 = vunpack.c.l.b16 %v8589
  %v10590 = vunpack.c.l.b16 %v8590
  %v10591 = vpack.c.b16 %v10560, %v10559
  %v10592 = vpack.c.b16 %v10562, %v10561
  %v10593 = vpack.c.b16 %v10564, %v10563
  %v10594 = vpack.c.b16 %v10566, %v10565
  %v10595 = vpack.c.b16 %v10568, %v10567
  %v10596 = vpack.c.b16 %v10570, %v10569
  %v10597 = vpack.c.b16 %v10572, %v10571
  %v10598 = vpack.c.b16 %v10574, %v10573
  %v10599 = vpack.c.b16 %v10576, %v10575
  %v10600 = vpack.c.b16 %v10578, %v10577
  %v10601 = vpack.c.b16 %v10580, %v10579
  %v10602 = vpack.c.b16 %v10582, %v10581
  %v10603 = vpack.c.b16 %v10584, %v10583
  %v10604 = vpack.c.b16 %v10586, %v10585
  %v10605 = vpack.c.b16 %v10588, %v10587
  %v10606 = vpack.c.b16 %v10590, %v10589
  %v10623 = vunpack.c.l.b16 %v8964
  %v10624 = vunpack.c.l.b16 %v8972
  %v10625 = vunpack.c.l.b16 %v8978
  %v10626 = vunpack.c.l.b16 %v8986
  %v10627 = vunpack.c.l.b16 %v8992
  %v10628 = vunpack.c.l.b16 %v9000
  %v10629 = vunpack.c.l.b16 %v9006
  %v10630 = vunpack.c.l.b16 %v9014
  %v10631 = vunpack.c.l.b16 %v9020
  %v10632 = vunpack.c.l.b16 %v9028
  %v10633 = vunpack.c.l.b16 %v9034
  %v10634 = vunpack.c.l.b16 %v9042
  %v10635 = vunpack.c.l.b16 %v9048
  %v10636 = vunpack.c.l.b16 %v9056
  %v10637 = vunpack.c.l.b16 %v9062
  %v10638 = vunpack.c.l.b16 %v9070
  %v10639 = vunpack.c.l.b16 %v9076
  %v10640 = vunpack.c.l.b16 %v9084
  %v10641 = vunpack.c.l.b16 %v9090
  %v10642 = vunpack.c.l.b16 %v9098
  %v10643 = vunpack.c.l.b16 %v9104
  %v10644 = vunpack.c.l.b16 %v9112
  %v10645 = vunpack.c.l.b16 %v9118
  %v10646 = vunpack.c.l.b16 %v9126
  %v10647 = vunpack.c.l.b16 %v9132
  %v10648 = vunpack.c.l.b16 %v9140
  %v10649 = vunpack.c.l.b16 %v9146
  %v10650 = vunpack.c.l.b16 %v9154
  %v10651 = vunpack.c.l.b16 %v9160
  %v10652 = vunpack.c.l.b16 %v9168
  %v10653 = vunpack.c.l.b16 %v9174
  %v10654 = vunpack.c.l.b16 %v9182
  %v10655 = vpack.c.b16 %v10624, %v10623
  %v10656 = vpack.c.b16 %v10626, %v10625
  %v10657 = vpack.c.b16 %v10628, %v10627
  %v10658 = vpack.c.b16 %v10630, %v10629
  %v10659 = vpack.c.b16 %v10632, %v10631
  %v10660 = vpack.c.b16 %v10634, %v10633
  %v10661 = vpack.c.b16 %v10636, %v10635
  %v10662 = vpack.c.b16 %v10638, %v10637
  %v10663 = vpack.c.b16 %v10640, %v10639
  %v10664 = vpack.c.b16 %v10642, %v10641
  %v10665 = vpack.c.b16 %v10644, %v10643
  %v10666 = vpack.c.b16 %v10646, %v10645
  %v10667 = vpack.c.b16 %v10648, %v10647
  %v10668 = vpack.c.b16 %v10650, %v10649
  %v10669 = vpack.c.b16 %v10652, %v10651
  %v10670 = vpack.c.b16 %v10654, %v10653
  %v10687 = vunpack.c.l.b16 %v9243
  %v10688 = vunpack.c.l.b16 %v9252
  %v10689 = vunpack.c.l.b16 %v9265
  %v10690 = vunpack.c.l.b16 %v9274
  %v10691 = vunpack.c.l.b16 %v9287
  %v10692 = vunpack.c.l.b16 %v9296
  %v10693 = vunpack.c.l.b16 %v9309
  %v10694 = vunpack.c.l.b16 %v9318
  %v10695 = vunpack.c.l.b16 %v9331
  %v10696 = vunpack.c.l.b16 %v9340
  %v10697 = vunpack.c.l.b16 %v9353
  %v10698 = vunpack.c.l.b16 %v9362
  %v10699 = vunpack.c.l.b16 %v9375
  %v10700 = vunpack.c.l.b16 %v9384
  %v10701 = vunpack.c.l.b16 %v9397
  %v10702 = vunpack.c.l.b16 %v9406
  %v10703 = vunpack.c.l.b16 %v9419
  %v10704 = vunpack.c.l.b16 %v9428
  %v10705 = vunpack.c.l.b16 %v9441
  %v10706 = vunpack.c.l.b16 %v9450
  %v10707 = vunpack.c.l.b16 %v9463
  %v10708 = vunpack.c.l.b16 %v9472
  %v10709 = vunpack.c.l.b16 %v9485
  %v10710 = vunpack.c.l.b16 %v9494
  %v10711 = vunpack.c.l.b16 %v9507
  %v10712 = vunpack.c.l.b16 %v9516
  %v10713 = vunpack.c.l.b16 %v9529
  %v10714 = vunpack.c.l.b16 %v9538
  %v10715 = vunpack.c.l.b16 %v9551
  %v10716 = vunpack.c.l.b16 %v9560
  %v10717 = vunpack.c.l.b16 %v9573
  %v10718 = vunpack.c.l.b16 %v9582
  %v10719 = vpack.c.b16 %v10688, %v10687
  %v10720 = vpack.c.b16 %v10690, %v10689
  %v10721 = vpack.c.b16 %v10692, %v10691
  %v10722 = vpack.c.b16 %v10694, %v10693
  %v10723 = vpack.c.b16 %v10696, %v10695
  %v10724 = vpack.c.b16 %v10698, %v10697
  %v10725 = vpack.c.b16 %v10700, %v10699
  %v10726 = vpack.c.b16 %v10702, %v10701
  %v10727 = vpack.c.b16 %v10704, %v10703
  %v10728 = vpack.c.b16 %v10706, %v10705
  %v10729 = vpack.c.b16 %v10708, %v10707
  %v10730 = vpack.c.b16 %v10710, %v10709
  %v10731 = vpack.c.b16 %v10712, %v10711
  %v10732 = vpack.c.b16 %v10714, %v10713
  %v10733 = vpack.c.b16 %v10716, %v10715
  %v10734 = vpack.c.b16 %v10718, %v10717
  %v10783 = vunpack.c.l.b16 %v9184
  %v10784 = vunpack.c.l.b16 %v9185
  %v10785 = vunpack.c.l.b16 %v9187
  %v10786 = vunpack.c.l.b16 %v9188
  %v10787 = vunpack.c.l.b16 %v9190
  %v10788 = vunpack.c.l.b16 %v9191
  %v10789 = vunpack.c.l.b16 %v9193
  %v10790 = vunpack.c.l.b16 %v9194
  %v10791 = vunpack.c.l.b16 %v9196
  %v10792 = vunpack.c.l.b16 %v9197
  %v10793 = vunpack.c.l.b16 %v9199
  %v10794 = vunpack.c.l.b16 %v9200
  %v10795 = vunpack.c.l.b16 %v9202
  %v10796 = vunpack.c.l.b16 %v9203
  %v10797 = vunpack.c.l.b16 %v9205
  %v10798 = vunpack.c.l.b16 %v9206
  %v10799 = vunpack.c.l.b16 %v9208
  %v10800 = vunpack.c.l.b16 %v9209
  %v10801 = vunpack.c.l.b16 %v9211
  %v10802 = vunpack.c.l.b16 %v9212
  %v10803 = vunpack.c.l.b16 %v9214
  %v10804 = vunpack.c.l.b16 %v9215
  %v10805 = vunpack.c.l.b16 %v9217
  %v10806 = vunpack.c.l.b16 %v9218
  %v10807 = vunpack.c.l.b16 %v9220
  %v10808 = vunpack.c.l.b16 %v9221
  %v10809 = vunpack.c.l.b16 %v9223
  %v10810 = vunpack.c.l.b16 %v9224
  %v10811 = vunpack.c.l.b16 %v9226
  %v10812 = vunpack.c.l.b16 %v9227
  %v10813 = vunpack.c.l.b16 %v9229
  %v10814 = vunpack.c.l.b16 %v9230
  %v10815 = vpack.c.b16 %v10784, %v10783
  %v10816 = vpack.c.b16 %v10786, %v10785
  %v10817 = vpack.c.b16 %v10788, %v10787
  %v10818 = vpack.c.b16 %v10790, %v10789
  %v10819 = vpack.c.b16 %v10792, %v10791
  %v10820 = vpack.c.b16 %v10794, %v10793
  %v10821 = vpack.c.b16 %v10796, %v10795
  %v10822 = vpack.c.b16 %v10798, %v10797
  %v10823 = vpack.c.b16 %v10800, %v10799
  %v10824 = vpack.c.b16 %v10802, %v10801
  %v10825 = vpack.c.b16 %v10804, %v10803
  %v10826 = vpack.c.b16 %v10806, %v10805
  %v10827 = vpack.c.b16 %v10808, %v10807
  %v10828 = vpack.c.b16 %v10810, %v10809
  %v10829 = vpack.c.b16 %v10812, %v10811
  %v10830 = vpack.c.b16 %v10814, %v10813
  %v10847 = vunpack.c.l.b16 %v9604
  %v10848 = vunpack.c.l.b16 %v9612
  %v10849 = vunpack.c.l.b16 %v9618
  %v10850 = vunpack.c.l.b16 %v9626
  %v10851 = vunpack.c.l.b16 %v9632
  %v10852 = vunpack.c.l.b16 %v9640
  %v10853 = vunpack.c.l.b16 %v9646
  %v10854 = vunpack.c.l.b16 %v9654
  %v10855 = vunpack.c.l.b16 %v9660
  %v10856 = vunpack.c.l.b16 %v9668
  %v10857 = vunpack.c.l.b16 %v9674
  %v10858 = vunpack.c.l.b16 %v9682
  %v10859 = vunpack.c.l.b16 %v9688
  %v10860 = vunpack.c.l.b16 %v9696
  %v10861 = vunpack.c.l.b16 %v9702
  %v10862 = vunpack.c.l.b16 %v9710
  %v10863 = vunpack.c.l.b16 %v9716
  %v10864 = vunpack.c.l.b16 %v9724
  %v10865 = vunpack.c.l.b16 %v9730
  %v10866 = vunpack.c.l.b16 %v9738
  %v10867 = vunpack.c.l.b16 %v9744
  %v10868 = vunpack.c.l.b16 %v9752
  %v10869 = vunpack.c.l.b16 %v9758
  %v10870 = vunpack.c.l.b16 %v9766
  %v10871 = vunpack.c.l.b16 %v9772
  %v10872 = vunpack.c.l.b16 %v9780
  %v10873 = vunpack.c.l.b16 %v9786
  %v10874 = vunpack.c.l.b16 %v9794
  %v10875 = vunpack.c.l.b16 %v9800
  %v10876 = vunpack.c.l.b16 %v9808
  %v10877 = vunpack.c.l.b16 %v9814
  %v10878 = vunpack.c.l.b16 %v9822
  %v10879 = vpack.c.b16 %v10848, %v10847
  %v10880 = vpack.c.b16 %v10850, %v10849
  %v10881 = vpack.c.b16 %v10852, %v10851
  %v10882 = vpack.c.b16 %v10854, %v10853
  %v10883 = vpack.c.b16 %v10856, %v10855
  %v10884 = vpack.c.b16 %v10858, %v10857
  %v10885 = vpack.c.b16 %v10860, %v10859
  %v10886 = vpack.c.b16 %v10862, %v10861
  %v10887 = vpack.c.b16 %v10864, %v10863
  %v10888 = vpack.c.b16 %v10866, %v10865
  %v10889 = vpack.c.b16 %v10868, %v10867
  %v10890 = vpack.c.b16 %v10870, %v10869
  %v10891 = vpack.c.b16 %v10872, %v10871
  %v10892 = vpack.c.b16 %v10874, %v10873
  %v10893 = vpack.c.b16 %v10876, %v10875
  %v10894 = vpack.c.b16 %v10878, %v10877
  %v10911 = vunpack.c.l.b16 %v9883
  %v10912 = vunpack.c.l.b16 %v9892
  %v10913 = vunpack.c.l.b16 %v9905
  %v10914 = vunpack.c.l.b16 %v9914
  %v10915 = vunpack.c.l.b16 %v9927
  %v10916 = vunpack.c.l.b16 %v9936
  %v10917 = vunpack.c.l.b16 %v9949
  %v10918 = vunpack.c.l.b16 %v9958
  %v10919 = vunpack.c.l.b16 %v9971
  %v10920 = vunpack.c.l.b16 %v9980
  %v10921 = vunpack.c.l.b16 %v9993
  %v10922 = vunpack.c.l.b16 %v10002
  %v10923 = vunpack.c.l.b16 %v10015
  %v10924 = vunpack.c.l.b16 %v10024
  %v10925 = vunpack.c.l.b16 %v10037
  %v10926 = vunpack.c.l.b16 %v10046
  %v10927 = vunpack.c.l.b16 %v10059
  %v10928 = vunpack.c.l.b16 %v10068
  %v10929 = vunpack.c.l.b16 %v10081
  %v10930 = vunpack.c.l.b16 %v10090
  %v10931 = vunpack.c.l.b16 %v10103
  %v10932 = vunpack.c.l.b16 %v10112
  %v10933 = vunpack.c.l.b16 %v10125
  %v10934 = vunpack.c.l.b16 %v10134
  %v10935 = vunpack.c.l.b16 %v10147
  %v10936 = vunpack.c.l.b16 %v10156
  %v10937 = vunpack.c.l.b16 %v10169
  %v10938 = vunpack.c.l.b16 %v10178
  %v10939 = vunpack.c.l.b16 %v10191
  %v10940 = vunpack.c.l.b16 %v10200
  %v10941 = vunpack.c.l.b16 %v10213
  %v10942 = vunpack.c.l.b16 %v10222
  %v10943 = vpack.c.b16 %v10912, %v10911
  %v10944 = vpack.c.b16 %v10914, %v10913
  %v10945 = vpack.c.b16 %v10916, %v10915
  %v10946 = vpack.c.b16 %v10918, %v10917
  %v10947 = vpack.c.b16 %v10920, %v10919
  %v10948 = vpack.c.b16 %v10922, %v10921
  %v10949 = vpack.c.b16 %v10924, %v10923
  %v10950 = vpack.c.b16 %v10926, %v10925
  %v10951 = vpack.c.b16 %v10928, %v10927
  %v10952 = vpack.c.b16 %v10930, %v10929
  %v10953 = vpack.c.b16 %v10932, %v10931
  %v10954 = vpack.c.b16 %v10934, %v10933
  %v10955 = vpack.c.b16 %v10936, %v10935
  %v10956 = vpack.c.b16 %v10938, %v10937
  %v10957 = vpack.c.b16 %v10940, %v10939
  %v10958 = vpack.c.b16 %v10942, %v10941
  %v11007 = vunpack.c.l.b16 %v9824
  %v11008 = vunpack.c.l.b16 %v9825
  %v11009 = vunpack.c.l.b16 %v9827
  %v11010 = vunpack.c.l.b16 %v9828
  %v11011 = vunpack.c.l.b16 %v9830
  %v11012 = vunpack.c.l.b16 %v9831
  %v11013 = vunpack.c.l.b16 %v9833
  %v11014 = vunpack.c.l.b16 %v9834
  %v11015 = vunpack.c.l.b16 %v9836
  %v11016 = vunpack.c.l.b16 %v9837
  %v11017 = vunpack.c.l.b16 %v9839
  %v11018 = vunpack.c.l.b16 %v9840
  %v11019 = vunpack.c.l.b16 %v9842
  %v11020 = vunpack.c.l.b16 %v9843
  %v11021 = vunpack.c.l.b16 %v9845
  %v11022 = vunpack.c.l.b16 %v9846
  %v11023 = vunpack.c.l.b16 %v9848
  %v11024 = vunpack.c.l.b16 %v9849
  %v11025 = vunpack.c.l.b16 %v9851
  %v11026 = vunpack.c.l.b16 %v9852
  %v11027 = vunpack.c.l.b16 %v9854
  %v11028 = vunpack.c.l.b16 %v9855
  %v11029 = vunpack.c.l.b16 %v9857
  %v11030 = vunpack.c.l.b16 %v9858
  %v11031 = vunpack.c.l.b16 %v9860
  %v11032 = vunpack.c.l.b16 %v9861
  %v11033 = vunpack.c.l.b16 %v9863
  %v11034 = vunpack.c.l.b16 %v9864
  %v11035 = vunpack.c.l.b16 %v9866
  %v11036 = vunpack.c.l.b16 %v9867
  %v11037 = vunpack.c.l.b16 %v9869
  %v11038 = vunpack.c.l.b16 %v9870
  %v11039 = vpack.c.b16 %v11008, %v11007
  %v11040 = vpack.c.b16 %v11010, %v11009
  %v11041 = vpack.c.b16 %v11012, %v11011
  %v11042 = vpack.c.b16 %v11014, %v11013
  %v11043 = vpack.c.b16 %v11016, %v11015
  %v11044 = vpack.c.b16 %v11018, %v11017
  %v11045 = vpack.c.b16 %v11020, %v11019
  %v11046 = vpack.c.b16 %v11022, %v11021
  %v11047 = vpack.c.b16 %v11024, %v11023
  %v11048 = vpack.c.b16 %v11026, %v11025
  %v11049 = vpack.c.b16 %v11028, %v11027
  %v11050 = vpack.c.b16 %v11030, %v11029
  %v11051 = vpack.c.b16 %v11032, %v11031
  %v11052 = vpack.c.b16 %v11034, %v11033
  %v11053 = vpack.c.b16 %v11036, %v11035
  %v11054 = vpack.c.b16 %v11038, %v11037
  %v11071 = vunpack.c.l.b16 %v10244
  %v11072 = vunpack.c.l.b16 %v10252
  %v11073 = vunpack.c.l.b16 %v10258
  %v11074 = vunpack.c.l.b16 %v10266
  %v11075 = vunpack.c.l.b16 %v10272
  %v11076 = vunpack.c.l.b16 %v10280
  %v11077 = vunpack.c.l.b16 %v10286
  %v11078 = vunpack.c.l.b16 %v10294
  %v11079 = vunpack.c.l.b16 %v10300
  %v11080 = vunpack.c.l.b16 %v10308
  %v11081 = vunpack.c.l.b16 %v10314
  %v11082 = vunpack.c.l.b16 %v10322
  %v11083 = vunpack.c.l.b16 %v10328
  %v11084 = vunpack.c.l.b16 %v10336
  %v11085 = vunpack.c.l.b16 %v10342
  %v11086 = vunpack.c.l.b16 %v10350
  %v11087 = vunpack.c.l.b16 %v10356
  %v11088 = vunpack.c.l.b16 %v10364
  %v11089 = vunpack.c.l.b16 %v10370
  %v11090 = vunpack.c.l.b16 %v10378
  %v11091 = vunpack.c.l.b16 %v10384
  %v11092 = vunpack.c.l.b16 %v10392
  %v11093 = vunpack.c.l.b16 %v10398
  %v11094 = vunpack.c.l.b16 %v10406
  %v11095 = vunpack.c.l.b16 %v10412
  %v11096 = vunpack.c.l.b16 %v10420
  %v11097 = vunpack.c.l.b16 %v10426
  %v11098 = vunpack.c.l.b16 %v10434
  %v11099 = vunpack.c.l.b16 %v10440
  %v11100 = vunpack.c.l.b16 %v10448
  %v11101 = vunpack.c.l.b16 %v10454
  %v11102 = vunpack.c.l.b16 %v10462
  %v11103 = vpack.c.b16 %v11072, %v11071
  %v11104 = vpack.c.b16 %v11074, %v11073
  %v11105 = vpack.c.b16 %v11076, %v11075
  %v11106 = vpack.c.b16 %v11078, %v11077
  %v11107 = vpack.c.b16 %v11080, %v11079
  %v11108 = vpack.c.b16 %v11082, %v11081
  %v11109 = vpack.c.b16 %v11084, %v11083
  %v11110 = vpack.c.b16 %v11086, %v11085
  %v11111 = vpack.c.b16 %v11088, %v11087
  %v11112 = vpack.c.b16 %v11090, %v11089
  %v11113 = vpack.c.b16 %v11092, %v11091
  %v11114 = vpack.c.b16 %v11094, %v11093
  %v11115 = vpack.c.b16 %v11096, %v11095
  %v11116 = vpack.c.b16 %v11098, %v11097
  %v11117 = vpack.c.b16 %v11100, %v11099
  %v11118 = vpack.c.b16 %v11102, %v11101
  %11135 = vmatpush.bf16.msra.mxu0 %v3351
  %11136 = vmatpush.bf16.msra.mxu0 %v3350
  %11137 = vmatpush.bf16.msra.mxu0 %v3349
  %11138 = vmatpush.bf16.msra.mxu0 %v3348
  %11139 = vmatpush.bf16.msra.mxu0 %v3347
  %11140 = vmatpush.bf16.msra.mxu0 %v3346
  %11141 = vmatpush.bf16.msra.mxu0 %v3345
  %11142 = vmatpush.bf16.msra.mxu0 %v3344
  %11143 = vmatmul.bf16.gmra.mxu0 %v10495
  %v11144 = vpop.f32.mrf.mxu0
  %v11145 = vadd.f32 0.0, %v11144
  %v11146 = vpop.f32.mrf.mxu0
  %v11147 = vadd.f32 0.0, %v11146
  %11148 = vmatmul.bf16.gmra.mxu0 %v10496
  %v11149 = vpop.f32.mrf.mxu0
  %v11150 = vadd.f32 0.0, %v11149
  %v11151 = vpop.f32.mrf.mxu0
  %v11152 = vadd.f32 0.0, %v11151
  %11153 = vmatmul.bf16.gmra.mxu0 %v10497
  %v11154 = vpop.f32.mrf.mxu0
  %v11155 = vadd.f32 0.0, %v11154
  %v11156 = vpop.f32.mrf.mxu0
  %v11157 = vadd.f32 0.0, %v11156
  %11158 = vmatmul.bf16.gmra.mxu0 %v10498
  %v11159 = vpop.f32.mrf.mxu0
  %v11160 = vadd.f32 0.0, %v11159
  %v11161 = vpop.f32.mrf.mxu0
  %v11162 = vadd.f32 0.0, %v11161
  %11163 = vmatmul.bf16.gmra.mxu0 %v10499
  %v11164 = vpop.f32.mrf.mxu0
  %v11165 = vadd.f32 0.0, %v11164
  %v11166 = vpop.f32.mrf.mxu0
  %v11167 = vadd.f32 0.0, %v11166
  %11168 = vmatmul.bf16.gmra.mxu0 %v10500
  %v11169 = vpop.f32.mrf.mxu0
  %v11170 = vadd.f32 0.0, %v11169
  %v11171 = vpop.f32.mrf.mxu0
  %v11172 = vadd.f32 0.0, %v11171
  %11173 = vmatmul.bf16.gmra.mxu0 %v10501
  %v11174 = vpop.f32.mrf.mxu0
  %v11175 = vadd.f32 0.0, %v11174
  %v11176 = vpop.f32.mrf.mxu0
  %v11177 = vadd.f32 0.0, %v11176
  %11178 = vmatmul.bf16.gmra.mxu0 %v10502
  %v11179 = vpop.f32.mrf.mxu0
  %v11180 = vadd.f32 0.0, %v11179
  %v11181 = vpop.f32.mrf.mxu0
  %v11182 = vadd.f32 0.0, %v11181
  %11183 = vmatmul.bf16.gmra.mxu0 %v10503
  %v11184 = vpop.f32.mrf.mxu0
  %v11185 = vadd.f32 0.0, %v11184
  %v11186 = vpop.f32.mrf.mxu0
  %v11187 = vadd.f32 0.0, %v11186
  %11188 = vmatmul.bf16.gmra.mxu0 %v10504
  %v11189 = vpop.f32.mrf.mxu0
  %v11190 = vadd.f32 0.0, %v11189
  %v11191 = vpop.f32.mrf.mxu0
  %v11192 = vadd.f32 0.0, %v11191
  %11193 = vmatmul.bf16.gmra.mxu0 %v10505
  %v11194 = vpop.f32.mrf.mxu0
  %v11195 = vadd.f32 0.0, %v11194
  %v11196 = vpop.f32.mrf.mxu0
  %v11197 = vadd.f32 0.0, %v11196
  %11198 = vmatmul.bf16.gmra.mxu0 %v10506
  %v11199 = vpop.f32.mrf.mxu0
  %v11200 = vadd.f32 0.0, %v11199
  %v11201 = vpop.f32.mrf.mxu0
  %v11202 = vadd.f32 0.0, %v11201
  %11203 = vmatmul.bf16.gmra.mxu0 %v10507
  %v11204 = vpop.f32.mrf.mxu0
  %v11205 = vadd.f32 0.0, %v11204
  %v11206 = vpop.f32.mrf.mxu0
  %v11207 = vadd.f32 0.0, %v11206
  %11208 = vmatmul.bf16.gmra.mxu0 %v10508
  %v11209 = vpop.f32.mrf.mxu0
  %v11210 = vadd.f32 0.0, %v11209
  %v11211 = vpop.f32.mrf.mxu0
  %v11212 = vadd.f32 0.0, %v11211
  %11213 = vmatmul.bf16.gmra.mxu0 %v10509
  %v11214 = vpop.f32.mrf.mxu0
  %v11215 = vadd.f32 0.0, %v11214
  %v11216 = vpop.f32.mrf.mxu0
  %v11217 = vadd.f32 0.0, %v11216
  %11218 = vmatmul.bf16.gmra.mxu0 %v10510
  %v11219 = vpop.f32.mrf.mxu0
  %v11220 = vadd.f32 0.0, %v11219
  %v11221 = vpop.f32.mrf.mxu0
  %v11222 = vadd.f32 0.0, %v11221
  %11223 = vdwg.mxu0
  %11224 = vmatpush.bf16.msra.mxu0 %v3359
  %11225 = vmatpush.bf16.msra.mxu0 %v3358
  %11226 = vmatpush.bf16.msra.mxu0 %v3357
  %11227 = vmatpush.bf16.msra.mxu0 %v3356
  %11228 = vmatpush.bf16.msra.mxu0 %v3355
  %11229 = vmatpush.bf16.msra.mxu0 %v3354
  %11230 = vmatpush.bf16.msra.mxu0 %v3353
  %11231 = vmatpush.bf16.msra.mxu0 %v3352
  %11232 = vmatmul.bf16.gmra.mxu0 %v10591
  %v11233 = vpop.f32.mrf.mxu0
  %v11234 = vadd.f32 %v11145, %v11233
  %v11235 = vpop.f32.mrf.mxu0
  %v11236 = vadd.f32 %v11147, %v11235
  %11237 = vmatmul.bf16.gmra.mxu0 %v10592
  %v11238 = vpop.f32.mrf.mxu0
  %v11239 = vadd.f32 %v11150, %v11238
  %v11240 = vpop.f32.mrf.mxu0
  %v11241 = vadd.f32 %v11152, %v11240
  %11242 = vmatmul.bf16.gmra.mxu0 %v10593
  %v11243 = vpop.f32.mrf.mxu0
  %v11244 = vadd.f32 %v11155, %v11243
  %v11245 = vpop.f32.mrf.mxu0
  %v11246 = vadd.f32 %v11157, %v11245
  %11247 = vmatmul.bf16.gmra.mxu0 %v10594
  %v11248 = vpop.f32.mrf.mxu0
  %v11249 = vadd.f32 %v11160, %v11248
  %v11250 = vpop.f32.mrf.mxu0
  %v11251 = vadd.f32 %v11162, %v11250
  %11252 = vmatmul.bf16.gmra.mxu0 %v10595
  %v11253 = vpop.f32.mrf.mxu0
  %v11254 = vadd.f32 %v11165, %v11253
  %v11255 = vpop.f32.mrf.mxu0
  %v11256 = vadd.f32 %v11167, %v11255
  %11257 = vmatmul.bf16.gmra.mxu0 %v10596
  %v11258 = vpop.f32.mrf.mxu0
  %v11259 = vadd.f32 %v11170, %v11258
  %v11260 = vpop.f32.mrf.mxu0
  %v11261 = vadd.f32 %v11172, %v11260
  %11262 = vmatmul.bf16.gmra.mxu0 %v10597
  %v11263 = vpop.f32.mrf.mxu0
  %v11264 = vadd.f32 %v11175, %v11263
  %v11265 = vpop.f32.mrf.mxu0
  %v11266 = vadd.f32 %v11177, %v11265
  %11267 = vmatmul.bf16.gmra.mxu0 %v10598
  %v11268 = vpop.f32.mrf.mxu0
  %v11269 = vadd.f32 %v11180, %v11268
  %v11270 = vpop.f32.mrf.mxu0
  %v11271 = vadd.f32 %v11182, %v11270
  %11272 = vmatmul.bf16.gmra.mxu0 %v10599
  %v11273 = vpop.f32.mrf.mxu0
  %v11274 = vadd.f32 %v11185, %v11273
  %v11275 = vpop.f32.mrf.mxu0
  %v11276 = vadd.f32 %v11187, %v11275
  %11277 = vmatmul.bf16.gmra.mxu0 %v10600
  %v11278 = vpop.f32.mrf.mxu0
  %v11279 = vadd.f32 %v11190, %v11278
  %v11280 = vpop.f32.mrf.mxu0
  %v11281 = vadd.f32 %v11192, %v11280
  %11282 = vmatmul.bf16.gmra.mxu0 %v10601
  %v11283 = vpop.f32.mrf.mxu0
  %v11284 = vadd.f32 %v11195, %v11283
  %v11285 = vpop.f32.mrf.mxu0
  %v11286 = vadd.f32 %v11197, %v11285
  %11287 = vmatmul.bf16.gmra.mxu0 %v10602
  %v11288 = vpop.f32.mrf.mxu0
  %v11289 = vadd.f32 %v11200, %v11288
  %v11290 = vpop.f32.mrf.mxu0
  %v11291 = vadd.f32 %v11202, %v11290
  %11292 = vmatmul.bf16.gmra.mxu0 %v10603
  %v11293 = vpop.f32.mrf.mxu0
  %v11294 = vadd.f32 %v11205, %v11293
  %v11295 = vpop.f32.mrf.mxu0
  %v11296 = vadd.f32 %v11207, %v11295
  %11297 = vmatmul.bf16.gmra.mxu0 %v10604
  %v11298 = vpop.f32.mrf.mxu0
  %v11299 = vadd.f32 %v11210, %v11298
  %v11300 = vpop.f32.mrf.mxu0
  %v11301 = vadd.f32 %v11212, %v11300
  %11302 = vmatmul.bf16.gmra.mxu0 %v10605
  %v11303 = vpop.f32.mrf.mxu0
  %v11304 = vadd.f32 %v11215, %v11303
  %v11305 = vpop.f32.mrf.mxu0
  %v11306 = vadd.f32 %v11217, %v11305
  %11307 = vmatmul.bf16.gmra.mxu0 %v10606
  %v11308 = vpop.f32.mrf.mxu0
  %v11309 = vadd.f32 %v11220, %v11308
  %v11310 = vpop.f32.mrf.mxu0
  %v11311 = vadd.f32 %v11222, %v11310
  %11312 = vdwg.mxu0
  %11313 = vmatpush.bf16.msra.mxu0 %v3367
  %11314 = vmatpush.bf16.msra.mxu0 %v3366
  %11315 = vmatpush.bf16.msra.mxu0 %v3365
  %11316 = vmatpush.bf16.msra.mxu0 %v3364
  %11317 = vmatpush.bf16.msra.mxu0 %v3363
  %11318 = vmatpush.bf16.msra.mxu0 %v3362
  %11319 = vmatpush.bf16.msra.mxu0 %v3361
  %11320 = vmatpush.bf16.msra.mxu0 %v3360
  %11321 = vmatmul.bf16.gmra.mxu0 %v10655
  %v11322 = vpop.f32.mrf.mxu0
  %v11323 = vadd.f32 %v11234, %v11322
  %v11324 = vpop.f32.mrf.mxu0
  %v11325 = vadd.f32 %v11236, %v11324
  %11326 = vmatmul.bf16.gmra.mxu0 %v10656
  %v11327 = vpop.f32.mrf.mxu0
  %v11328 = vadd.f32 %v11239, %v11327
  %v11329 = vpop.f32.mrf.mxu0
  %v11330 = vadd.f32 %v11241, %v11329
  %11331 = vmatmul.bf16.gmra.mxu0 %v10657
  %v11332 = vpop.f32.mrf.mxu0
  %v11333 = vadd.f32 %v11244, %v11332
  %v11334 = vpop.f32.mrf.mxu0
  %v11335 = vadd.f32 %v11246, %v11334
  %11336 = vmatmul.bf16.gmra.mxu0 %v10658
  %v11337 = vpop.f32.mrf.mxu0
  %v11338 = vadd.f32 %v11249, %v11337
  %v11339 = vpop.f32.mrf.mxu0
  %v11340 = vadd.f32 %v11251, %v11339
  %11341 = vmatmul.bf16.gmra.mxu0 %v10659
  %v11342 = vpop.f32.mrf.mxu0
  %v11343 = vadd.f32 %v11254, %v11342
  %v11344 = vpop.f32.mrf.mxu0
  %v11345 = vadd.f32 %v11256, %v11344
  %11346 = vmatmul.bf16.gmra.mxu0 %v10660
  %v11347 = vpop.f32.mrf.mxu0
  %v11348 = vadd.f32 %v11259, %v11347
  %v11349 = vpop.f32.mrf.mxu0
  %v11350 = vadd.f32 %v11261, %v11349
  %11351 = vmatmul.bf16.gmra.mxu0 %v10661
  %v11352 = vpop.f32.mrf.mxu0
  %v11353 = vadd.f32 %v11264, %v11352
  %v11354 = vpop.f32.mrf.mxu0
  %v11355 = vadd.f32 %v11266, %v11354
  %11356 = vmatmul.bf16.gmra.mxu0 %v10662
  %v11357 = vpop.f32.mrf.mxu0
  %v11358 = vadd.f32 %v11269, %v11357
  %v11359 = vpop.f32.mrf.mxu0
  %v11360 = vadd.f32 %v11271, %v11359
  %11361 = vmatmul.bf16.gmra.mxu0 %v10663
  %v11362 = vpop.f32.mrf.mxu0
  %v11363 = vadd.f32 %v11274, %v11362
  %v11364 = vpop.f32.mrf.mxu0
  %v11365 = vadd.f32 %v11276, %v11364
  %11366 = vmatmul.bf16.gmra.mxu0 %v10664
  %v11367 = vpop.f32.mrf.mxu0
  %v11368 = vadd.f32 %v11279, %v11367
  %v11369 = vpop.f32.mrf.mxu0
  %v11370 = vadd.f32 %v11281, %v11369
  %11371 = vmatmul.bf16.gmra.mxu0 %v10665
  %v11372 = vpop.f32.mrf.mxu0
  %v11373 = vadd.f32 %v11284, %v11372
  %v11374 = vpop.f32.mrf.mxu0
  %v11375 = vadd.f32 %v11286, %v11374
  %11376 = vmatmul.bf16.gmra.mxu0 %v10666
  %v11377 = vpop.f32.mrf.mxu0
  %v11378 = vadd.f32 %v11289, %v11377
  %v11379 = vpop.f32.mrf.mxu0
  %v11380 = vadd.f32 %v11291, %v11379
  %11381 = vmatmul.bf16.gmra.mxu0 %v10667
  %v11382 = vpop.f32.mrf.mxu0
  %v11383 = vadd.f32 %v11294, %v11382
  %v11384 = vpop.f32.mrf.mxu0
  %v11385 = vadd.f32 %v11296, %v11384
  %11386 = vmatmul.bf16.gmra.mxu0 %v10668
  %v11387 = vpop.f32.mrf.mxu0
  %v11388 = vadd.f32 %v11299, %v11387
  %v11389 = vpop.f32.mrf.mxu0
  %v11390 = vadd.f32 %v11301, %v11389
  %11391 = vmatmul.bf16.gmra.mxu0 %v10669
  %v11392 = vpop.f32.mrf.mxu0
  %v11393 = vadd.f32 %v11304, %v11392
  %v11394 = vpop.f32.mrf.mxu0
  %v11395 = vadd.f32 %v11306, %v11394
  %11396 = vmatmul.bf16.gmra.mxu0 %v10670
  %v11397 = vpop.f32.mrf.mxu0
  %v11398 = vadd.f32 %v11309, %v11397
  %v11399 = vpop.f32.mrf.mxu0
  %v11400 = vadd.f32 %v11311, %v11399
  %11401 = vdwg.mxu0
  %11402 = vmatpush.bf16.msra.mxu0 %v3375
  %11403 = vmatpush.bf16.msra.mxu0 %v3374
  %11404 = vmatpush.bf16.msra.mxu0 %v3373
  %11405 = vmatpush.bf16.msra.mxu0 %v3372
  %11406 = vmatpush.bf16.msra.mxu0 %v3371
  %11407 = vmatpush.bf16.msra.mxu0 %v3370
  %11408 = vmatpush.bf16.msra.mxu0 %v3369
  %11409 = vmatpush.bf16.msra.mxu0 %v3368
  %11410 = vmatmul.bf16.gmra.mxu0 %v10719
  %v11411 = vpop.f32.mrf.mxu0
  %v11412 = vadd.f32 %v11323, %v11411
  %v11413 = vpop.f32.mrf.mxu0
  %v11414 = vadd.f32 %v11325, %v11413
  %11415 = vmatmul.bf16.gmra.mxu0 %v10720
  %v11416 = vpop.f32.mrf.mxu0
  %v11417 = vadd.f32 %v11328, %v11416
  %v11418 = vpop.f32.mrf.mxu0
  %v11419 = vadd.f32 %v11330, %v11418
  %11420 = vmatmul.bf16.gmra.mxu0 %v10721
  %v11421 = vpop.f32.mrf.mxu0
  %v11422 = vadd.f32 %v11333, %v11421
  %v11423 = vpop.f32.mrf.mxu0
  %v11424 = vadd.f32 %v11335, %v11423
  %11425 = vmatmul.bf16.gmra.mxu0 %v10722
  %v11426 = vpop.f32.mrf.mxu0
  %v11427 = vadd.f32 %v11338, %v11426
  %v11428 = vpop.f32.mrf.mxu0
  %v11429 = vadd.f32 %v11340, %v11428
  %11430 = vmatmul.bf16.gmra.mxu0 %v10723
  %v11431 = vpop.f32.mrf.mxu0
  %v11432 = vadd.f32 %v11343, %v11431
  %v11433 = vpop.f32.mrf.mxu0
  %v11434 = vadd.f32 %v11345, %v11433
  %11435 = vmatmul.bf16.gmra.mxu0 %v10724
  %v11436 = vpop.f32.mrf.mxu0
  %v11437 = vadd.f32 %v11348, %v11436
  %v11438 = vpop.f32.mrf.mxu0
  %v11439 = vadd.f32 %v11350, %v11438
  %11440 = vmatmul.bf16.gmra.mxu0 %v10725
  %v11441 = vpop.f32.mrf.mxu0
  %v11442 = vadd.f32 %v11353, %v11441
  %v11443 = vpop.f32.mrf.mxu0
  %v11444 = vadd.f32 %v11355, %v11443
  %11445 = vmatmul.bf16.gmra.mxu0 %v10726
  %v11446 = vpop.f32.mrf.mxu0
  %v11447 = vadd.f32 %v11358, %v11446
  %v11448 = vpop.f32.mrf.mxu0
  %v11449 = vadd.f32 %v11360, %v11448
  %11450 = vmatmul.bf16.gmra.mxu0 %v10727
  %v11451 = vpop.f32.mrf.mxu0
  %v11452 = vadd.f32 %v11363, %v11451
  %v11453 = vpop.f32.mrf.mxu0
  %v11454 = vadd.f32 %v11365, %v11453
  %11455 = vmatmul.bf16.gmra.mxu0 %v10728
  %v11456 = vpop.f32.mrf.mxu0
  %v11457 = vadd.f32 %v11368, %v11456
  %v11458 = vpop.f32.mrf.mxu0
  %v11459 = vadd.f32 %v11370, %v11458
  %11460 = vmatmul.bf16.gmra.mxu0 %v10729
  %v11461 = vpop.f32.mrf.mxu0
  %v11462 = vadd.f32 %v11373, %v11461
  %v11463 = vpop.f32.mrf.mxu0
  %v11464 = vadd.f32 %v11375, %v11463
  %11465 = vmatmul.bf16.gmra.mxu0 %v10730
  %v11466 = vpop.f32.mrf.mxu0
  %v11467 = vadd.f32 %v11378, %v11466
  %v11468 = vpop.f32.mrf.mxu0
  %v11469 = vadd.f32 %v11380, %v11468
  %11470 = vmatmul.bf16.gmra.mxu0 %v10731
  %v11471 = vpop.f32.mrf.mxu0
  %v11472 = vadd.f32 %v11383, %v11471
  %v11473 = vpop.f32.mrf.mxu0
  %v11474 = vadd.f32 %v11385, %v11473
  %11475 = vmatmul.bf16.gmra.mxu0 %v10732
  %v11476 = vpop.f32.mrf.mxu0
  %v11477 = vadd.f32 %v11388, %v11476
  %v11478 = vpop.f32.mrf.mxu0
  %v11479 = vadd.f32 %v11390, %v11478
  %11480 = vmatmul.bf16.gmra.mxu0 %v10733
  %v11481 = vpop.f32.mrf.mxu0
  %v11482 = vadd.f32 %v11393, %v11481
  %v11483 = vpop.f32.mrf.mxu0
  %v11484 = vadd.f32 %v11395, %v11483
  %11485 = vmatmul.bf16.gmra.mxu0 %v10734
  %v11486 = vpop.f32.mrf.mxu0
  %v11487 = vadd.f32 %v11398, %v11486
  %v11488 = vpop.f32.mrf.mxu0
  %v11489 = vadd.f32 %v11400, %v11488
  %11490 = vdwg.mxu0
  %11491 = vmatpush.bf16.msra.mxu0 %v3383
  %11492 = vmatpush.bf16.msra.mxu0 %v3382
  %11493 = vmatpush.bf16.msra.mxu0 %v3381
  %11494 = vmatpush.bf16.msra.mxu0 %v3380
  %11495 = vmatpush.bf16.msra.mxu0 %v3379
  %11496 = vmatpush.bf16.msra.mxu0 %v3378
  %11497 = vmatpush.bf16.msra.mxu0 %v3377
  %11498 = vmatpush.bf16.msra.mxu0 %v3376
  %11499 = vmatmul.bf16.gmra.mxu0 %v10815
  %v11500 = vpop.f32.mrf.mxu0
  %v11501 = vadd.f32 %v11412, %v11500
  %v11502 = vpop.f32.mrf.mxu0
  %v11503 = vadd.f32 %v11414, %v11502
  %11504 = vmatmul.bf16.gmra.mxu0 %v10816
  %v11505 = vpop.f32.mrf.mxu0
  %v11506 = vadd.f32 %v11417, %v11505
  %v11507 = vpop.f32.mrf.mxu0
  %v11508 = vadd.f32 %v11419, %v11507
  %11509 = vmatmul.bf16.gmra.mxu0 %v10817
  %v11510 = vpop.f32.mrf.mxu0
  %v11511 = vadd.f32 %v11422, %v11510
  %v11512 = vpop.f32.mrf.mxu0
  %v11513 = vadd.f32 %v11424, %v11512
  %11514 = vmatmul.bf16.gmra.mxu0 %v10818
  %v11515 = vpop.f32.mrf.mxu0
  %v11516 = vadd.f32 %v11427, %v11515
  %v11517 = vpop.f32.mrf.mxu0
  %v11518 = vadd.f32 %v11429, %v11517
  %11519 = vmatmul.bf16.gmra.mxu0 %v10819
  %v11520 = vpop.f32.mrf.mxu0
  %v11521 = vadd.f32 %v11432, %v11520
  %v11522 = vpop.f32.mrf.mxu0
  %v11523 = vadd.f32 %v11434, %v11522
  %11524 = vmatmul.bf16.gmra.mxu0 %v10820
  %v11525 = vpop.f32.mrf.mxu0
  %v11526 = vadd.f32 %v11437, %v11525
  %v11527 = vpop.f32.mrf.mxu0
  %v11528 = vadd.f32 %v11439, %v11527
  %11529 = vmatmul.bf16.gmra.mxu0 %v10821
  %v11530 = vpop.f32.mrf.mxu0
  %v11531 = vadd.f32 %v11442, %v11530
  %v11532 = vpop.f32.mrf.mxu0
  %v11533 = vadd.f32 %v11444, %v11532
  %11534 = vmatmul.bf16.gmra.mxu0 %v10822
  %v11535 = vpop.f32.mrf.mxu0
  %v11536 = vadd.f32 %v11447, %v11535
  %v11537 = vpop.f32.mrf.mxu0
  %v11538 = vadd.f32 %v11449, %v11537
  %11539 = vmatmul.bf16.gmra.mxu0 %v10823
  %v11540 = vpop.f32.mrf.mxu0
  %v11541 = vadd.f32 %v11452, %v11540
  %v11542 = vpop.f32.mrf.mxu0
  %v11543 = vadd.f32 %v11454, %v11542
  %11544 = vmatmul.bf16.gmra.mxu0 %v10824
  %v11545 = vpop.f32.mrf.mxu0
  %v11546 = vadd.f32 %v11457, %v11545
  %v11547 = vpop.f32.mrf.mxu0
  %v11548 = vadd.f32 %v11459, %v11547
  %11549 = vmatmul.bf16.gmra.mxu0 %v10825
  %v11550 = vpop.f32.mrf.mxu0
  %v11551 = vadd.f32 %v11462, %v11550
  %v11552 = vpop.f32.mrf.mxu0
  %v11553 = vadd.f32 %v11464, %v11552
  %11554 = vmatmul.bf16.gmra.mxu0 %v10826
  %v11555 = vpop.f32.mrf.mxu0
  %v11556 = vadd.f32 %v11467, %v11555
  %v11557 = vpop.f32.mrf.mxu0
  %v11558 = vadd.f32 %v11469, %v11557
  %11559 = vmatmul.bf16.gmra.mxu0 %v10827
  %v11560 = vpop.f32.mrf.mxu0
  %v11561 = vadd.f32 %v11472, %v11560
  %v11562 = vpop.f32.mrf.mxu0
  %v11563 = vadd.f32 %v11474, %v11562
  %11564 = vmatmul.bf16.gmra.mxu0 %v10828
  %v11565 = vpop.f32.mrf.mxu0
  %v11566 = vadd.f32 %v11477, %v11565
  %v11567 = vpop.f32.mrf.mxu0
  %v11568 = vadd.f32 %v11479, %v11567
  %11569 = vmatmul.bf16.gmra.mxu0 %v10829
  %v11570 = vpop.f32.mrf.mxu0
  %v11571 = vadd.f32 %v11482, %v11570
  %v11572 = vpop.f32.mrf.mxu0
  %v11573 = vadd.f32 %v11484, %v11572
  %11574 = vmatmul.bf16.gmra.mxu0 %v10830
  %v11575 = vpop.f32.mrf.mxu0
  %v11576 = vadd.f32 %v11487, %v11575
  %v11577 = vpop.f32.mrf.mxu0
  %v11578 = vadd.f32 %v11489, %v11577
  %11579 = vdwg.mxu0
  %11580 = vmatpush.bf16.msra.mxu0 %v3391
  %11581 = vmatpush.bf16.msra.mxu0 %v3390
  %11582 = vmatpush.bf16.msra.mxu0 %v3389
  %11583 = vmatpush.bf16.msra.mxu0 %v3388
  %11584 = vmatpush.bf16.msra.mxu0 %v3387
  %11585 = vmatpush.bf16.msra.mxu0 %v3386
  %11586 = vmatpush.bf16.msra.mxu0 %v3385
  %11587 = vmatpush.bf16.msra.mxu0 %v3384
  %11588 = vmatmul.bf16.gmra.mxu0 %v10879
  %v11589 = vpop.f32.mrf.mxu0
  %v11590 = vadd.f32 %v11501, %v11589
  %v11591 = vpop.f32.mrf.mxu0
  %v11592 = vadd.f32 %v11503, %v11591
  %11593 = vmatmul.bf16.gmra.mxu0 %v10880
  %v11594 = vpop.f32.mrf.mxu0
  %v11595 = vadd.f32 %v11506, %v11594
  %v11596 = vpop.f32.mrf.mxu0
  %v11597 = vadd.f32 %v11508, %v11596
  %11598 = vmatmul.bf16.gmra.mxu0 %v10881
  %v11599 = vpop.f32.mrf.mxu0
  %v11600 = vadd.f32 %v11511, %v11599
  %v11601 = vpop.f32.mrf.mxu0
  %v11602 = vadd.f32 %v11513, %v11601
  %11603 = vmatmul.bf16.gmra.mxu0 %v10882
  %v11604 = vpop.f32.mrf.mxu0
  %v11605 = vadd.f32 %v11516, %v11604
  %v11606 = vpop.f32.mrf.mxu0
  %v11607 = vadd.f32 %v11518, %v11606
  %11608 = vmatmul.bf16.gmra.mxu0 %v10883
  %v11609 = vpop.f32.mrf.mxu0
  %v11610 = vadd.f32 %v11521, %v11609
  %v11611 = vpop.f32.mrf.mxu0
  %v11612 = vadd.f32 %v11523, %v11611
  %11613 = vmatmul.bf16.gmra.mxu0 %v10884
  %v11614 = vpop.f32.mrf.mxu0
  %v11615 = vadd.f32 %v11526, %v11614
  %v11616 = vpop.f32.mrf.mxu0
  %v11617 = vadd.f32 %v11528, %v11616
  %11618 = vmatmul.bf16.gmra.mxu0 %v10885
  %v11619 = vpop.f32.mrf.mxu0
  %v11620 = vadd.f32 %v11531, %v11619
  %v11621 = vpop.f32.mrf.mxu0
  %v11622 = vadd.f32 %v11533, %v11621
  %11623 = vmatmul.bf16.gmra.mxu0 %v10886
  %v11624 = vpop.f32.mrf.mxu0
  %v11625 = vadd.f32 %v11536, %v11624
  %v11626 = vpop.f32.mrf.mxu0
  %v11627 = vadd.f32 %v11538, %v11626
  %11628 = vmatmul.bf16.gmra.mxu0 %v10887
  %v11629 = vpop.f32.mrf.mxu0
  %v11630 = vadd.f32 %v11541, %v11629
  %v11631 = vpop.f32.mrf.mxu0
  %v11632 = vadd.f32 %v11543, %v11631
  %11633 = vmatmul.bf16.gmra.mxu0 %v10888
  %v11634 = vpop.f32.mrf.mxu0
  %v11635 = vadd.f32 %v11546, %v11634
  %v11636 = vpop.f32.mrf.mxu0
  %v11637 = vadd.f32 %v11548, %v11636
  %11638 = vmatmul.bf16.gmra.mxu0 %v10889
  %v11639 = vpop.f32.mrf.mxu0
  %v11640 = vadd.f32 %v11551, %v11639
  %v11641 = vpop.f32.mrf.mxu0
  %v11642 = vadd.f32 %v11553, %v11641
  %11643 = vmatmul.bf16.gmra.mxu0 %v10890
  %v11644 = vpop.f32.mrf.mxu0
  %v11645 = vadd.f32 %v11556, %v11644
  %v11646 = vpop.f32.mrf.mxu0
  %v11647 = vadd.f32 %v11558, %v11646
  %11648 = vmatmul.bf16.gmra.mxu0 %v10891
  %v11649 = vpop.f32.mrf.mxu0
  %v11650 = vadd.f32 %v11561, %v11649
  %v11651 = vpop.f32.mrf.mxu0
  %v11652 = vadd.f32 %v11563, %v11651
  %11653 = vmatmul.bf16.gmra.mxu0 %v10892
  %v11654 = vpop.f32.mrf.mxu0
  %v11655 = vadd.f32 %v11566, %v11654
  %v11656 = vpop.f32.mrf.mxu0
  %v11657 = vadd.f32 %v11568, %v11656
  %11658 = vmatmul.bf16.gmra.mxu0 %v10893
  %v11659 = vpop.f32.mrf.mxu0
  %v11660 = vadd.f32 %v11571, %v11659
  %v11661 = vpop.f32.mrf.mxu0
  %v11662 = vadd.f32 %v11573, %v11661
  %11663 = vmatmul.bf16.gmra.mxu0 %v10894
  %v11664 = vpop.f32.mrf.mxu0
  %v11665 = vadd.f32 %v11576, %v11664
  %v11666 = vpop.f32.mrf.mxu0
  %v11667 = vadd.f32 %v11578, %v11666
  %11668 = vdwg.mxu0
  %11669 = vmatpush.bf16.msra.mxu0 %v3399
  %11670 = vmatpush.bf16.msra.mxu0 %v3398
  %11671 = vmatpush.bf16.msra.mxu0 %v3397
  %11672 = vmatpush.bf16.msra.mxu0 %v3396
  %11673 = vmatpush.bf16.msra.mxu0 %v3395
  %11674 = vmatpush.bf16.msra.mxu0 %v3394
  %11675 = vmatpush.bf16.msra.mxu0 %v3393
  %11676 = vmatpush.bf16.msra.mxu0 %v3392
  %11677 = vmatmul.bf16.gmra.mxu0 %v10943
  %v11678 = vpop.f32.mrf.mxu0
  %v11679 = vadd.f32 %v11590, %v11678
  %v11680 = vpop.f32.mrf.mxu0
  %v11681 = vadd.f32 %v11592, %v11680
  %11682 = vmatmul.bf16.gmra.mxu0 %v10944
  %v11683 = vpop.f32.mrf.mxu0
  %v11684 = vadd.f32 %v11595, %v11683
  %v11685 = vpop.f32.mrf.mxu0
  %v11686 = vadd.f32 %v11597, %v11685
  %11687 = vmatmul.bf16.gmra.mxu0 %v10945
  %v11688 = vpop.f32.mrf.mxu0
  %v11689 = vadd.f32 %v11600, %v11688
  %v11690 = vpop.f32.mrf.mxu0
  %v11691 = vadd.f32 %v11602, %v11690
  %11692 = vmatmul.bf16.gmra.mxu0 %v10946
  %v11693 = vpop.f32.mrf.mxu0
  %v11694 = vadd.f32 %v11605, %v11693
  %v11695 = vpop.f32.mrf.mxu0
  %v11696 = vadd.f32 %v11607, %v11695
  %11697 = vmatmul.bf16.gmra.mxu0 %v10947
  %v11698 = vpop.f32.mrf.mxu0
  %v11699 = vadd.f32 %v11610, %v11698
  %v11700 = vpop.f32.mrf.mxu0
  %v11701 = vadd.f32 %v11612, %v11700
  %11702 = vmatmul.bf16.gmra.mxu0 %v10948
  %v11703 = vpop.f32.mrf.mxu0
  %v11704 = vadd.f32 %v11615, %v11703
  %v11705 = vpop.f32.mrf.mxu0
  %v11706 = vadd.f32 %v11617, %v11705
  %11707 = vmatmul.bf16.gmra.mxu0 %v10949
  %v11708 = vpop.f32.mrf.mxu0
  %v11709 = vadd.f32 %v11620, %v11708
  %v11710 = vpop.f32.mrf.mxu0
  %v11711 = vadd.f32 %v11622, %v11710
  %11712 = vmatmul.bf16.gmra.mxu0 %v10950
  %v11713 = vpop.f32.mrf.mxu0
  %v11714 = vadd.f32 %v11625, %v11713
  %v11715 = vpop.f32.mrf.mxu0
  %v11716 = vadd.f32 %v11627, %v11715
  %11717 = vmatmul.bf16.gmra.mxu0 %v10951
  %v11718 = vpop.f32.mrf.mxu0
  %v11719 = vadd.f32 %v11630, %v11718
  %v11720 = vpop.f32.mrf.mxu0
  %v11721 = vadd.f32 %v11632, %v11720
  %11722 = vmatmul.bf16.gmra.mxu0 %v10952
  %v11723 = vpop.f32.mrf.mxu0
  %v11724 = vadd.f32 %v11635, %v11723
  %v11725 = vpop.f32.mrf.mxu0
  %v11726 = vadd.f32 %v11637, %v11725
  %11727 = vmatmul.bf16.gmra.mxu0 %v10953
  %v11728 = vpop.f32.mrf.mxu0
  %v11729 = vadd.f32 %v11640, %v11728
  %v11730 = vpop.f32.mrf.mxu0
  %v11731 = vadd.f32 %v11642, %v11730
  %11732 = vmatmul.bf16.gmra.mxu0 %v10954
  %v11733 = vpop.f32.mrf.mxu0
  %v11734 = vadd.f32 %v11645, %v11733
  %v11735 = vpop.f32.mrf.mxu0
  %v11736 = vadd.f32 %v11647, %v11735
  %11737 = vmatmul.bf16.gmra.mxu0 %v10955
  %v11738 = vpop.f32.mrf.mxu0
  %v11739 = vadd.f32 %v11650, %v11738
  %v11740 = vpop.f32.mrf.mxu0
  %v11741 = vadd.f32 %v11652, %v11740
  %11742 = vmatmul.bf16.gmra.mxu0 %v10956
  %v11743 = vpop.f32.mrf.mxu0
  %v11744 = vadd.f32 %v11655, %v11743
  %v11745 = vpop.f32.mrf.mxu0
  %v11746 = vadd.f32 %v11657, %v11745
  %11747 = vmatmul.bf16.gmra.mxu0 %v10957
  %v11748 = vpop.f32.mrf.mxu0
  %v11749 = vadd.f32 %v11660, %v11748
  %v11750 = vpop.f32.mrf.mxu0
  %v11751 = vadd.f32 %v11662, %v11750
  %11752 = vmatmul.bf16.gmra.mxu0 %v10958
  %v11753 = vpop.f32.mrf.mxu0
  %v11754 = vadd.f32 %v11665, %v11753
  %v11755 = vpop.f32.mrf.mxu0
  %v11756 = vadd.f32 %v11667, %v11755
  %11757 = vdwg.mxu0
  %11758 = vmatpush.bf16.msra.mxu0 %v3407
  %11759 = vmatpush.bf16.msra.mxu0 %v3406
  %11760 = vmatpush.bf16.msra.mxu0 %v3405
  %11761 = vmatpush.bf16.msra.mxu0 %v3404
  %11762 = vmatpush.bf16.msra.mxu0 %v3403
  %11763 = vmatpush.bf16.msra.mxu0 %v3402
  %11764 = vmatpush.bf16.msra.mxu0 %v3401
  %11765 = vmatpush.bf16.msra.mxu0 %v3400
  %11766 = vmatmul.bf16.gmra.mxu0 %v11039
  %v11767 = vpop.f32.mrf.mxu0
  %v11768 = vadd.f32 %v11679, %v11767
  %v11769 = vpop.f32.mrf.mxu0
  %v11770 = vadd.f32 %v11681, %v11769
  %11771 = vmatmul.bf16.gmra.mxu0 %v11040
  %v11772 = vpop.f32.mrf.mxu0
  %v11773 = vadd.f32 %v11684, %v11772
  %v11774 = vpop.f32.mrf.mxu0
  %v11775 = vadd.f32 %v11686, %v11774
  %11776 = vmatmul.bf16.gmra.mxu0 %v11041
  %v11777 = vpop.f32.mrf.mxu0
  %v11778 = vadd.f32 %v11689, %v11777
  %v11779 = vpop.f32.mrf.mxu0
  %v11780 = vadd.f32 %v11691, %v11779
  %11781 = vmatmul.bf16.gmra.mxu0 %v11042
  %v11782 = vpop.f32.mrf.mxu0
  %v11783 = vadd.f32 %v11694, %v11782
  %v11784 = vpop.f32.mrf.mxu0
  %v11785 = vadd.f32 %v11696, %v11784
  %11786 = vmatmul.bf16.gmra.mxu0 %v11043
  %v11787 = vpop.f32.mrf.mxu0
  %v11788 = vadd.f32 %v11699, %v11787
  %v11789 = vpop.f32.mrf.mxu0
  %v11790 = vadd.f32 %v11701, %v11789
  %11791 = vmatmul.bf16.gmra.mxu0 %v11044
  %v11792 = vpop.f32.mrf.mxu0
  %v11793 = vadd.f32 %v11704, %v11792
  %v11794 = vpop.f32.mrf.mxu0
  %v11795 = vadd.f32 %v11706, %v11794
  %11796 = vmatmul.bf16.gmra.mxu0 %v11045
  %v11797 = vpop.f32.mrf.mxu0
  %v11798 = vadd.f32 %v11709, %v11797
  %v11799 = vpop.f32.mrf.mxu0
  %v11800 = vadd.f32 %v11711, %v11799
  %11801 = vmatmul.bf16.gmra.mxu0 %v11046
  %v11802 = vpop.f32.mrf.mxu0
  %v11803 = vadd.f32 %v11714, %v11802
  %v11804 = vpop.f32.mrf.mxu0
  %v11805 = vadd.f32 %v11716, %v11804
  %11806 = vmatmul.bf16.gmra.mxu0 %v11047
  %v11807 = vpop.f32.mrf.mxu0
  %v11808 = vadd.f32 %v11719, %v11807
  %v11809 = vpop.f32.mrf.mxu0
  %v11810 = vadd.f32 %v11721, %v11809
  %11811 = vmatmul.bf16.gmra.mxu0 %v11048
  %v11812 = vpop.f32.mrf.mxu0
  %v11813 = vadd.f32 %v11724, %v11812
  %v11814 = vpop.f32.mrf.mxu0
  %v11815 = vadd.f32 %v11726, %v11814
  %11816 = vmatmul.bf16.gmra.mxu0 %v11049
  %v11817 = vpop.f32.mrf.mxu0
  %v11818 = vadd.f32 %v11729, %v11817
  %v11819 = vpop.f32.mrf.mxu0
  %v11820 = vadd.f32 %v11731, %v11819
  %11821 = vmatmul.bf16.gmra.mxu0 %v11050
  %v11822 = vpop.f32.mrf.mxu0
  %v11823 = vadd.f32 %v11734, %v11822
  %v11824 = vpop.f32.mrf.mxu0
  %v11825 = vadd.f32 %v11736, %v11824
  %11826 = vmatmul.bf16.gmra.mxu0 %v11051
  %v11827 = vpop.f32.mrf.mxu0
  %v11828 = vadd.f32 %v11739, %v11827
  %v11829 = vpop.f32.mrf.mxu0
  %v11830 = vadd.f32 %v11741, %v11829
  %11831 = vmatmul.bf16.gmra.mxu0 %v11052
  %v11832 = vpop.f32.mrf.mxu0
  %v11833 = vadd.f32 %v11744, %v11832
  %v11834 = vpop.f32.mrf.mxu0
  %v11835 = vadd.f32 %v11746, %v11834
  %11836 = vmatmul.bf16.gmra.mxu0 %v11053
  %v11837 = vpop.f32.mrf.mxu0
  %v11838 = vadd.f32 %v11749, %v11837
  %v11839 = vpop.f32.mrf.mxu0
  %v11840 = vadd.f32 %v11751, %v11839
  %11841 = vmatmul.bf16.gmra.mxu0 %v11054
  %v11842 = vpop.f32.mrf.mxu0
  %v11843 = vadd.f32 %v11754, %v11842
  %v11844 = vpop.f32.mrf.mxu0
  %v11845 = vadd.f32 %v11756, %v11844
  %11846 = vdwg.mxu0
  %11847 = vmatpush.bf16.msra.mxu0 %v3415
  %11848 = vmatpush.bf16.msra.mxu0 %v3414
  %11849 = vmatpush.bf16.msra.mxu0 %v3413
  %11850 = vmatpush.bf16.msra.mxu0 %v3412
  %11851 = vmatpush.bf16.msra.mxu0 %v3411
  %11852 = vmatpush.bf16.msra.mxu0 %v3410
  %11853 = vmatpush.bf16.msra.mxu0 %v3409
  %11854 = vmatpush.bf16.msra.mxu0 %v3408
  %11855 = vmatmul.bf16.gmra.mxu0 %v11103
  %v11856 = vpop.f32.mrf.mxu0
  %v11857 = vadd.f32 %v11768, %v11856
  %v11858 = vpop.f32.mrf.mxu0
  %v11859 = vadd.f32 %v11770, %v11858
  %11860 = vmatmul.bf16.gmra.mxu0 %v11104
  %v11861 = vpop.f32.mrf.mxu0
  %v11862 = vadd.f32 %v11773, %v11861
  %v11863 = vpop.f32.mrf.mxu0
  %v11864 = vadd.f32 %v11775, %v11863
  %11865 = vmatmul.bf16.gmra.mxu0 %v11105
  %v11866 = vpop.f32.mrf.mxu0
  %v11867 = vadd.f32 %v11778, %v11866
  %v11868 = vpop.f32.mrf.mxu0
  %v11869 = vadd.f32 %v11780, %v11868
  %11870 = vmatmul.bf16.gmra.mxu0 %v11106
  %v11871 = vpop.f32.mrf.mxu0
  %v11872 = vadd.f32 %v11783, %v11871
  %v11873 = vpop.f32.mrf.mxu0
  %v11874 = vadd.f32 %v11785, %v11873
  %11875 = vmatmul.bf16.gmra.mxu0 %v11107
  %v11876 = vpop.f32.mrf.mxu0
  %v11877 = vadd.f32 %v11788, %v11876
  %v11878 = vpop.f32.mrf.mxu0
  %v11879 = vadd.f32 %v11790, %v11878
  %11880 = vmatmul.bf16.gmra.mxu0 %v11108
  %v11881 = vpop.f32.mrf.mxu0
  %v11882 = vadd.f32 %v11793, %v11881
  %v11883 = vpop.f32.mrf.mxu0
  %v11884 = vadd.f32 %v11795, %v11883
  %11885 = vmatmul.bf16.gmra.mxu0 %v11109
  %v11886 = vpop.f32.mrf.mxu0
  %v11887 = vadd.f32 %v11798, %v11886
  %v11888 = vpop.f32.mrf.mxu0
  %v11889 = vadd.f32 %v11800, %v11888
  %11890 = vmatmul.bf16.gmra.mxu0 %v11110
  %v11891 = vpop.f32.mrf.mxu0
  %v11892 = vadd.f32 %v11803, %v11891
  %v11893 = vpop.f32.mrf.mxu0
  %v11894 = vadd.f32 %v11805, %v11893
  %11895 = vmatmul.bf16.gmra.mxu0 %v11111
  %v11896 = vpop.f32.mrf.mxu0
  %v11897 = vadd.f32 %v11808, %v11896
  %v11898 = vpop.f32.mrf.mxu0
  %v11899 = vadd.f32 %v11810, %v11898
  %11900 = vmatmul.bf16.gmra.mxu0 %v11112
  %v11901 = vpop.f32.mrf.mxu0
  %v11902 = vadd.f32 %v11813, %v11901
  %v11903 = vpop.f32.mrf.mxu0
  %v11904 = vadd.f32 %v11815, %v11903
  %11905 = vmatmul.bf16.gmra.mxu0 %v11113
  %v11906 = vpop.f32.mrf.mxu0
  %v11907 = vadd.f32 %v11818, %v11906
  %v11908 = vpop.f32.mrf.mxu0
  %v11909 = vadd.f32 %v11820, %v11908
  %11910 = vmatmul.bf16.gmra.mxu0 %v11114
  %v11911 = vpop.f32.mrf.mxu0
  %v11912 = vadd.f32 %v11823, %v11911
  %v11913 = vpop.f32.mrf.mxu0
  %v11914 = vadd.f32 %v11825, %v11913
  %11915 = vmatmul.bf16.gmra.mxu0 %v11115
  %v11916 = vpop.f32.mrf.mxu0
  %v11917 = vadd.f32 %v11828, %v11916
  %v11918 = vpop.f32.mrf.mxu0
  %v11919 = vadd.f32 %v11830, %v11918
  %11920 = vmatmul.bf16.gmra.mxu0 %v11116
  %v11921 = vpop.f32.mrf.mxu0
  %v11922 = vadd.f32 %v11833, %v11921
  %v11923 = vpop.f32.mrf.mxu0
  %v11924 = vadd.f32 %v11835, %v11923
  %11925 = vmatmul.bf16.gmra.mxu0 %v11117
  %v11926 = vpop.f32.mrf.mxu0
  %v11927 = vadd.f32 %v11838, %v11926
  %v11928 = vpop.f32.mrf.mxu0
  %v11929 = vadd.f32 %v11840, %v11928
  %11930 = vmatmul.bf16.gmra.mxu0 %v11118
  %v11931 = vpop.f32.mrf.mxu0
  %v11932 = vadd.f32 %v11843, %v11931
  %v11933 = vpop.f32.mrf.mxu0
  %v11934 = vadd.f32 %v11845, %v11933
  %11935 = vdwg.mxu0
  %v11936 = vmul.f32 %v11857, %v4290
  %v11937 = vmul.f32 %v11859, %v4290
  %v11938 = vmul.f32 %v11862, %v4290
  %v11939 = vmul.f32 %v11864, %v4290
  %v11940 = vmul.f32 %v11867, %v4290
  %v11941 = vmul.f32 %v11869, %v4290
  %v11942 = vmul.f32 %v11872, %v4290
  %v11943 = vmul.f32 %v11874, %v4290
  %v11944 = vmul.f32 %v11877, %v4290
  %v11945 = vmul.f32 %v11879, %v4290
  %v11946 = vmul.f32 %v11882, %v4290
  %v11947 = vmul.f32 %v11884, %v4290
  %v11948 = vmul.f32 %v11887, %v4290
  %v11949 = vmul.f32 %v11889, %v4290
  %v11950 = vmul.f32 %v11892, %v4290
  %v11951 = vmul.f32 %v11894, %v4290
  %v11952 = vmul.f32 %v11897, %v4290
  %v11953 = vmul.f32 %v11899, %v4290
  %v11954 = vmul.f32 %v11902, %v4290
  %v11955 = vmul.f32 %v11904, %v4290
  %v11956 = vmul.f32 %v11907, %v4290
  %v11957 = vmul.f32 %v11909, %v4290
  %v11958 = vmul.f32 %v11912, %v4290
  %v11959 = vmul.f32 %v11914, %v4290
  %v11960 = vmul.f32 %v11917, %v4290
  %v11961 = vmul.f32 %v11919, %v4290
  %v11962 = vmul.f32 %v11922, %v4290
  %v11963 = vmul.f32 %v11924, %v4290
  %v11964 = vmul.f32 %v11927, %v4290
  %v11965 = vmul.f32 %v11929, %v4290
  %v11966 = vmul.f32 %v11932, %v4290
  %v11967 = vmul.f32 %v11934, %v4290
  %v11968 = vadd.f32 %v11936, %v4325
  %v11969 = vadd.f32 %v11937, %v4325
  %v11970 = vadd.f32 %v11938, %v4325
  %v11971 = vadd.f32 %v11939, %v4325
  %v11972 = vadd.f32 %v11940, %v4325
  %v11973 = vadd.f32 %v11941, %v4325
  %v11974 = vadd.f32 %v11942, %v4325
  %v11975 = vadd.f32 %v11943, %v4325
  %v11976 = vadd.f32 %v11944, %v4325
  %v11977 = vadd.f32 %v11945, %v4325
  %v11978 = vadd.f32 %v11946, %v4325
  %v11979 = vadd.f32 %v11947, %v4325
  %v11980 = vadd.f32 %v11948, %v4325
  %v11981 = vadd.f32 %v11949, %v4325
  %v11982 = vadd.f32 %v11950, %v4325
  %v11983 = vadd.f32 %v11951, %v4325
  %v11984 = vadd.f32 %v11952, %v4325
  %v11985 = vadd.f32 %v11953, %v4325
  %v11986 = vadd.f32 %v11954, %v4325
  %v11987 = vadd.f32 %v11955, %v4325
  %v11988 = vadd.f32 %v11956, %v4325
  %v11989 = vadd.f32 %v11957, %v4325
  %v11990 = vadd.f32 %v11958, %v4325
  %v11991 = vadd.f32 %v11959, %v4325
  %v11992 = vadd.f32 %v11960, %v4325
  %v11993 = vadd.f32 %v11961, %v4325
  %v11994 = vadd.f32 %v11962, %v4325
  %v11995 = vadd.f32 %v11963, %v4325
  %v11996 = vadd.f32 %v11964, %v4325
  %v11997 = vadd.f32 %v11965, %v4325
  %v11998 = vadd.f32 %v11966, %v4325
  %v11999 = vadd.f32 %v11967, %v4325
  %v12000 = vmax.f32 %v11968, 0.0
  %v12001 = vmax.f32 %v11969, 0.0
  %v12002 = vmax.f32 %v11970, 0.0
  %v12003 = vmax.f32 %v11971, 0.0
  %v12004 = vmax.f32 %v11972, 0.0
  %v12005 = vmax.f32 %v11973, 0.0
  %v12006 = vmax.f32 %v11974, 0.0
  %v12007 = vmax.f32 %v11975, 0.0
  %v12008 = vmax.f32 %v11976, 0.0
  %v12009 = vmax.f32 %v11977, 0.0
  %v12010 = vmax.f32 %v11978, 0.0
  %v12011 = vmax.f32 %v11979, 0.0
  %v12012 = vmax.f32 %v11980, 0.0
  %v12013 = vmax.f32 %v11981, 0.0
  %v12014 = vmax.f32 %v11982, 0.0
  %v12015 = vmax.f32 %v11983, 0.0
  %v12016 = vmax.f32 %v11984, 0.0
  %v12017 = vmax.f32 %v11985, 0.0
  %v12018 = vmax.f32 %v11986, 0.0
  %v12019 = vmax.f32 %v11987, 0.0
  %v12020 = vmax.f32 %v11988, 0.0
  %v12021 = vmax.f32 %v11989, 0.0
  %v12022 = vmax.f32 %v11990, 0.0
  %v12023 = vmax.f32 %v11991, 0.0
  %v12024 = vmax.f32 %v11992, 0.0
  %v12025 = vmax.f32 %v11993, 0.0
  %v12026 = vmax.f32 %v11994, 0.0
  %v12027 = vmax.f32 %v11995, 0.0
  %v12028 = vmax.f32 %v11996, 0.0
  %v12029 = vmax.f32 %v11997, 0.0
  %v12030 = vmax.f32 %v11998, 0.0
  %v12031 = vmax.f32 %v11999, 0.0
  %v12032 = vpack.c.bf16 %v12000, %v12000
  %v12033 = vpack.c.bf16 %v12001, %v12001
  %v12034 = vpack.c.bf16 %v12002, %v12002
  %v12035 = vpack.c.bf16 %v12003, %v12003
  %v12036 = vpack.c.bf16 %v12004, %v12004
  %v12037 = vpack.c.bf16 %v12005, %v12005
  %v12038 = vpack.c.bf16 %v12006, %v12006
  %v12039 = vpack.c.bf16 %v12007, %v12007
  %v12040 = vpack.c.bf16 %v12008, %v12008
  %v12041 = vpack.c.bf16 %v12009, %v12009
  %v12042 = vpack.c.bf16 %v12010, %v12010
  %v12043 = vpack.c.bf16 %v12011, %v12011
  %v12044 = vpack.c.bf16 %v12012, %v12012
  %v12045 = vpack.c.bf16 %v12013, %v12013
  %v12046 = vpack.c.bf16 %v12014, %v12014
  %v12047 = vpack.c.bf16 %v12015, %v12015
  %v12048 = vpack.c.bf16 %v12016, %v12016
  %v12049 = vpack.c.bf16 %v12017, %v12017
  %v12050 = vpack.c.bf16 %v12018, %v12018
  %v12051 = vpack.c.bf16 %v12019, %v12019
  %v12052 = vpack.c.bf16 %v12020, %v12020
  %v12053 = vpack.c.bf16 %v12021, %v12021
  %v12054 = vpack.c.bf16 %v12022, %v12022
  %v12055 = vpack.c.bf16 %v12023, %v12023
  %v12056 = vpack.c.bf16 %v12024, %v12024
  %v12057 = vpack.c.bf16 %v12025, %v12025
  %v12058 = vpack.c.bf16 %v12026, %v12026
  %v12059 = vpack.c.bf16 %v12027, %v12027
  %v12060 = vpack.c.bf16 %v12028, %v12028
  %v12061 = vpack.c.bf16 %v12029, %v12029
  %v12062 = vpack.c.bf16 %v12030, %v12030
  %v12063 = vpack.c.bf16 %v12031, %v12031
  %12064 = vst [vmem:[%s424 + $0x4] sm:$0xf] %v12032
  %12065 = vst [vmem:[%s424 + $0x8] sm:$0xf] %v12033
  %12066 = vst [vmem:[%s424 + $0x14] sm:$0xf] %v12034
  %12067 = vst [vmem:[%s424 + $0x18] sm:$0xf] %v12035
  %12068 = vst [vmem:[%s424 + $0x24] sm:$0xf] %v12036
  %12069 = vst [vmem:[%s424 + $0x28] sm:$0xf] %v12037
  %12070 = vst [vmem:[%s424 + $0x34] sm:$0xf] %v12038
  %12071 = vst [vmem:[%s424 + $0x38] sm:$0xf] %v12039
  %12072 = vst [vmem:[%s424 + $0x44] sm:$0xf] %v12040
  %12073 = vst [vmem:[%s424 + $0x48] sm:$0xf] %v12041
  %12074 = vst [vmem:[%s424 + $0x54] sm:$0xf] %v12042
  %12075 = vst [vmem:[%s424 + $0x58] sm:$0xf] %v12043
  %12076 = vst [vmem:[%s424 + $0x64] sm:$0xf] %v12044
  %12077 = vst [vmem:[%s424 + $0x68] sm:$0xf] %v12045
  %12078 = vst [vmem:[%s424 + $0x74] sm:$0xf] %v12046
  %12079 = vst [vmem:[%s424 + $0x78] sm:$0xf] %v12047
  %12080 = vst [vmem:[%s424 + $0x84] sm:$0xf] %v12048
  %12081 = vst [vmem:[%s424 + $0x88] sm:$0xf] %v12049
  %12082 = vst [vmem:[%s424 + $0x94] sm:$0xf] %v12050
  %12083 = vst [vmem:[%s424 + $0x98] sm:$0xf] %v12051
  %12084 = vst [vmem:[%s424 + $0xa4] sm:$0xf] %v12052
  %12085 = vst [vmem:[%s424 + $0xa8] sm:$0xf] %v12053
  %12086 = vst [vmem:[%s424 + $0xb4] sm:$0xf] %v12054
  %12087 = vst [vmem:[%s424 + $0xb8] sm:$0xf] %v12055
  %12088 = vst [vmem:[%s424 + $0xc4] sm:$0xf] %v12056
  %12089 = vst [vmem:[%s424 + $0xc8] sm:$0xf] %v12057
  %12090 = vst [vmem:[%s424 + $0xd4] sm:$0xf] %v12058
  %12091 = vst [vmem:[%s424 + $0xd8] sm:$0xf] %v12059
  %12092 = vst [vmem:[%s424 + $0xe4] sm:$0xf] %v12060
  %12093 = vst [vmem:[%s424 + $0xe8] sm:$0xf] %v12061
  %12094 = vst [vmem:[%s424 + $0xf4] sm:$0xf] %v12062
  %12095 = vst [vmem:[%s424 + $0xf8] sm:$0xf] %v12063
  %v12096 = vld [vmem:[#allocation2] sm:$0x8]
  %v12097 = vld [vmem:[#allocation2 + $0x4] sm:$0xf]
  %v12098 = vld [vmem:[#allocation2 + $0x8] sm:$0xf]
  %v12099 = vld [vmem:[#allocation2 + $0x10] sm:$0x8]
  %v12100 = vld [vmem:[#allocation2 + $0x14] sm:$0xf]
  %v12101 = vld [vmem:[#allocation2 + $0x18] sm:$0xf]
  %v12102 = vld [vmem:[#allocation2 + $0x20] sm:$0x8]
  %v12103 = vld [vmem:[#allocation2 + $0x24] sm:$0xf]
  %v12104 = vld [vmem:[#allocation2 + $0x28] sm:$0xf]
  %v12105 = vld [vmem:[#allocation2 + $0x30] sm:$0x8]
  %v12106 = vld [vmem:[#allocation2 + $0x34] sm:$0xf]
  %v12107 = vld [vmem:[#allocation2 + $0x38] sm:$0xf]
  %v12108 = vld [vmem:[#allocation2 + $0x40] sm:$0x8]
  %v12109 = vld [vmem:[#allocation2 + $0x44] sm:$0xf]
  %v12110 = vld [vmem:[#allocation2 + $0x48] sm:$0xf]
  %v12111 = vld [vmem:[#allocation2 + $0x50] sm:$0x8]
  %v12112 = vld [vmem:[#allocation2 + $0x54] sm:$0xf]
  %v12113 = vld [vmem:[#allocation2 + $0x58] sm:$0xf]
  %v12114 = vld [vmem:[#allocation2 + $0x60] sm:$0x8]
  %v12115 = vld [vmem:[#allocation2 + $0x64] sm:$0xf]
  %v12116 = vld [vmem:[#allocation2 + $0x68] sm:$0xf]
  %v12117 = vld [vmem:[#allocation2 + $0x70] sm:$0x8]
  %v12118 = vld [vmem:[#allocation2 + $0x74] sm:$0xf]
  %v12119 = vld [vmem:[#allocation2 + $0x78] sm:$0xf]
  %v12120 = vld [vmem:[#allocation2 + $0x80] sm:$0x8]
  %v12121 = vld [vmem:[#allocation2 + $0x84] sm:$0xf]
  %v12122 = vld [vmem:[#allocation2 + $0x88] sm:$0xf]
  %v12123 = vld [vmem:[#allocation2 + $0x90] sm:$0x8]
  %v12124 = vld [vmem:[#allocation2 + $0x94] sm:$0xf]
  %v12125 = vld [vmem:[#allocation2 + $0x98] sm:$0xf]
  %v12126 = vld [vmem:[#allocation2 + $0xa0] sm:$0x8]
  %v12127 = vld [vmem:[#allocation2 + $0xa4] sm:$0xf]
  %v12128 = vld [vmem:[#allocation2 + $0xa8] sm:$0xf]
  %v12129 = vld [vmem:[#allocation2 + $0xb0] sm:$0x8]
  %v12130 = vld [vmem:[#allocation2 + $0xb4] sm:$0xf]
  %v12131 = vld [vmem:[#allocation2 + $0xb8] sm:$0xf]
  %v12132 = vld [vmem:[#allocation2 + $0xc0] sm:$0x8]
  %v12133 = vld [vmem:[#allocation2 + $0xc4] sm:$0xf]
  %v12134 = vld [vmem:[#allocation2 + $0xc8] sm:$0xf]
  %v12135 = vld [vmem:[#allocation2 + $0xd0] sm:$0x8]
  %v12136 = vld [vmem:[#allocation2 + $0xd4] sm:$0xf]
  %v12137 = vld [vmem:[#allocation2 + $0xd8] sm:$0xf]
  %v12138 = vld [vmem:[#allocation2 + $0xe0] sm:$0x8]
  %v12139 = vld [vmem:[#allocation2 + $0xe4] sm:$0xf]
  %v12140 = vld [vmem:[#allocation2 + $0xe8] sm:$0xf]
  %v12141 = vld [vmem:[#allocation2 + $0xf0] sm:$0x8]
  %v12142 = vld [vmem:[#allocation2 + $0xf4] sm:$0xf]
  %v12143 = vld [vmem:[#allocation2 + $0xf8] sm:$0xf]
  %v12145 = vshrl.u32 %v12096, 16
  %v12147 = vrot.slane %v12145, 7
  %v12148 = vrot.slane %v12147, 4
  %v12150 = vshrl.u32 %v12097, 16
  %v12152 = vrot.slane %v12150, 7
  %v12153 = vshll.u32 %v12097, 16
  %v12155 = vor.u32 %v12152, %v12153
  %v12156 = vsel %vm507, %v12148, %v12155
  %v12157 = vrot.slane %v12152, 4
  %v12159 = vshrl.u32 %v12098, 16
  %v12161 = vrot.slane %v12159, 7
  %v12162 = vshll.u32 %v12098, 16
  %v12164 = vor.u32 %v12161, %v12162
  %v12165 = vsel %vm507, %v12157, %v12164
  %v12167 = vshrl.u32 %v12099, 16
  %v12169 = vrot.slane %v12167, 7
  %v12170 = vrot.slane %v12169, 4
  %v12172 = vshrl.u32 %v12100, 16
  %v12174 = vrot.slane %v12172, 7
  %v12175 = vshll.u32 %v12100, 16
  %v12177 = vor.u32 %v12174, %v12175
  %v12178 = vsel %vm507, %v12170, %v12177
  %v12179 = vrot.slane %v12174, 4
  %v12181 = vshrl.u32 %v12101, 16
  %v12183 = vrot.slane %v12181, 7
  %v12184 = vshll.u32 %v12101, 16
  %v12186 = vor.u32 %v12183, %v12184
  %v12187 = vsel %vm507, %v12179, %v12186
  %v12189 = vshrl.u32 %v12102, 16
  %v12191 = vrot.slane %v12189, 7
  %v12192 = vrot.slane %v12191, 4
  %v12194 = vshrl.u32 %v12103, 16
  %v12196 = vrot.slane %v12194, 7
  %v12197 = vshll.u32 %v12103, 16
  %v12199 = vor.u32 %v12196, %v12197
  %v12200 = vsel %vm507, %v12192, %v12199
  %v12201 = vrot.slane %v12196, 4
  %v12203 = vshrl.u32 %v12104, 16
  %v12205 = vrot.slane %v12203, 7
  %v12206 = vshll.u32 %v12104, 16
  %v12208 = vor.u32 %v12205, %v12206
  %v12209 = vsel %vm507, %v12201, %v12208
  %v12211 = vshrl.u32 %v12105, 16
  %v12213 = vrot.slane %v12211, 7
  %v12214 = vrot.slane %v12213, 4
  %v12216 = vshrl.u32 %v12106, 16
  %v12218 = vrot.slane %v12216, 7
  %v12219 = vshll.u32 %v12106, 16
  %v12221 = vor.u32 %v12218, %v12219
  %v12222 = vsel %vm507, %v12214, %v12221
  %v12223 = vrot.slane %v12218, 4
  %v12225 = vshrl.u32 %v12107, 16
  %v12227 = vrot.slane %v12225, 7
  %v12228 = vshll.u32 %v12107, 16
  %v12230 = vor.u32 %v12227, %v12228
  %v12231 = vsel %vm507, %v12223, %v12230
  %v12233 = vshrl.u32 %v12108, 16
  %v12235 = vrot.slane %v12233, 7
  %v12236 = vrot.slane %v12235, 4
  %v12238 = vshrl.u32 %v12109, 16
  %v12240 = vrot.slane %v12238, 7
  %v12241 = vshll.u32 %v12109, 16
  %v12243 = vor.u32 %v12240, %v12241
  %v12244 = vsel %vm507, %v12236, %v12243
  %v12245 = vrot.slane %v12240, 4
  %v12247 = vshrl.u32 %v12110, 16
  %v12249 = vrot.slane %v12247, 7
  %v12250 = vshll.u32 %v12110, 16
  %v12252 = vor.u32 %v12249, %v12250
  %v12253 = vsel %vm507, %v12245, %v12252
  %v12255 = vshrl.u32 %v12111, 16
  %v12257 = vrot.slane %v12255, 7
  %v12258 = vrot.slane %v12257, 4
  %v12260 = vshrl.u32 %v12112, 16
  %v12262 = vrot.slane %v12260, 7
  %v12263 = vshll.u32 %v12112, 16
  %v12265 = vor.u32 %v12262, %v12263
  %v12266 = vsel %vm507, %v12258, %v12265
  %v12267 = vrot.slane %v12262, 4
  %v12269 = vshrl.u32 %v12113, 16
  %v12271 = vrot.slane %v12269, 7
  %v12272 = vshll.u32 %v12113, 16
  %v12274 = vor.u32 %v12271, %v12272
  %v12275 = vsel %vm507, %v12267, %v12274
  %v12277 = vshrl.u32 %v12114, 16
  %v12279 = vrot.slane %v12277, 7
  %v12280 = vrot.slane %v12279, 4
  %v12282 = vshrl.u32 %v12115, 16
  %v12284 = vrot.slane %v12282, 7
  %v12285 = vshll.u32 %v12115, 16
  %v12287 = vor.u32 %v12284, %v12285
  %v12288 = vsel %vm507, %v12280, %v12287
  %v12289 = vrot.slane %v12284, 4
  %v12291 = vshrl.u32 %v12116, 16
  %v12293 = vrot.slane %v12291, 7
  %v12294 = vshll.u32 %v12116, 16
  %v12296 = vor.u32 %v12293, %v12294
  %v12297 = vsel %vm507, %v12289, %v12296
  %v12299 = vshrl.u32 %v12117, 16
  %v12301 = vrot.slane %v12299, 7
  %v12302 = vrot.slane %v12301, 4
  %v12304 = vshrl.u32 %v12118, 16
  %v12306 = vrot.slane %v12304, 7
  %v12307 = vshll.u32 %v12118, 16
  %v12309 = vor.u32 %v12306, %v12307
  %v12310 = vsel %vm507, %v12302, %v12309
  %v12311 = vrot.slane %v12306, 4
  %v12313 = vshrl.u32 %v12119, 16
  %v12315 = vrot.slane %v12313, 7
  %v12316 = vshll.u32 %v12119, 16
  %v12318 = vor.u32 %v12315, %v12316
  %v12319 = vsel %vm507, %v12311, %v12318
  %v12321 = vshrl.u32 %v12120, 16
  %v12323 = vrot.slane %v12321, 7
  %v12324 = vrot.slane %v12323, 4
  %v12326 = vshrl.u32 %v12121, 16
  %v12328 = vrot.slane %v12326, 7
  %v12329 = vshll.u32 %v12121, 16
  %v12331 = vor.u32 %v12328, %v12329
  %v12332 = vsel %vm507, %v12324, %v12331
  %v12333 = vrot.slane %v12328, 4
  %v12335 = vshrl.u32 %v12122, 16
  %v12337 = vrot.slane %v12335, 7
  %v12338 = vshll.u32 %v12122, 16
  %v12340 = vor.u32 %v12337, %v12338
  %v12341 = vsel %vm507, %v12333, %v12340
  %v12343 = vshrl.u32 %v12123, 16
  %v12345 = vrot.slane %v12343, 7
  %v12346 = vrot.slane %v12345, 4
  %v12348 = vshrl.u32 %v12124, 16
  %v12350 = vrot.slane %v12348, 7
  %v12351 = vshll.u32 %v12124, 16
  %v12353 = vor.u32 %v12350, %v12351
  %v12354 = vsel %vm507, %v12346, %v12353
  %v12355 = vrot.slane %v12350, 4
  %v12357 = vshrl.u32 %v12125, 16
  %v12359 = vrot.slane %v12357, 7
  %v12360 = vshll.u32 %v12125, 16
  %v12362 = vor.u32 %v12359, %v12360
  %v12363 = vsel %vm507, %v12355, %v12362
  %v12365 = vshrl.u32 %v12126, 16
  %v12367 = vrot.slane %v12365, 7
  %v12368 = vrot.slane %v12367, 4
  %v12370 = vshrl.u32 %v12127, 16
  %v12372 = vrot.slane %v12370, 7
  %v12373 = vshll.u32 %v12127, 16
  %v12375 = vor.u32 %v12372, %v12373
  %v12376 = vsel %vm507, %v12368, %v12375
  %v12377 = vrot.slane %v12372, 4
  %v12379 = vshrl.u32 %v12128, 16
  %v12381 = vrot.slane %v12379, 7
  %v12382 = vshll.u32 %v12128, 16
  %v12384 = vor.u32 %v12381, %v12382
  %v12385 = vsel %vm507, %v12377, %v12384
  %v12387 = vshrl.u32 %v12129, 16
  %v12389 = vrot.slane %v12387, 7
  %v12390 = vrot.slane %v12389, 4
  %v12392 = vshrl.u32 %v12130, 16
  %v12394 = vrot.slane %v12392, 7
  %v12395 = vshll.u32 %v12130, 16
  %v12397 = vor.u32 %v12394, %v12395
  %v12398 = vsel %vm507, %v12390, %v12397
  %v12399 = vrot.slane %v12394, 4
  %v12401 = vshrl.u32 %v12131, 16
  %v12403 = vrot.slane %v12401, 7
  %v12404 = vshll.u32 %v12131, 16
  %v12406 = vor.u32 %v12403, %v12404
  %v12407 = vsel %vm507, %v12399, %v12406
  %v12409 = vshrl.u32 %v12132, 16
  %v12411 = vrot.slane %v12409, 7
  %v12412 = vrot.slane %v12411, 4
  %v12414 = vshrl.u32 %v12133, 16
  %v12416 = vrot.slane %v12414, 7
  %v12417 = vshll.u32 %v12133, 16
  %v12419 = vor.u32 %v12416, %v12417
  %v12420 = vsel %vm507, %v12412, %v12419
  %v12421 = vrot.slane %v12416, 4
  %v12423 = vshrl.u32 %v12134, 16
  %v12425 = vrot.slane %v12423, 7
  %v12426 = vshll.u32 %v12134, 16
  %v12428 = vor.u32 %v12425, %v12426
  %v12429 = vsel %vm507, %v12421, %v12428
  %v12431 = vshrl.u32 %v12135, 16
  %v12433 = vrot.slane %v12431, 7
  %v12434 = vrot.slane %v12433, 4
  %v12436 = vshrl.u32 %v12136, 16
  %v12438 = vrot.slane %v12436, 7
  %v12439 = vshll.u32 %v12136, 16
  %v12441 = vor.u32 %v12438, %v12439
  %v12442 = vsel %vm507, %v12434, %v12441
  %v12443 = vrot.slane %v12438, 4
  %v12445 = vshrl.u32 %v12137, 16
  %v12447 = vrot.slane %v12445, 7
  %v12448 = vshll.u32 %v12137, 16
  %v12450 = vor.u32 %v12447, %v12448
  %v12451 = vsel %vm507, %v12443, %v12450
  %v12453 = vshrl.u32 %v12138, 16
  %v12455 = vrot.slane %v12453, 7
  %v12456 = vrot.slane %v12455, 4
  %v12458 = vshrl.u32 %v12139, 16
  %v12460 = vrot.slane %v12458, 7
  %v12461 = vshll.u32 %v12139, 16
  %v12463 = vor.u32 %v12460, %v12461
  %v12464 = vsel %vm507, %v12456, %v12463
  %v12465 = vrot.slane %v12460, 4
  %v12467 = vshrl.u32 %v12140, 16
  %v12469 = vrot.slane %v12467, 7
  %v12470 = vshll.u32 %v12140, 16
  %v12472 = vor.u32 %v12469, %v12470
  %v12473 = vsel %vm507, %v12465, %v12472
  %v12475 = vshrl.u32 %v12141, 16
  %v12477 = vrot.slane %v12475, 7
  %v12478 = vrot.slane %v12477, 4
  %v12480 = vshrl.u32 %v12142, 16
  %v12482 = vrot.slane %v12480, 7
  %v12483 = vshll.u32 %v12142, 16
  %v12485 = vor.u32 %v12482, %v12483
  %v12486 = vsel %vm507, %v12478, %v12485
  %v12487 = vrot.slane %v12482, 4
  %v12489 = vshrl.u32 %v12143, 16
  %v12491 = vrot.slane %v12489, 7
  %v12492 = vshll.u32 %v12143, 16
  %v12494 = vor.u32 %v12491, %v12492
  %v12495 = vsel %vm507, %v12487, %v12494
  %v12496 = vld [vmem:[#allocation2 + $0xc] sm:$0x1]
  %v12497 = vld [vmem:[#allocation2 + $0x1c] sm:$0x1]
  %v12498 = vld [vmem:[#allocation2 + $0x2c] sm:$0x1]
  %v12499 = vld [vmem:[#allocation2 + $0x3c] sm:$0x1]
  %v12500 = vld [vmem:[#allocation2 + $0x4c] sm:$0x1]
  %v12501 = vld [vmem:[#allocation2 + $0x5c] sm:$0x1]
  %v12502 = vld [vmem:[#allocation2 + $0x6c] sm:$0x1]
  %v12503 = vld [vmem:[#allocation2 + $0x7c] sm:$0x1]
  %v12504 = vld [vmem:[#allocation2 + $0x8c] sm:$0x1]
  %v12505 = vld [vmem:[#allocation2 + $0x9c] sm:$0x1]
  %v12506 = vld [vmem:[#allocation2 + $0xac] sm:$0x1]
  %v12507 = vld [vmem:[#allocation2 + $0xbc] sm:$0x1]
  %v12508 = vld [vmem:[#allocation2 + $0xcc] sm:$0x1]
  %v12509 = vld [vmem:[#allocation2 + $0xdc] sm:$0x1]
  %v12510 = vld [vmem:[#allocation2 + $0xec] sm:$0x1]
  %v12511 = vld [vmem:[#allocation2 + $0xfc] sm:$0x1]
  %v12512 = vrot.slane %v12150, 4
  %v12513 = vrot.slane %v12153, 5
  %v12514 = vor.u32 %v12512, %v12513
  %v12515 = vrot.slane %v12514, 4
  %v12516 = vrot.slane %v12162, 5
  %v12517 = vsel %vm878, %v12515, %v12516
  %v12518 = vrot.slane %v12159, 4
  %v12519 = vor.u32 %v12518, %v12516
  %v12520 = vrot.slane %v12519, 4
  %v12522 = vshll.u32 %v12496, 16
  %v12524 = vrot.slane %v12522, 5
  %v12525 = vsel %vm878, %v12520, %v12524
  %v12526 = vrot.slane %v12172, 4
  %v12527 = vrot.slane %v12175, 5
  %v12528 = vor.u32 %v12526, %v12527
  %v12529 = vrot.slane %v12528, 4
  %v12530 = vrot.slane %v12184, 5
  %v12531 = vsel %vm878, %v12529, %v12530
  %v12532 = vrot.slane %v12181, 4
  %v12533 = vor.u32 %v12532, %v12530
  %v12534 = vrot.slane %v12533, 4
  %v12536 = vshll.u32 %v12497, 16
  %v12538 = vrot.slane %v12536, 5
  %v12539 = vsel %vm878, %v12534, %v12538
  %v12540 = vrot.slane %v12194, 4
  %v12541 = vrot.slane %v12197, 5
  %v12542 = vor.u32 %v12540, %v12541
  %v12543 = vrot.slane %v12542, 4
  %v12544 = vrot.slane %v12206, 5
  %v12545 = vsel %vm878, %v12543, %v12544
  %v12546 = vrot.slane %v12203, 4
  %v12547 = vor.u32 %v12546, %v12544
  %v12548 = vrot.slane %v12547, 4
  %v12550 = vshll.u32 %v12498, 16
  %v12552 = vrot.slane %v12550, 5
  %v12553 = vsel %vm878, %v12548, %v12552
  %v12554 = vrot.slane %v12216, 4
  %v12555 = vrot.slane %v12219, 5
  %v12556 = vor.u32 %v12554, %v12555
  %v12557 = vrot.slane %v12556, 4
  %v12558 = vrot.slane %v12228, 5
  %v12559 = vsel %vm878, %v12557, %v12558
  %v12560 = vrot.slane %v12225, 4
  %v12561 = vor.u32 %v12560, %v12558
  %v12562 = vrot.slane %v12561, 4
  %v12564 = vshll.u32 %v12499, 16
  %v12566 = vrot.slane %v12564, 5
  %v12567 = vsel %vm878, %v12562, %v12566
  %v12568 = vrot.slane %v12238, 4
  %v12569 = vrot.slane %v12241, 5
  %v12570 = vor.u32 %v12568, %v12569
  %v12571 = vrot.slane %v12570, 4
  %v12572 = vrot.slane %v12250, 5
  %v12573 = vsel %vm878, %v12571, %v12572
  %v12574 = vrot.slane %v12247, 4
  %v12575 = vor.u32 %v12574, %v12572
  %v12576 = vrot.slane %v12575, 4
  %v12578 = vshll.u32 %v12500, 16
  %v12580 = vrot.slane %v12578, 5
  %v12581 = vsel %vm878, %v12576, %v12580
  %v12582 = vrot.slane %v12260, 4
  %v12583 = vrot.slane %v12263, 5
  %v12584 = vor.u32 %v12582, %v12583
  %v12585 = vrot.slane %v12584, 4
  %v12586 = vrot.slane %v12272, 5
  %v12587 = vsel %vm878, %v12585, %v12586
  %v12588 = vrot.slane %v12269, 4
  %v12589 = vor.u32 %v12588, %v12586
  %v12590 = vrot.slane %v12589, 4
  %v12592 = vshll.u32 %v12501, 16
  %v12594 = vrot.slane %v12592, 5
  %v12595 = vsel %vm878, %v12590, %v12594
  %v12596 = vrot.slane %v12282, 4
  %v12597 = vrot.slane %v12285, 5
  %v12598 = vor.u32 %v12596, %v12597
  %v12599 = vrot.slane %v12598, 4
  %v12600 = vrot.slane %v12294, 5
  %v12601 = vsel %vm878, %v12599, %v12600
  %v12602 = vrot.slane %v12291, 4
  %v12603 = vor.u32 %v12602, %v12600
  %v12604 = vrot.slane %v12603, 4
  %v12606 = vshll.u32 %v12502, 16
  %v12608 = vrot.slane %v12606, 5
  %v12609 = vsel %vm878, %v12604, %v12608
  %v12610 = vrot.slane %v12304, 4
  %v12611 = vrot.slane %v12307, 5
  %v12612 = vor.u32 %v12610, %v12611
  %v12613 = vrot.slane %v12612, 4
  %v12614 = vrot.slane %v12316, 5
  %v12615 = vsel %vm878, %v12613, %v12614
  %v12616 = vrot.slane %v12313, 4
  %v12617 = vor.u32 %v12616, %v12614
  %v12618 = vrot.slane %v12617, 4
  %v12620 = vshll.u32 %v12503, 16
  %v12622 = vrot.slane %v12620, 5
  %v12623 = vsel %vm878, %v12618, %v12622
  %v12624 = vrot.slane %v12326, 4
  %v12625 = vrot.slane %v12329, 5
  %v12626 = vor.u32 %v12624, %v12625
  %v12627 = vrot.slane %v12626, 4
  %v12628 = vrot.slane %v12338, 5
  %v12629 = vsel %vm878, %v12627, %v12628
  %v12630 = vrot.slane %v12335, 4
  %v12631 = vor.u32 %v12630, %v12628
  %v12632 = vrot.slane %v12631, 4
  %v12634 = vshll.u32 %v12504, 16
  %v12636 = vrot.slane %v12634, 5
  %v12637 = vsel %vm878, %v12632, %v12636
  %v12638 = vrot.slane %v12348, 4
  %v12639 = vrot.slane %v12351, 5
  %v12640 = vor.u32 %v12638, %v12639
  %v12641 = vrot.slane %v12640, 4
  %v12642 = vrot.slane %v12360, 5
  %v12643 = vsel %vm878, %v12641, %v12642
  %v12644 = vrot.slane %v12357, 4
  %v12645 = vor.u32 %v12644, %v12642
  %v12646 = vrot.slane %v12645, 4
  %v12648 = vshll.u32 %v12505, 16
  %v12650 = vrot.slane %v12648, 5
  %v12651 = vsel %vm878, %v12646, %v12650
  %v12652 = vrot.slane %v12370, 4
  %v12653 = vrot.slane %v12373, 5
  %v12654 = vor.u32 %v12652, %v12653
  %v12655 = vrot.slane %v12654, 4
  %v12656 = vrot.slane %v12382, 5
  %v12657 = vsel %vm878, %v12655, %v12656
  %v12658 = vrot.slane %v12379, 4
  %v12659 = vor.u32 %v12658, %v12656
  %v12660 = vrot.slane %v12659, 4
  %v12662 = vshll.u32 %v12506, 16
  %v12664 = vrot.slane %v12662, 5
  %v12665 = vsel %vm878, %v12660, %v12664
  %v12666 = vrot.slane %v12392, 4
  %v12667 = vrot.slane %v12395, 5
  %v12668 = vor.u32 %v12666, %v12667
  %v12669 = vrot.slane %v12668, 4
  %v12670 = vrot.slane %v12404, 5
  %v12671 = vsel %vm878, %v12669, %v12670
  %v12672 = vrot.slane %v12401, 4
  %v12673 = vor.u32 %v12672, %v12670
  %v12674 = vrot.slane %v12673, 4
  %v12676 = vshll.u32 %v12507, 16
  %v12678 = vrot.slane %v12676, 5
  %v12679 = vsel %vm878, %v12674, %v12678
  %v12680 = vrot.slane %v12414, 4
  %v12681 = vrot.slane %v12417, 5
  %v12682 = vor.u32 %v12680, %v12681
  %v12683 = vrot.slane %v12682, 4
  %v12684 = vrot.slane %v12426, 5
  %v12685 = vsel %vm878, %v12683, %v12684
  %v12686 = vrot.slane %v12423, 4
  %v12687 = vor.u32 %v12686, %v12684
  %v12688 = vrot.slane %v12687, 4
  %v12690 = vshll.u32 %v12508, 16
  %v12692 = vrot.slane %v12690, 5
  %v12693 = vsel %vm878, %v12688, %v12692
  %v12694 = vrot.slane %v12436, 4
  %v12695 = vrot.slane %v12439, 5
  %v12696 = vor.u32 %v12694, %v12695
  %v12697 = vrot.slane %v12696, 4
  %v12698 = vrot.slane %v12448, 5
  %v12699 = vsel %vm878, %v12697, %v12698
  %v12700 = vrot.slane %v12445, 4
  %v12701 = vor.u32 %v12700, %v12698
  %v12702 = vrot.slane %v12701, 4
  %v12704 = vshll.u32 %v12509, 16
  %v12706 = vrot.slane %v12704, 5
  %v12707 = vsel %vm878, %v12702, %v12706
  %v12708 = vrot.slane %v12458, 4
  %v12709 = vrot.slane %v12461, 5
  %v12710 = vor.u32 %v12708, %v12709
  %v12711 = vrot.slane %v12710, 4
  %v12712 = vrot.slane %v12470, 5
  %v12713 = vsel %vm878, %v12711, %v12712
  %v12714 = vrot.slane %v12467, 4
  %v12715 = vor.u32 %v12714, %v12712
  %v12716 = vrot.slane %v12715, 4
  %v12718 = vshll.u32 %v12510, 16
  %v12720 = vrot.slane %v12718, 5
  %v12721 = vsel %vm878, %v12716, %v12720
  %v12722 = vrot.slane %v12480, 4
  %v12723 = vrot.slane %v12483, 5
  %v12724 = vor.u32 %v12722, %v12723
  %v12725 = vrot.slane %v12724, 4
  %v12726 = vrot.slane %v12492, 5
  %v12727 = vsel %vm878, %v12725, %v12726
  %v12728 = vrot.slane %v12489, 4
  %v12729 = vor.u32 %v12728, %v12726
  %v12730 = vrot.slane %v12729, 4
  %v12732 = vshll.u32 %v12511, 16
  %v12734 = vrot.slane %v12732, 5
  %v12735 = vsel %vm878, %v12730, %v12734
  %v12736 = vld [vmem:[%s424] sm:$0x8]
  %v12737 = vld [vmem:[%s424 + $0x4] sm:$0xf]
  %v12738 = vld [vmem:[%s424 + $0x8] sm:$0xf]
  %v12739 = vld [vmem:[%s424 + $0x10] sm:$0x8]
  %v12740 = vld [vmem:[%s424 + $0x14] sm:$0xf]
  %v12741 = vld [vmem:[%s424 + $0x18] sm:$0xf]
  %v12742 = vld [vmem:[%s424 + $0x20] sm:$0x8]
  %v12743 = vld [vmem:[%s424 + $0x24] sm:$0xf]
  %v12744 = vld [vmem:[%s424 + $0x28] sm:$0xf]
  %v12745 = vld [vmem:[%s424 + $0x30] sm:$0x8]
  %v12746 = vld [vmem:[%s424 + $0x34] sm:$0xf]
  %v12747 = vld [vmem:[%s424 + $0x38] sm:$0xf]
  %v12748 = vld [vmem:[%s424 + $0x40] sm:$0x8]
  %v12749 = vld [vmem:[%s424 + $0x44] sm:$0xf]
  %v12750 = vld [vmem:[%s424 + $0x48] sm:$0xf]
  %v12751 = vld [vmem:[%s424 + $0x50] sm:$0x8]
  %v12752 = vld [vmem:[%s424 + $0x54] sm:$0xf]
  %v12753 = vld [vmem:[%s424 + $0x58] sm:$0xf]
  %v12754 = vld [vmem:[%s424 + $0x60] sm:$0x8]
  %v12755 = vld [vmem:[%s424 + $0x64] sm:$0xf]
  %v12756 = vld [vmem:[%s424 + $0x68] sm:$0xf]
  %v12757 = vld [vmem:[%s424 + $0x70] sm:$0x8]
  %v12758 = vld [vmem:[%s424 + $0x74] sm:$0xf]
  %v12759 = vld [vmem:[%s424 + $0x78] sm:$0xf]
  %v12760 = vld [vmem:[%s424 + $0x80] sm:$0x8]
  %v12761 = vld [vmem:[%s424 + $0x84] sm:$0xf]
  %v12762 = vld [vmem:[%s424 + $0x88] sm:$0xf]
  %v12763 = vld [vmem:[%s424 + $0x90] sm:$0x8]
  %v12764 = vld [vmem:[%s424 + $0x94] sm:$0xf]
  %v12765 = vld [vmem:[%s424 + $0x98] sm:$0xf]
  %v12766 = vld [vmem:[%s424 + $0xa0] sm:$0x8]
  %v12767 = vld [vmem:[%s424 + $0xa4] sm:$0xf]
  %v12768 = vld [vmem:[%s424 + $0xa8] sm:$0xf]
  %v12769 = vld [vmem:[%s424 + $0xb0] sm:$0x8]
  %v12770 = vld [vmem:[%s424 + $0xb4] sm:$0xf]
  %v12771 = vld [vmem:[%s424 + $0xb8] sm:$0xf]
  %v12772 = vld [vmem:[%s424 + $0xc0] sm:$0x8]
  %v12773 = vld [vmem:[%s424 + $0xc4] sm:$0xf]
  %v12774 = vld [vmem:[%s424 + $0xc8] sm:$0xf]
  %v12775 = vld [vmem:[%s424 + $0xd0] sm:$0x8]
  %v12776 = vld [vmem:[%s424 + $0xd4] sm:$0xf]
  %v12777 = vld [vmem:[%s424 + $0xd8] sm:$0xf]
  %v12778 = vld [vmem:[%s424 + $0xe0] sm:$0x8]
  %v12779 = vld [vmem:[%s424 + $0xe4] sm:$0xf]
  %v12780 = vld [vmem:[%s424 + $0xe8] sm:$0xf]
  %v12781 = vld [vmem:[%s424 + $0xf0] sm:$0x8]
  %v12782 = vld [vmem:[%s424 + $0xf4] sm:$0xf]
  %v12783 = vld [vmem:[%s424 + $0xf8] sm:$0xf]
  %v12785 = vshrl.u32 %v12736, 16
  %v12787 = vrot.slane %v12785, 7
  %v12788 = vrot.slane %v12787, 4
  %v12790 = vshrl.u32 %v12737, 16
  %v12792 = vrot.slane %v12790, 7
  %v12793 = vshll.u32 %v12737, 16
  %v12795 = vor.u32 %v12792, %v12793
  %v12796 = vsel %vm507, %v12788, %v12795
  %v12797 = vrot.slane %v12792, 4
  %v12799 = vshrl.u32 %v12738, 16
  %v12801 = vrot.slane %v12799, 7
  %v12802 = vshll.u32 %v12738, 16
  %v12804 = vor.u32 %v12801, %v12802
  %v12805 = vsel %vm507, %v12797, %v12804
  %v12807 = vshrl.u32 %v12739, 16
  %v12809 = vrot.slane %v12807, 7
  %v12810 = vrot.slane %v12809, 4
  %v12812 = vshrl.u32 %v12740, 16
  %v12814 = vrot.slane %v12812, 7
  %v12815 = vshll.u32 %v12740, 16
  %v12817 = vor.u32 %v12814, %v12815
  %v12818 = vsel %vm507, %v12810, %v12817
  %v12819 = vrot.slane %v12814, 4
  %v12821 = vshrl.u32 %v12741, 16
  %v12823 = vrot.slane %v12821, 7
  %v12824 = vshll.u32 %v12741, 16
  %v12826 = vor.u32 %v12823, %v12824
  %v12827 = vsel %vm507, %v12819, %v12826
  %v12829 = vshrl.u32 %v12742, 16
  %v12831 = vrot.slane %v12829, 7
  %v12832 = vrot.slane %v12831, 4
  %v12834 = vshrl.u32 %v12743, 16
  %v12836 = vrot.slane %v12834, 7
  %v12837 = vshll.u32 %v12743, 16
  %v12839 = vor.u32 %v12836, %v12837
  %v12840 = vsel %vm507, %v12832, %v12839
  %v12841 = vrot.slane %v12836, 4
  %v12843 = vshrl.u32 %v12744, 16
  %v12845 = vrot.slane %v12843, 7
  %v12846 = vshll.u32 %v12744, 16
  %v12848 = vor.u32 %v12845, %v12846
  %v12849 = vsel %vm507, %v12841, %v12848
  %v12851 = vshrl.u32 %v12745, 16
  %v12853 = vrot.slane %v12851, 7
  %v12854 = vrot.slane %v12853, 4
  %v12856 = vshrl.u32 %v12746, 16
  %v12858 = vrot.slane %v12856, 7
  %v12859 = vshll.u32 %v12746, 16
  %v12861 = vor.u32 %v12858, %v12859
  %v12862 = vsel %vm507, %v12854, %v12861
  %v12863 = vrot.slane %v12858, 4
  %v12865 = vshrl.u32 %v12747, 16
  %v12867 = vrot.slane %v12865, 7
  %v12868 = vshll.u32 %v12747, 16
  %v12870 = vor.u32 %v12867, %v12868
  %v12871 = vsel %vm507, %v12863, %v12870
  %v12873 = vshrl.u32 %v12748, 16
  %v12875 = vrot.slane %v12873, 7
  %v12876 = vrot.slane %v12875, 4
  %v12878 = vshrl.u32 %v12749, 16
  %v12880 = vrot.slane %v12878, 7
  %v12881 = vshll.u32 %v12749, 16
  %v12883 = vor.u32 %v12880, %v12881
  %v12884 = vsel %vm507, %v12876, %v12883
  %v12885 = vrot.slane %v12880, 4
  %v12887 = vshrl.u32 %v12750, 16
  %v12889 = vrot.slane %v12887, 7
  %v12890 = vshll.u32 %v12750, 16
  %v12892 = vor.u32 %v12889, %v12890
  %v12893 = vsel %vm507, %v12885, %v12892
  %v12895 = vshrl.u32 %v12751, 16
  %v12897 = vrot.slane %v12895, 7
  %v12898 = vrot.slane %v12897, 4
  %v12900 = vshrl.u32 %v12752, 16
  %v12902 = vrot.slane %v12900, 7
  %v12903 = vshll.u32 %v12752, 16
  %v12905 = vor.u32 %v12902, %v12903
  %v12906 = vsel %vm507, %v12898, %v12905
  %v12907 = vrot.slane %v12902, 4
  %v12909 = vshrl.u32 %v12753, 16
  %v12911 = vrot.slane %v12909, 7
  %v12912 = vshll.u32 %v12753, 16
  %v12914 = vor.u32 %v12911, %v12912
  %v12915 = vsel %vm507, %v12907, %v12914
  %v12917 = vshrl.u32 %v12754, 16
  %v12919 = vrot.slane %v12917, 7
  %v12920 = vrot.slane %v12919, 4
  %v12922 = vshrl.u32 %v12755, 16
  %v12924 = vrot.slane %v12922, 7
  %v12925 = vshll.u32 %v12755, 16
  %v12927 = vor.u32 %v12924, %v12925
  %v12928 = vsel %vm507, %v12920, %v12927
  %v12929 = vrot.slane %v12924, 4
  %v12931 = vshrl.u32 %v12756, 16
  %v12933 = vrot.slane %v12931, 7
  %v12934 = vshll.u32 %v12756, 16
  %v12936 = vor.u32 %v12933, %v12934
  %v12937 = vsel %vm507, %v12929, %v12936
  %v12939 = vshrl.u32 %v12757, 16
  %v12941 = vrot.slane %v12939, 7
  %v12942 = vrot.slane %v12941, 4
  %v12944 = vshrl.u32 %v12758, 16
  %v12946 = vrot.slane %v12944, 7
  %v12947 = vshll.u32 %v12758, 16
  %v12949 = vor.u32 %v12946, %v12947
  %v12950 = vsel %vm507, %v12942, %v12949
  %v12951 = vrot.slane %v12946, 4
  %v12953 = vshrl.u32 %v12759, 16
  %v12955 = vrot.slane %v12953, 7
  %v12956 = vshll.u32 %v12759, 16
  %v12958 = vor.u32 %v12955, %v12956
  %v12959 = vsel %vm507, %v12951, %v12958
  %v12961 = vshrl.u32 %v12760, 16
  %v12963 = vrot.slane %v12961, 7
  %v12964 = vrot.slane %v12963, 4
  %v12966 = vshrl.u32 %v12761, 16
  %v12968 = vrot.slane %v12966, 7
  %v12969 = vshll.u32 %v12761, 16
  %v12971 = vor.u32 %v12968, %v12969
  %v12972 = vsel %vm507, %v12964, %v12971
  %v12973 = vrot.slane %v12968, 4
  %v12975 = vshrl.u32 %v12762, 16
  %v12977 = vrot.slane %v12975, 7
  %v12978 = vshll.u32 %v12762, 16
  %v12980 = vor.u32 %v12977, %v12978
  %v12981 = vsel %vm507, %v12973, %v12980
  %v12983 = vshrl.u32 %v12763, 16
  %v12985 = vrot.slane %v12983, 7
  %v12986 = vrot.slane %v12985, 4
  %v12988 = vshrl.u32 %v12764, 16
  %v12990 = vrot.slane %v12988, 7
  %v12991 = vshll.u32 %v12764, 16
  %v12993 = vor.u32 %v12990, %v12991
  %v12994 = vsel %vm507, %v12986, %v12993
  %v12995 = vrot.slane %v12990, 4
  %v12997 = vshrl.u32 %v12765, 16
  %v12999 = vrot.slane %v12997, 7
  %v13000 = vshll.u32 %v12765, 16
  %v13002 = vor.u32 %v12999, %v13000
  %v13003 = vsel %vm507, %v12995, %v13002
  %v13005 = vshrl.u32 %v12766, 16
  %v13007 = vrot.slane %v13005, 7
  %v13008 = vrot.slane %v13007, 4
  %v13010 = vshrl.u32 %v12767, 16
  %v13012 = vrot.slane %v13010, 7
  %v13013 = vshll.u32 %v12767, 16
  %v13015 = vor.u32 %v13012, %v13013
  %v13016 = vsel %vm507, %v13008, %v13015
  %v13017 = vrot.slane %v13012, 4
  %v13019 = vshrl.u32 %v12768, 16
  %v13021 = vrot.slane %v13019, 7
  %v13022 = vshll.u32 %v12768, 16
  %v13024 = vor.u32 %v13021, %v13022
  %v13025 = vsel %vm507, %v13017, %v13024
  %v13027 = vshrl.u32 %v12769, 16
  %v13029 = vrot.slane %v13027, 7
  %v13030 = vrot.slane %v13029, 4
  %v13032 = vshrl.u32 %v12770, 16
  %v13034 = vrot.slane %v13032, 7
  %v13035 = vshll.u32 %v12770, 16
  %v13037 = vor.u32 %v13034, %v13035
  %v13038 = vsel %vm507, %v13030, %v13037
  %v13039 = vrot.slane %v13034, 4
  %v13041 = vshrl.u32 %v12771, 16
  %v13043 = vrot.slane %v13041, 7
  %v13044 = vshll.u32 %v12771, 16
  %v13046 = vor.u32 %v13043, %v13044
  %v13047 = vsel %vm507, %v13039, %v13046
  %v13049 = vshrl.u32 %v12772, 16
  %v13051 = vrot.slane %v13049, 7
  %v13052 = vrot.slane %v13051, 4
  %v13054 = vshrl.u32 %v12773, 16
  %v13056 = vrot.slane %v13054, 7
  %v13057 = vshll.u32 %v12773, 16
  %v13059 = vor.u32 %v13056, %v13057
  %v13060 = vsel %vm507, %v13052, %v13059
  %v13061 = vrot.slane %v13056, 4
  %v13063 = vshrl.u32 %v12774, 16
  %v13065 = vrot.slane %v13063, 7
  %v13066 = vshll.u32 %v12774, 16
  %v13068 = vor.u32 %v13065, %v13066
  %v13069 = vsel %vm507, %v13061, %v13068
  %v13071 = vshrl.u32 %v12775, 16
  %v13073 = vrot.slane %v13071, 7
  %v13074 = vrot.slane %v13073, 4
  %v13076 = vshrl.u32 %v12776, 16
  %v13078 = vrot.slane %v13076, 7
  %v13079 = vshll.u32 %v12776, 16
  %v13081 = vor.u32 %v13078, %v13079
  %v13082 = vsel %vm507, %v13074, %v13081
  %v13083 = vrot.slane %v13078, 4
  %v13085 = vshrl.u32 %v12777, 16
  %v13087 = vrot.slane %v13085, 7
  %v13088 = vshll.u32 %v12777, 16
  %v13090 = vor.u32 %v13087, %v13088
  %v13091 = vsel %vm507, %v13083, %v13090
  %v13093 = vshrl.u32 %v12778, 16
  %v13095 = vrot.slane %v13093, 7
  %v13096 = vrot.slane %v13095, 4
  %v13098 = vshrl.u32 %v12779, 16
  %v13100 = vrot.slane %v13098, 7
  %v13101 = vshll.u32 %v12779, 16
  %v13103 = vor.u32 %v13100, %v13101
  %v13104 = vsel %vm507, %v13096, %v13103
  %v13105 = vrot.slane %v13100, 4
  %v13107 = vshrl.u32 %v12780, 16
  %v13109 = vrot.slane %v13107, 7
  %v13110 = vshll.u32 %v12780, 16
  %v13112 = vor.u32 %v13109, %v13110
  %v13113 = vsel %vm507, %v13105, %v13112
  %v13115 = vshrl.u32 %v12781, 16
  %v13117 = vrot.slane %v13115, 7
  %v13118 = vrot.slane %v13117, 4
  %v13120 = vshrl.u32 %v12782, 16
  %v13122 = vrot.slane %v13120, 7
  %v13123 = vshll.u32 %v12782, 16
  %v13125 = vor.u32 %v13122, %v13123
  %v13126 = vsel %vm507, %v13118, %v13125
  %v13127 = vrot.slane %v13122, 4
  %v13129 = vshrl.u32 %v12783, 16
  %v13131 = vrot.slane %v13129, 7
  %v13132 = vshll.u32 %v12783, 16
  %v13134 = vor.u32 %v13131, %v13132
  %v13135 = vsel %vm507, %v13127, %v13134
  %v13136 = vld [vmem:[%s424 + $0xc] sm:$0x1]
  %v13137 = vld [vmem:[%s424 + $0x1c] sm:$0x1]
  %v13138 = vld [vmem:[%s424 + $0x2c] sm:$0x1]
  %v13139 = vld [vmem:[%s424 + $0x3c] sm:$0x1]
  %v13140 = vld [vmem:[%s424 + $0x4c] sm:$0x1]
  %v13141 = vld [vmem:[%s424 + $0x5c] sm:$0x1]
  %v13142 = vld [vmem:[%s424 + $0x6c] sm:$0x1]
  %v13143 = vld [vmem:[%s424 + $0x7c] sm:$0x1]
  %v13144 = vld [vmem:[%s424 + $0x8c] sm:$0x1]
  %v13145 = vld [vmem:[%s424 + $0x9c] sm:$0x1]
  %v13146 = vld [vmem:[%s424 + $0xac] sm:$0x1]
  %v13147 = vld [vmem:[%s424 + $0xbc] sm:$0x1]
  %v13148 = vld [vmem:[%s424 + $0xcc] sm:$0x1]
  %v13149 = vld [vmem:[%s424 + $0xdc] sm:$0x1]
  %v13150 = vld [vmem:[%s424 + $0xec] sm:$0x1]
  %v13151 = vld [vmem:[%s424 + $0xfc] sm:$0x1]
  %v13152 = vrot.slane %v12790, 4
  %v13153 = vrot.slane %v12793, 5
  %v13154 = vor.u32 %v13152, %v13153
  %v13155 = vrot.slane %v13154, 4
  %v13156 = vrot.slane %v12802, 5
  %v13157 = vsel %vm878, %v13155, %v13156
  %v13158 = vrot.slane %v12799, 4
  %v13159 = vor.u32 %v13158, %v13156
  %v13160 = vrot.slane %v13159, 4
  %v13162 = vshll.u32 %v13136, 16
  %v13164 = vrot.slane %v13162, 5
  %v13165 = vsel %vm878, %v13160, %v13164
  %v13166 = vrot.slane %v12812, 4
  %v13167 = vrot.slane %v12815, 5
  %v13168 = vor.u32 %v13166, %v13167
  %v13169 = vrot.slane %v13168, 4
  %v13170 = vrot.slane %v12824, 5
  %v13171 = vsel %vm878, %v13169, %v13170
  %v13172 = vrot.slane %v12821, 4
  %v13173 = vor.u32 %v13172, %v13170
  %v13174 = vrot.slane %v13173, 4
  %v13176 = vshll.u32 %v13137, 16
  %v13178 = vrot.slane %v13176, 5
  %v13179 = vsel %vm878, %v13174, %v13178
  %v13180 = vrot.slane %v12834, 4
  %v13181 = vrot.slane %v12837, 5
  %v13182 = vor.u32 %v13180, %v13181
  %v13183 = vrot.slane %v13182, 4
  %v13184 = vrot.slane %v12846, 5
  %v13185 = vsel %vm878, %v13183, %v13184
  %v13186 = vrot.slane %v12843, 4
  %v13187 = vor.u32 %v13186, %v13184
  %v13188 = vrot.slane %v13187, 4
  %v13190 = vshll.u32 %v13138, 16
  %v13192 = vrot.slane %v13190, 5
  %v13193 = vsel %vm878, %v13188, %v13192
  %v13194 = vrot.slane %v12856, 4
  %v13195 = vrot.slane %v12859, 5
  %v13196 = vor.u32 %v13194, %v13195
  %v13197 = vrot.slane %v13196, 4
  %v13198 = vrot.slane %v12868, 5
  %v13199 = vsel %vm878, %v13197, %v13198
  %v13200 = vrot.slane %v12865, 4
  %v13201 = vor.u32 %v13200, %v13198
  %v13202 = vrot.slane %v13201, 4
  %v13204 = vshll.u32 %v13139, 16
  %v13206 = vrot.slane %v13204, 5
  %v13207 = vsel %vm878, %v13202, %v13206
  %v13208 = vrot.slane %v12878, 4
  %v13209 = vrot.slane %v12881, 5
  %v13210 = vor.u32 %v13208, %v13209
  %v13211 = vrot.slane %v13210, 4
  %v13212 = vrot.slane %v12890, 5
  %v13213 = vsel %vm878, %v13211, %v13212
  %v13214 = vrot.slane %v12887, 4
  %v13215 = vor.u32 %v13214, %v13212
  %v13216 = vrot.slane %v13215, 4
  %v13218 = vshll.u32 %v13140, 16
  %v13220 = vrot.slane %v13218, 5
  %v13221 = vsel %vm878, %v13216, %v13220
  %v13222 = vrot.slane %v12900, 4
  %v13223 = vrot.slane %v12903, 5
  %v13224 = vor.u32 %v13222, %v13223
  %v13225 = vrot.slane %v13224, 4
  %v13226 = vrot.slane %v12912, 5
  %v13227 = vsel %vm878, %v13225, %v13226
  %v13228 = vrot.slane %v12909, 4
  %v13229 = vor.u32 %v13228, %v13226
  %v13230 = vrot.slane %v13229, 4
  %v13232 = vshll.u32 %v13141, 16
  %v13234 = vrot.slane %v13232, 5
  %v13235 = vsel %vm878, %v13230, %v13234
  %v13236 = vrot.slane %v12922, 4
  %v13237 = vrot.slane %v12925, 5
  %v13238 = vor.u32 %v13236, %v13237
  %v13239 = vrot.slane %v13238, 4
  %v13240 = vrot.slane %v12934, 5
  %v13241 = vsel %vm878, %v13239, %v13240
  %v13242 = vrot.slane %v12931, 4
  %v13243 = vor.u32 %v13242, %v13240
  %v13244 = vrot.slane %v13243, 4
  %v13246 = vshll.u32 %v13142, 16
  %v13248 = vrot.slane %v13246, 5
  %v13249 = vsel %vm878, %v13244, %v13248
  %v13250 = vrot.slane %v12944, 4
  %v13251 = vrot.slane %v12947, 5
  %v13252 = vor.u32 %v13250, %v13251
  %v13253 = vrot.slane %v13252, 4
  %v13254 = vrot.slane %v12956, 5
  %v13255 = vsel %vm878, %v13253, %v13254
  %v13256 = vrot.slane %v12953, 4
  %v13257 = vor.u32 %v13256, %v13254
  %v13258 = vrot.slane %v13257, 4
  %v13260 = vshll.u32 %v13143, 16
  %v13262 = vrot.slane %v13260, 5
  %v13263 = vsel %vm878, %v13258, %v13262
  %v13264 = vrot.slane %v12966, 4
  %v13265 = vrot.slane %v12969, 5
  %v13266 = vor.u32 %v13264, %v13265
  %v13267 = vrot.slane %v13266, 4
  %v13268 = vrot.slane %v12978, 5
  %v13269 = vsel %vm878, %v13267, %v13268
  %v13270 = vrot.slane %v12975, 4
  %v13271 = vor.u32 %v13270, %v13268
  %v13272 = vrot.slane %v13271, 4
  %v13274 = vshll.u32 %v13144, 16
  %v13276 = vrot.slane %v13274, 5
  %v13277 = vsel %vm878, %v13272, %v13276
  %v13278 = vrot.slane %v12988, 4
  %v13279 = vrot.slane %v12991, 5
  %v13280 = vor.u32 %v13278, %v13279
  %v13281 = vrot.slane %v13280, 4
  %v13282 = vrot.slane %v13000, 5
  %v13283 = vsel %vm878, %v13281, %v13282
  %v13284 = vrot.slane %v12997, 4
  %v13285 = vor.u32 %v13284, %v13282
  %v13286 = vrot.slane %v13285, 4
  %v13288 = vshll.u32 %v13145, 16
  %v13290 = vrot.slane %v13288, 5
  %v13291 = vsel %vm878, %v13286, %v13290
  %v13292 = vrot.slane %v13010, 4
  %v13293 = vrot.slane %v13013, 5
  %v13294 = vor.u32 %v13292, %v13293
  %v13295 = vrot.slane %v13294, 4
  %v13296 = vrot.slane %v13022, 5
  %v13297 = vsel %vm878, %v13295, %v13296
  %v13298 = vrot.slane %v13019, 4
  %v13299 = vor.u32 %v13298, %v13296
  %v13300 = vrot.slane %v13299, 4
  %v13302 = vshll.u32 %v13146, 16
  %v13304 = vrot.slane %v13302, 5
  %v13305 = vsel %vm878, %v13300, %v13304
  %v13306 = vrot.slane %v13032, 4
  %v13307 = vrot.slane %v13035, 5
  %v13308 = vor.u32 %v13306, %v13307
  %v13309 = vrot.slane %v13308, 4
  %v13310 = vrot.slane %v13044, 5
  %v13311 = vsel %vm878, %v13309, %v13310
  %v13312 = vrot.slane %v13041, 4
  %v13313 = vor.u32 %v13312, %v13310
  %v13314 = vrot.slane %v13313, 4
  %v13316 = vshll.u32 %v13147, 16
  %v13318 = vrot.slane %v13316, 5
  %v13319 = vsel %vm878, %v13314, %v13318
  %v13320 = vrot.slane %v13054, 4
  %v13321 = vrot.slane %v13057, 5
  %v13322 = vor.u32 %v13320, %v13321
  %v13323 = vrot.slane %v13322, 4
  %v13324 = vrot.slane %v13066, 5
  %v13325 = vsel %vm878, %v13323, %v13324
  %v13326 = vrot.slane %v13063, 4
  %v13327 = vor.u32 %v13326, %v13324
  %v13328 = vrot.slane %v13327, 4
  %v13330 = vshll.u32 %v13148, 16
  %v13332 = vrot.slane %v13330, 5
  %v13333 = vsel %vm878, %v13328, %v13332
  %v13334 = vrot.slane %v13076, 4
  %v13335 = vrot.slane %v13079, 5
  %v13336 = vor.u32 %v13334, %v13335
  %v13337 = vrot.slane %v13336, 4
  %v13338 = vrot.slane %v13088, 5
  %v13339 = vsel %vm878, %v13337, %v13338
  %v13340 = vrot.slane %v13085, 4
  %v13341 = vor.u32 %v13340, %v13338
  %v13342 = vrot.slane %v13341, 4
  %v13344 = vshll.u32 %v13149, 16
  %v13346 = vrot.slane %v13344, 5
  %v13347 = vsel %vm878, %v13342, %v13346
  %v13348 = vrot.slane %v13098, 4
  %v13349 = vrot.slane %v13101, 5
  %v13350 = vor.u32 %v13348, %v13349
  %v13351 = vrot.slane %v13350, 4
  %v13352 = vrot.slane %v13110, 5
  %v13353 = vsel %vm878, %v13351, %v13352
  %v13354 = vrot.slane %v13107, 4
  %v13355 = vor.u32 %v13354, %v13352
  %v13356 = vrot.slane %v13355, 4
  %v13358 = vshll.u32 %v13150, 16
  %v13360 = vrot.slane %v13358, 5
  %v13361 = vsel %vm878, %v13356, %v13360
  %v13362 = vrot.slane %v13120, 4
  %v13363 = vrot.slane %v13123, 5
  %v13364 = vor.u32 %v13362, %v13363
  %v13365 = vrot.slane %v13364, 4
  %v13366 = vrot.slane %v13132, 5
  %v13367 = vsel %vm878, %v13365, %v13366
  %v13368 = vrot.slane %v13129, 4
  %v13369 = vor.u32 %v13368, %v13366
  %v13370 = vrot.slane %v13369, 4
  %v13372 = vshll.u32 %v13151, 16
  %v13374 = vrot.slane %v13372, 5
  %v13375 = vsel %vm878, %v13370, %v13374
  %v13376 = vld [vmem:[%s1743] sm:$0x8]
  %v13377 = vld [vmem:[%s1743 + $0x4] sm:$0xf]
  %v13378 = vld [vmem:[%s1743 + $0x8] sm:$0xf]
  %v13379 = vld [vmem:[%s1743 + $0x10] sm:$0x8]
  %v13380 = vld [vmem:[%s1743 + $0x14] sm:$0xf]
  %v13381 = vld [vmem:[%s1743 + $0x18] sm:$0xf]
  %v13382 = vld [vmem:[%s1743 + $0x20] sm:$0x8]
  %v13383 = vld [vmem:[%s1743 + $0x24] sm:$0xf]
  %v13384 = vld [vmem:[%s1743 + $0x28] sm:$0xf]
  %v13385 = vld [vmem:[%s1743 + $0x30] sm:$0x8]
  %v13386 = vld [vmem:[%s1743 + $0x34] sm:$0xf]
  %v13387 = vld [vmem:[%s1743 + $0x38] sm:$0xf]
  %v13388 = vld [vmem:[%s1743 + $0x40] sm:$0x8]
  %v13389 = vld [vmem:[%s1743 + $0x44] sm:$0xf]
  %v13390 = vld [vmem:[%s1743 + $0x48] sm:$0xf]
  %v13391 = vld [vmem:[%s1743 + $0x50] sm:$0x8]
  %v13392 = vld [vmem:[%s1743 + $0x54] sm:$0xf]
  %v13393 = vld [vmem:[%s1743 + $0x58] sm:$0xf]
  %v13394 = vld [vmem:[%s1743 + $0x60] sm:$0x8]
  %v13395 = vld [vmem:[%s1743 + $0x64] sm:$0xf]
  %v13396 = vld [vmem:[%s1743 + $0x68] sm:$0xf]
  %v13397 = vld [vmem:[%s1743 + $0x70] sm:$0x8]
  %v13398 = vld [vmem:[%s1743 + $0x74] sm:$0xf]
  %v13399 = vld [vmem:[%s1743 + $0x78] sm:$0xf]
  %v13400 = vld [vmem:[%s1743 + $0x80] sm:$0x8]
  %v13401 = vld [vmem:[%s1743 + $0x84] sm:$0xf]
  %v13402 = vld [vmem:[%s1743 + $0x88] sm:$0xf]
  %v13403 = vld [vmem:[%s1743 + $0x90] sm:$0x8]
  %v13404 = vld [vmem:[%s1743 + $0x94] sm:$0xf]
  %v13405 = vld [vmem:[%s1743 + $0x98] sm:$0xf]
  %v13406 = vld [vmem:[%s1743 + $0xa0] sm:$0x8]
  %v13407 = vld [vmem:[%s1743 + $0xa4] sm:$0xf]
  %v13408 = vld [vmem:[%s1743 + $0xa8] sm:$0xf]
  %v13409 = vld [vmem:[%s1743 + $0xb0] sm:$0x8]
  %v13410 = vld [vmem:[%s1743 + $0xb4] sm:$0xf]
  %v13411 = vld [vmem:[%s1743 + $0xb8] sm:$0xf]
  %v13412 = vld [vmem:[%s1743 + $0xc0] sm:$0x8]
  %v13413 = vld [vmem:[%s1743 + $0xc4] sm:$0xf]
  %v13414 = vld [vmem:[%s1743 + $0xc8] sm:$0xf]
  %v13415 = vld [vmem:[%s1743 + $0xd0] sm:$0x8]
  %v13416 = vld [vmem:[%s1743 + $0xd4] sm:$0xf]
  %v13417 = vld [vmem:[%s1743 + $0xd8] sm:$0xf]
  %v13418 = vld [vmem:[%s1743 + $0xe0] sm:$0x8]
  %v13419 = vld [vmem:[%s1743 + $0xe4] sm:$0xf]
  %v13420 = vld [vmem:[%s1743 + $0xe8] sm:$0xf]
  %v13421 = vld [vmem:[%s1743 + $0xf0] sm:$0x8]
  %v13422 = vld [vmem:[%s1743 + $0xf4] sm:$0xf]
  %v13423 = vld [vmem:[%s1743 + $0xf8] sm:$0xf]
  %v13425 = vshrl.u32 %v13376, 16
  %v13427 = vrot.slane %v13425, 7
  %v13428 = vrot.slane %v13427, 4
  %v13430 = vshrl.u32 %v13377, 16
  %v13432 = vrot.slane %v13430, 7
  %v13433 = vshll.u32 %v13377, 16
  %v13435 = vor.u32 %v13432, %v13433
  %v13436 = vsel %vm507, %v13428, %v13435
  %v13437 = vrot.slane %v13432, 4
  %v13439 = vshrl.u32 %v13378, 16
  %v13441 = vrot.slane %v13439, 7
  %v13442 = vshll.u32 %v13378, 16
  %v13444 = vor.u32 %v13441, %v13442
  %v13445 = vsel %vm507, %v13437, %v13444
  %v13447 = vshrl.u32 %v13379, 16
  %v13449 = vrot.slane %v13447, 7
  %v13450 = vrot.slane %v13449, 4
  %v13452 = vshrl.u32 %v13380, 16
  %v13454 = vrot.slane %v13452, 7
  %v13455 = vshll.u32 %v13380, 16
  %v13457 = vor.u32 %v13454, %v13455
  %v13458 = vsel %vm507, %v13450, %v13457
  %v13459 = vrot.slane %v13454, 4
  %v13461 = vshrl.u32 %v13381, 16
  %v13463 = vrot.slane %v13461, 7
  %v13464 = vshll.u32 %v13381, 16
  %v13466 = vor.u32 %v13463, %v13464
  %v13467 = vsel %vm507, %v13459, %v13466
  %v13469 = vshrl.u32 %v13382, 16
  %v13471 = vrot.slane %v13469, 7
  %v13472 = vrot.slane %v13471, 4
  %v13474 = vshrl.u32 %v13383, 16
  %v13476 = vrot.slane %v13474, 7
  %v13477 = vshll.u32 %v13383, 16
  %v13479 = vor.u32 %v13476, %v13477
  %v13480 = vsel %vm507, %v13472, %v13479
  %v13481 = vrot.slane %v13476, 4
  %v13483 = vshrl.u32 %v13384, 16
  %v13485 = vrot.slane %v13483, 7
  %v13486 = vshll.u32 %v13384, 16
  %v13488 = vor.u32 %v13485, %v13486
  %v13489 = vsel %vm507, %v13481, %v13488
  %v13491 = vshrl.u32 %v13385, 16
  %v13493 = vrot.slane %v13491, 7
  %v13494 = vrot.slane %v13493, 4
  %v13496 = vshrl.u32 %v13386, 16
  %v13498 = vrot.slane %v13496, 7
  %v13499 = vshll.u32 %v13386, 16
  %v13501 = vor.u32 %v13498, %v13499
  %v13502 = vsel %vm507, %v13494, %v13501
  %v13503 = vrot.slane %v13498, 4
  %v13505 = vshrl.u32 %v13387, 16
  %v13507 = vrot.slane %v13505, 7
  %v13508 = vshll.u32 %v13387, 16
  %v13510 = vor.u32 %v13507, %v13508
  %v13511 = vsel %vm507, %v13503, %v13510
  %v13513 = vshrl.u32 %v13388, 16
  %v13515 = vrot.slane %v13513, 7
  %v13516 = vrot.slane %v13515, 4
  %v13518 = vshrl.u32 %v13389, 16
  %v13520 = vrot.slane %v13518, 7
  %v13521 = vshll.u32 %v13389, 16
  %v13523 = vor.u32 %v13520, %v13521
  %v13524 = vsel %vm507, %v13516, %v13523
  %v13525 = vrot.slane %v13520, 4
  %v13527 = vshrl.u32 %v13390, 16
  %v13529 = vrot.slane %v13527, 7
  %v13530 = vshll.u32 %v13390, 16
  %v13532 = vor.u32 %v13529, %v13530
  %v13533 = vsel %vm507, %v13525, %v13532
  %v13535 = vshrl.u32 %v13391, 16
  %v13537 = vrot.slane %v13535, 7
  %v13538 = vrot.slane %v13537, 4
  %v13540 = vshrl.u32 %v13392, 16
  %v13542 = vrot.slane %v13540, 7
  %v13543 = vshll.u32 %v13392, 16
  %v13545 = vor.u32 %v13542, %v13543
  %v13546 = vsel %vm507, %v13538, %v13545
  %v13547 = vrot.slane %v13542, 4
  %v13549 = vshrl.u32 %v13393, 16
  %v13551 = vrot.slane %v13549, 7
  %v13552 = vshll.u32 %v13393, 16
  %v13554 = vor.u32 %v13551, %v13552
  %v13555 = vsel %vm507, %v13547, %v13554
  %v13557 = vshrl.u32 %v13394, 16
  %v13559 = vrot.slane %v13557, 7
  %v13560 = vrot.slane %v13559, 4
  %v13562 = vshrl.u32 %v13395, 16
  %v13564 = vrot.slane %v13562, 7
  %v13565 = vshll.u32 %v13395, 16
  %v13567 = vor.u32 %v13564, %v13565
  %v13568 = vsel %vm507, %v13560, %v13567
  %v13569 = vrot.slane %v13564, 4
  %v13571 = vshrl.u32 %v13396, 16
  %v13573 = vrot.slane %v13571, 7
  %v13574 = vshll.u32 %v13396, 16
  %v13576 = vor.u32 %v13573, %v13574
  %v13577 = vsel %vm507, %v13569, %v13576
  %v13579 = vshrl.u32 %v13397, 16
  %v13581 = vrot.slane %v13579, 7
  %v13582 = vrot.slane %v13581, 4
  %v13584 = vshrl.u32 %v13398, 16
  %v13586 = vrot.slane %v13584, 7
  %v13587 = vshll.u32 %v13398, 16
  %v13589 = vor.u32 %v13586, %v13587
  %v13590 = vsel %vm507, %v13582, %v13589
  %v13591 = vrot.slane %v13586, 4
  %v13593 = vshrl.u32 %v13399, 16
  %v13595 = vrot.slane %v13593, 7
  %v13596 = vshll.u32 %v13399, 16
  %v13598 = vor.u32 %v13595, %v13596
  %v13599 = vsel %vm507, %v13591, %v13598
  %v13601 = vshrl.u32 %v13400, 16
  %v13603 = vrot.slane %v13601, 7
  %v13604 = vrot.slane %v13603, 4
  %v13606 = vshrl.u32 %v13401, 16
  %v13608 = vrot.slane %v13606, 7
  %v13609 = vshll.u32 %v13401, 16
  %v13611 = vor.u32 %v13608, %v13609
  %v13612 = vsel %vm507, %v13604, %v13611
  %v13613 = vrot.slane %v13608, 4
  %v13615 = vshrl.u32 %v13402, 16
  %v13617 = vrot.slane %v13615, 7
  %v13618 = vshll.u32 %v13402, 16
  %v13620 = vor.u32 %v13617, %v13618
  %v13621 = vsel %vm507, %v13613, %v13620
  %v13623 = vshrl.u32 %v13403, 16
  %v13625 = vrot.slane %v13623, 7
  %v13626 = vrot.slane %v13625, 4
  %v13628 = vshrl.u32 %v13404, 16
  %v13630 = vrot.slane %v13628, 7
  %v13631 = vshll.u32 %v13404, 16
  %v13633 = vor.u32 %v13630, %v13631
  %v13634 = vsel %vm507, %v13626, %v13633
  %v13635 = vrot.slane %v13630, 4
  %v13637 = vshrl.u32 %v13405, 16
  %v13639 = vrot.slane %v13637, 7
  %v13640 = vshll.u32 %v13405, 16
  %v13642 = vor.u32 %v13639, %v13640
  %v13643 = vsel %vm507, %v13635, %v13642
  %v13645 = vshrl.u32 %v13406, 16
  %v13647 = vrot.slane %v13645, 7
  %v13648 = vrot.slane %v13647, 4
  %v13650 = vshrl.u32 %v13407, 16
  %v13652 = vrot.slane %v13650, 7
  %v13653 = vshll.u32 %v13407, 16
  %v13655 = vor.u32 %v13652, %v13653
  %v13656 = vsel %vm507, %v13648, %v13655
  %v13657 = vrot.slane %v13652, 4
  %v13659 = vshrl.u32 %v13408, 16
  %v13661 = vrot.slane %v13659, 7
  %v13662 = vshll.u32 %v13408, 16
  %v13664 = vor.u32 %v13661, %v13662
  %v13665 = vsel %vm507, %v13657, %v13664
  %v13667 = vshrl.u32 %v13409, 16
  %v13669 = vrot.slane %v13667, 7
  %v13670 = vrot.slane %v13669, 4
  %v13672 = vshrl.u32 %v13410, 16
  %v13674 = vrot.slane %v13672, 7
  %v13675 = vshll.u32 %v13410, 16
  %v13677 = vor.u32 %v13674, %v13675
  %v13678 = vsel %vm507, %v13670, %v13677
  %v13679 = vrot.slane %v13674, 4
  %v13681 = vshrl.u32 %v13411, 16
  %v13683 = vrot.slane %v13681, 7
  %v13684 = vshll.u32 %v13411, 16
  %v13686 = vor.u32 %v13683, %v13684
  %v13687 = vsel %vm507, %v13679, %v13686
  %v13689 = vshrl.u32 %v13412, 16
  %v13691 = vrot.slane %v13689, 7
  %v13692 = vrot.slane %v13691, 4
  %v13694 = vshrl.u32 %v13413, 16
  %v13696 = vrot.slane %v13694, 7
  %v13697 = vshll.u32 %v13413, 16
  %v13699 = vor.u32 %v13696, %v13697
  %v13700 = vsel %vm507, %v13692, %v13699
  %v13701 = vrot.slane %v13696, 4
  %v13703 = vshrl.u32 %v13414, 16
  %v13705 = vrot.slane %v13703, 7
  %v13706 = vshll.u32 %v13414, 16
  %v13708 = vor.u32 %v13705, %v13706
  %v13709 = vsel %vm507, %v13701, %v13708
  %v13711 = vshrl.u32 %v13415, 16
  %v13713 = vrot.slane %v13711, 7
  %v13714 = vrot.slane %v13713, 4
  %v13716 = vshrl.u32 %v13416, 16
  %v13718 = vrot.slane %v13716, 7
  %v13719 = vshll.u32 %v13416, 16
  %v13721 = vor.u32 %v13718, %v13719
  %v13722 = vsel %vm507, %v13714, %v13721
  %v13723 = vrot.slane %v13718, 4
  %v13725 = vshrl.u32 %v13417, 16
  %v13727 = vrot.slane %v13725, 7
  %v13728 = vshll.u32 %v13417, 16
  %v13730 = vor.u32 %v13727, %v13728
  %v13731 = vsel %vm507, %v13723, %v13730
  %v13733 = vshrl.u32 %v13418, 16
  %v13735 = vrot.slane %v13733, 7
  %v13736 = vrot.slane %v13735, 4
  %v13738 = vshrl.u32 %v13419, 16
  %v13740 = vrot.slane %v13738, 7
  %v13741 = vshll.u32 %v13419, 16
  %v13743 = vor.u32 %v13740, %v13741
  %v13744 = vsel %vm507, %v13736, %v13743
  %v13745 = vrot.slane %v13740, 4
  %v13747 = vshrl.u32 %v13420, 16
  %v13749 = vrot.slane %v13747, 7
  %v13750 = vshll.u32 %v13420, 16
  %v13752 = vor.u32 %v13749, %v13750
  %v13753 = vsel %vm507, %v13745, %v13752
  %v13755 = vshrl.u32 %v13421, 16
  %v13757 = vrot.slane %v13755, 7
  %v13758 = vrot.slane %v13757, 4
  %v13760 = vshrl.u32 %v13422, 16
  %v13762 = vrot.slane %v13760, 7
  %v13763 = vshll.u32 %v13422, 16
  %v13765 = vor.u32 %v13762, %v13763
  %v13766 = vsel %vm507, %v13758, %v13765
  %v13767 = vrot.slane %v13762, 4
  %v13769 = vshrl.u32 %v13423, 16
  %v13771 = vrot.slane %v13769, 7
  %v13772 = vshll.u32 %v13423, 16
  %v13774 = vor.u32 %v13771, %v13772
  %v13775 = vsel %vm507, %v13767, %v13774
  %v13776 = vld [vmem:[%s1743 + $0xc] sm:$0x1]
  %v13777 = vld [vmem:[%s1743 + $0x1c] sm:$0x1]
  %v13778 = vld [vmem:[%s1743 + $0x2c] sm:$0x1]
  %v13779 = vld [vmem:[%s1743 + $0x3c] sm:$0x1]
  %v13780 = vld [vmem:[%s1743 + $0x4c] sm:$0x1]
  %v13781 = vld [vmem:[%s1743 + $0x5c] sm:$0x1]
  %v13782 = vld [vmem:[%s1743 + $0x6c] sm:$0x1]
  %v13783 = vld [vmem:[%s1743 + $0x7c] sm:$0x1]
  %v13784 = vld [vmem:[%s1743 + $0x8c] sm:$0x1]
  %v13785 = vld [vmem:[%s1743 + $0x9c] sm:$0x1]
  %v13786 = vld [vmem:[%s1743 + $0xac] sm:$0x1]
  %v13787 = vld [vmem:[%s1743 + $0xbc] sm:$0x1]
  %v13788 = vld [vmem:[%s1743 + $0xcc] sm:$0x1]
  %v13789 = vld [vmem:[%s1743 + $0xdc] sm:$0x1]
  %v13790 = vld [vmem:[%s1743 + $0xec] sm:$0x1]
  %v13791 = vld [vmem:[%s1743 + $0xfc] sm:$0x1]
  %v13792 = vrot.slane %v13430, 4
  %v13793 = vrot.slane %v13433, 5
  %v13794 = vor.u32 %v13792, %v13793
  %v13795 = vrot.slane %v13794, 4
  %v13796 = vrot.slane %v13442, 5
  %v13797 = vsel %vm878, %v13795, %v13796
  %v13798 = vrot.slane %v13439, 4
  %v13799 = vor.u32 %v13798, %v13796
  %v13800 = vrot.slane %v13799, 4
  %v13802 = vshll.u32 %v13776, 16
  %v13804 = vrot.slane %v13802, 5
  %v13805 = vsel %vm878, %v13800, %v13804
  %v13806 = vrot.slane %v13452, 4
  %v13807 = vrot.slane %v13455, 5
  %v13808 = vor.u32 %v13806, %v13807
  %v13809 = vrot.slane %v13808, 4
  %v13810 = vrot.slane %v13464, 5
  %v13811 = vsel %vm878, %v13809, %v13810
  %v13812 = vrot.slane %v13461, 4
  %v13813 = vor.u32 %v13812, %v13810
  %v13814 = vrot.slane %v13813, 4
  %v13816 = vshll.u32 %v13777, 16
  %v13818 = vrot.slane %v13816, 5
  %v13819 = vsel %vm878, %v13814, %v13818
  %v13820 = vrot.slane %v13474, 4
  %v13821 = vrot.slane %v13477, 5
  %v13822 = vor.u32 %v13820, %v13821
  %v13823 = vrot.slane %v13822, 4
  %v13824 = vrot.slane %v13486, 5
  %v13825 = vsel %vm878, %v13823, %v13824
  %v13826 = vrot.slane %v13483, 4
  %v13827 = vor.u32 %v13826, %v13824
  %v13828 = vrot.slane %v13827, 4
  %v13830 = vshll.u32 %v13778, 16
  %v13832 = vrot.slane %v13830, 5
  %v13833 = vsel %vm878, %v13828, %v13832
  %v13834 = vrot.slane %v13496, 4
  %v13835 = vrot.slane %v13499, 5
  %v13836 = vor.u32 %v13834, %v13835
  %v13837 = vrot.slane %v13836, 4
  %v13838 = vrot.slane %v13508, 5
  %v13839 = vsel %vm878, %v13837, %v13838
  %v13840 = vrot.slane %v13505, 4
  %v13841 = vor.u32 %v13840, %v13838
  %v13842 = vrot.slane %v13841, 4
  %v13844 = vshll.u32 %v13779, 16
  %v13846 = vrot.slane %v13844, 5
  %v13847 = vsel %vm878, %v13842, %v13846
  %v13848 = vrot.slane %v13518, 4
  %v13849 = vrot.slane %v13521, 5
  %v13850 = vor.u32 %v13848, %v13849
  %v13851 = vrot.slane %v13850, 4
  %v13852 = vrot.slane %v13530, 5
  %v13853 = vsel %vm878, %v13851, %v13852
  %v13854 = vrot.slane %v13527, 4
  %v13855 = vor.u32 %v13854, %v13852
  %v13856 = vrot.slane %v13855, 4
  %v13858 = vshll.u32 %v13780, 16
  %v13860 = vrot.slane %v13858, 5
  %v13861 = vsel %vm878, %v13856, %v13860
  %v13862 = vrot.slane %v13540, 4
  %v13863 = vrot.slane %v13543, 5
  %v13864 = vor.u32 %v13862, %v13863
  %v13865 = vrot.slane %v13864, 4
  %v13866 = vrot.slane %v13552, 5
  %v13867 = vsel %vm878, %v13865, %v13866
  %v13868 = vrot.slane %v13549, 4
  %v13869 = vor.u32 %v13868, %v13866
  %v13870 = vrot.slane %v13869, 4
  %v13872 = vshll.u32 %v13781, 16
  %v13874 = vrot.slane %v13872, 5
  %v13875 = vsel %vm878, %v13870, %v13874
  %v13876 = vrot.slane %v13562, 4
  %v13877 = vrot.slane %v13565, 5
  %v13878 = vor.u32 %v13876, %v13877
  %v13879 = vrot.slane %v13878, 4
  %v13880 = vrot.slane %v13574, 5
  %v13881 = vsel %vm878, %v13879, %v13880
  %v13882 = vrot.slane %v13571, 4
  %v13883 = vor.u32 %v13882, %v13880
  %v13884 = vrot.slane %v13883, 4
  %v13886 = vshll.u32 %v13782, 16
  %v13888 = vrot.slane %v13886, 5
  %v13889 = vsel %vm878, %v13884, %v13888
  %v13890 = vrot.slane %v13584, 4
  %v13891 = vrot.slane %v13587, 5
  %v13892 = vor.u32 %v13890, %v13891
  %v13893 = vrot.slane %v13892, 4
  %v13894 = vrot.slane %v13596, 5
  %v13895 = vsel %vm878, %v13893, %v13894
  %v13896 = vrot.slane %v13593, 4
  %v13897 = vor.u32 %v13896, %v13894
  %v13898 = vrot.slane %v13897, 4
  %v13900 = vshll.u32 %v13783, 16
  %v13902 = vrot.slane %v13900, 5
  %v13903 = vsel %vm878, %v13898, %v13902
  %v13904 = vrot.slane %v13606, 4
  %v13905 = vrot.slane %v13609, 5
  %v13906 = vor.u32 %v13904, %v13905
  %v13907 = vrot.slane %v13906, 4
  %v13908 = vrot.slane %v13618, 5
  %v13909 = vsel %vm878, %v13907, %v13908
  %v13910 = vrot.slane %v13615, 4
  %v13911 = vor.u32 %v13910, %v13908
  %v13912 = vrot.slane %v13911, 4
  %v13914 = vshll.u32 %v13784, 16
  %v13916 = vrot.slane %v13914, 5
  %v13917 = vsel %vm878, %v13912, %v13916
  %v13918 = vrot.slane %v13628, 4
  %v13919 = vrot.slane %v13631, 5
  %v13920 = vor.u32 %v13918, %v13919
  %v13921 = vrot.slane %v13920, 4
  %v13922 = vrot.slane %v13640, 5
  %v13923 = vsel %vm878, %v13921, %v13922
  %v13924 = vrot.slane %v13637, 4
  %v13925 = vor.u32 %v13924, %v13922
  %v13926 = vrot.slane %v13925, 4
  %v13928 = vshll.u32 %v13785, 16
  %v13930 = vrot.slane %v13928, 5
  %v13931 = vsel %vm878, %v13926, %v13930
  %v13932 = vrot.slane %v13650, 4
  %v13933 = vrot.slane %v13653, 5
  %v13934 = vor.u32 %v13932, %v13933
  %v13935 = vrot.slane %v13934, 4
  %v13936 = vrot.slane %v13662, 5
  %v13937 = vsel %vm878, %v13935, %v13936
  %v13938 = vrot.slane %v13659, 4
  %v13939 = vor.u32 %v13938, %v13936
  %v13940 = vrot.slane %v13939, 4
  %v13942 = vshll.u32 %v13786, 16
  %v13944 = vrot.slane %v13942, 5
  %v13945 = vsel %vm878, %v13940, %v13944
  %v13946 = vrot.slane %v13672, 4
  %v13947 = vrot.slane %v13675, 5
  %v13948 = vor.u32 %v13946, %v13947
  %v13949 = vrot.slane %v13948, 4
  %v13950 = vrot.slane %v13684, 5
  %v13951 = vsel %vm878, %v13949, %v13950
  %v13952 = vrot.slane %v13681, 4
  %v13953 = vor.u32 %v13952, %v13950
  %v13954 = vrot.slane %v13953, 4
  %v13956 = vshll.u32 %v13787, 16
  %v13958 = vrot.slane %v13956, 5
  %v13959 = vsel %vm878, %v13954, %v13958
  %v13960 = vrot.slane %v13694, 4
  %v13961 = vrot.slane %v13697, 5
  %v13962 = vor.u32 %v13960, %v13961
  %v13963 = vrot.slane %v13962, 4
  %v13964 = vrot.slane %v13706, 5
  %v13965 = vsel %vm878, %v13963, %v13964
  %v13966 = vrot.slane %v13703, 4
  %v13967 = vor.u32 %v13966, %v13964
  %v13968 = vrot.slane %v13967, 4
  %v13970 = vshll.u32 %v13788, 16
  %v13972 = vrot.slane %v13970, 5
  %v13973 = vsel %vm878, %v13968, %v13972
  %v13974 = vrot.slane %v13716, 4
  %v13975 = vrot.slane %v13719, 5
  %v13976 = vor.u32 %v13974, %v13975
  %v13977 = vrot.slane %v13976, 4
  %v13978 = vrot.slane %v13728, 5
  %v13979 = vsel %vm878, %v13977, %v13978
  %v13980 = vrot.slane %v13725, 4
  %v13981 = vor.u32 %v13980, %v13978
  %v13982 = vrot.slane %v13981, 4
  %v13984 = vshll.u32 %v13789, 16
  %v13986 = vrot.slane %v13984, 5
  %v13987 = vsel %vm878, %v13982, %v13986
  %v13988 = vrot.slane %v13738, 4
  %v13989 = vrot.slane %v13741, 5
  %v13990 = vor.u32 %v13988, %v13989
  %v13991 = vrot.slane %v13990, 4
  %v13992 = vrot.slane %v13750, 5
  %v13993 = vsel %vm878, %v13991, %v13992
  %v13994 = vrot.slane %v13747, 4
  %v13995 = vor.u32 %v13994, %v13992
  %v13996 = vrot.slane %v13995, 4
  %v13998 = vshll.u32 %v13790, 16
  %v14000 = vrot.slane %v13998, 5
  %v14001 = vsel %vm878, %v13996, %v14000
  %v14002 = vrot.slane %v13760, 4
  %v14003 = vrot.slane %v13763, 5
  %v14004 = vor.u32 %v14002, %v14003
  %v14005 = vrot.slane %v14004, 4
  %v14006 = vrot.slane %v13772, 5
  %v14007 = vsel %vm878, %v14005, %v14006
  %v14008 = vrot.slane %v13769, 4
  %v14009 = vor.u32 %v14008, %v14006
  %v14010 = vrot.slane %v14009, 4
  %v14012 = vshll.u32 %v13791, 16
  %v14014 = vrot.slane %v14012, 5
  %v14015 = vsel %vm878, %v14010, %v14014
  %v14016 = vunpack.c.l.b16 %v12156
  %v14017 = vunpack.c.l.b16 %v12165
  %v14018 = vunpack.c.l.b16 %v12178
  %v14019 = vunpack.c.l.b16 %v12187
  %v14020 = vunpack.c.l.b16 %v12200
  %v14021 = vunpack.c.l.b16 %v12209
  %v14022 = vunpack.c.l.b16 %v12222
  %v14023 = vunpack.c.l.b16 %v12231
  %v14024 = vunpack.c.l.b16 %v12244
  %v14025 = vunpack.c.l.b16 %v12253
  %v14026 = vunpack.c.l.b16 %v12266
  %v14027 = vunpack.c.l.b16 %v12275
  %v14028 = vunpack.c.l.b16 %v12288
  %v14029 = vunpack.c.l.b16 %v12297
  %v14030 = vunpack.c.l.b16 %v12310
  %v14031 = vunpack.c.l.b16 %v12319
  %v14032 = vunpack.c.l.b16 %v12332
  %v14033 = vunpack.c.l.b16 %v12341
  %v14034 = vunpack.c.l.b16 %v12354
  %v14035 = vunpack.c.l.b16 %v12363
  %v14036 = vunpack.c.l.b16 %v12376
  %v14037 = vunpack.c.l.b16 %v12385
  %v14038 = vunpack.c.l.b16 %v12398
  %v14039 = vunpack.c.l.b16 %v12407
  %v14040 = vunpack.c.l.b16 %v12420
  %v14041 = vunpack.c.l.b16 %v12429
  %v14042 = vunpack.c.l.b16 %v12442
  %v14043 = vunpack.c.l.b16 %v12451
  %v14044 = vunpack.c.l.b16 %v12464
  %v14045 = vunpack.c.l.b16 %v12473
  %v14046 = vunpack.c.l.b16 %v12486
  %v14047 = vunpack.c.l.b16 %v12495
  %v14048 = vpack.c.b16 %v14017, %v14016
  %v14049 = vpack.c.b16 %v14019, %v14018
  %v14050 = vpack.c.b16 %v14021, %v14020
  %v14051 = vpack.c.b16 %v14023, %v14022
  %v14052 = vpack.c.b16 %v14025, %v14024
  %v14053 = vpack.c.b16 %v14027, %v14026
  %v14054 = vpack.c.b16 %v14029, %v14028
  %v14055 = vpack.c.b16 %v14031, %v14030
  %v14056 = vpack.c.b16 %v14033, %v14032
  %v14057 = vpack.c.b16 %v14035, %v14034
  %v14058 = vpack.c.b16 %v14037, %v14036
  %v14059 = vpack.c.b16 %v14039, %v14038
  %v14060 = vpack.c.b16 %v14041, %v14040
  %v14061 = vpack.c.b16 %v14043, %v14042
  %v14062 = vpack.c.b16 %v14045, %v14044
  %v14063 = vpack.c.b16 %v14047, %v14046
  %v14112 = vunpack.c.l.b16 %v12097
  %v14113 = vunpack.c.l.b16 %v12098
  %v14114 = vunpack.c.l.b16 %v12100
  %v14115 = vunpack.c.l.b16 %v12101
  %v14116 = vunpack.c.l.b16 %v12103
  %v14117 = vunpack.c.l.b16 %v12104
  %v14118 = vunpack.c.l.b16 %v12106
  %v14119 = vunpack.c.l.b16 %v12107
  %v14120 = vunpack.c.l.b16 %v12109
  %v14121 = vunpack.c.l.b16 %v12110
  %v14122 = vunpack.c.l.b16 %v12112
  %v14123 = vunpack.c.l.b16 %v12113
  %v14124 = vunpack.c.l.b16 %v12115
  %v14125 = vunpack.c.l.b16 %v12116
  %v14126 = vunpack.c.l.b16 %v12118
  %v14127 = vunpack.c.l.b16 %v12119
  %v14128 = vunpack.c.l.b16 %v12121
  %v14129 = vunpack.c.l.b16 %v12122
  %v14130 = vunpack.c.l.b16 %v12124
  %v14131 = vunpack.c.l.b16 %v12125
  %v14132 = vunpack.c.l.b16 %v12127
  %v14133 = vunpack.c.l.b16 %v12128
  %v14134 = vunpack.c.l.b16 %v12130
  %v14135 = vunpack.c.l.b16 %v12131
  %v14136 = vunpack.c.l.b16 %v12133
  %v14137 = vunpack.c.l.b16 %v12134
  %v14138 = vunpack.c.l.b16 %v12136
  %v14139 = vunpack.c.l.b16 %v12137
  %v14140 = vunpack.c.l.b16 %v12139
  %v14141 = vunpack.c.l.b16 %v12140
  %v14142 = vunpack.c.l.b16 %v12142
  %v14143 = vunpack.c.l.b16 %v12143
  %v14144 = vpack.c.b16 %v14113, %v14112
  %v14145 = vpack.c.b16 %v14115, %v14114
  %v14146 = vpack.c.b16 %v14117, %v14116
  %v14147 = vpack.c.b16 %v14119, %v14118
  %v14148 = vpack.c.b16 %v14121, %v14120
  %v14149 = vpack.c.b16 %v14123, %v14122
  %v14150 = vpack.c.b16 %v14125, %v14124
  %v14151 = vpack.c.b16 %v14127, %v14126
  %v14152 = vpack.c.b16 %v14129, %v14128
  %v14153 = vpack.c.b16 %v14131, %v14130
  %v14154 = vpack.c.b16 %v14133, %v14132
  %v14155 = vpack.c.b16 %v14135, %v14134
  %v14156 = vpack.c.b16 %v14137, %v14136
  %v14157 = vpack.c.b16 %v14139, %v14138
  %v14158 = vpack.c.b16 %v14141, %v14140
  %v14159 = vpack.c.b16 %v14143, %v14142
  %v14176 = vunpack.c.l.b16 %v12517
  %v14177 = vunpack.c.l.b16 %v12525
  %v14178 = vunpack.c.l.b16 %v12531
  %v14179 = vunpack.c.l.b16 %v12539
  %v14180 = vunpack.c.l.b16 %v12545
  %v14181 = vunpack.c.l.b16 %v12553
  %v14182 = vunpack.c.l.b16 %v12559
  %v14183 = vunpack.c.l.b16 %v12567
  %v14184 = vunpack.c.l.b16 %v12573
  %v14185 = vunpack.c.l.b16 %v12581
  %v14186 = vunpack.c.l.b16 %v12587
  %v14187 = vunpack.c.l.b16 %v12595
  %v14188 = vunpack.c.l.b16 %v12601
  %v14189 = vunpack.c.l.b16 %v12609
  %v14190 = vunpack.c.l.b16 %v12615
  %v14191 = vunpack.c.l.b16 %v12623
  %v14192 = vunpack.c.l.b16 %v12629
  %v14193 = vunpack.c.l.b16 %v12637
  %v14194 = vunpack.c.l.b16 %v12643
  %v14195 = vunpack.c.l.b16 %v12651
  %v14196 = vunpack.c.l.b16 %v12657
  %v14197 = vunpack.c.l.b16 %v12665
  %v14198 = vunpack.c.l.b16 %v12671
  %v14199 = vunpack.c.l.b16 %v12679
  %v14200 = vunpack.c.l.b16 %v12685
  %v14201 = vunpack.c.l.b16 %v12693
  %v14202 = vunpack.c.l.b16 %v12699
  %v14203 = vunpack.c.l.b16 %v12707
  %v14204 = vunpack.c.l.b16 %v12713
  %v14205 = vunpack.c.l.b16 %v12721
  %v14206 = vunpack.c.l.b16 %v12727
  %v14207 = vunpack.c.l.b16 %v12735
  %v14208 = vpack.c.b16 %v14177, %v14176
  %v14209 = vpack.c.b16 %v14179, %v14178
  %v14210 = vpack.c.b16 %v14181, %v14180
  %v14211 = vpack.c.b16 %v14183, %v14182
  %v14212 = vpack.c.b16 %v14185, %v14184
  %v14213 = vpack.c.b16 %v14187, %v14186
  %v14214 = vpack.c.b16 %v14189, %v14188
  %v14215 = vpack.c.b16 %v14191, %v14190
  %v14216 = vpack.c.b16 %v14193, %v14192
  %v14217 = vpack.c.b16 %v14195, %v14194
  %v14218 = vpack.c.b16 %v14197, %v14196
  %v14219 = vpack.c.b16 %v14199, %v14198
  %v14220 = vpack.c.b16 %v14201, %v14200
  %v14221 = vpack.c.b16 %v14203, %v14202
  %v14222 = vpack.c.b16 %v14205, %v14204
  %v14223 = vpack.c.b16 %v14207, %v14206
  %v14240 = vunpack.c.l.b16 %v12796
  %v14241 = vunpack.c.l.b16 %v12805
  %v14242 = vunpack.c.l.b16 %v12818
  %v14243 = vunpack.c.l.b16 %v12827
  %v14244 = vunpack.c.l.b16 %v12840
  %v14245 = vunpack.c.l.b16 %v12849
  %v14246 = vunpack.c.l.b16 %v12862
  %v14247 = vunpack.c.l.b16 %v12871
  %v14248 = vunpack.c.l.b16 %v12884
  %v14249 = vunpack.c.l.b16 %v12893
  %v14250 = vunpack.c.l.b16 %v12906
  %v14251 = vunpack.c.l.b16 %v12915
  %v14252 = vunpack.c.l.b16 %v12928
  %v14253 = vunpack.c.l.b16 %v12937
  %v14254 = vunpack.c.l.b16 %v12950
  %v14255 = vunpack.c.l.b16 %v12959
  %v14256 = vunpack.c.l.b16 %v12972
  %v14257 = vunpack.c.l.b16 %v12981
  %v14258 = vunpack.c.l.b16 %v12994
  %v14259 = vunpack.c.l.b16 %v13003
  %v14260 = vunpack.c.l.b16 %v13016
  %v14261 = vunpack.c.l.b16 %v13025
  %v14262 = vunpack.c.l.b16 %v13038
  %v14263 = vunpack.c.l.b16 %v13047
  %v14264 = vunpack.c.l.b16 %v13060
  %v14265 = vunpack.c.l.b16 %v13069
  %v14266 = vunpack.c.l.b16 %v13082
  %v14267 = vunpack.c.l.b16 %v13091
  %v14268 = vunpack.c.l.b16 %v13104
  %v14269 = vunpack.c.l.b16 %v13113
  %v14270 = vunpack.c.l.b16 %v13126
  %v14271 = vunpack.c.l.b16 %v13135
  %v14272 = vpack.c.b16 %v14241, %v14240
  %v14273 = vpack.c.b16 %v14243, %v14242
  %v14274 = vpack.c.b16 %v14245, %v14244
  %v14275 = vpack.c.b16 %v14247, %v14246
  %v14276 = vpack.c.b16 %v14249, %v14248
  %v14277 = vpack.c.b16 %v14251, %v14250
  %v14278 = vpack.c.b16 %v14253, %v14252
  %v14279 = vpack.c.b16 %v14255, %v14254
  %v14280 = vpack.c.b16 %v14257, %v14256
  %v14281 = vpack.c.b16 %v14259, %v14258
  %v14282 = vpack.c.b16 %v14261, %v14260
  %v14283 = vpack.c.b16 %v14263, %v14262
  %v14284 = vpack.c.b16 %v14265, %v14264
  %v14285 = vpack.c.b16 %v14267, %v14266
  %v14286 = vpack.c.b16 %v14269, %v14268
  %v14287 = vpack.c.b16 %v14271, %v14270
  %v14336 = vunpack.c.l.b16 %v12737
  %v14337 = vunpack.c.l.b16 %v12738
  %v14338 = vunpack.c.l.b16 %v12740
  %v14339 = vunpack.c.l.b16 %v12741
  %v14340 = vunpack.c.l.b16 %v12743
  %v14341 = vunpack.c.l.b16 %v12744
  %v14342 = vunpack.c.l.b16 %v12746
  %v14343 = vunpack.c.l.b16 %v12747
  %v14344 = vunpack.c.l.b16 %v12749
  %v14345 = vunpack.c.l.b16 %v12750
  %v14346 = vunpack.c.l.b16 %v12752
  %v14347 = vunpack.c.l.b16 %v12753
  %v14348 = vunpack.c.l.b16 %v12755
  %v14349 = vunpack.c.l.b16 %v12756
  %v14350 = vunpack.c.l.b16 %v12758
  %v14351 = vunpack.c.l.b16 %v12759
  %v14352 = vunpack.c.l.b16 %v12761
  %v14353 = vunpack.c.l.b16 %v12762
  %v14354 = vunpack.c.l.b16 %v12764
  %v14355 = vunpack.c.l.b16 %v12765
  %v14356 = vunpack.c.l.b16 %v12767
  %v14357 = vunpack.c.l.b16 %v12768
  %v14358 = vunpack.c.l.b16 %v12770
  %v14359 = vunpack.c.l.b16 %v12771
  %v14360 = vunpack.c.l.b16 %v12773
  %v14361 = vunpack.c.l.b16 %v12774
  %v14362 = vunpack.c.l.b16 %v12776
  %v14363 = vunpack.c.l.b16 %v12777
  %v14364 = vunpack.c.l.b16 %v12779
  %v14365 = vunpack.c.l.b16 %v12780
  %v14366 = vunpack.c.l.b16 %v12782
  %v14367 = vunpack.c.l.b16 %v12783
  %v14368 = vpack.c.b16 %v14337, %v14336
  %v14369 = vpack.c.b16 %v14339, %v14338
  %v14370 = vpack.c.b16 %v14341, %v14340
  %v14371 = vpack.c.b16 %v14343, %v14342
  %v14372 = vpack.c.b16 %v14345, %v14344
  %v14373 = vpack.c.b16 %v14347, %v14346
  %v14374 = vpack.c.b16 %v14349, %v14348
  %v14375 = vpack.c.b16 %v14351, %v14350
  %v14376 = vpack.c.b16 %v14353, %v14352
  %v14377 = vpack.c.b16 %v14355, %v14354
  %v14378 = vpack.c.b16 %v14357, %v14356
  %v14379 = vpack.c.b16 %v14359, %v14358
  %v14380 = vpack.c.b16 %v14361, %v14360
  %v14381 = vpack.c.b16 %v14363, %v14362
  %v14382 = vpack.c.b16 %v14365, %v14364
  %v14383 = vpack.c.b16 %v14367, %v14366
  %v14400 = vunpack.c.l.b16 %v13157
  %v14401 = vunpack.c.l.b16 %v13165
  %v14402 = vunpack.c.l.b16 %v13171
  %v14403 = vunpack.c.l.b16 %v13179
  %v14404 = vunpack.c.l.b16 %v13185
  %v14405 = vunpack.c.l.b16 %v13193
  %v14406 = vunpack.c.l.b16 %v13199
  %v14407 = vunpack.c.l.b16 %v13207
  %v14408 = vunpack.c.l.b16 %v13213
  %v14409 = vunpack.c.l.b16 %v13221
  %v14410 = vunpack.c.l.b16 %v13227
  %v14411 = vunpack.c.l.b16 %v13235
  %v14412 = vunpack.c.l.b16 %v13241
  %v14413 = vunpack.c.l.b16 %v13249
  %v14414 = vunpack.c.l.b16 %v13255
  %v14415 = vunpack.c.l.b16 %v13263
  %v14416 = vunpack.c.l.b16 %v13269
  %v14417 = vunpack.c.l.b16 %v13277
  %v14418 = vunpack.c.l.b16 %v13283
  %v14419 = vunpack.c.l.b16 %v13291
  %v14420 = vunpack.c.l.b16 %v13297
  %v14421 = vunpack.c.l.b16 %v13305
  %v14422 = vunpack.c.l.b16 %v13311
  %v14423 = vunpack.c.l.b16 %v13319
  %v14424 = vunpack.c.l.b16 %v13325
  %v14425 = vunpack.c.l.b16 %v13333
  %v14426 = vunpack.c.l.b16 %v13339
  %v14427 = vunpack.c.l.b16 %v13347
  %v14428 = vunpack.c.l.b16 %v13353
  %v14429 = vunpack.c.l.b16 %v13361
  %v14430 = vunpack.c.l.b16 %v13367
  %v14431 = vunpack.c.l.b16 %v13375
  %v14432 = vpack.c.b16 %v14401, %v14400
  %v14433 = vpack.c.b16 %v14403, %v14402
  %v14434 = vpack.c.b16 %v14405, %v14404
  %v14435 = vpack.c.b16 %v14407, %v14406
  %v14436 = vpack.c.b16 %v14409, %v14408
  %v14437 = vpack.c.b16 %v14411, %v14410
  %v14438 = vpack.c.b16 %v14413, %v14412
  %v14439 = vpack.c.b16 %v14415, %v14414
  %v14440 = vpack.c.b16 %v14417, %v14416
  %v14441 = vpack.c.b16 %v14419, %v14418
  %v14442 = vpack.c.b16 %v14421, %v14420
  %v14443 = vpack.c.b16 %v14423, %v14422
  %v14444 = vpack.c.b16 %v14425, %v14424
  %v14445 = vpack.c.b16 %v14427, %v14426
  %v14446 = vpack.c.b16 %v14429, %v14428
  %v14447 = vpack.c.b16 %v14431, %v14430
  %v14464 = vunpack.c.l.b16 %v13436
  %v14465 = vunpack.c.l.b16 %v13445
  %v14466 = vunpack.c.l.b16 %v13458
  %v14467 = vunpack.c.l.b16 %v13467
  %v14468 = vunpack.c.l.b16 %v13480
  %v14469 = vunpack.c.l.b16 %v13489
  %v14470 = vunpack.c.l.b16 %v13502
  %v14471 = vunpack.c.l.b16 %v13511
  %v14472 = vunpack.c.l.b16 %v13524
  %v14473 = vunpack.c.l.b16 %v13533
  %v14474 = vunpack.c.l.b16 %v13546
  %v14475 = vunpack.c.l.b16 %v13555
  %v14476 = vunpack.c.l.b16 %v13568
  %v14477 = vunpack.c.l.b16 %v13577
  %v14478 = vunpack.c.l.b16 %v13590
  %v14479 = vunpack.c.l.b16 %v13599
  %v14480 = vunpack.c.l.b16 %v13612
  %v14481 = vunpack.c.l.b16 %v13621
  %v14482 = vunpack.c.l.b16 %v13634
  %v14483 = vunpack.c.l.b16 %v13643
  %v14484 = vunpack.c.l.b16 %v13656
  %v14485 = vunpack.c.l.b16 %v13665
  %v14486 = vunpack.c.l.b16 %v13678
  %v14487 = vunpack.c.l.b16 %v13687
  %v14488 = vunpack.c.l.b16 %v13700
  %v14489 = vunpack.c.l.b16 %v13709
  %v14490 = vunpack.c.l.b16 %v13722
  %v14491 = vunpack.c.l.b16 %v13731
  %v14492 = vunpack.c.l.b16 %v13744
  %v14493 = vunpack.c.l.b16 %v13753
  %v14494 = vunpack.c.l.b16 %v13766
  %v14495 = vunpack.c.l.b16 %v13775
  %v14496 = vpack.c.b16 %v14465, %v14464
  %v14497 = vpack.c.b16 %v14467, %v14466
  %v14498 = vpack.c.b16 %v14469, %v14468
  %v14499 = vpack.c.b16 %v14471, %v14470
  %v14500 = vpack.c.b16 %v14473, %v14472
  %v14501 = vpack.c.b16 %v14475, %v14474
  %v14502 = vpack.c.b16 %v14477, %v14476
  %v14503 = vpack.c.b16 %v14479, %v14478
  %v14504 = vpack.c.b16 %v14481, %v14480
  %v14505 = vpack.c.b16 %v14483, %v14482
  %v14506 = vpack.c.b16 %v14485, %v14484
  %v14507 = vpack.c.b16 %v14487, %v14486
  %v14508 = vpack.c.b16 %v14489, %v14488
  %v14509 = vpack.c.b16 %v14491, %v14490
  %v14510 = vpack.c.b16 %v14493, %v14492
  %v14511 = vpack.c.b16 %v14495, %v14494
  %v14560 = vunpack.c.l.b16 %v13377
  %v14561 = vunpack.c.l.b16 %v13378
  %v14562 = vunpack.c.l.b16 %v13380
  %v14563 = vunpack.c.l.b16 %v13381
  %v14564 = vunpack.c.l.b16 %v13383
  %v14565 = vunpack.c.l.b16 %v13384
  %v14566 = vunpack.c.l.b16 %v13386
  %v14567 = vunpack.c.l.b16 %v13387
  %v14568 = vunpack.c.l.b16 %v13389
  %v14569 = vunpack.c.l.b16 %v13390
  %v14570 = vunpack.c.l.b16 %v13392
  %v14571 = vunpack.c.l.b16 %v13393
  %v14572 = vunpack.c.l.b16 %v13395
  %v14573 = vunpack.c.l.b16 %v13396
  %v14574 = vunpack.c.l.b16 %v13398
  %v14575 = vunpack.c.l.b16 %v13399
  %v14576 = vunpack.c.l.b16 %v13401
  %v14577 = vunpack.c.l.b16 %v13402
  %v14578 = vunpack.c.l.b16 %v13404
  %v14579 = vunpack.c.l.b16 %v13405
  %v14580 = vunpack.c.l.b16 %v13407
  %v14581 = vunpack.c.l.b16 %v13408
  %v14582 = vunpack.c.l.b16 %v13410
  %v14583 = vunpack.c.l.b16 %v13411
  %v14584 = vunpack.c.l.b16 %v13413
  %v14585 = vunpack.c.l.b16 %v13414
  %v14586 = vunpack.c.l.b16 %v13416
  %v14587 = vunpack.c.l.b16 %v13417
  %v14588 = vunpack.c.l.b16 %v13419
  %v14589 = vunpack.c.l.b16 %v13420
  %v14590 = vunpack.c.l.b16 %v13422
  %v14591 = vunpack.c.l.b16 %v13423
  %v14592 = vpack.c.b16 %v14561, %v14560
  %v14593 = vpack.c.b16 %v14563, %v14562
  %v14594 = vpack.c.b16 %v14565, %v14564
  %v14595 = vpack.c.b16 %v14567, %v14566
  %v14596 = vpack.c.b16 %v14569, %v14568
  %v14597 = vpack.c.b16 %v14571, %v14570
  %v14598 = vpack.c.b16 %v14573, %v14572
  %v14599 = vpack.c.b16 %v14575, %v14574
  %v14600 = vpack.c.b16 %v14577, %v14576
  %v14601 = vpack.c.b16 %v14579, %v14578
  %v14602 = vpack.c.b16 %v14581, %v14580
  %v14603 = vpack.c.b16 %v14583, %v14582
  %v14604 = vpack.c.b16 %v14585, %v14584
  %v14605 = vpack.c.b16 %v14587, %v14586
  %v14606 = vpack.c.b16 %v14589, %v14588
  %v14607 = vpack.c.b16 %v14591, %v14590
  %v14624 = vunpack.c.l.b16 %v13797
  %v14625 = vunpack.c.l.b16 %v13805
  %v14626 = vunpack.c.l.b16 %v13811
  %v14627 = vunpack.c.l.b16 %v13819
  %v14628 = vunpack.c.l.b16 %v13825
  %v14629 = vunpack.c.l.b16 %v13833
  %v14630 = vunpack.c.l.b16 %v13839
  %v14631 = vunpack.c.l.b16 %v13847
  %v14632 = vunpack.c.l.b16 %v13853
  %v14633 = vunpack.c.l.b16 %v13861
  %v14634 = vunpack.c.l.b16 %v13867
  %v14635 = vunpack.c.l.b16 %v13875
  %v14636 = vunpack.c.l.b16 %v13881
  %v14637 = vunpack.c.l.b16 %v13889
  %v14638 = vunpack.c.l.b16 %v13895
  %v14639 = vunpack.c.l.b16 %v13903
  %v14640 = vunpack.c.l.b16 %v13909
  %v14641 = vunpack.c.l.b16 %v13917
  %v14642 = vunpack.c.l.b16 %v13923
  %v14643 = vunpack.c.l.b16 %v13931
  %v14644 = vunpack.c.l.b16 %v13937
  %v14645 = vunpack.c.l.b16 %v13945
  %v14646 = vunpack.c.l.b16 %v13951
  %v14647 = vunpack.c.l.b16 %v13959
  %v14648 = vunpack.c.l.b16 %v13965
  %v14649 = vunpack.c.l.b16 %v13973
  %v14650 = vunpack.c.l.b16 %v13979
  %v14651 = vunpack.c.l.b16 %v13987
  %v14652 = vunpack.c.l.b16 %v13993
  %v14653 = vunpack.c.l.b16 %v14001
  %v14654 = vunpack.c.l.b16 %v14007
  %v14655 = vunpack.c.l.b16 %v14015
  %v14656 = vpack.c.b16 %v14625, %v14624
  %v14657 = vpack.c.b16 %v14627, %v14626
  %v14658 = vpack.c.b16 %v14629, %v14628
  %v14659 = vpack.c.b16 %v14631, %v14630
  %v14660 = vpack.c.b16 %v14633, %v14632
  %v14661 = vpack.c.b16 %v14635, %v14634
  %v14662 = vpack.c.b16 %v14637, %v14636
  %v14663 = vpack.c.b16 %v14639, %v14638
  %v14664 = vpack.c.b16 %v14641, %v14640
  %v14665 = vpack.c.b16 %v14643, %v14642
  %v14666 = vpack.c.b16 %v14645, %v14644
  %v14667 = vpack.c.b16 %v14647, %v14646
  %v14668 = vpack.c.b16 %v14649, %v14648
  %v14669 = vpack.c.b16 %v14651, %v14650
  %v14670 = vpack.c.b16 %v14653, %v14652
  %v14671 = vpack.c.b16 %v14655, %v14654
  %14688 = vmatpush.bf16.msra.mxu0 %v7342
  %14689 = vmatpush.bf16.msra.mxu0 %v7341
  %14690 = vmatpush.bf16.msra.mxu0 %v7340
  %14691 = vmatpush.bf16.msra.mxu0 %v7339
  %14692 = vmatpush.bf16.msra.mxu0 %v7338
  %14693 = vmatpush.bf16.msra.mxu0 %v7337
  %14694 = vmatpush.bf16.msra.mxu0 %v7336
  %14695 = vmatpush.bf16.msra.mxu0 %v7335
  %14696 = vmatmul.bf16.gmra.mxu0 %v14048
  %v14697 = vpop.f32.mrf.mxu0
  %v14698 = vadd.f32 0.0, %v14697
  %v14699 = vpop.f32.mrf.mxu0
  %v14700 = vadd.f32 0.0, %v14699
  %14701 = vmatmul.bf16.gmra.mxu0 %v14049
  %v14702 = vpop.f32.mrf.mxu0
  %v14703 = vadd.f32 0.0, %v14702
  %v14704 = vpop.f32.mrf.mxu0
  %v14705 = vadd.f32 0.0, %v14704
  %14706 = vmatmul.bf16.gmra.mxu0 %v14050
  %v14707 = vpop.f32.mrf.mxu0
  %v14708 = vadd.f32 0.0, %v14707
  %v14709 = vpop.f32.mrf.mxu0
  %v14710 = vadd.f32 0.0, %v14709
  %14711 = vmatmul.bf16.gmra.mxu0 %v14051
  %v14712 = vpop.f32.mrf.mxu0
  %v14713 = vadd.f32 0.0, %v14712
  %v14714 = vpop.f32.mrf.mxu0
  %v14715 = vadd.f32 0.0, %v14714
  %14716 = vmatmul.bf16.gmra.mxu0 %v14052
  %v14717 = vpop.f32.mrf.mxu0
  %v14718 = vadd.f32 0.0, %v14717
  %v14719 = vpop.f32.mrf.mxu0
  %v14720 = vadd.f32 0.0, %v14719
  %14721 = vmatmul.bf16.gmra.mxu0 %v14053
  %v14722 = vpop.f32.mrf.mxu0
  %v14723 = vadd.f32 0.0, %v14722
  %v14724 = vpop.f32.mrf.mxu0
  %v14725 = vadd.f32 0.0, %v14724
  %14726 = vmatmul.bf16.gmra.mxu0 %v14054
  %v14727 = vpop.f32.mrf.mxu0
  %v14728 = vadd.f32 0.0, %v14727
  %v14729 = vpop.f32.mrf.mxu0
  %v14730 = vadd.f32 0.0, %v14729
  %14731 = vmatmul.bf16.gmra.mxu0 %v14055
  %v14732 = vpop.f32.mrf.mxu0
  %v14733 = vadd.f32 0.0, %v14732
  %v14734 = vpop.f32.mrf.mxu0
  %v14735 = vadd.f32 0.0, %v14734
  %14736 = vmatmul.bf16.gmra.mxu0 %v14056
  %v14737 = vpop.f32.mrf.mxu0
  %v14738 = vadd.f32 0.0, %v14737
  %v14739 = vpop.f32.mrf.mxu0
  %v14740 = vadd.f32 0.0, %v14739
  %14741 = vmatmul.bf16.gmra.mxu0 %v14057
  %v14742 = vpop.f32.mrf.mxu0
  %v14743 = vadd.f32 0.0, %v14742
  %v14744 = vpop.f32.mrf.mxu0
  %v14745 = vadd.f32 0.0, %v14744
  %14746 = vmatmul.bf16.gmra.mxu0 %v14058
  %v14747 = vpop.f32.mrf.mxu0
  %v14748 = vadd.f32 0.0, %v14747
  %v14749 = vpop.f32.mrf.mxu0
  %v14750 = vadd.f32 0.0, %v14749
  %14751 = vmatmul.bf16.gmra.mxu0 %v14059
  %v14752 = vpop.f32.mrf.mxu0
  %v14753 = vadd.f32 0.0, %v14752
  %v14754 = vpop.f32.mrf.mxu0
  %v14755 = vadd.f32 0.0, %v14754
  %14756 = vmatmul.bf16.gmra.mxu0 %v14060
  %v14757 = vpop.f32.mrf.mxu0
  %v14758 = vadd.f32 0.0, %v14757
  %v14759 = vpop.f32.mrf.mxu0
  %v14760 = vadd.f32 0.0, %v14759
  %14761 = vmatmul.bf16.gmra.mxu0 %v14061
  %v14762 = vpop.f32.mrf.mxu0
  %v14763 = vadd.f32 0.0, %v14762
  %v14764 = vpop.f32.mrf.mxu0
  %v14765 = vadd.f32 0.0, %v14764
  %14766 = vmatmul.bf16.gmra.mxu0 %v14062
  %v14767 = vpop.f32.mrf.mxu0
  %v14768 = vadd.f32 0.0, %v14767
  %v14769 = vpop.f32.mrf.mxu0
  %v14770 = vadd.f32 0.0, %v14769
  %14771 = vmatmul.bf16.gmra.mxu0 %v14063
  %v14772 = vpop.f32.mrf.mxu0
  %v14773 = vadd.f32 0.0, %v14772
  %v14774 = vpop.f32.mrf.mxu0
  %v14775 = vadd.f32 0.0, %v14774
  %14776 = vdwg.mxu0
  %14777 = vmatpush.bf16.msra.mxu0 %v7350
  %14778 = vmatpush.bf16.msra.mxu0 %v7349
  %14779 = vmatpush.bf16.msra.mxu0 %v7348
  %14780 = vmatpush.bf16.msra.mxu0 %v7347
  %14781 = vmatpush.bf16.msra.mxu0 %v7346
  %14782 = vmatpush.bf16.msra.mxu0 %v7345
  %14783 = vmatpush.bf16.msra.mxu0 %v7344
  %14784 = vmatpush.bf16.msra.mxu0 %v7343
  %14785 = vmatmul.bf16.gmra.mxu0 %v14144
  %v14786 = vpop.f32.mrf.mxu0
  %v14787 = vadd.f32 %v14698, %v14786
  %v14788 = vpop.f32.mrf.mxu0
  %v14789 = vadd.f32 %v14700, %v14788
  %14790 = vmatmul.bf16.gmra.mxu0 %v14145
  %v14791 = vpop.f32.mrf.mxu0
  %v14792 = vadd.f32 %v14703, %v14791
  %v14793 = vpop.f32.mrf.mxu0
  %v14794 = vadd.f32 %v14705, %v14793
  %14795 = vmatmul.bf16.gmra.mxu0 %v14146
  %v14796 = vpop.f32.mrf.mxu0
  %v14797 = vadd.f32 %v14708, %v14796
  %v14798 = vpop.f32.mrf.mxu0
  %v14799 = vadd.f32 %v14710, %v14798
  %14800 = vmatmul.bf16.gmra.mxu0 %v14147
  %v14801 = vpop.f32.mrf.mxu0
  %v14802 = vadd.f32 %v14713, %v14801
  %v14803 = vpop.f32.mrf.mxu0
  %v14804 = vadd.f32 %v14715, %v14803
  %14805 = vmatmul.bf16.gmra.mxu0 %v14148
  %v14806 = vpop.f32.mrf.mxu0
  %v14807 = vadd.f32 %v14718, %v14806
  %v14808 = vpop.f32.mrf.mxu0
  %v14809 = vadd.f32 %v14720, %v14808
  %14810 = vmatmul.bf16.gmra.mxu0 %v14149
  %v14811 = vpop.f32.mrf.mxu0
  %v14812 = vadd.f32 %v14723, %v14811
  %v14813 = vpop.f32.mrf.mxu0
  %v14814 = vadd.f32 %v14725, %v14813
  %14815 = vmatmul.bf16.gmra.mxu0 %v14150
  %v14816 = vpop.f32.mrf.mxu0
  %v14817 = vadd.f32 %v14728, %v14816
  %v14818 = vpop.f32.mrf.mxu0
  %v14819 = vadd.f32 %v14730, %v14818
  %14820 = vmatmul.bf16.gmra.mxu0 %v14151
  %v14821 = vpop.f32.mrf.mxu0
  %v14822 = vadd.f32 %v14733, %v14821
  %v14823 = vpop.f32.mrf.mxu0
  %v14824 = vadd.f32 %v14735, %v14823
  %14825 = vmatmul.bf16.gmra.mxu0 %v14152
  %v14826 = vpop.f32.mrf.mxu0
  %v14827 = vadd.f32 %v14738, %v14826
  %v14828 = vpop.f32.mrf.mxu0
  %v14829 = vadd.f32 %v14740, %v14828
  %14830 = vmatmul.bf16.gmra.mxu0 %v14153
  %v14831 = vpop.f32.mrf.mxu0
  %v14832 = vadd.f32 %v14743, %v14831
  %v14833 = vpop.f32.mrf.mxu0
  %v14834 = vadd.f32 %v14745, %v14833
  %14835 = vmatmul.bf16.gmra.mxu0 %v14154
  %v14836 = vpop.f32.mrf.mxu0
  %v14837 = vadd.f32 %v14748, %v14836
  %v14838 = vpop.f32.mrf.mxu0
  %v14839 = vadd.f32 %v14750, %v14838
  %14840 = vmatmul.bf16.gmra.mxu0 %v14155
  %v14841 = vpop.f32.mrf.mxu0
  %v14842 = vadd.f32 %v14753, %v14841
  %v14843 = vpop.f32.mrf.mxu0
  %v14844 = vadd.f32 %v14755, %v14843
  %14845 = vmatmul.bf16.gmra.mxu0 %v14156
  %v14846 = vpop.f32.mrf.mxu0
  %v14847 = vadd.f32 %v14758, %v14846
  %v14848 = vpop.f32.mrf.mxu0
  %v14849 = vadd.f32 %v14760, %v14848
  %14850 = vmatmul.bf16.gmra.mxu0 %v14157
  %v14851 = vpop.f32.mrf.mxu0
  %v14852 = vadd.f32 %v14763, %v14851
  %v14853 = vpop.f32.mrf.mxu0
  %v14854 = vadd.f32 %v14765, %v14853
  %14855 = vmatmul.bf16.gmra.mxu0 %v14158
  %v14856 = vpop.f32.mrf.mxu0
  %v14857 = vadd.f32 %v14768, %v14856
  %v14858 = vpop.f32.mrf.mxu0
  %v14859 = vadd.f32 %v14770, %v14858
  %14860 = vmatmul.bf16.gmra.mxu0 %v14159
  %v14861 = vpop.f32.mrf.mxu0
  %v14862 = vadd.f32 %v14773, %v14861
  %v14863 = vpop.f32.mrf.mxu0
  %v14864 = vadd.f32 %v14775, %v14863
  %14865 = vdwg.mxu0
  %14866 = vmatpush.bf16.msra.mxu0 %v7358
  %14867 = vmatpush.bf16.msra.mxu0 %v7357
  %14868 = vmatpush.bf16.msra.mxu0 %v7356
  %14869 = vmatpush.bf16.msra.mxu0 %v7355
  %14870 = vmatpush.bf16.msra.mxu0 %v7354
  %14871 = vmatpush.bf16.msra.mxu0 %v7353
  %14872 = vmatpush.bf16.msra.mxu0 %v7352
  %14873 = vmatpush.bf16.msra.mxu0 %v7351
  %14874 = vmatmul.bf16.gmra.mxu0 %v14208
  %v14875 = vpop.f32.mrf.mxu0
  %v14876 = vadd.f32 %v14787, %v14875
  %v14877 = vpop.f32.mrf.mxu0
  %v14878 = vadd.f32 %v14789, %v14877
  %14879 = vmatmul.bf16.gmra.mxu0 %v14209
  %v14880 = vpop.f32.mrf.mxu0
  %v14881 = vadd.f32 %v14792, %v14880
  %v14882 = vpop.f32.mrf.mxu0
  %v14883 = vadd.f32 %v14794, %v14882
  %14884 = vmatmul.bf16.gmra.mxu0 %v14210
  %v14885 = vpop.f32.mrf.mxu0
  %v14886 = vadd.f32 %v14797, %v14885
  %v14887 = vpop.f32.mrf.mxu0
  %v14888 = vadd.f32 %v14799, %v14887
  %14889 = vmatmul.bf16.gmra.mxu0 %v14211
  %v14890 = vpop.f32.mrf.mxu0
  %v14891 = vadd.f32 %v14802, %v14890
  %v14892 = vpop.f32.mrf.mxu0
  %v14893 = vadd.f32 %v14804, %v14892
  %14894 = vmatmul.bf16.gmra.mxu0 %v14212
  %v14895 = vpop.f32.mrf.mxu0
  %v14896 = vadd.f32 %v14807, %v14895
  %v14897 = vpop.f32.mrf.mxu0
  %v14898 = vadd.f32 %v14809, %v14897
  %14899 = vmatmul.bf16.gmra.mxu0 %v14213
  %v14900 = vpop.f32.mrf.mxu0
  %v14901 = vadd.f32 %v14812, %v14900
  %v14902 = vpop.f32.mrf.mxu0
  %v14903 = vadd.f32 %v14814, %v14902
  %14904 = vmatmul.bf16.gmra.mxu0 %v14214
  %v14905 = vpop.f32.mrf.mxu0
  %v14906 = vadd.f32 %v14817, %v14905
  %v14907 = vpop.f32.mrf.mxu0
  %v14908 = vadd.f32 %v14819, %v14907
  %14909 = vmatmul.bf16.gmra.mxu0 %v14215
  %v14910 = vpop.f32.mrf.mxu0
  %v14911 = vadd.f32 %v14822, %v14910
  %v14912 = vpop.f32.mrf.mxu0
  %v14913 = vadd.f32 %v14824, %v14912
  %14914 = vmatmul.bf16.gmra.mxu0 %v14216
  %v14915 = vpop.f32.mrf.mxu0
  %v14916 = vadd.f32 %v14827, %v14915
  %v14917 = vpop.f32.mrf.mxu0
  %v14918 = vadd.f32 %v14829, %v14917
  %14919 = vmatmul.bf16.gmra.mxu0 %v14217
  %v14920 = vpop.f32.mrf.mxu0
  %v14921 = vadd.f32 %v14832, %v14920
  %v14922 = vpop.f32.mrf.mxu0
  %v14923 = vadd.f32 %v14834, %v14922
  %14924 = vmatmul.bf16.gmra.mxu0 %v14218
  %v14925 = vpop.f32.mrf.mxu0
  %v14926 = vadd.f32 %v14837, %v14925
  %v14927 = vpop.f32.mrf.mxu0
  %v14928 = vadd.f32 %v14839, %v14927
  %14929 = vmatmul.bf16.gmra.mxu0 %v14219
  %v14930 = vpop.f32.mrf.mxu0
  %v14931 = vadd.f32 %v14842, %v14930
  %v14932 = vpop.f32.mrf.mxu0
  %v14933 = vadd.f32 %v14844, %v14932
  %14934 = vmatmul.bf16.gmra.mxu0 %v14220
  %v14935 = vpop.f32.mrf.mxu0
  %v14936 = vadd.f32 %v14847, %v14935
  %v14937 = vpop.f32.mrf.mxu0
  %v14938 = vadd.f32 %v14849, %v14937
  %14939 = vmatmul.bf16.gmra.mxu0 %v14221
  %v14940 = vpop.f32.mrf.mxu0
  %v14941 = vadd.f32 %v14852, %v14940
  %v14942 = vpop.f32.mrf.mxu0
  %v14943 = vadd.f32 %v14854, %v14942
  %14944 = vmatmul.bf16.gmra.mxu0 %v14222
  %v14945 = vpop.f32.mrf.mxu0
  %v14946 = vadd.f32 %v14857, %v14945
  %v14947 = vpop.f32.mrf.mxu0
  %v14948 = vadd.f32 %v14859, %v14947
  %14949 = vmatmul.bf16.gmra.mxu0 %v14223
  %v14950 = vpop.f32.mrf.mxu0
  %v14951 = vadd.f32 %v14862, %v14950
  %v14952 = vpop.f32.mrf.mxu0
  %v14953 = vadd.f32 %v14864, %v14952
  %14954 = vdwg.mxu0
  %14955 = vmatpush.bf16.msra.mxu0 %v7366
  %14956 = vmatpush.bf16.msra.mxu0 %v7365
  %14957 = vmatpush.bf16.msra.mxu0 %v7364
  %14958 = vmatpush.bf16.msra.mxu0 %v7363
  %14959 = vmatpush.bf16.msra.mxu0 %v7362
  %14960 = vmatpush.bf16.msra.mxu0 %v7361
  %14961 = vmatpush.bf16.msra.mxu0 %v7360
  %14962 = vmatpush.bf16.msra.mxu0 %v7359
  %14963 = vmatmul.bf16.gmra.mxu0 %v14272
  %v14964 = vpop.f32.mrf.mxu0
  %v14965 = vadd.f32 %v14876, %v14964
  %v14966 = vpop.f32.mrf.mxu0
  %v14967 = vadd.f32 %v14878, %v14966
  %14968 = vmatmul.bf16.gmra.mxu0 %v14273
  %v14969 = vpop.f32.mrf.mxu0
  %v14970 = vadd.f32 %v14881, %v14969
  %v14971 = vpop.f32.mrf.mxu0
  %v14972 = vadd.f32 %v14883, %v14971
  %14973 = vmatmul.bf16.gmra.mxu0 %v14274
  %v14974 = vpop.f32.mrf.mxu0
  %v14975 = vadd.f32 %v14886, %v14974
  %v14976 = vpop.f32.mrf.mxu0
  %v14977 = vadd.f32 %v14888, %v14976
  %14978 = vmatmul.bf16.gmra.mxu0 %v14275
  %v14979 = vpop.f32.mrf.mxu0
  %v14980 = vadd.f32 %v14891, %v14979
  %v14981 = vpop.f32.mrf.mxu0
  %v14982 = vadd.f32 %v14893, %v14981
  %14983 = vmatmul.bf16.gmra.mxu0 %v14276
  %v14984 = vpop.f32.mrf.mxu0
  %v14985 = vadd.f32 %v14896, %v14984
  %v14986 = vpop.f32.mrf.mxu0
  %v14987 = vadd.f32 %v14898, %v14986
  %14988 = vmatmul.bf16.gmra.mxu0 %v14277
  %v14989 = vpop.f32.mrf.mxu0
  %v14990 = vadd.f32 %v14901, %v14989
  %v14991 = vpop.f32.mrf.mxu0
  %v14992 = vadd.f32 %v14903, %v14991
  %14993 = vmatmul.bf16.gmra.mxu0 %v14278
  %v14994 = vpop.f32.mrf.mxu0
  %v14995 = vadd.f32 %v14906, %v14994
  %v14996 = vpop.f32.mrf.mxu0
  %v14997 = vadd.f32 %v14908, %v14996
  %14998 = vmatmul.bf16.gmra.mxu0 %v14279
  %v14999 = vpop.f32.mrf.mxu0
  %v15000 = vadd.f32 %v14911, %v14999
  %v15001 = vpop.f32.mrf.mxu0
  %v15002 = vadd.f32 %v14913, %v15001
  %15003 = vmatmul.bf16.gmra.mxu0 %v14280
  %v15004 = vpop.f32.mrf.mxu0
  %v15005 = vadd.f32 %v14916, %v15004
  %v15006 = vpop.f32.mrf.mxu0
  %v15007 = vadd.f32 %v14918, %v15006
  %15008 = vmatmul.bf16.gmra.mxu0 %v14281
  %v15009 = vpop.f32.mrf.mxu0
  %v15010 = vadd.f32 %v14921, %v15009
  %v15011 = vpop.f32.mrf.mxu0
  %v15012 = vadd.f32 %v14923, %v15011
  %15013 = vmatmul.bf16.gmra.mxu0 %v14282
  %v15014 = vpop.f32.mrf.mxu0
  %v15015 = vadd.f32 %v14926, %v15014
  %v15016 = vpop.f32.mrf.mxu0
  %v15017 = vadd.f32 %v14928, %v15016
  %15018 = vmatmul.bf16.gmra.mxu0 %v14283
  %v15019 = vpop.f32.mrf.mxu0
  %v15020 = vadd.f32 %v14931, %v15019
  %v15021 = vpop.f32.mrf.mxu0
  %v15022 = vadd.f32 %v14933, %v15021
  %15023 = vmatmul.bf16.gmra.mxu0 %v14284
  %v15024 = vpop.f32.mrf.mxu0
  %v15025 = vadd.f32 %v14936, %v15024
  %v15026 = vpop.f32.mrf.mxu0
  %v15027 = vadd.f32 %v14938, %v15026
  %15028 = vmatmul.bf16.gmra.mxu0 %v14285
  %v15029 = vpop.f32.mrf.mxu0
  %v15030 = vadd.f32 %v14941, %v15029
  %v15031 = vpop.f32.mrf.mxu0
  %v15032 = vadd.f32 %v14943, %v15031
  %15033 = vmatmul.bf16.gmra.mxu0 %v14286
  %v15034 = vpop.f32.mrf.mxu0
  %v15035 = vadd.f32 %v14946, %v15034
  %v15036 = vpop.f32.mrf.mxu0
  %v15037 = vadd.f32 %v14948, %v15036
  %15038 = vmatmul.bf16.gmra.mxu0 %v14287
  %v15039 = vpop.f32.mrf.mxu0
  %v15040 = vadd.f32 %v14951, %v15039
  %v15041 = vpop.f32.mrf.mxu0
  %v15042 = vadd.f32 %v14953, %v15041
  %15043 = vdwg.mxu0
  %15044 = vmatpush.bf16.msra.mxu0 %v7374
  %15045 = vmatpush.bf16.msra.mxu0 %v7373
  %15046 = vmatpush.bf16.msra.mxu0 %v7372
  %15047 = vmatpush.bf16.msra.mxu0 %v7371
  %15048 = vmatpush.bf16.msra.mxu0 %v7370
  %15049 = vmatpush.bf16.msra.mxu0 %v7369
  %15050 = vmatpush.bf16.msra.mxu0 %v7368
  %15051 = vmatpush.bf16.msra.mxu0 %v7367
  %15052 = vmatmul.bf16.gmra.mxu0 %v14368
  %v15053 = vpop.f32.mrf.mxu0
  %v15054 = vadd.f32 %v14965, %v15053
  %v15055 = vpop.f32.mrf.mxu0
  %v15056 = vadd.f32 %v14967, %v15055
  %15057 = vmatmul.bf16.gmra.mxu0 %v14369
  %v15058 = vpop.f32.mrf.mxu0
  %v15059 = vadd.f32 %v14970, %v15058
  %v15060 = vpop.f32.mrf.mxu0
  %v15061 = vadd.f32 %v14972, %v15060
  %15062 = vmatmul.bf16.gmra.mxu0 %v14370
  %v15063 = vpop.f32.mrf.mxu0
  %v15064 = vadd.f32 %v14975, %v15063
  %v15065 = vpop.f32.mrf.mxu0
  %v15066 = vadd.f32 %v14977, %v15065
  %15067 = vmatmul.bf16.gmra.mxu0 %v14371
  %v15068 = vpop.f32.mrf.mxu0
  %v15069 = vadd.f32 %v14980, %v15068
  %v15070 = vpop.f32.mrf.mxu0
  %v15071 = vadd.f32 %v14982, %v15070
  %15072 = vmatmul.bf16.gmra.mxu0 %v14372
  %v15073 = vpop.f32.mrf.mxu0
  %v15074 = vadd.f32 %v14985, %v15073
  %v15075 = vpop.f32.mrf.mxu0
  %v15076 = vadd.f32 %v14987, %v15075
  %15077 = vmatmul.bf16.gmra.mxu0 %v14373
  %v15078 = vpop.f32.mrf.mxu0
  %v15079 = vadd.f32 %v14990, %v15078
  %v15080 = vpop.f32.mrf.mxu0
  %v15081 = vadd.f32 %v14992, %v15080
  %15082 = vmatmul.bf16.gmra.mxu0 %v14374
  %v15083 = vpop.f32.mrf.mxu0
  %v15084 = vadd.f32 %v14995, %v15083
  %v15085 = vpop.f32.mrf.mxu0
  %v15086 = vadd.f32 %v14997, %v15085
  %15087 = vmatmul.bf16.gmra.mxu0 %v14375
  %v15088 = vpop.f32.mrf.mxu0
  %v15089 = vadd.f32 %v15000, %v15088
  %v15090 = vpop.f32.mrf.mxu0
  %v15091 = vadd.f32 %v15002, %v15090
  %15092 = vmatmul.bf16.gmra.mxu0 %v14376
  %v15093 = vpop.f32.mrf.mxu0
  %v15094 = vadd.f32 %v15005, %v15093
  %v15095 = vpop.f32.mrf.mxu0
  %v15096 = vadd.f32 %v15007, %v15095
  %15097 = vmatmul.bf16.gmra.mxu0 %v14377
  %v15098 = vpop.f32.mrf.mxu0
  %v15099 = vadd.f32 %v15010, %v15098
  %v15100 = vpop.f32.mrf.mxu0
  %v15101 = vadd.f32 %v15012, %v15100
  %15102 = vmatmul.bf16.gmra.mxu0 %v14378
  %v15103 = vpop.f32.mrf.mxu0
  %v15104 = vadd.f32 %v15015, %v15103
  %v15105 = vpop.f32.mrf.mxu0
  %v15106 = vadd.f32 %v15017, %v15105
  %15107 = vmatmul.bf16.gmra.mxu0 %v14379
  %v15108 = vpop.f32.mrf.mxu0
  %v15109 = vadd.f32 %v15020, %v15108
  %v15110 = vpop.f32.mrf.mxu0
  %v15111 = vadd.f32 %v15022, %v15110
  %15112 = vmatmul.bf16.gmra.mxu0 %v14380
  %v15113 = vpop.f32.mrf.mxu0
  %v15114 = vadd.f32 %v15025, %v15113
  %v15115 = vpop.f32.mrf.mxu0
  %v15116 = vadd.f32 %v15027, %v15115
  %15117 = vmatmul.bf16.gmra.mxu0 %v14381
  %v15118 = vpop.f32.mrf.mxu0
  %v15119 = vadd.f32 %v15030, %v15118
  %v15120 = vpop.f32.mrf.mxu0
  %v15121 = vadd.f32 %v15032, %v15120
  %15122 = vmatmul.bf16.gmra.mxu0 %v14382
  %v15123 = vpop.f32.mrf.mxu0
  %v15124 = vadd.f32 %v15035, %v15123
  %v15125 = vpop.f32.mrf.mxu0
  %v15126 = vadd.f32 %v15037, %v15125
  %15127 = vmatmul.bf16.gmra.mxu0 %v14383
  %v15128 = vpop.f32.mrf.mxu0
  %v15129 = vadd.f32 %v15040, %v15128
  %v15130 = vpop.f32.mrf.mxu0
  %v15131 = vadd.f32 %v15042, %v15130
  %15132 = vdwg.mxu0
  %15133 = vmatpush.bf16.msra.mxu0 %v7382
  %15134 = vmatpush.bf16.msra.mxu0 %v7381
  %15135 = vmatpush.bf16.msra.mxu0 %v7380
  %15136 = vmatpush.bf16.msra.mxu0 %v7379
  %15137 = vmatpush.bf16.msra.mxu0 %v7378
  %15138 = vmatpush.bf16.msra.mxu0 %v7377
  %15139 = vmatpush.bf16.msra.mxu0 %v7376
  %15140 = vmatpush.bf16.msra.mxu0 %v7375
  %15141 = vmatmul.bf16.gmra.mxu0 %v14432
  %v15142 = vpop.f32.mrf.mxu0
  %v15143 = vadd.f32 %v15054, %v15142
  %v15144 = vpop.f32.mrf.mxu0
  %v15145 = vadd.f32 %v15056, %v15144
  %15146 = vmatmul.bf16.gmra.mxu0 %v14433
  %v15147 = vpop.f32.mrf.mxu0
  %v15148 = vadd.f32 %v15059, %v15147
  %v15149 = vpop.f32.mrf.mxu0
  %v15150 = vadd.f32 %v15061, %v15149
  %15151 = vmatmul.bf16.gmra.mxu0 %v14434
  %v15152 = vpop.f32.mrf.mxu0
  %v15153 = vadd.f32 %v15064, %v15152
  %v15154 = vpop.f32.mrf.mxu0
  %v15155 = vadd.f32 %v15066, %v15154
  %15156 = vmatmul.bf16.gmra.mxu0 %v14435
  %v15157 = vpop.f32.mrf.mxu0
  %v15158 = vadd.f32 %v15069, %v15157
  %v15159 = vpop.f32.mrf.mxu0
  %v15160 = vadd.f32 %v15071, %v15159
  %15161 = vmatmul.bf16.gmra.mxu0 %v14436
  %v15162 = vpop.f32.mrf.mxu0
  %v15163 = vadd.f32 %v15074, %v15162
  %v15164 = vpop.f32.mrf.mxu0
  %v15165 = vadd.f32 %v15076, %v15164
  %15166 = vmatmul.bf16.gmra.mxu0 %v14437
  %v15167 = vpop.f32.mrf.mxu0
  %v15168 = vadd.f32 %v15079, %v15167
  %v15169 = vpop.f32.mrf.mxu0
  %v15170 = vadd.f32 %v15081, %v15169
  %15171 = vmatmul.bf16.gmra.mxu0 %v14438
  %v15172 = vpop.f32.mrf.mxu0
  %v15173 = vadd.f32 %v15084, %v15172
  %v15174 = vpop.f32.mrf.mxu0
  %v15175 = vadd.f32 %v15086, %v15174
  %15176 = vmatmul.bf16.gmra.mxu0 %v14439
  %v15177 = vpop.f32.mrf.mxu0
  %v15178 = vadd.f32 %v15089, %v15177
  %v15179 = vpop.f32.mrf.mxu0
  %v15180 = vadd.f32 %v15091, %v15179
  %15181 = vmatmul.bf16.gmra.mxu0 %v14440
  %v15182 = vpop.f32.mrf.mxu0
  %v15183 = vadd.f32 %v15094, %v15182
  %v15184 = vpop.f32.mrf.mxu0
  %v15185 = vadd.f32 %v15096, %v15184
  %15186 = vmatmul.bf16.gmra.mxu0 %v14441
  %v15187 = vpop.f32.mrf.mxu0
  %v15188 = vadd.f32 %v15099, %v15187
  %v15189 = vpop.f32.mrf.mxu0
  %v15190 = vadd.f32 %v15101, %v15189
  %15191 = vmatmul.bf16.gmra.mxu0 %v14442
  %v15192 = vpop.f32.mrf.mxu0
  %v15193 = vadd.f32 %v15104, %v15192
  %v15194 = vpop.f32.mrf.mxu0
  %v15195 = vadd.f32 %v15106, %v15194
  %15196 = vmatmul.bf16.gmra.mxu0 %v14443
  %v15197 = vpop.f32.mrf.mxu0
  %v15198 = vadd.f32 %v15109, %v15197
  %v15199 = vpop.f32.mrf.mxu0
  %v15200 = vadd.f32 %v15111, %v15199
  %15201 = vmatmul.bf16.gmra.mxu0 %v14444
  %v15202 = vpop.f32.mrf.mxu0
  %v15203 = vadd.f32 %v15114, %v15202
  %v15204 = vpop.f32.mrf.mxu0
  %v15205 = vadd.f32 %v15116, %v15204
  %15206 = vmatmul.bf16.gmra.mxu0 %v14445
  %v15207 = vpop.f32.mrf.mxu0
  %v15208 = vadd.f32 %v15119, %v15207
  %v15209 = vpop.f32.mrf.mxu0
  %v15210 = vadd.f32 %v15121, %v15209
  %15211 = vmatmul.bf16.gmra.mxu0 %v14446
  %v15212 = vpop.f32.mrf.mxu0
  %v15213 = vadd.f32 %v15124, %v15212
  %v15214 = vpop.f32.mrf.mxu0
  %v15215 = vadd.f32 %v15126, %v15214
  %15216 = vmatmul.bf16.gmra.mxu0 %v14447
  %v15217 = vpop.f32.mrf.mxu0
  %v15218 = vadd.f32 %v15129, %v15217
  %v15219 = vpop.f32.mrf.mxu0
  %v15220 = vadd.f32 %v15131, %v15219
  %15221 = vdwg.mxu0
  %15222 = vmatpush.bf16.msra.mxu0 %v7390
  %15223 = vmatpush.bf16.msra.mxu0 %v7389
  %15224 = vmatpush.bf16.msra.mxu0 %v7388
  %15225 = vmatpush.bf16.msra.mxu0 %v7387
  %15226 = vmatpush.bf16.msra.mxu0 %v7386
  %15227 = vmatpush.bf16.msra.mxu0 %v7385
  %15228 = vmatpush.bf16.msra.mxu0 %v7384
  %15229 = vmatpush.bf16.msra.mxu0 %v7383
  %15230 = vmatmul.bf16.gmra.mxu0 %v14496
  %v15231 = vpop.f32.mrf.mxu0
  %v15232 = vadd.f32 %v15143, %v15231
  %v15233 = vpop.f32.mrf.mxu0
  %v15234 = vadd.f32 %v15145, %v15233
  %15235 = vmatmul.bf16.gmra.mxu0 %v14497
  %v15236 = vpop.f32.mrf.mxu0
  %v15237 = vadd.f32 %v15148, %v15236
  %v15238 = vpop.f32.mrf.mxu0
  %v15239 = vadd.f32 %v15150, %v15238
  %15240 = vmatmul.bf16.gmra.mxu0 %v14498
  %v15241 = vpop.f32.mrf.mxu0
  %v15242 = vadd.f32 %v15153, %v15241
  %v15243 = vpop.f32.mrf.mxu0
  %v15244 = vadd.f32 %v15155, %v15243
  %15245 = vmatmul.bf16.gmra.mxu0 %v14499
  %v15246 = vpop.f32.mrf.mxu0
  %v15247 = vadd.f32 %v15158, %v15246
  %v15248 = vpop.f32.mrf.mxu0
  %v15249 = vadd.f32 %v15160, %v15248
  %15250 = vmatmul.bf16.gmra.mxu0 %v14500
  %v15251 = vpop.f32.mrf.mxu0
  %v15252 = vadd.f32 %v15163, %v15251
  %v15253 = vpop.f32.mrf.mxu0
  %v15254 = vadd.f32 %v15165, %v15253
  %15255 = vmatmul.bf16.gmra.mxu0 %v14501
  %v15256 = vpop.f32.mrf.mxu0
  %v15257 = vadd.f32 %v15168, %v15256
  %v15258 = vpop.f32.mrf.mxu0
  %v15259 = vadd.f32 %v15170, %v15258
  %15260 = vmatmul.bf16.gmra.mxu0 %v14502
  %v15261 = vpop.f32.mrf.mxu0
  %v15262 = vadd.f32 %v15173, %v15261
  %v15263 = vpop.f32.mrf.mxu0
  %v15264 = vadd.f32 %v15175, %v15263
  %15265 = vmatmul.bf16.gmra.mxu0 %v14503
  %v15266 = vpop.f32.mrf.mxu0
  %v15267 = vadd.f32 %v15178, %v15266
  %v15268 = vpop.f32.mrf.mxu0
  %v15269 = vadd.f32 %v15180, %v15268
  %15270 = vmatmul.bf16.gmra.mxu0 %v14504
  %v15271 = vpop.f32.mrf.mxu0
  %v15272 = vadd.f32 %v15183, %v15271
  %v15273 = vpop.f32.mrf.mxu0
  %v15274 = vadd.f32 %v15185, %v15273
  %15275 = vmatmul.bf16.gmra.mxu0 %v14505
  %v15276 = vpop.f32.mrf.mxu0
  %v15277 = vadd.f32 %v15188, %v15276
  %v15278 = vpop.f32.mrf.mxu0
  %v15279 = vadd.f32 %v15190, %v15278
  %15280 = vmatmul.bf16.gmra.mxu0 %v14506
  %v15281 = vpop.f32.mrf.mxu0
  %v15282 = vadd.f32 %v15193, %v15281
  %v15283 = vpop.f32.mrf.mxu0
  %v15284 = vadd.f32 %v15195, %v15283
  %15285 = vmatmul.bf16.gmra.mxu0 %v14507
  %v15286 = vpop.f32.mrf.mxu0
  %v15287 = vadd.f32 %v15198, %v15286
  %v15288 = vpop.f32.mrf.mxu0
  %v15289 = vadd.f32 %v15200, %v15288
  %15290 = vmatmul.bf16.gmra.mxu0 %v14508
  %v15291 = vpop.f32.mrf.mxu0
  %v15292 = vadd.f32 %v15203, %v15291
  %v15293 = vpop.f32.mrf.mxu0
  %v15294 = vadd.f32 %v15205, %v15293
  %15295 = vmatmul.bf16.gmra.mxu0 %v14509
  %v15296 = vpop.f32.mrf.mxu0
  %v15297 = vadd.f32 %v15208, %v15296
  %v15298 = vpop.f32.mrf.mxu0
  %v15299 = vadd.f32 %v15210, %v15298
  %15300 = vmatmul.bf16.gmra.mxu0 %v14510
  %v15301 = vpop.f32.mrf.mxu0
  %v15302 = vadd.f32 %v15213, %v15301
  %v15303 = vpop.f32.mrf.mxu0
  %v15304 = vadd.f32 %v15215, %v15303
  %15305 = vmatmul.bf16.gmra.mxu0 %v14511
  %v15306 = vpop.f32.mrf.mxu0
  %v15307 = vadd.f32 %v15218, %v15306
  %v15308 = vpop.f32.mrf.mxu0
  %v15309 = vadd.f32 %v15220, %v15308
  %15310 = vdwg.mxu0
  %15311 = vmatpush.bf16.msra.mxu0 %v7398
  %15312 = vmatpush.bf16.msra.mxu0 %v7397
  %15313 = vmatpush.bf16.msra.mxu0 %v7396
  %15314 = vmatpush.bf16.msra.mxu0 %v7395
  %15315 = vmatpush.bf16.msra.mxu0 %v7394
  %15316 = vmatpush.bf16.msra.mxu0 %v7393
  %15317 = vmatpush.bf16.msra.mxu0 %v7392
  %15318 = vmatpush.bf16.msra.mxu0 %v7391
  %15319 = vmatmul.bf16.gmra.mxu0 %v14592
  %v15320 = vpop.f32.mrf.mxu0
  %v15321 = vadd.f32 %v15232, %v15320
  %v15322 = vpop.f32.mrf.mxu0
  %v15323 = vadd.f32 %v15234, %v15322
  %15324 = vmatmul.bf16.gmra.mxu0 %v14593
  %v15325 = vpop.f32.mrf.mxu0
  %v15326 = vadd.f32 %v15237, %v15325
  %v15327 = vpop.f32.mrf.mxu0
  %v15328 = vadd.f32 %v15239, %v15327
  %15329 = vmatmul.bf16.gmra.mxu0 %v14594
  %v15330 = vpop.f32.mrf.mxu0
  %v15331 = vadd.f32 %v15242, %v15330
  %v15332 = vpop.f32.mrf.mxu0
  %v15333 = vadd.f32 %v15244, %v15332
  %15334 = vmatmul.bf16.gmra.mxu0 %v14595
  %v15335 = vpop.f32.mrf.mxu0
  %v15336 = vadd.f32 %v15247, %v15335
  %v15337 = vpop.f32.mrf.mxu0
  %v15338 = vadd.f32 %v15249, %v15337
  %15339 = vmatmul.bf16.gmra.mxu0 %v14596
  %v15340 = vpop.f32.mrf.mxu0
  %v15341 = vadd.f32 %v15252, %v15340
  %v15342 = vpop.f32.mrf.mxu0
  %v15343 = vadd.f32 %v15254, %v15342
  %15344 = vmatmul.bf16.gmra.mxu0 %v14597
  %v15345 = vpop.f32.mrf.mxu0
  %v15346 = vadd.f32 %v15257, %v15345
  %v15347 = vpop.f32.mrf.mxu0
  %v15348 = vadd.f32 %v15259, %v15347
  %15349 = vmatmul.bf16.gmra.mxu0 %v14598
  %v15350 = vpop.f32.mrf.mxu0
  %v15351 = vadd.f32 %v15262, %v15350
  %v15352 = vpop.f32.mrf.mxu0
  %v15353 = vadd.f32 %v15264, %v15352
  %15354 = vmatmul.bf16.gmra.mxu0 %v14599
  %v15355 = vpop.f32.mrf.mxu0
  %v15356 = vadd.f32 %v15267, %v15355
  %v15357 = vpop.f32.mrf.mxu0
  %v15358 = vadd.f32 %v15269, %v15357
  %15359 = vmatmul.bf16.gmra.mxu0 %v14600
  %v15360 = vpop.f32.mrf.mxu0
  %v15361 = vadd.f32 %v15272, %v15360
  %v15362 = vpop.f32.mrf.mxu0
  %v15363 = vadd.f32 %v15274, %v15362
  %15364 = vmatmul.bf16.gmra.mxu0 %v14601
  %v15365 = vpop.f32.mrf.mxu0
  %v15366 = vadd.f32 %v15277, %v15365
  %v15367 = vpop.f32.mrf.mxu0
  %v15368 = vadd.f32 %v15279, %v15367
  %15369 = vmatmul.bf16.gmra.mxu0 %v14602
  %v15370 = vpop.f32.mrf.mxu0
  %v15371 = vadd.f32 %v15282, %v15370
  %v15372 = vpop.f32.mrf.mxu0
  %v15373 = vadd.f32 %v15284, %v15372
  %15374 = vmatmul.bf16.gmra.mxu0 %v14603
  %v15375 = vpop.f32.mrf.mxu0
  %v15376 = vadd.f32 %v15287, %v15375
  %v15377 = vpop.f32.mrf.mxu0
  %v15378 = vadd.f32 %v15289, %v15377
  %15379 = vmatmul.bf16.gmra.mxu0 %v14604
  %v15380 = vpop.f32.mrf.mxu0
  %v15381 = vadd.f32 %v15292, %v15380
  %v15382 = vpop.f32.mrf.mxu0
  %v15383 = vadd.f32 %v15294, %v15382
  %15384 = vmatmul.bf16.gmra.mxu0 %v14605
  %v15385 = vpop.f32.mrf.mxu0
  %v15386 = vadd.f32 %v15297, %v15385
  %v15387 = vpop.f32.mrf.mxu0
  %v15388 = vadd.f32 %v15299, %v15387
  %15389 = vmatmul.bf16.gmra.mxu0 %v14606
  %v15390 = vpop.f32.mrf.mxu0
  %v15391 = vadd.f32 %v15302, %v15390
  %v15392 = vpop.f32.mrf.mxu0
  %v15393 = vadd.f32 %v15304, %v15392
  %15394 = vmatmul.bf16.gmra.mxu0 %v14607
  %v15395 = vpop.f32.mrf.mxu0
  %v15396 = vadd.f32 %v15307, %v15395
  %v15397 = vpop.f32.mrf.mxu0
  %v15398 = vadd.f32 %v15309, %v15397
  %15399 = vdwg.mxu0
  %15400 = vmatpush.bf16.msra.mxu0 %v7406
  %15401 = vmatpush.bf16.msra.mxu0 %v7405
  %15402 = vmatpush.bf16.msra.mxu0 %v7404
  %15403 = vmatpush.bf16.msra.mxu0 %v7403
  %15404 = vmatpush.bf16.msra.mxu0 %v7402
  %15405 = vmatpush.bf16.msra.mxu0 %v7401
  %15406 = vmatpush.bf16.msra.mxu0 %v7400
  %15407 = vmatpush.bf16.msra.mxu0 %v7399
  %15408 = vmatmul.bf16.gmra.mxu0 %v14656
  %v15409 = vpop.f32.mrf.mxu0
  %v15410 = vadd.f32 %v15321, %v15409
  %v15411 = vpop.f32.mrf.mxu0
  %v15412 = vadd.f32 %v15323, %v15411
  %15413 = vmatmul.bf16.gmra.mxu0 %v14657
  %v15414 = vpop.f32.mrf.mxu0
  %v15415 = vadd.f32 %v15326, %v15414
  %v15416 = vpop.f32.mrf.mxu0
  %v15417 = vadd.f32 %v15328, %v15416
  %15418 = vmatmul.bf16.gmra.mxu0 %v14658
  %v15419 = vpop.f32.mrf.mxu0
  %v15420 = vadd.f32 %v15331, %v15419
  %v15421 = vpop.f32.mrf.mxu0
  %v15422 = vadd.f32 %v15333, %v15421
  %15423 = vmatmul.bf16.gmra.mxu0 %v14659
  %v15424 = vpop.f32.mrf.mxu0
  %v15425 = vadd.f32 %v15336, %v15424
  %v15426 = vpop.f32.mrf.mxu0
  %v15427 = vadd.f32 %v15338, %v15426
  %15428 = vmatmul.bf16.gmra.mxu0 %v14660
  %v15429 = vpop.f32.mrf.mxu0
  %v15430 = vadd.f32 %v15341, %v15429
  %v15431 = vpop.f32.mrf.mxu0
  %v15432 = vadd.f32 %v15343, %v15431
  %15433 = vmatmul.bf16.gmra.mxu0 %v14661
  %v15434 = vpop.f32.mrf.mxu0
  %v15435 = vadd.f32 %v15346, %v15434
  %v15436 = vpop.f32.mrf.mxu0
  %v15437 = vadd.f32 %v15348, %v15436
  %15438 = vmatmul.bf16.gmra.mxu0 %v14662
  %v15439 = vpop.f32.mrf.mxu0
  %v15440 = vadd.f32 %v15351, %v15439
  %v15441 = vpop.f32.mrf.mxu0
  %v15442 = vadd.f32 %v15353, %v15441
  %15443 = vmatmul.bf16.gmra.mxu0 %v14663
  %v15444 = vpop.f32.mrf.mxu0
  %v15445 = vadd.f32 %v15356, %v15444
  %v15446 = vpop.f32.mrf.mxu0
  %v15447 = vadd.f32 %v15358, %v15446
  %15448 = vmatmul.bf16.gmra.mxu0 %v14664
  %v15449 = vpop.f32.mrf.mxu0
  %v15450 = vadd.f32 %v15361, %v15449
  %v15451 = vpop.f32.mrf.mxu0
  %v15452 = vadd.f32 %v15363, %v15451
  %15453 = vmatmul.bf16.gmra.mxu0 %v14665
  %v15454 = vpop.f32.mrf.mxu0
  %v15455 = vadd.f32 %v15366, %v15454
  %v15456 = vpop.f32.mrf.mxu0
  %v15457 = vadd.f32 %v15368, %v15456
  %15458 = vmatmul.bf16.gmra.mxu0 %v14666
  %v15459 = vpop.f32.mrf.mxu0
  %v15460 = vadd.f32 %v15371, %v15459
  %v15461 = vpop.f32.mrf.mxu0
  %v15462 = vadd.f32 %v15373, %v15461
  %15463 = vmatmul.bf16.gmra.mxu0 %v14667
  %v15464 = vpop.f32.mrf.mxu0
  %v15465 = vadd.f32 %v15376, %v15464
  %v15466 = vpop.f32.mrf.mxu0
  %v15467 = vadd.f32 %v15378, %v15466
  %15468 = vmatmul.bf16.gmra.mxu0 %v14668
  %v15469 = vpop.f32.mrf.mxu0
  %v15470 = vadd.f32 %v15381, %v15469
  %v15471 = vpop.f32.mrf.mxu0
  %v15472 = vadd.f32 %v15383, %v15471
  %15473 = vmatmul.bf16.gmra.mxu0 %v14669
  %v15474 = vpop.f32.mrf.mxu0
  %v15475 = vadd.f32 %v15386, %v15474
  %v15476 = vpop.f32.mrf.mxu0
  %v15477 = vadd.f32 %v15388, %v15476
  %15478 = vmatmul.bf16.gmra.mxu0 %v14670
  %v15479 = vpop.f32.mrf.mxu0
  %v15480 = vadd.f32 %v15391, %v15479
  %v15481 = vpop.f32.mrf.mxu0
  %v15482 = vadd.f32 %v15393, %v15481
  %15483 = vmatmul.bf16.gmra.mxu0 %v14671
  %v15484 = vpop.f32.mrf.mxu0
  %v15485 = vadd.f32 %v15396, %v15484
  %v15486 = vpop.f32.mrf.mxu0
  %v15487 = vadd.f32 %v15398, %v15486
  %15488 = vdwg.mxu0
  %v15489 = vmul.f32 %v15410, %v8281
  %v15490 = vmul.f32 %v15412, %v8281
  %v15491 = vmul.f32 %v15415, %v8281
  %v15492 = vmul.f32 %v15417, %v8281
  %v15493 = vmul.f32 %v15420, %v8281
  %v15494 = vmul.f32 %v15422, %v8281
  %v15495 = vmul.f32 %v15425, %v8281
  %v15496 = vmul.f32 %v15427, %v8281
  %v15497 = vmul.f32 %v15430, %v8281
  %v15498 = vmul.f32 %v15432, %v8281
  %v15499 = vmul.f32 %v15435, %v8281
  %v15500 = vmul.f32 %v15437, %v8281
  %v15501 = vmul.f32 %v15440, %v8281
  %v15502 = vmul.f32 %v15442, %v8281
  %v15503 = vmul.f32 %v15445, %v8281
  %v15504 = vmul.f32 %v15447, %v8281
  %v15505 = vmul.f32 %v15450, %v8281
  %v15506 = vmul.f32 %v15452, %v8281
  %v15507 = vmul.f32 %v15455, %v8281
  %v15508 = vmul.f32 %v15457, %v8281
  %v15509 = vmul.f32 %v15460, %v8281
  %v15510 = vmul.f32 %v15462, %v8281
  %v15511 = vmul.f32 %v15465, %v8281
  %v15512 = vmul.f32 %v15467, %v8281
  %v15513 = vmul.f32 %v15470, %v8281
  %v15514 = vmul.f32 %v15472, %v8281
  %v15515 = vmul.f32 %v15475, %v8281
  %v15516 = vmul.f32 %v15477, %v8281
  %v15517 = vmul.f32 %v15480, %v8281
  %v15518 = vmul.f32 %v15482, %v8281
  %v15519 = vmul.f32 %v15485, %v8281
  %v15520 = vmul.f32 %v15487, %v8281
  %v15521 = vadd.f32 %v15489, %v8316
  %v15522 = vadd.f32 %v15490, %v8316
  %v15523 = vadd.f32 %v15491, %v8316
  %v15524 = vadd.f32 %v15492, %v8316
  %v15525 = vadd.f32 %v15493, %v8316
  %v15526 = vadd.f32 %v15494, %v8316
  %v15527 = vadd.f32 %v15495, %v8316
  %v15528 = vadd.f32 %v15496, %v8316
  %v15529 = vadd.f32 %v15497, %v8316
  %v15530 = vadd.f32 %v15498, %v8316
  %v15531 = vadd.f32 %v15499, %v8316
  %v15532 = vadd.f32 %v15500, %v8316
  %v15533 = vadd.f32 %v15501, %v8316
  %v15534 = vadd.f32 %v15502, %v8316
  %v15535 = vadd.f32 %v15503, %v8316
  %v15536 = vadd.f32 %v15504, %v8316
  %v15537 = vadd.f32 %v15505, %v8316
  %v15538 = vadd.f32 %v15506, %v8316
  %v15539 = vadd.f32 %v15507, %v8316
  %v15540 = vadd.f32 %v15508, %v8316
  %v15541 = vadd.f32 %v15509, %v8316
  %v15542 = vadd.f32 %v15510, %v8316
  %v15543 = vadd.f32 %v15511, %v8316
  %v15544 = vadd.f32 %v15512, %v8316
  %v15545 = vadd.f32 %v15513, %v8316
  %v15546 = vadd.f32 %v15514, %v8316
  %v15547 = vadd.f32 %v15515, %v8316
  %v15548 = vadd.f32 %v15516, %v8316
  %v15549 = vadd.f32 %v15517, %v8316
  %v15550 = vadd.f32 %v15518, %v8316
  %v15551 = vadd.f32 %v15519, %v8316
  %v15552 = vadd.f32 %v15520, %v8316
  %v15553 = vadd.f32 %v15521, %v8447
  %v15554 = vadd.f32 %v15522, %v8448
  %v15555 = vadd.f32 %v15523, %v8449
  %v15556 = vadd.f32 %v15524, %v8450
  %v15557 = vadd.f32 %v15525, %v8451
  %v15558 = vadd.f32 %v15526, %v8452
  %v15559 = vadd.f32 %v15527, %v8453
  %v15560 = vadd.f32 %v15528, %v8454
  %v15561 = vadd.f32 %v15529, %v8455
  %v15562 = vadd.f32 %v15530, %v8456
  %v15563 = vadd.f32 %v15531, %v8457
  %v15564 = vadd.f32 %v15532, %v8458
  %v15565 = vadd.f32 %v15533, %v8459
  %v15566 = vadd.f32 %v15534, %v8460
  %v15567 = vadd.f32 %v15535, %v8461
  %v15568 = vadd.f32 %v15536, %v8462
  %v15569 = vadd.f32 %v15537, %v8463
  %v15570 = vadd.f32 %v15538, %v8464
  %v15571 = vadd.f32 %v15539, %v8465
  %v15572 = vadd.f32 %v15540, %v8466
  %v15573 = vadd.f32 %v15541, %v8467
  %v15574 = vadd.f32 %v15542, %v8468
  %v15575 = vadd.f32 %v15543, %v8469
  %v15576 = vadd.f32 %v15544, %v8470
  %v15577 = vadd.f32 %v15545, %v8471
  %v15578 = vadd.f32 %v15546, %v8472
  %v15579 = vadd.f32 %v15547, %v8473
  %v15580 = vadd.f32 %v15548, %v8474
  %v15581 = vadd.f32 %v15549, %v8475
  %v15582 = vadd.f32 %v15550, %v8476
  %v15583 = vadd.f32 %v15551, %v8477
  %v15584 = vadd.f32 %v15552, %v8478
  %v15585 = vmax.f32 %v15553, 0.0
  %v15586 = vmax.f32 %v15554, 0.0
  %v15587 = vmax.f32 %v15555, 0.0
  %v15588 = vmax.f32 %v15556, 0.0
  %v15589 = vmax.f32 %v15557, 0.0
  %v15590 = vmax.f32 %v15558, 0.0
  %v15591 = vmax.f32 %v15559, 0.0
  %v15592 = vmax.f32 %v15560, 0.0
  %v15593 = vmax.f32 %v15561, 0.0
  %v15594 = vmax.f32 %v15562, 0.0
  %v15595 = vmax.f32 %v15563, 0.0
  %v15596 = vmax.f32 %v15564, 0.0
  %v15597 = vmax.f32 %v15565, 0.0
  %v15598 = vmax.f32 %v15566, 0.0
  %v15599 = vmax.f32 %v15567, 0.0
  %v15600 = vmax.f32 %v15568, 0.0
  %v15601 = vmax.f32 %v15569, 0.0
  %v15602 = vmax.f32 %v15570, 0.0
  %v15603 = vmax.f32 %v15571, 0.0
  %v15604 = vmax.f32 %v15572, 0.0
  %v15605 = vmax.f32 %v15573, 0.0
  %v15606 = vmax.f32 %v15574, 0.0
  %v15607 = vmax.f32 %v15575, 0.0
  %v15608 = vmax.f32 %v15576, 0.0
  %v15609 = vmax.f32 %v15577, 0.0
  %v15610 = vmax.f32 %v15578, 0.0
  %v15611 = vmax.f32 %v15579, 0.0
  %v15612 = vmax.f32 %v15580, 0.0
  %v15613 = vmax.f32 %v15581, 0.0
  %v15614 = vmax.f32 %v15582, 0.0
  %v15615 = vmax.f32 %v15583, 0.0
  %v15616 = vmax.f32 %v15584, 0.0
  %s15617 = scalar_lea.vmem %s7, 256
  %15618 = vst [vmem:[%s15617] sm:$0xff] %v15585
  %15619 = vst [vmem:[%s15617 + $0x8] sm:$0xff] %v15586
  %15620 = vst [vmem:[%s15617 + $0x10] sm:$0xff] %v15587
  %15621 = vst [vmem:[%s15617 + $0x18] sm:$0xff] %v15588
  %15622 = vst [vmem:[%s15617 + $0x20] sm:$0xff] %v15589
  %15623 = vst [vmem:[%s15617 + $0x28] sm:$0xff] %v15590
  %15624 = vst [vmem:[%s15617 + $0x30] sm:$0xff] %v15591
  %15625 = vst [vmem:[%s15617 + $0x38] sm:$0xff] %v15592
  %15626 = vst [vmem:[%s15617 + $0x40] sm:$0xff] %v15593
  %15627 = vst [vmem:[%s15617 + $0x48] sm:$0xff] %v15594
  %15628 = vst [vmem:[%s15617 + $0x50] sm:$0xff] %v15595
  %15629 = vst [vmem:[%s15617 + $0x58] sm:$0xff] %v15596
  %15630 = vst [vmem:[%s15617 + $0x60] sm:$0xff] %v15597
  %15631 = vst [vmem:[%s15617 + $0x68] sm:$0xff] %v15598
  %15632 = vst [vmem:[%s15617 + $0x70] sm:$0xff] %v15599
  %15633 = vst [vmem:[%s15617 + $0x78] sm:$0xff] %v15600
  %15634 = vst [vmem:[%s15617 + $0x80] sm:$0xff] %v15601
  %15635 = vst [vmem:[%s15617 + $0x88] sm:$0xff] %v15602
  %15636 = vst [vmem:[%s15617 + $0x90] sm:$0xff] %v15603
  %15637 = vst [vmem:[%s15617 + $0x98] sm:$0xff] %v15604
  %15638 = vst [vmem:[%s15617 + $0xa0] sm:$0xff] %v15605
  %15639 = vst [vmem:[%s15617 + $0xa8] sm:$0xff] %v15606
  %15640 = vst [vmem:[%s15617 + $0xb0] sm:$0xff] %v15607
  %15641 = vst [vmem:[%s15617 + $0xb8] sm:$0xff] %v15608
  %15642 = vst [vmem:[%s15617 + $0xc0] sm:$0xff] %v15609
  %15643 = vst [vmem:[%s15617 + $0xc8] sm:$0xff] %v15610
  %15644 = vst [vmem:[%s15617 + $0xd0] sm:$0xff] %v15611
  %15645 = vst [vmem:[%s15617 + $0xd8] sm:$0xff] %v15612
  %15646 = vst [vmem:[%s15617 + $0xe0] sm:$0xff] %v15613
  %15647 = vst [vmem:[%s15617 + $0xe8] sm:$0xff] %v15614
  %15648 = vst [vmem:[%s15617 + $0xf0] sm:$0xff] %v15615
  %15649 = vst [vmem:[%s15617 + $0xf8] sm:$0xff] %v15616
  // Predicated region
  $region30: #{basic_block_forward.1} parent=0 // pred_check
    _
  $region31: #{basic_block_forward.1} parent=0 // pred_check_branch
    %15651 = sbr.rel (0) target = $region33
  $region32: #{basic_block_forward.1} parent=0 // pred_region
    _
  $region33: #{basic_block_forward.1} parent=0 // pred_fallthru
    _
  // Predicated region
  $region34: #{basic_block_forward.1} parent=0 // pred_check
    _
  $region35: #{basic_block_forward.1} parent=0 // pred_check_branch
    %15653 = sbr.rel (0) target = $region37
  $region36: #{basic_block_forward.1} parent=0 // pred_region
    _
  $region37: #{basic_block_forward.1} parent=0 // pred_fallthru
    _

</llo_original>
